<compile_context>
chip_gen: v6e
topology: v6e:2x2x1
jax: 0.10.0
libtpu: 0.0.40
codegen_flags: <defaults>
</compile_context>

<pallas_src>
import functools

import jax
import jax.numpy as jnp
import numpy as np
from jax.experimental import pallas as pl
from jax.experimental.pallas import tpu as pltpu

_LANES = 128      # TPU lane width: pad all kernel-visible channel dims to this
_NEG = -1e30      # mask for padded class columns (keeps log_softmax exact)


# ----------------------------- Pallas kernels ------------------------------ #

def _conv_pool_block(p, w, b, n):
    """p: (4n, K) pool-phase-stacked im2col patches; w: (K, C); b: (1, C).
    Returns relu(maxpool2x2(conv)) = relu(max over 4 phases + b), shape (n, C)."""
    y = jnp.dot(p, w, preferred_element_type=jnp.float32)     # one MXU call
    m = jnp.maximum(jnp.maximum(y[0:n], y[n:2 * n]),
                    jnp.maximum(y[2 * n:3 * n], y[3 * n:4 * n]))
    return jnp.maximum(m + b, 0.0)     # bias + ReLU hoisted after the phase max


def _conv1_kernel(p_ref, w_ref, b_ref, o_ref, *, n_rows):
    o_ref[...] = _conv_pool_block(p_ref[...], w_ref[...], b_ref[...], n_rows)


def _conv2_fc_kernel(p_ref, w2_ref, b2_ref, w1s_ref, b1_ref, w3_ref, b3_ref,
                     o_ref, *, n_rows, bp, c_valid):
    # conv2 + ReLU + pool; rows are ordered (s = hp*4+wp, b) so a fixed spatial
    # position is a contiguous bp-row block (no strided gathers needed below).
    a2 = _conv_pool_block(p_ref[...], w2_ref[...], b2_ref[...], n_rows)
    a2 = a2[:, :c_valid]                                   # (16*bp, 50)

    # fc1: the PyTorch .view(-1, 800) flatten is folded into w1s[s, c, :];
    # summing the 16 per-position matmuls is exactly x_flat @ W1.
    n_spatial = n_rows // bp
    h = None
    for s in range(n_spatial):
        part = jnp.dot(a2[s * bp:(s + 1) * bp, :], w1s_ref[s],
                       preferred_element_type=jnp.float32)
        h = part if h is None else h + part
    h = jnp.maximum(h + b1_ref[...], 0.0)                  # (bp, 500)

    # fc2 (padded class columns get -1e30 via the bias) + log_softmax.
    logits = jnp.dot(h, w3_ref[...], preferred_element_type=jnp.float32) + b3_ref[...]
    mx = jnp.max(logits, axis=-1, keepdims=True)
    sh = logits - mx
    lse = jnp.log(jnp.sum(jnp.exp(sh), axis=-1, keepdims=True))
    o_ref[...] = sh - lse


# ------------------------------- JAX glue ---------------------------------- #

def _pad_cols(a, n=_LANES):
    pad = n - a.shape[-1]
    if pad <= 0:
        return a
    return jnp.pad(a, [(0, 0)] * (a.ndim - 1) + [(0, pad)])


def _conv1(x, w, b):
    """x: (B,1,28,28) NCHW -> relu(maxpool(conv1)) as NHWC (B,12,12,20)."""
    B = x.shape[0]
    Hp = Wp = (x.shape[2] - 5 + 1) // 2                    # 12
    n = B * Hp * Wp                                        # 288 (multiple of 8)
    # One fused im2col op; feature order is (cin, kh, kw) == OIHW flatten.
    pt = jax.lax.conv_general_dilated_patches(
        x, filter_shape=(5, 5), window_strides=(1, 1), padding="VALID",
        dimension_numbers=("NCHW", "OIHW", "NHWC"),
        precision=jax.lax.Precision.HIGHEST)               # (B, 24, 24, 25)
    K = pt.shape[-1]
    phases = [pt[:, di::2, dj::2, :].reshape(n, K)
              for di in range(2) for dj in range(2)]
    p = jnp.concatenate(phases, axis=0)                    # (4n, 25)

    wmat = _pad_cols(w.reshape(w.shape[0], -1).T)          # (25, 128), zero-padded
    bmat = _pad_cols(b.reshape(1, -1))                     # (1, 128)

    out = pl.pallas_call(
        functools.partial(_conv1_kernel, n_rows=n),
        out_shape=jax.ShapeDtypeStruct((n, _LANES), jnp.float32),
        grid=(1,),
        in_specs=[
            pl.BlockSpec((4 * n, K), lambda i: (0, 0)),
            pl.BlockSpec((K, _LANES), lambda i: (0, 0)),
            pl.BlockSpec((1, _LANES), lambda i: (0, 0)),
        ],
        out_specs=pl.BlockSpec((n, _LANES), lambda i: (0, 0)),
        compiler_params=pltpu.CompilerParams(dimension_semantics=("arbitrary",)),
    )(p, wmat, bmat)
    # NHWC, valid channels only (padded channels are exactly zero).
    return out.reshape(B, Hp, Wp, _LANES)[:, :, :, :w.shape[0]]


def _conv2_fc(a1, w2, b2, fc1_w, fc1_b, fc2_w, fc2_b):
    """a1: (B,12,12,20) NHWC -> log_softmax logits (B, 10)."""
    B = a1.shape[0]
    Bp = ((B + 7) // 8) * 8                                # pad batch to 8 sublanes
    if Bp != B:
        a1 = jnp.pad(a1, ((0, Bp - B), (0, 0), (0, 0), (0, 0)))
    Hp = Wp = (a1.shape[1] - 5 + 1) // 2                   # 4
    s_cnt = Hp * Wp                                        # 16
    n = s_cnt * Bp                                         # 128
    cout = w2.shape[0]                                     # 50
    hdim = fc1_w.shape[1]                                  # 500
    odim = fc2_w.shape[1]                                  # 10

    pt = jax.lax.conv_general_dilated_patches(
        a1, filter_shape=(5, 5), window_strides=(1, 1), padding="VALID",
        dimension_numbers=("NHWC", "HWIO", "NHWC"),
        precision=jax.lax.Precision.HIGHEST)               # (Bp, 8, 8, 500)
    K = pt.shape[-1]                                       # 500
    # Row order (hp, wp, b): fixed spatial position s is a contiguous Bp-row block.
    phases = [jnp.transpose(pt[:, di::2, dj::2, :], (1, 2, 0, 3)).reshape(n, K)
              for di in range(2) for dj in range(2)]
    p = jnp.concatenate(phases, axis=0)                    # (4n, 500)

    w2mat = _pad_cols(w2.reshape(cout, -1).T)              # (500, 128)
    b2mat = _pad_cols(b2.reshape(1, -1))                   # (1, 128)
    # fc1 weight rearranged so w1s[s, c, :] == fc1_w[c*16 + s, :]  (NCHW flatten).
    w1s = fc1_w.reshape(cout, s_cnt, hdim).transpose(1, 0, 2)   # (16, 50, 500)
    b1mat = fc1_b.reshape(1, hdim)
    w3mat = _pad_cols(fc2_w)                               # (500, 128), zero-padded
    b3mat = jnp.concatenate(
        [fc2_b.reshape(1, odim),
         jnp.full((1, _LANES - odim), _NEG, jnp.float32)], axis=1)   # (1, 128)

    out = pl.pallas_call(
        functools.partial(_conv2_fc_kernel, n_rows=n, bp=Bp, c_valid=cout),
        out_shape=jax.ShapeDtypeStruct((Bp, _LANES), jnp.float32),
        grid=(1,),
        in_specs=[
            pl.BlockSpec((4 * n, K), lambda i: (0, 0)),
            pl.BlockSpec((K, _LANES), lambda i: (0, 0)),
            pl.BlockSpec((1, _LANES), lambda i: (0, 0)),
            pl.BlockSpec((s_cnt, cout, hdim), lambda i: (0, 0, 0)),
            pl.BlockSpec((1, hdim), lambda i: (0, 0)),
            pl.BlockSpec((hdim, _LANES), lambda i: (0, 0)),
            pl.BlockSpec((1, _LANES), lambda i: (0, 0)),
        ],
        out_specs=pl.BlockSpec((Bp, _LANES), lambda i: (0, 0)),
        compiler_params=pltpu.CompilerParams(dimension_semantics=("arbitrary",)),
    )(p, w2mat, b2mat, w1s, b1mat, w3mat, b3mat)
    return out[:B, :odim]


def lenet_forward(x, params):
    a1 = _conv1(x, params["conv1_w"], params["conv1_b"])        # (B, 12, 12, 20) NHWC
    return _conv2_fc(a1, params["conv2_w"], params["conv2_b"],
                     params["fc1_w"], params["fc1_b"],
                     params["fc2_w"], params["fc2_b"])          # (B, 10)


# --------------------------- params & reference ---------------------------- #

def init_params(key):
    ks = jax.random.split(key, 8)

    def init(k, shape, fan_in):
        return jax.random.normal(k, shape, jnp.float32) / np.sqrt(fan_in)

    return {
        "conv1_w": init(ks[0], (20, 1, 5, 5), 25),
        "conv1_b": init(ks[1], (20,), 25),
        "conv2_w": init(ks[2], (50, 20, 5, 5), 20 * 25),
        "conv2_b": init(ks[3], (50,), 20 * 25),
        # Linear weights stored pre-transposed: (in, out); y = x @ W + b
        "fc1_w": init(ks[4], (800, 500), 800),
        "fc1_b": init(ks[5], (500,), 800),
        "fc2_w": init(ks[6], (500, 10), 500),
        "fc2_b": init(ks[7], (10,), 500),
    }


def reference_forward(x, params):
    hp = jax.lax.Precision.HIGHEST

    def conv_block(x, w, b):
        y = jax.lax.conv_general_dilated(
            x, w, window_strides=(1, 1), padding="VALID",
            dimension_numbers=("NCHW", "OIHW", "NCHW"), precision=hp)
        y = jnp.maximum(y + b.reshape(1, -1, 1, 1), 0.0)
        return jax.lax.reduce_window(y, -jnp.inf, jax.lax.max,
                                     (1, 1, 2, 2), (1, 1, 2, 2), "VALID")

    y = conv_block(x, params["conv1_w"], params["conv1_b"])
    y = conv_block(y, params["conv2_w"], params["conv2_b"])
    y = y.reshape(y.shape[0], -1)
    h = jnp.maximum(jnp.dot(y, params["fc1_w"], precision=hp) + params["fc1_b"], 0.0)
    logits = jnp.dot(h, params["fc2_w"], precision=hp) + params["fc2_b"]
    return jax.nn.log_softmax(logits, axis=1)


# ---------------------------------- main ------------------------------------ #

if __name__ == "__main__":
    key = jax.random.PRNGKey(0)
    pkey, xkey = jax.random.split(key)
    params = init_params(pkey)

    # LeNet geometry requires 28x28 single-channel input (so flatten is 4*4*50).
    x = jax.random.normal(xkey, (2, 1, 28, 28), jnp.float32)

    out = jax.jit(lenet_forward)(x, params)
    out = jax.block_until_ready(out)

    ref = reference_forward(x, params)
    assert out.shape == (2, 10)
    np.testing.assert_allclose(np.asarray(out), np.asarray(ref),
                               atol=1e-2, rtol=1e-2)
    print("KERNEL_OK")
</pallas_src>

<mosaic_0001>
module attributes {stable_mosaic.version = 11 : i64} {
  func.func @_conv1_kernel(%arg0: i32, %arg1: memref<1152x25xf32, #tpu.memory_space<vmem>>, %arg2: memref<25x128xf32, #tpu.memory_space<vmem>>, %arg3: memref<1x128xf32, #tpu.memory_space<vmem>>, %arg4: memref<288x128xf32, #tpu.memory_space<vmem>>) attributes {dimension_semantics = [#tpu.dimension_semantics<arbitrary>], iteration_bounds = array<i64: 1>, scalar_prefetch = 0 : i64, scratch_operands = 0 : i64, tpu.core_type = #tpu.core_type<tc>, window_params = [{pipeline_mode = #tpu.pipeline_mode<synchronous>, transform_indices = @transform_0, window_bounds = array<i64: 1152, 25>}, {pipeline_mode = #tpu.pipeline_mode<synchronous>, transform_indices = @transform_1, window_bounds = array<i64: 25, 128>}, {pipeline_mode = #tpu.pipeline_mode<synchronous>, transform_indices = @transform_2, window_bounds = array<i64: 1, 128>}, {pipeline_mode = #tpu.pipeline_mode<synchronous>, transform_indices = @transform_3, window_bounds = array<i64: 288, 128>}]} {
    %c0 = arith.constant 0 : index
    %c0_0 = arith.constant 0 : index
    %0 = vector.load %arg1[%c0, %c0_0] : memref<1152x25xf32, #tpu.memory_space<vmem>>, vector<1152x25xf32>
    %c0_1 = arith.constant 0 : index
    %c0_2 = arith.constant 0 : index
    %1 = vector.load %arg2[%c0_1, %c0_2] : memref<25x128xf32, #tpu.memory_space<vmem>>, vector<25x128xf32>
    %c0_3 = arith.constant 0 : index
    %c0_4 = arith.constant 0 : index
    %2 = vector.load %arg3[%c0_3, %c0_4] : memref<1x128xf32, #tpu.memory_space<vmem>>, vector<1x128xf32>
    %cst = arith.constant dense<0.000000e+00> : vector<1152x128xf32>
    %3 = tpu.matmul %0, %1, %cst {dimension_numbers = #tpu.dot_dimension_numbers<[1], [0], [0], [1], [0, 0, 1, 1], [], []>} : vector<1152x25xf32>, vector<25x128xf32>, vector<1152x128xf32> -> vector<1152x128xf32>
    %4 = vector.extract_strided_slice %3 {offsets = [0, 0], sizes = [288, 128], strides = [1, 1]} : vector<1152x128xf32> to vector<288x128xf32>
    %5 = vector.extract_strided_slice %3 {offsets = [288, 0], sizes = [288, 128], strides = [1, 1]} : vector<1152x128xf32> to vector<288x128xf32>
    %6 = arith.maximumf %4, %5 : vector<288x128xf32>
    %7 = vector.extract_strided_slice %3 {offsets = [576, 0], sizes = [288, 128], strides = [1, 1]} : vector<1152x128xf32> to vector<288x128xf32>
    %8 = vector.extract_strided_slice %3 {offsets = [864, 0], sizes = [288, 128], strides = [1, 1]} : vector<1152x128xf32> to vector<288x128xf32>
    %9 = arith.maximumf %7, %8 : vector<288x128xf32>
    %10 = arith.maximumf %6, %9 : vector<288x128xf32>
    %11 = vector.broadcast %2 : vector<1x128xf32> to vector<288x128xf32>
    %12 = arith.addf %10, %11 : vector<288x128xf32>
    %cst_5 = arith.constant 0.000000e+00 : f32
    %13 = vector.broadcast %cst_5 : f32 to vector<288x128xf32>
    %14 = arith.maximumf %12, %13 : vector<288x128xf32>
    %c0_6 = arith.constant 0 : index
    %c0_7 = arith.constant 0 : index
    %15 = vector.load %arg4[%c0_6, %c0_7] : memref<288x128xf32, #tpu.memory_space<vmem>>, vector<288x128xf32>
    tpu.vector_store %arg4[%c0_6, %c0_7], %14 {strides = array<i32>} : memref<288x128xf32, #tpu.memory_space<vmem>>, vector<288x128xf32>,
    return
  }
  func.func @transform_0(%arg0: i32) -> (i32, i32) {
    %c0_i32 = arith.constant 0 : i32
    %c0_i32_0 = arith.constant 0 : i32
    %c0_i32_1 = arith.constant 0 : i32
    return %c0_i32, %c0_i32_0 : i32, i32
  }
  func.func @transform_1(%arg0: i32) -> (i32, i32) {
    %c0_i32 = arith.constant 0 : i32
    %c0_i32_0 = arith.constant 0 : i32
    %c0_i32_1 = arith.constant 0 : i32
    return %c0_i32, %c0_i32_0 : i32, i32
  }
  func.func @transform_2(%arg0: i32) -> (i32, i32) {
    %c0_i32 = arith.constant 0 : i32
    %c0_i32_0 = arith.constant 0 : i32
    %c0_i32_1 = arith.constant 0 : i32
    return %c0_i32, %c0_i32_0 : i32, i32
  }
  func.func @transform_3(%arg0: i32) -> (i32, i32) {
    %c0_i32 = arith.constant 0 : i32
    %c0_i32_0 = arith.constant 0 : i32
    %c0_i32_1 = arith.constant 0 : i32
    return %c0_i32, %c0_i32_0 : i32, i32
  }
}

module attributes {stable_mosaic.version = 11 : i64} {
  func.func @_conv2_fc_kernel(%arg0: i32, %arg1: memref<512x500xf32, #tpu.memory_space<vmem>>, %arg2: memref<500x128xf32, #tpu.memory_space<vmem>>, %arg3: memref<1x128xf32, #tpu.memory_space<vmem>>, %arg4: memref<16x50x500xf32, #tpu.memory_space<vmem>>, %arg5: memref<1x500xf32, #tpu.memory_space<vmem>>, %arg6: memref<500x128xf32, #tpu.memory_space<vmem>>, %arg7: memref<1x128xf32, #tpu.memory_space<vmem>>, %arg8: memref<8x128xf32, #tpu.memory_space<vmem>>) attributes {dimension_semantics = [#tpu.dimension_semantics<arbitrary>], iteration_bounds = array<i64: 1>, scalar_prefetch = 0 : i64, scratch_operands = 0 : i64, tpu.core_type = #tpu.core_type<tc>, window_params = [{pipeline_mode = #tpu.pipeline_mode<synchronous>, transform_indices = @transform_0, window_bounds = array<i64: 512, 500>}, {pipeline_mode = #tpu.pipeline_mode<synchronous>, transform_indices = @transform_1, window_bounds = array<i64: 500, 128>}, {pipeline_mode = #tpu.pipeline_mode<synchronous>, transform_indices = @transform_2, window_bounds = array<i64: 1, 128>}, {pipeline_mode = #tpu.pipeline_mode<synchronous>, transform_indices = @transform_3, window_bounds = array<i64: 16, 50, 500>}, {pipeline_mode = #tpu.pipeline_mode<synchronous>, transform_indices = @transform_4, window_bounds = array<i64: 1, 500>}, {pipeline_mode = #tpu.pipeline_mode<synchronous>, transform_indices = @transform_5, window_bounds = array<i64: 500, 128>}, {pipeline_mode = #tpu.pipeline_mode<synchronous>, transform_indices = @transform_6, window_bounds = array<i64: 1, 128>}, {pipeline_mode = #tpu.pipeline_mode<synchronous>, transform_indices = @transform_7, window_bounds = array<i64: 8, 128>}]} {
    %c0 = arith.constant 0 : index
    %c0_0 = arith.constant 0 : index
    %0 = vector.load %arg1[%c0, %c0_0] : memref<512x500xf32, #tpu.memory_space<vmem>>, vector<512x500xf32>
    %c0_1 = arith.constant 0 : index
    %c0_2 = arith.constant 0 : index
    %1 = vector.load %arg2[%c0_1, %c0_2] : memref<500x128xf32, #tpu.memory_space<vmem>>, vector<500x128xf32>
    %c0_3 = arith.constant 0 : index
    %c0_4 = arith.constant 0 : index
    %2 = vector.load %arg3[%c0_3, %c0_4] : memref<1x128xf32, #tpu.memory_space<vmem>>, vector<1x128xf32>
    %cst = arith.constant dense<0.000000e+00> : vector<512x128xf32>
    %3 = tpu.matmul %0, %1, %cst {dimension_numbers = #tpu.dot_dimension_numbers<[1], [0], [0], [1], [0, 0, 1, 1], [], []>} : vector<512x500xf32>, vector<500x128xf32>, vector<512x128xf32> -> vector<512x128xf32>
    %4 = vector.extract_strided_slice %3 {offsets = [0, 0], sizes = [128, 128], strides = [1, 1]} : vector<512x128xf32> to vector<128x128xf32>
    %5 = vector.extract_strided_slice %3 {offsets = [128, 0], sizes = [128, 128], strides = [1, 1]} : vector<512x128xf32> to vector<128x128xf32>
    %6 = arith.maximumf %4, %5 : vector<128x128xf32>
    %7 = vector.extract_strided_slice %3 {offsets = [256, 0], sizes = [128, 128], strides = [1, 1]} : vector<512x128xf32> to vector<128x128xf32>
    %8 = vector.extract_strided_slice %3 {offsets = [384, 0], sizes = [128, 128], strides = [1, 1]} : vector<512x128xf32> to vector<128x128xf32>
    %9 = arith.maximumf %7, %8 : vector<128x128xf32>
    %10 = arith.maximumf %6, %9 : vector<128x128xf32>
    %11 = vector.broadcast %2 : vector<1x128xf32> to vector<128x128xf32>
    %12 = arith.addf %10, %11 : vector<128x128xf32>
    %cst_5 = arith.constant 0.000000e+00 : f32
    %13 = vector.broadcast %cst_5 : f32 to vector<128x128xf32>
    %14 = arith.maximumf %12, %13 : vector<128x128xf32>
    %15 = vector.extract_strided_slice %14 {offsets = [0, 0], sizes = [128, 50], strides = [1, 1]} : vector<128x128xf32> to vector<128x50xf32>
    %16 = vector.extract_strided_slice %15 {offsets = [0, 0], sizes = [8, 50], strides = [1, 1]} : vector<128x50xf32> to vector<8x50xf32>
    %c0_6 = arith.constant 0 : index
    %c0_7 = arith.constant 0 : index
    %c0_8 = arith.constant 0 : index
    %17 = vector.load %arg4[%c0_6, %c0_7, %c0_8] : memref<16x50x500xf32, #tpu.memory_space<vmem>>, vector<1x50x500xf32>
    %18 = vector.shape_cast %17 : vector<1x50x500xf32> to vector<50x500xf32>
    %cst_9 = arith.constant dense<0.000000e+00> : vector<8x500xf32>
    %19 = tpu.matmul %16, %18, %cst_9 {dimension_numbers = #tpu.dot_dimension_numbers<[1], [0], [0], [1], [0, 0, 1, 1], [], []>} : vector<8x50xf32>, vector<50x500xf32>, vector<8x500xf32> -> vector<8x500xf32>
    %20 = vector.extract_strided_slice %15 {offsets = [8, 0], sizes = [8, 50], strides = [1, 1]} : vector<128x50xf32> to vector<8x50xf32>
    %c1 = arith.constant 1 : index
    %c0_10 = arith.constant 0 : index
    %c0_11 = arith.constant 0 : index
    %21 = vector.load %arg4[%c1, %c0_10, %c0_11] : memref<16x50x500xf32, #tpu.memory_space<vmem>>, vector<1x50x500xf32>
    %22 = vector.shape_cast %21 : vector<1x50x500xf32> to vector<50x500xf32>
    %cst_12 = arith.constant dense<0.000000e+00> : vector<8x500xf32>
    %23 = tpu.matmul %20, %22, %cst_12 {dimension_numbers = #tpu.dot_dimension_numbers<[1], [0], [0], [1], [0, 0, 1, 1], [], []>} : vector<8x50xf32>, vector<50x500xf32>, vector<8x500xf32> -> vector<8x500xf32>
    %24 = arith.addf %19, %23 : vector<8x500xf32>
    %25 = vector.extract_strided_slice %15 {offsets = [16, 0], sizes = [8, 50], strides = [1, 1]} : vector<128x50xf32> to vector<8x50xf32>
    %c2 = arith.constant 2 : index
    %c0_13 = arith.constant 0 : index
    %c0_14 = arith.constant 0 : index
    %26 = vector.load %arg4[%c2, %c0_13, %c0_14] : memref<16x50x500xf32, #tpu.memory_space<vmem>>, vector<1x50x500xf32>
    %27 = vector.shape_cast %26 : vector<1x50x500xf32> to vector<50x500xf32>
    %cst_15 = arith.constant dense<0.000000e+00> : vector<8x500xf32>
    %28 = tpu.matmul %25, %27, %cst_15 {dimension_numbers = #tpu.dot_dimension_numbers<[1], [0], [0], [1], [0, 0, 1, 1], [], []>} : vector<8x50xf32>, vector<50x500xf32>, vector<8x500xf32> -> vector<8x500xf32>
    %29 = arith.addf %24, %28 : vector<8x500xf32>
    %30 = vector.extract_strided_slice %15 {offsets = [24, 0], sizes = [8, 50], strides = [1, 1]} : vector<128x50xf32> to vector<8x50xf32>
    %c3 = arith.constant 3 : index
    %c0_16 = arith.constant 0 : index
    %c0_17 = arith.constant 0 : index
    %31 = vector.load %arg4[%c3, %c0_16, %c0_17] : memref<16x50x500xf32, #tpu.memory_space<vmem>>, vector<1x50x500xf32>
    %32 = vector.shape_cast %31 : vector<1x50x500xf32> to vector<50x500xf32>
    %cst_18 = arith.constant dense<0.000000e+00> : vector<8x500xf32>
    %33 = tpu.matmul %30, %32, %cst_18 {dimension_numbers = #tpu.dot_dimension_numbers<[1], [0], [0], [1], [0, 0, 1, 1], [], []>} : vector<8x50xf32>, vector<50x500xf32>, vector<8x500xf32> -> vector<8x500xf32>
    %34 = arith.addf %29, %33 : vector<8x500xf32>
    %35 = vector.extract_strided_slice %15 {offsets = [32, 0], sizes = [8, 50], strides = [1, 1]} : vector<128x50xf32> to vector<8x50xf32>
    %c4 = arith.constant 4 : index
    %c0_19 = arith.constant 0 : index
    %c0_20 = arith.constant 0 : index
    %36 = vector.load %arg4[%c4, %c0_19, %c0_20] : memref<16x50x500xf32, #tpu.memory_space<vmem>>, vector<1x50x500xf32>
    %37 = vector.shape_cast %36 : vector<1x50x500xf32> to vector<50x500xf32>
    %cst_21 = arith.constant dense<0.000000e+00> : vector<8x500xf32>
    %38 = tpu.matmul %35, %37, %cst_21 {dimension_numbers = #tpu.dot_dimension_numbers<[1], [0], [0], [1], [0, 0, 1, 1], [], []>} : vector<8x50xf32>, vector<50x500xf32>, vector<8x500xf32> -> vector<8x500xf32>
    %39 = arith.addf %34, %38 : vector<8x500xf32>
    %40 = vector.extract_strided_slice %15 {offsets = [40, 0], sizes = [8, 50], strides = [1, 1]} : vector<128x50xf32> to vector<8x50xf32>
    %c5 = arith.constant 5 : index
    %c0_22 = arith.constant 0 : index
    %c0_23 = arith.constant 0 : index
    %41 = vector.load %arg4[%c5, %c0_22, %c0_23] : memref<16x50x500xf32, #tpu.memory_space<vmem>>, vector<1x50x500xf32>
    %42 = vector.shape_cast %41 : vector<1x50x500xf32> to vector<50x500xf32>
    %cst_24 = arith.constant dense<0.000000e+00> : vector<8x500xf32>
    %43 = tpu.matmul %40, %42, %cst_24 {dimension_numbers = #tpu.dot_dimension_numbers<[1], [0], [0], [1], [0, 0, 1, 1], [], []>} : vector<8x50xf32>, vector<50x500xf32>, vector<8x500xf32> -> vector<8x500xf32>
    %44 = arith.addf %39, %43 : vector<8x500xf32>
    %45 = vector.extract_strided_slice %15 {offsets = [48, 0], sizes = [8, 50], strides = [1, 1]} : vector<128x50xf32> to vector<8x50xf32>
    %c6 = arith.constant 6 : index
    %c0_25 = arith.constant 0 : index
    %c0_26 = arith.constant 0 : index
    %46 = vector.load %arg4[%c6, %c0_25, %c0_26] : memref<16x50x500xf32, #tpu.memory_space<vmem>>, vector<1x50x500xf32>
    %47 = vector.shape_cast %46 : vector<1x50x500xf32> to vector<50x500xf32>
    %cst_27 = arith.constant dense<0.000000e+00> : vector<8x500xf32>
    %48 = tpu.matmul %45, %47, %cst_27 {dimension_numbers = #tpu.dot_dimension_numbers<[1], [0], [0], [1], [0, 0, 1, 1], [], []>} : vector<8x50xf32>, vector<50x500xf32>, vector<8x500xf32> -> vector<8x500xf32>
    %49 = arith.addf %44, %48 : vector<8x500xf32>
    %50 = vector.extract_strided_slice %15 {offsets = [56, 0], sizes = [8, 50], strides = [1, 1]} : vector<128x50xf32> to vector<8x50xf32>
    %c7 = arith.constant 7 : index
    %c0_28 = arith.constant 0 : index
    %c0_29 = arith.constant 0 : index
    %51 = vector.load %arg4[%c7, %c0_28, %c0_29] : memref<16x50x500xf32, #tpu.memory_space<vmem>>, vector<1x50x500xf32>
    %52 = vector.shape_cast %51 : vector<1x50x500xf32> to vector<50x500xf32>
    %cst_30 = arith.constant dense<0.000000e+00> : vector<8x500xf32>
    %53 = tpu.matmul %50, %52, %cst_30 {dimension_numbers = #tpu.dot_dimension_numbers<[1], [0], [0], [1], [0, 0, 1, 1], [], []>} : vector<8x50xf32>, vector<50x500xf32>, vector<8x500xf32> -> vector<8x500xf32>
    %54 = arith.addf %49, %53 : vector<8x500xf32>
    %55 = vector.extract_strided_slice %15 {offsets = [64, 0], sizes = [8, 50], strides = [1, 1]} : vector<128x50xf32> to vector<8x50xf32>
    %c8 = arith.constant 8 : index
    %c0_31 = arith.constant 0 : index
    %c0_32 = arith.constant 0 : index
    %56 = vector.load %arg4[%c8, %c0_31, %c0_32] : memref<16x50x500xf32, #tpu.memory_space<vmem>>, vector<1x50x500xf32>
    %57 = vector.shape_cast %56 : vector<1x50x500xf32> to vector<50x500xf32>
    %cst_33 = arith.constant dense<0.000000e+00> : vector<8x500xf32>
    %58 = tpu.matmul %55, %57, %cst_33 {dimension_numbers = #tpu.dot_dimension_numbers<[1], [0], [0], [1], [0, 0, 1, 1], [], []>} : vector<8x50xf32>, vector<50x500xf32>, vector<8x500xf32> -> vector<8x500xf32>
    %59 = arith.addf %54, %58 : vector<8x500xf32>
    %60 = vector.extract_strided_slice %15 {offsets = [72, 0], sizes = [8, 50], strides = [1, 1]} : vector<128x50xf32> to vector<8x50xf32>
    %c9 = arith.constant 9 : index
    %c0_34 = arith.constant 0 : index
    %c0_35 = arith.constant 0 : index
    %61 = vector.load %arg4[%c9, %c0_34, %c0_35] : memref<16x50x500xf32, #tpu.memory_space<vmem>>, vector<1x50x500xf32>
    %62 = vector.shape_cast %61 : vector<1x50x500xf32> to vector<50x500xf32>
    %cst_36 = arith.constant dense<0.000000e+00> : vector<8x500xf32>
    %63 = tpu.matmul %60, %62, %cst_36 {dimension_numbers = #tpu.dot_dimension_numbers<[1], [0], [0], [1], [0, 0, 1, 1], [], []>} : vector<8x50xf32>, vector<50x500xf32>, vector<8x500xf32> -> vector<8x500xf32>
    %64 = arith.addf %59, %63 : vector<8x500xf32>
    %65 = vector.extract_strided_slice %15 {offsets = [80, 0], sizes = [8, 50], strides = [1, 1]} : vector<128x50xf32> to vector<8x50xf32>
    %c10 = arith.constant 10 : index
    %c0_37 = arith.constant 0 : index
    %c0_38 = arith.constant 0 : index
    %66 = vector.load %arg4[%c10, %c0_37, %c0_38] : memref<16x50x500xf32, #tpu.memory_space<vmem>>, vector<1x50x500xf32>
    %67 = vector.shape_cast %66 : vector<1x50x500xf32> to vector<50x500xf32>
    %cst_39 = arith.constant dense<0.000000e+00> : vector<8x500xf32>
    %68 = tpu.matmul %65, %67, %cst_39 {dimension_numbers = #tpu.dot_dimension_numbers<[1], [0], [0], [1], [0, 0, 1, 1], [], []>} : vector<8x50xf32>, vector<50x500xf32>, vector<8x500xf32> -> vector<8x500xf32>
    %69 = arith.addf %64, %68 : vector<8x500xf32>
    %70 = vector.extract_strided_slice %15 {offsets = [88, 0], sizes = [8, 50], strides = [1, 1]} : vector<128x50xf32> to vector<8x50xf32>
    %c11 = arith.constant 11 : index
    %c0_40 = arith.constant 0 : index
    %c0_41 = arith.constant 0 : index
    %71 = vector.load %arg4[%c11, %c0_40, %c0_41] : memref<16x50x500xf32, #tpu.memory_space<vmem>>, vector<1x50x500xf32>
    %72 = vector.shape_cast %71 : vector<1x50x500xf32> to vector<50x500xf32>
    %cst_42 = arith.constant dense<0.000000e+00> : vector<8x500xf32>
    %73 = tpu.matmul %70, %72, %cst_42 {dimension_numbers = #tpu.dot_dimension_numbers<[1], [0], [0], [1], [0, 0, 1, 1], [], []>} : vector<8x50xf32>, vector<50x500xf32>, vector<8x500xf32> -> vector<8x500xf32>
    %74 = arith.addf %69, %73 : vector<8x500xf32>
    %75 = vector.extract_strided_slice %15 {offsets = [96, 0], sizes = [8, 50], strides = [1, 1]} : vector<128x50xf32> to vector<8x50xf32>
    %c12 = arith.constant 12 : index
    %c0_43 = arith.constant 0 : index
    %c0_44 = arith.constant 0 : index
    %76 = vector.load %arg4[%c12, %c0_43, %c0_44] : memref<16x50x500xf32, #tpu.memory_space<vmem>>, vector<1x50x500xf32>
    %77 = vector.shape_cast %76 : vector<1x50x500xf32> to vector<50x500xf32>
    %cst_45 = arith.constant dense<0.000000e+00> : vector<8x500xf32>
    %78 = tpu.matmul %75, %77, %cst_45 {dimension_numbers = #tpu.dot_dimension_numbers<[1], [0], [0], [1], [0, 0, 1, 1], [], []>} : vector<8x50xf32>, vector<50x500xf32>, vector<8x500xf32> -> vector<8x500xf32>
    %79 = arith.addf %74, %78 : vector<8x500xf32>
    %80 = vector.extract_strided_slice %15 {offsets = [104, 0], sizes = [8, 50], strides = [1, 1]} : vector<128x50xf32> to vector<8x50xf32>
    %c13 = arith.constant 13 : index
    %c0_46 = arith.constant 0 : index
    %c0_47 = arith.constant 0 : index
    %81 = vector.load %arg4[%c13, %c0_46, %c0_47] : memref<16x50x500xf32, #tpu.memory_space<vmem>>, vector<1x50x500xf32>
    %82 = vector.shape_cast %81 : vector<1x50x500xf32> to vector<50x500xf32>
    %cst_48 = arith.constant dense<0.000000e+00> : vector<8x500xf32>
    %83 = tpu.matmul %80, %82, %cst_48 {dimension_numbers = #tpu.dot_dimension_numbers<[1], [0], [0], [1], [0, 0, 1, 1], [], []>} : vector<8x50xf32>, vector<50x500xf32>, vector<8x500xf32> -> vector<8x500xf32>
    %84 = arith.addf %79, %83 : vector<8x500xf32>
    %85 = vector.extract_strided_slice %15 {offsets = [112, 0], sizes = [8, 50], strides = [1, 1]} : vector<128x50xf32> to vector<8x50xf32>
    %c14 = arith.constant 14 : index
    %c0_49 = arith.constant 0 : index
    %c0_50 = arith.constant 0 : index
    %86 = vector.load %arg4[%c14, %c0_49, %c0_50] : memref<16x50x500xf32, #tpu.memory_space<vmem>>, vector<1x50x500xf32>
    %87 = vector.shape_cast %86 : vector<1x50x500xf32> to vector<50x500xf32>
    %cst_51 = arith.constant dense<0.000000e+00> : vector<8x500xf32>
    %88 = tpu.matmul %85, %87, %cst_51 {dimension_numbers = #tpu.dot_dimension_numbers<[1], [0], [0], [1], [0, 0, 1, 1], [], []>} : vector<8x50xf32>, vector<50x500xf32>, vector<8x500xf32> -> vector<8x500xf32>
    %89 = arith.addf %84, %88 : vector<8x500xf32>
    %90 = vector.extract_strided_slice %15 {offsets = [120, 0], sizes = [8, 50], strides = [1, 1]} : vector<128x50xf32> to vector<8x50xf32>
    %c15 = arith.constant 15 : index
    %c0_52 = arith.constant 0 : index
    %c0_53 = arith.constant 0 : index
    %91 = vector.load %arg4[%c15, %c0_52, %c0_53] : memref<16x50x500xf32, #tpu.memory_space<vmem>>, vector<1x50x500xf32>
    %92 = vector.shape_cast %91 : vector<1x50x500xf32> to vector<50x500xf32>
    %cst_54 = arith.constant dense<0.000000e+00> : vector<8x500xf32>
    %93 = tpu.matmul %90, %92, %cst_54 {dimension_numbers = #tpu.dot_dimension_numbers<[1], [0], [0], [1], [0, 0, 1, 1], [], []>} : vector<8x50xf32>, vector<50x500xf32>, vector<8x500xf32> -> vector<8x500xf32>
    %94 = arith.addf %89, %93 : vector<8x500xf32>
    %c0_55 = arith.constant 0 : index
    %c0_56 = arith.constant 0 : index
    %95 = vector.load %arg5[%c0_55, %c0_56] : memref<1x500xf32, #tpu.memory_space<vmem>>, vector<1x500xf32>
    %96 = vector.broadcast %95 : vector<1x500xf32> to vector<8x500xf32>
    %97 = arith.addf %94, %96 : vector<8x500xf32>
    %cst_57 = arith.constant 0.000000e+00 : f32
    %98 = vector.broadcast %cst_57 : f32 to vector<8x500xf32>
    %99 = arith.maximumf %97, %98 : vector<8x500xf32>
    %c0_58 = arith.constant 0 : index
    %c0_59 = arith.constant 0 : index
    %100 = vector.load %arg6[%c0_58, %c0_59] : memref<500x128xf32, #tpu.memory_space<vmem>>, vector<500x128xf32>
    %cst_60 = arith.constant dense<0.000000e+00> : vector<8x128xf32>
    %101 = tpu.matmul %99, %100, %cst_60 {dimension_numbers = #tpu.dot_dimension_numbers<[1], [0], [0], [1], [0, 0, 1, 1], [], []>} : vector<8x500xf32>, vector<500x128xf32>, vector<8x128xf32> -> vector<8x128xf32>
    %c0_61 = arith.constant 0 : index
    %c0_62 = arith.constant 0 : index
    %102 = vector.load %arg7[%c0_61, %c0_62] : memref<1x128xf32, #tpu.memory_space<vmem>>, vector<1x128xf32>
    %103 = vector.broadcast %102 : vector<1x128xf32> to vector<8x128xf32>
    %104 = arith.addf %101, %103 : vector<8x128xf32>
    %cst_63 = arith.constant dense<0xFF800000> : vector<8xf32>
    %105 = vector.multi_reduction <maximumf>, %104, %cst_63 [1] : vector<8x128xf32> to vector<8xf32>
    %106 = vector.shape_cast %105 : vector<8xf32> to vector<8x1xf32>
    %107 = vector.broadcast %106 : vector<8x1xf32> to vector<8x128xf32>
    %108 = arith.subf %104, %107 : vector<8x128xf32>
    %109 = math.exp %108 : vector<8x128xf32>
    %cst_64 = arith.constant dense<0.000000e+00> : vector<8xf32>
    %110 = vector.multi_reduction <add>, %109, %cst_64 [1] : vector<8x128xf32> to vector<8xf32>
    %111 = vector.shape_cast %110 : vector<8xf32> to vector<8x1xf32>
    %112 = math.log %111 : vector<8x1xf32>
    %113 = vector.broadcast %112 : vector<8x1xf32> to vector<8x128xf32>
    %114 = arith.subf %108, %113 : vector<8x128xf32>
    %c0_65 = arith.constant 0 : index
    %c0_66 = arith.constant 0 : index
    %115 = vector.load %arg8[%c0_65, %c0_66] : memref<8x128xf32, #tpu.memory_space<vmem>>, vector<8x128xf32>
    tpu.vector_store %arg8[%c0_65, %c0_66], %114 {strides = array<i32>} : memref<8x128xf32, #tpu.memory_space<vmem>>, vector<8x128xf32>,
    return
  }
  func.func @transform_0(%arg0: i32) -> (i32, i32) {
    %c0_i32 = arith.constant 0 : i32
    %c0_i32_0 = arith.constant 0 : i32
    %c0_i32_1 = arith.constant 0 : i32
    return %c0_i32, %c0_i32_0 : i32, i32
  }
  func.func @transform_1(%arg0: i32) -> (i32, i32) {
    %c0_i32 = arith.constant 0 : i32
    %c0_i32_0 = arith.constant 0 : i32
    %c0_i32_1 = arith.constant 0 : i32
    return %c0_i32, %c0_i32_0 : i32, i32
  }
  func.func @transform_2(%arg0: i32) -> (i32, i32) {
    %c0_i32 = arith.constant 0 : i32
    %c0_i32_0 = arith.constant 0 : i32
    %c0_i32_1 = arith.constant 0 : i32
    return %c0_i32, %c0_i32_0 : i32, i32
  }
  func.func @transform_3(%arg0: i32) -> (i32, i32, i32) {
    %c0_i32 = arith.constant 0 : i32
    %c0_i32_0 = arith.constant 0 : i32
    %c0_i32_1 = arith.constant 0 : i32
    %c0_i32_2 = arith.constant 0 : i32
    return %c0_i32, %c0_i32_0, %c0_i32_1 : i32, i32, i32
  }
  func.func @transform_4(%arg0: i32) -> (i32, i32) {
    %c0_i32 = arith.constant 0 : i32
    %c0_i32_0 = arith.constant 0 : i32
    %c0_i32_1 = arith.constant 0 : i32
    return %c0_i32, %c0_i32_0 : i32, i32
  }
  func.func @transform_5(%arg0: i32) -> (i32, i32) {
    %c0_i32 = arith.constant 0 : i32
    %c0_i32_0 = arith.constant 0 : i32
    %c0_i32_1 = arith.constant 0 : i32
    return %c0_i32, %c0_i32_0 : i32, i32
  }
  func.func @transform_6(%arg0: i32) -> (i32, i32) {
    %c0_i32 = arith.constant 0 : i32
    %c0_i32_0 = arith.constant 0 : i32
    %c0_i32_1 = arith.constant 0 : i32
    return %c0_i32, %c0_i32_0 : i32, i32
  }
  func.func @transform_7(%arg0: i32) -> (i32, i32) {
    %c0_i32 = arith.constant 0 : i32
    %c0_i32_0 = arith.constant 0 : i32
    %c0_i32_1 = arith.constant 0 : i32
    return %c0_i32, %c0_i32_0 : i32, i32
  }
}

</mosaic_0001>

<llo_original>
// kernel: lenet_forward.2
$region0: #{lenet_forward.2}
  #allocation0 [shape = 'u32[]', space=smem, size = 0x4, offset = 0x4, fixed_abs, tag = 'smem constant byte address 0x4 - core index']
  #allocation1 [shape = 'u32[144,128]{1,0:T(1,128)}', space=vmem, size = 0x12000, scoped, tag = 'internal scratch']
  %s0 = inlined_call_operand.vmem [shape: f32[1152,25], index: 0, kind: input, shape index: {}]
  %s1 = inlined_call_operand.vmem [shape: f32[25,128], index: 1, kind: input, shape index: {}]
  %s2 = inlined_call_operand.vmem [shape: f32[1,128], index: 2, kind: input, shape index: {}]
  %s3 = inlined_call_operand.vmem [shape: f32[288,128], index: 3, kind: output, shape index: {}]
  %s4 = sld [smem:[#allocation0]]
  $region22: #{lenet_forward.2} parent=0
    _
  %s6 = ssub.s32 1, %s4
  %s7 = scalar_select 0, %s6, %s4
  // Predicated region
  $region2: #{lenet_forward.2} parent=0 // pred_check
    _
  $region3: #{lenet_forward.2} parent=0 // pred_check_branch
    %9 = sbr.rel (0) target = $region5
  $region4: #{lenet_forward.2} parent=0 // pred_region
    _
  $region5: #{lenet_forward.2} parent=0 // pred_fallthru
    _
  // Predicated region
  $region6: #{lenet_forward.2} parent=0 // pred_check
    _
  $region7: #{lenet_forward.2} parent=0 // pred_check_branch
    %11 = sbr.rel (0) target = $region9
  $region8: #{lenet_forward.2} parent=0 // pred_region
    _
  $region9: #{lenet_forward.2} parent=0 // pred_fallthru
    _
  // Predicated region
  $region10: #{lenet_forward.2} parent=0 // pred_check
    _
  $region11: #{lenet_forward.2} parent=0 // pred_check_branch
    %13 = sbr.rel (0) target = $region13
  $region12: #{lenet_forward.2} parent=0 // pred_region
    _
  $region13: #{lenet_forward.2} parent=0 // pred_fallthru
    _
  %v14 = vld [vmem:[%s0] sm:$0xff]
  %v15 = vld [vmem:[%s0 + $0x8] sm:$0xff]
  %v16 = vld [vmem:[%s0 + $0x10] sm:$0xff]
  %v17 = vld [vmem:[%s0 + $0x18] sm:$0xff]
  %v18 = vld [vmem:[%s0 + $0x20] sm:$0xff]
  %v19 = vld [vmem:[%s0 + $0x28] sm:$0xff]
  %v20 = vld [vmem:[%s0 + $0x30] sm:$0xff]
  %v21 = vld [vmem:[%s0 + $0x38] sm:$0xff]
  %v22 = vld [vmem:[%s0 + $0x40] sm:$0xff]
  %v23 = vld [vmem:[%s0 + $0x48] sm:$0xff]
  %v24 = vld [vmem:[%s0 + $0x50] sm:$0xff]
  %v25 = vld [vmem:[%s0 + $0x58] sm:$0xff]
  %v26 = vld [vmem:[%s0 + $0x60] sm:$0xff]
  %v27 = vld [vmem:[%s0 + $0x68] sm:$0xff]
  %v28 = vld [vmem:[%s0 + $0x70] sm:$0xff]
  %v29 = vld [vmem:[%s0 + $0x78] sm:$0xff]
  %v30 = vld [vmem:[%s0 + $0x80] sm:$0xff]
  %v31 = vld [vmem:[%s0 + $0x88] sm:$0xff]
  %v32 = vld [vmem:[%s0 + $0x90] sm:$0xff]
  %v33 = vld [vmem:[%s0 + $0x98] sm:$0xff]
  %v34 = vld [vmem:[%s0 + $0xa0] sm:$0xff]
  %v35 = vld [vmem:[%s0 + $0xa8] sm:$0xff]
  %v36 = vld [vmem:[%s0 + $0xb0] sm:$0xff]
  %v37 = vld [vmem:[%s0 + $0xb8] sm:$0xff]
  %v38 = vld [vmem:[%s0 + $0xc0] sm:$0xff]
  %v39 = vld [vmem:[%s0 + $0xc8] sm:$0xff]
  %v40 = vld [vmem:[%s0 + $0xd0] sm:$0xff]
  %v41 = vld [vmem:[%s0 + $0xd8] sm:$0xff]
  %v42 = vld [vmem:[%s0 + $0xe0] sm:$0xff]
  %v43 = vld [vmem:[%s0 + $0xe8] sm:$0xff]
  %v44 = vld [vmem:[%s0 + $0xf0] sm:$0xff]
  %v45 = vld [vmem:[%s0 + $0xf8] sm:$0xff]
  %v46 = vld [vmem:[%s0 + $0x100] sm:$0xff]
  %v47 = vld [vmem:[%s0 + $0x108] sm:$0xff]
  %v48 = vld [vmem:[%s0 + $0x110] sm:$0xff]
  %v49 = vld [vmem:[%s0 + $0x118] sm:$0xff]
  %v50 = vld [vmem:[%s0 + $0x120] sm:$0xff]
  %v51 = vld [vmem:[%s0 + $0x128] sm:$0xff]
  %v52 = vld [vmem:[%s0 + $0x130] sm:$0xff]
  %v53 = vld [vmem:[%s0 + $0x138] sm:$0xff]
  %v54 = vld [vmem:[%s0 + $0x140] sm:$0xff]
  %v55 = vld [vmem:[%s0 + $0x148] sm:$0xff]
  %v56 = vld [vmem:[%s0 + $0x150] sm:$0xff]
  %v57 = vld [vmem:[%s0 + $0x158] sm:$0xff]
  %v58 = vld [vmem:[%s0 + $0x160] sm:$0xff]
  %v59 = vld [vmem:[%s0 + $0x168] sm:$0xff]
  %v60 = vld [vmem:[%s0 + $0x170] sm:$0xff]
  %v61 = vld [vmem:[%s0 + $0x178] sm:$0xff]
  %v62 = vld [vmem:[%s0 + $0x180] sm:$0xff]
  %v63 = vld [vmem:[%s0 + $0x188] sm:$0xff]
  %v64 = vld [vmem:[%s0 + $0x190] sm:$0xff]
  %v65 = vld [vmem:[%s0 + $0x198] sm:$0xff]
  %v66 = vld [vmem:[%s0 + $0x1a0] sm:$0xff]
  %v67 = vld [vmem:[%s0 + $0x1a8] sm:$0xff]
  %v68 = vld [vmem:[%s0 + $0x1b0] sm:$0xff]
  %v69 = vld [vmem:[%s0 + $0x1b8] sm:$0xff]
  %v70 = vld [vmem:[%s0 + $0x1c0] sm:$0xff]
  %v71 = vld [vmem:[%s0 + $0x1c8] sm:$0xff]
  %v72 = vld [vmem:[%s0 + $0x1d0] sm:$0xff]
  %v73 = vld [vmem:[%s0 + $0x1d8] sm:$0xff]
  %v74 = vld [vmem:[%s0 + $0x1e0] sm:$0xff]
  %v75 = vld [vmem:[%s0 + $0x1e8] sm:$0xff]
  %v76 = vld [vmem:[%s0 + $0x1f0] sm:$0xff]
  %v77 = vld [vmem:[%s0 + $0x1f8] sm:$0xff]
  %v78 = vld [vmem:[%s0 + $0x200] sm:$0xff]
  %v79 = vld [vmem:[%s0 + $0x208] sm:$0xff]
  %v80 = vld [vmem:[%s0 + $0x210] sm:$0xff]
  %v81 = vld [vmem:[%s0 + $0x218] sm:$0xff]
  %v82 = vld [vmem:[%s0 + $0x220] sm:$0xff]
  %v83 = vld [vmem:[%s0 + $0x228] sm:$0xff]
  %v84 = vld [vmem:[%s0 + $0x230] sm:$0xff]
  %v85 = vld [vmem:[%s0 + $0x238] sm:$0xff]
  %v86 = vld [vmem:[%s0 + $0x240] sm:$0xff]
  %v87 = vld [vmem:[%s0 + $0x248] sm:$0xff]
  %v88 = vld [vmem:[%s0 + $0x250] sm:$0xff]
  %v89 = vld [vmem:[%s0 + $0x258] sm:$0xff]
  %v90 = vld [vmem:[%s0 + $0x260] sm:$0xff]
  %v91 = vld [vmem:[%s0 + $0x268] sm:$0xff]
  %v92 = vld [vmem:[%s0 + $0x270] sm:$0xff]
  %v93 = vld [vmem:[%s0 + $0x278] sm:$0xff]
  %v94 = vld [vmem:[%s0 + $0x280] sm:$0xff]
  %v95 = vld [vmem:[%s0 + $0x288] sm:$0xff]
  %v96 = vld [vmem:[%s0 + $0x290] sm:$0xff]
  %v97 = vld [vmem:[%s0 + $0x298] sm:$0xff]
  %v98 = vld [vmem:[%s0 + $0x2a0] sm:$0xff]
  %v99 = vld [vmem:[%s0 + $0x2a8] sm:$0xff]
  %v100 = vld [vmem:[%s0 + $0x2b0] sm:$0xff]
  %v101 = vld [vmem:[%s0 + $0x2b8] sm:$0xff]
  %v102 = vld [vmem:[%s0 + $0x2c0] sm:$0xff]
  %v103 = vld [vmem:[%s0 + $0x2c8] sm:$0xff]
  %v104 = vld [vmem:[%s0 + $0x2d0] sm:$0xff]
  %v105 = vld [vmem:[%s0 + $0x2d8] sm:$0xff]
  %v106 = vld [vmem:[%s0 + $0x2e0] sm:$0xff]
  %v107 = vld [vmem:[%s0 + $0x2e8] sm:$0xff]
  %v108 = vld [vmem:[%s0 + $0x2f0] sm:$0xff]
  %v109 = vld [vmem:[%s0 + $0x2f8] sm:$0xff]
  %v110 = vld [vmem:[%s0 + $0x300] sm:$0xff]
  %v111 = vld [vmem:[%s0 + $0x308] sm:$0xff]
  %v112 = vld [vmem:[%s0 + $0x310] sm:$0xff]
  %v113 = vld [vmem:[%s0 + $0x318] sm:$0xff]
  %v114 = vld [vmem:[%s0 + $0x320] sm:$0xff]
  %v115 = vld [vmem:[%s0 + $0x328] sm:$0xff]
  %v116 = vld [vmem:[%s0 + $0x330] sm:$0xff]
  %v117 = vld [vmem:[%s0 + $0x338] sm:$0xff]
  %v118 = vld [vmem:[%s0 + $0x340] sm:$0xff]
  %v119 = vld [vmem:[%s0 + $0x348] sm:$0xff]
  %v120 = vld [vmem:[%s0 + $0x350] sm:$0xff]
  %v121 = vld [vmem:[%s0 + $0x358] sm:$0xff]
  %v122 = vld [vmem:[%s0 + $0x360] sm:$0xff]
  %v123 = vld [vmem:[%s0 + $0x368] sm:$0xff]
  %v124 = vld [vmem:[%s0 + $0x370] sm:$0xff]
  %v125 = vld [vmem:[%s0 + $0x378] sm:$0xff]
  %v126 = vld [vmem:[%s0 + $0x380] sm:$0xff]
  %v127 = vld [vmem:[%s0 + $0x388] sm:$0xff]
  %v128 = vld [vmem:[%s0 + $0x390] sm:$0xff]
  %v129 = vld [vmem:[%s0 + $0x398] sm:$0xff]
  %v130 = vld [vmem:[%s0 + $0x3a0] sm:$0xff]
  %v131 = vld [vmem:[%s0 + $0x3a8] sm:$0xff]
  %v132 = vld [vmem:[%s0 + $0x3b0] sm:$0xff]
  %v133 = vld [vmem:[%s0 + $0x3b8] sm:$0xff]
  %v134 = vld [vmem:[%s0 + $0x3c0] sm:$0xff]
  %v135 = vld [vmem:[%s0 + $0x3c8] sm:$0xff]
  %v136 = vld [vmem:[%s0 + $0x3d0] sm:$0xff]
  %v137 = vld [vmem:[%s0 + $0x3d8] sm:$0xff]
  %v138 = vld [vmem:[%s0 + $0x3e0] sm:$0xff]
  %v139 = vld [vmem:[%s0 + $0x3e8] sm:$0xff]
  %v140 = vld [vmem:[%s0 + $0x3f0] sm:$0xff]
  %v141 = vld [vmem:[%s0 + $0x3f8] sm:$0xff]
  %v142 = vld [vmem:[%s0 + $0x400] sm:$0xff]
  %v143 = vld [vmem:[%s0 + $0x408] sm:$0xff]
  %v144 = vld [vmem:[%s0 + $0x410] sm:$0xff]
  %v145 = vld [vmem:[%s0 + $0x418] sm:$0xff]
  %v146 = vld [vmem:[%s0 + $0x420] sm:$0xff]
  %v147 = vld [vmem:[%s0 + $0x428] sm:$0xff]
  %v148 = vld [vmem:[%s0 + $0x430] sm:$0xff]
  %v149 = vld [vmem:[%s0 + $0x438] sm:$0xff]
  %v150 = vld [vmem:[%s0 + $0x440] sm:$0xff]
  %v151 = vld [vmem:[%s0 + $0x448] sm:$0xff]
  %v152 = vld [vmem:[%s0 + $0x450] sm:$0xff]
  %v153 = vld [vmem:[%s0 + $0x458] sm:$0xff]
  %v154 = vld [vmem:[%s0 + $0x460] sm:$0xff]
  %v155 = vld [vmem:[%s0 + $0x468] sm:$0xff]
  %v156 = vld [vmem:[%s0 + $0x470] sm:$0xff]
  %v157 = vld [vmem:[%s0 + $0x478] sm:$0xff]
  %v158 = vld [vmem:[%s1] sm:$0xff]
  %v159 = vld [vmem:[%s1 + $0x8] sm:$0xff]
  %v160 = vld [vmem:[%s1 + $0x10] sm:$0xff]
  %v161 = vld [vmem:[%s1 + $0x18] sm:$0x1]
  %v162 = vld [vmem:[%s2] sm:$0x1]
  %vm163 = vcmask 203776
  %v165 = vsel %vm163, %v14, 0
  %v168 = vsel %vm163, %v15, 0
  %v171 = vsel %vm163, %v16, 0
  %v174 = vsel %vm163, %v17, 0
  %v177 = vsel %vm163, %v18, 0
  %v180 = vsel %vm163, %v19, 0
  %v183 = vsel %vm163, %v20, 0
  %v186 = vsel %vm163, %v21, 0
  %v189 = vsel %vm163, %v22, 0
  %v192 = vsel %vm163, %v23, 0
  %v195 = vsel %vm163, %v24, 0
  %v198 = vsel %vm163, %v25, 0
  %v201 = vsel %vm163, %v26, 0
  %v204 = vsel %vm163, %v27, 0
  %v207 = vsel %vm163, %v28, 0
  %v210 = vsel %vm163, %v29, 0
  %v213 = vsel %vm163, %v30, 0
  %v216 = vsel %vm163, %v31, 0
  %v219 = vsel %vm163, %v32, 0
  %v222 = vsel %vm163, %v33, 0
  %v225 = vsel %vm163, %v34, 0
  %v228 = vsel %vm163, %v35, 0
  %v231 = vsel %vm163, %v36, 0
  %v234 = vsel %vm163, %v37, 0
  %v237 = vsel %vm163, %v38, 0
  %v240 = vsel %vm163, %v39, 0
  %v243 = vsel %vm163, %v40, 0
  %v246 = vsel %vm163, %v41, 0
  %v249 = vsel %vm163, %v42, 0
  %v252 = vsel %vm163, %v43, 0
  %v255 = vsel %vm163, %v44, 0
  %v258 = vsel %vm163, %v45, 0
  %v261 = vsel %vm163, %v46, 0
  %v264 = vsel %vm163, %v47, 0
  %v267 = vsel %vm163, %v48, 0
  %v270 = vsel %vm163, %v49, 0
  %v273 = vsel %vm163, %v50, 0
  %v276 = vsel %vm163, %v51, 0
  %v279 = vsel %vm163, %v52, 0
  %v282 = vsel %vm163, %v53, 0
  %v285 = vsel %vm163, %v54, 0
  %v288 = vsel %vm163, %v55, 0
  %v291 = vsel %vm163, %v56, 0
  %v294 = vsel %vm163, %v57, 0
  %v297 = vsel %vm163, %v58, 0
  %v300 = vsel %vm163, %v59, 0
  %v303 = vsel %vm163, %v60, 0
  %v306 = vsel %vm163, %v61, 0
  %v309 = vsel %vm163, %v62, 0
  %v312 = vsel %vm163, %v63, 0
  %v315 = vsel %vm163, %v64, 0
  %v318 = vsel %vm163, %v65, 0
  %v321 = vsel %vm163, %v66, 0
  %v324 = vsel %vm163, %v67, 0
  %v327 = vsel %vm163, %v68, 0
  %v330 = vsel %vm163, %v69, 0
  %v333 = vsel %vm163, %v70, 0
  %v336 = vsel %vm163, %v71, 0
  %v339 = vsel %vm163, %v72, 0
  %v342 = vsel %vm163, %v73, 0
  %v345 = vsel %vm163, %v74, 0
  %v348 = vsel %vm163, %v75, 0
  %v351 = vsel %vm163, %v76, 0
  %v354 = vsel %vm163, %v77, 0
  %v357 = vsel %vm163, %v78, 0
  %v360 = vsel %vm163, %v79, 0
  %v363 = vsel %vm163, %v80, 0
  %v366 = vsel %vm163, %v81, 0
  %v369 = vsel %vm163, %v82, 0
  %v372 = vsel %vm163, %v83, 0
  %v375 = vsel %vm163, %v84, 0
  %v378 = vsel %vm163, %v85, 0
  %v381 = vsel %vm163, %v86, 0
  %v384 = vsel %vm163, %v87, 0
  %v387 = vsel %vm163, %v88, 0
  %v390 = vsel %vm163, %v89, 0
  %v393 = vsel %vm163, %v90, 0
  %v396 = vsel %vm163, %v91, 0
  %v399 = vsel %vm163, %v92, 0
  %v402 = vsel %vm163, %v93, 0
  %v405 = vsel %vm163, %v94, 0
  %v408 = vsel %vm163, %v95, 0
  %v411 = vsel %vm163, %v96, 0
  %v414 = vsel %vm163, %v97, 0
  %v417 = vsel %vm163, %v98, 0
  %v420 = vsel %vm163, %v99, 0
  %v423 = vsel %vm163, %v100, 0
  %v426 = vsel %vm163, %v101, 0
  %v429 = vsel %vm163, %v102, 0
  %v432 = vsel %vm163, %v103, 0
  %v435 = vsel %vm163, %v104, 0
  %v438 = vsel %vm163, %v105, 0
  %v441 = vsel %vm163, %v106, 0
  %v444 = vsel %vm163, %v107, 0
  %v447 = vsel %vm163, %v108, 0
  %v450 = vsel %vm163, %v109, 0
  %v453 = vsel %vm163, %v110, 0
  %v456 = vsel %vm163, %v111, 0
  %v459 = vsel %vm163, %v112, 0
  %v462 = vsel %vm163, %v113, 0
  %v465 = vsel %vm163, %v114, 0
  %v468 = vsel %vm163, %v115, 0
  %v471 = vsel %vm163, %v116, 0
  %v474 = vsel %vm163, %v117, 0
  %v477 = vsel %vm163, %v118, 0
  %v480 = vsel %vm163, %v119, 0
  %v483 = vsel %vm163, %v120, 0
  %v486 = vsel %vm163, %v121, 0
  %v489 = vsel %vm163, %v122, 0
  %v492 = vsel %vm163, %v123, 0
  %v495 = vsel %vm163, %v124, 0
  %v498 = vsel %vm163, %v125, 0
  %v501 = vsel %vm163, %v126, 0
  %v504 = vsel %vm163, %v127, 0
  %v507 = vsel %vm163, %v128, 0
  %v510 = vsel %vm163, %v129, 0
  %v513 = vsel %vm163, %v130, 0
  %v516 = vsel %vm163, %v131, 0
  %v519 = vsel %vm163, %v132, 0
  %v522 = vsel %vm163, %v133, 0
  %v525 = vsel %vm163, %v134, 0
  %v528 = vsel %vm163, %v135, 0
  %v531 = vsel %vm163, %v136, 0
  %v534 = vsel %vm163, %v137, 0
  %v537 = vsel %vm163, %v138, 0
  %v540 = vsel %vm163, %v139, 0
  %v543 = vsel %vm163, %v140, 0
  %v546 = vsel %vm163, %v141, 0
  %v549 = vsel %vm163, %v142, 0
  %v552 = vsel %vm163, %v143, 0
  %v555 = vsel %vm163, %v144, 0
  %v558 = vsel %vm163, %v145, 0
  %v561 = vsel %vm163, %v146, 0
  %v564 = vsel %vm163, %v147, 0
  %v567 = vsel %vm163, %v148, 0
  %v570 = vsel %vm163, %v149, 0
  %v573 = vsel %vm163, %v150, 0
  %v576 = vsel %vm163, %v151, 0
  %v579 = vsel %vm163, %v152, 0
  %v582 = vsel %vm163, %v153, 0
  %v585 = vsel %vm163, %v154, 0
  %v588 = vsel %vm163, %v155, 0
  %v591 = vsel %vm163, %v156, 0
  %v594 = vsel %vm163, %v157, 0
  %vm596 = vcmask 1040384
  %v598 = vsel %vm596, %v161, 0
  %600 = vmatprep.subr.mxu0 0.0
  %601 = vmatpush1.msra.mxu0 0.0
  %602 = vmatprep.subr.mxu0 0.0
  %603 = vmatpush1.msra.mxu0 0.0
  %604 = vmatprep.subr.mxu0 0.0
  %605 = vmatpush1.msra.mxu0 0.0
  %606 = vmatprep.subr.mxu0 0.0
  %607 = vmatpush1.msra.mxu0 0.0
  %608 = vmatprep.subr.mxu0 0.0
  %609 = vmatpush1.msra.mxu0 0.0
  %610 = vmatprep.subr.mxu0 0.0
  %611 = vmatpush1.msra.mxu0 0.0
  %612 = vmatprep.subr.mxu0 0.0
  %613 = vmatpush1.msra.mxu0 0.0
  %614 = vmatprep.subr.mxu0 0.0
  %615 = vmatpush1.msra.mxu0 0.0
  %616 = vmatprep.subr.mxu0 0.0
  %617 = vmatpush1.msra.mxu0 0.0
  %618 = vmatprep.subr.mxu0 0.0
  %619 = vmatpush1.msra.mxu0 0.0
  %620 = vmatprep.subr.mxu0 0.0
  %621 = vmatpush1.msra.mxu0 0.0
  %622 = vmatprep.subr.mxu0 0.0
  %623 = vmatpush1.msra.mxu0 0.0
  %624 = vmatprep.subr.mxu0 0.0
  %625 = vmatpush1.msra.mxu0 %v598
  %626 = vmatprep.subr.mxu0 0.0
  %627 = vmatpush1.msra.mxu0 %v160
  %628 = vmatprep.subr.mxu0 0.0
  %629 = vmatpush1.msra.mxu0 %v159
  %630 = vmatprep.subr.mxu0 0.0
  %631 = vmatpush1.msra.mxu0 %v158
  %632 = vmatprep.subr.mxu0 0.0
  %633 = vmatpush2.msra.mxu0 0.0
  %634 = vmatprep.subr.mxu0 0.0
  %635 = vmatpush2.msra.mxu0 0.0
  %636 = vmatprep.subr.mxu0 0.0
  %637 = vmatpush2.msra.mxu0 0.0
  %638 = vmatprep.subr.mxu0 0.0
  %639 = vmatpush2.msra.mxu0 0.0
  %640 = vmatprep.subr.mxu0 0.0
  %641 = vmatpush2.msra.mxu0 0.0
  %642 = vmatprep.subr.mxu0 0.0
  %643 = vmatpush2.msra.mxu0 0.0
  %644 = vmatprep.subr.mxu0 0.0
  %645 = vmatpush2.msra.mxu0 0.0
  %646 = vmatprep.subr.mxu0 0.0
  %647 = vmatpush2.msra.mxu0 0.0
  %648 = vmatprep.subr.mxu0 0.0
  %649 = vmatpush2.msra.mxu0 0.0
  %650 = vmatprep.subr.mxu0 0.0
  %651 = vmatpush2.msra.mxu0 0.0
  %652 = vmatprep.subr.mxu0 0.0
  %653 = vmatpush2.msra.mxu0 0.0
  %654 = vmatprep.subr.mxu0 0.0
  %655 = vmatpush2.msra.mxu0 0.0
  %656 = vmatprep.subr.mxu0 0.0
  %657 = vmatpush2.msra.mxu0 0.0
  %658 = vmatprep.subr.mxu0 0.0
  %659 = vmatpush2.msra.mxu0 0.0
  %660 = vmatprep.subr.mxu0 0.0
  %661 = vmatpush2.msra.mxu0 0.0
  %662 = vmatprep.subr.mxu0 0.0
  %663 = vmatpush2.msra.mxu0 0.0
  %664 = vmatprep.mubr.f32.mxu0 0.0
  %665 = vmatmul.mubr.f32.gmra.mxu0 %v165
  %v666 = vpop.f32.mrf.mxu0
  %v667 = vadd.f32 0.0, %v666
  %v668 = vpop.f32.mrf.mxu0
  %669 = vmatprep.mubr.f32.mxu0 0.0
  %670 = vmatmul.mubr.f32.gmra.mxu0 %v168
  %v671 = vpop.f32.mrf.mxu0
  %v672 = vadd.f32 0.0, %v671
  %v673 = vpop.f32.mrf.mxu0
  %674 = vmatprep.mubr.f32.mxu0 0.0
  %675 = vmatmul.mubr.f32.gmra.mxu0 %v171
  %v676 = vpop.f32.mrf.mxu0
  %v677 = vadd.f32 0.0, %v676
  %v678 = vpop.f32.mrf.mxu0
  %679 = vmatprep.mubr.f32.mxu0 0.0
  %680 = vmatmul.mubr.f32.gmra.mxu0 %v174
  %v681 = vpop.f32.mrf.mxu0
  %v682 = vadd.f32 0.0, %v681
  %v683 = vpop.f32.mrf.mxu0
  %684 = vmatprep.mubr.f32.mxu0 0.0
  %685 = vmatmul.mubr.f32.gmra.mxu0 %v177
  %v686 = vpop.f32.mrf.mxu0
  %v687 = vadd.f32 0.0, %v686
  %v688 = vpop.f32.mrf.mxu0
  %689 = vmatprep.mubr.f32.mxu0 0.0
  %690 = vmatmul.mubr.f32.gmra.mxu0 %v180
  %v691 = vpop.f32.mrf.mxu0
  %v692 = vadd.f32 0.0, %v691
  %v693 = vpop.f32.mrf.mxu0
  %694 = vmatprep.mubr.f32.mxu0 0.0
  %695 = vmatmul.mubr.f32.gmra.mxu0 %v183
  %v696 = vpop.f32.mrf.mxu0
  %v697 = vadd.f32 0.0, %v696
  %v698 = vpop.f32.mrf.mxu0
  %699 = vmatprep.mubr.f32.mxu0 0.0
  %700 = vmatmul.mubr.f32.gmra.mxu0 %v186
  %v701 = vpop.f32.mrf.mxu0
  %v702 = vadd.f32 0.0, %v701
  %v703 = vpop.f32.mrf.mxu0
  %704 = vmatprep.mubr.f32.mxu0 0.0
  %705 = vmatmul.mubr.f32.gmra.mxu0 %v189
  %v706 = vpop.f32.mrf.mxu0
  %v707 = vadd.f32 0.0, %v706
  %v708 = vpop.f32.mrf.mxu0
  %709 = vmatprep.mubr.f32.mxu0 0.0
  %710 = vmatmul.mubr.f32.gmra.mxu0 %v192
  %v711 = vpop.f32.mrf.mxu0
  %v712 = vadd.f32 0.0, %v711
  %v713 = vpop.f32.mrf.mxu0
  %714 = vmatprep.mubr.f32.mxu0 0.0
  %715 = vmatmul.mubr.f32.gmra.mxu0 %v195
  %v716 = vpop.f32.mrf.mxu0
  %v717 = vadd.f32 0.0, %v716
  %v718 = vpop.f32.mrf.mxu0
  %719 = vmatprep.mubr.f32.mxu0 0.0
  %720 = vmatmul.mubr.f32.gmra.mxu0 %v198
  %v721 = vpop.f32.mrf.mxu0
  %v722 = vadd.f32 0.0, %v721
  %v723 = vpop.f32.mrf.mxu0
  %724 = vmatprep.mubr.f32.mxu0 0.0
  %725 = vmatmul.mubr.f32.gmra.mxu0 %v201
  %v726 = vpop.f32.mrf.mxu0
  %v727 = vadd.f32 0.0, %v726
  %v728 = vpop.f32.mrf.mxu0
  %729 = vmatprep.mubr.f32.mxu0 0.0
  %730 = vmatmul.mubr.f32.gmra.mxu0 %v204
  %v731 = vpop.f32.mrf.mxu0
  %v732 = vadd.f32 0.0, %v731
  %v733 = vpop.f32.mrf.mxu0
  %734 = vmatprep.mubr.f32.mxu0 0.0
  %735 = vmatmul.mubr.f32.gmra.mxu0 %v207
  %v736 = vpop.f32.mrf.mxu0
  %v737 = vadd.f32 0.0, %v736
  %v738 = vpop.f32.mrf.mxu0
  %739 = vmatprep.mubr.f32.mxu0 0.0
  %740 = vmatmul.mubr.f32.gmra.mxu0 %v210
  %v741 = vpop.f32.mrf.mxu0
  %v742 = vadd.f32 0.0, %v741
  %v743 = vpop.f32.mrf.mxu0
  %744 = vmatprep.mubr.f32.mxu0 0.0
  %745 = vmatmul.mubr.f32.gmra.mxu0 %v213
  %v746 = vpop.f32.mrf.mxu0
  %v747 = vadd.f32 0.0, %v746
  %v748 = vpop.f32.mrf.mxu0
  %749 = vmatprep.mubr.f32.mxu0 0.0
  %750 = vmatmul.mubr.f32.gmra.mxu0 %v216
  %v751 = vpop.f32.mrf.mxu0
  %v752 = vadd.f32 0.0, %v751
  %v753 = vpop.f32.mrf.mxu0
  %754 = vmatprep.mubr.f32.mxu0 0.0
  %755 = vmatmul.mubr.f32.gmra.mxu0 %v219
  %v756 = vpop.f32.mrf.mxu0
  %v757 = vadd.f32 0.0, %v756
  %v758 = vpop.f32.mrf.mxu0
  %759 = vmatprep.mubr.f32.mxu0 0.0
  %760 = vmatmul.mubr.f32.gmra.mxu0 %v222
  %v761 = vpop.f32.mrf.mxu0
  %v762 = vadd.f32 0.0, %v761
  %v763 = vpop.f32.mrf.mxu0
  %764 = vmatprep.mubr.f32.mxu0 0.0
  %765 = vmatmul.mubr.f32.gmra.mxu0 %v225
  %v766 = vpop.f32.mrf.mxu0
  %v767 = vadd.f32 0.0, %v766
  %v768 = vpop.f32.mrf.mxu0
  %769 = vmatprep.mubr.f32.mxu0 0.0
  %770 = vmatmul.mubr.f32.gmra.mxu0 %v228
  %v771 = vpop.f32.mrf.mxu0
  %v772 = vadd.f32 0.0, %v771
  %v773 = vpop.f32.mrf.mxu0
  %774 = vmatprep.mubr.f32.mxu0 0.0
  %775 = vmatmul.mubr.f32.gmra.mxu0 %v231
  %v776 = vpop.f32.mrf.mxu0
  %v777 = vadd.f32 0.0, %v776
  %v778 = vpop.f32.mrf.mxu0
  %779 = vmatprep.mubr.f32.mxu0 0.0
  %780 = vmatmul.mubr.f32.gmra.mxu0 %v234
  %v781 = vpop.f32.mrf.mxu0
  %v782 = vadd.f32 0.0, %v781
  %v783 = vpop.f32.mrf.mxu0
  %784 = vmatprep.mubr.f32.mxu0 0.0
  %785 = vmatmul.mubr.f32.gmra.mxu0 %v237
  %v786 = vpop.f32.mrf.mxu0
  %v787 = vadd.f32 0.0, %v786
  %v788 = vpop.f32.mrf.mxu0
  %789 = vmatprep.mubr.f32.mxu0 0.0
  %790 = vmatmul.mubr.f32.gmra.mxu0 %v240
  %v791 = vpop.f32.mrf.mxu0
  %v792 = vadd.f32 0.0, %v791
  %v793 = vpop.f32.mrf.mxu0
  %794 = vmatprep.mubr.f32.mxu0 0.0
  %795 = vmatmul.mubr.f32.gmra.mxu0 %v243
  %v796 = vpop.f32.mrf.mxu0
  %v797 = vadd.f32 0.0, %v796
  %v798 = vpop.f32.mrf.mxu0
  %799 = vmatprep.mubr.f32.mxu0 0.0
  %800 = vmatmul.mubr.f32.gmra.mxu0 %v246
  %v801 = vpop.f32.mrf.mxu0
  %v802 = vadd.f32 0.0, %v801
  %v803 = vpop.f32.mrf.mxu0
  %804 = vmatprep.mubr.f32.mxu0 0.0
  %805 = vmatmul.mubr.f32.gmra.mxu0 %v249
  %v806 = vpop.f32.mrf.mxu0
  %v807 = vadd.f32 0.0, %v806
  %v808 = vpop.f32.mrf.mxu0
  %809 = vmatprep.mubr.f32.mxu0 0.0
  %810 = vmatmul.mubr.f32.gmra.mxu0 %v252
  %v811 = vpop.f32.mrf.mxu0
  %v812 = vadd.f32 0.0, %v811
  %v813 = vpop.f32.mrf.mxu0
  %814 = vmatprep.mubr.f32.mxu0 0.0
  %815 = vmatmul.mubr.f32.gmra.mxu0 %v255
  %v816 = vpop.f32.mrf.mxu0
  %v817 = vadd.f32 0.0, %v816
  %v818 = vpop.f32.mrf.mxu0
  %819 = vmatprep.mubr.f32.mxu0 0.0
  %820 = vmatmul.mubr.f32.gmra.mxu0 %v258
  %v821 = vpop.f32.mrf.mxu0
  %v822 = vadd.f32 0.0, %v821
  %v823 = vpop.f32.mrf.mxu0
  %824 = vmatprep.mubr.f32.mxu0 0.0
  %825 = vmatmul.mubr.f32.gmra.mxu0 %v261
  %v826 = vpop.f32.mrf.mxu0
  %v827 = vadd.f32 0.0, %v826
  %v828 = vpop.f32.mrf.mxu0
  %829 = vmatprep.mubr.f32.mxu0 0.0
  %830 = vmatmul.mubr.f32.gmra.mxu0 %v264
  %v831 = vpop.f32.mrf.mxu0
  %v832 = vadd.f32 0.0, %v831
  %v833 = vpop.f32.mrf.mxu0
  %834 = vmatprep.mubr.f32.mxu0 0.0
  %835 = vmatmul.mubr.f32.gmra.mxu0 %v267
  %v836 = vpop.f32.mrf.mxu0
  %v837 = vadd.f32 0.0, %v836
  %v838 = vpop.f32.mrf.mxu0
  %839 = vmatprep.mubr.f32.mxu0 0.0
  %840 = vmatmul.mubr.f32.gmra.mxu0 %v270
  %v841 = vpop.f32.mrf.mxu0
  %v842 = vadd.f32 0.0, %v841
  %v843 = vpop.f32.mrf.mxu0
  %844 = vmatprep.mubr.f32.mxu0 0.0
  %845 = vmatmul.mubr.f32.gmra.mxu0 %v273
  %v846 = vpop.f32.mrf.mxu0
  %v847 = vadd.f32 0.0, %v846
  %v848 = vpop.f32.mrf.mxu0
  %849 = vmatprep.mubr.f32.mxu0 0.0
  %850 = vmatmul.mubr.f32.gmra.mxu0 %v276
  %v851 = vpop.f32.mrf.mxu0
  %v852 = vadd.f32 0.0, %v851
  %v853 = vpop.f32.mrf.mxu0
  %854 = vmatprep.mubr.f32.mxu0 0.0
  %855 = vmatmul.mubr.f32.gmra.mxu0 %v279
  %v856 = vpop.f32.mrf.mxu0
  %v857 = vadd.f32 0.0, %v856
  %v858 = vpop.f32.mrf.mxu0
  %859 = vmatprep.mubr.f32.mxu0 0.0
  %860 = vmatmul.mubr.f32.gmra.mxu0 %v282
  %v861 = vpop.f32.mrf.mxu0
  %v862 = vadd.f32 0.0, %v861
  %v863 = vpop.f32.mrf.mxu0
  %864 = vmatprep.mubr.f32.mxu0 0.0
  %865 = vmatmul.mubr.f32.gmra.mxu0 %v285
  %v866 = vpop.f32.mrf.mxu0
  %v867 = vadd.f32 0.0, %v866
  %v868 = vpop.f32.mrf.mxu0
  %869 = vmatprep.mubr.f32.mxu0 0.0
  %870 = vmatmul.mubr.f32.gmra.mxu0 %v288
  %v871 = vpop.f32.mrf.mxu0
  %v872 = vadd.f32 0.0, %v871
  %v873 = vpop.f32.mrf.mxu0
  %874 = vmatprep.mubr.f32.mxu0 0.0
  %875 = vmatmul.mubr.f32.gmra.mxu0 %v291
  %v876 = vpop.f32.mrf.mxu0
  %v877 = vadd.f32 0.0, %v876
  %v878 = vpop.f32.mrf.mxu0
  %879 = vmatprep.mubr.f32.mxu0 0.0
  %880 = vmatmul.mubr.f32.gmra.mxu0 %v294
  %v881 = vpop.f32.mrf.mxu0
  %v882 = vadd.f32 0.0, %v881
  %v883 = vpop.f32.mrf.mxu0
  %884 = vmatprep.mubr.f32.mxu0 0.0
  %885 = vmatmul.mubr.f32.gmra.mxu0 %v297
  %v886 = vpop.f32.mrf.mxu0
  %v887 = vadd.f32 0.0, %v886
  %v888 = vpop.f32.mrf.mxu0
  %889 = vmatprep.mubr.f32.mxu0 0.0
  %890 = vmatmul.mubr.f32.gmra.mxu0 %v300
  %v891 = vpop.f32.mrf.mxu0
  %v892 = vadd.f32 0.0, %v891
  %v893 = vpop.f32.mrf.mxu0
  %894 = vmatprep.mubr.f32.mxu0 0.0
  %895 = vmatmul.mubr.f32.gmra.mxu0 %v303
  %v896 = vpop.f32.mrf.mxu0
  %v897 = vadd.f32 0.0, %v896
  %v898 = vpop.f32.mrf.mxu0
  %899 = vmatprep.mubr.f32.mxu0 0.0
  %900 = vmatmul.mubr.f32.gmra.mxu0 %v306
  %v901 = vpop.f32.mrf.mxu0
  %v902 = vadd.f32 0.0, %v901
  %v903 = vpop.f32.mrf.mxu0
  %904 = vmatprep.mubr.f32.mxu0 0.0
  %905 = vmatmul.mubr.f32.gmra.mxu0 %v309
  %v906 = vpop.f32.mrf.mxu0
  %v907 = vadd.f32 0.0, %v906
  %v908 = vpop.f32.mrf.mxu0
  %909 = vmatprep.mubr.f32.mxu0 0.0
  %910 = vmatmul.mubr.f32.gmra.mxu0 %v312
  %v911 = vpop.f32.mrf.mxu0
  %v912 = vadd.f32 0.0, %v911
  %v913 = vpop.f32.mrf.mxu0
  %914 = vmatprep.mubr.f32.mxu0 0.0
  %915 = vmatmul.mubr.f32.gmra.mxu0 %v315
  %v916 = vpop.f32.mrf.mxu0
  %v917 = vadd.f32 0.0, %v916
  %v918 = vpop.f32.mrf.mxu0
  %919 = vmatprep.mubr.f32.mxu0 0.0
  %920 = vmatmul.mubr.f32.gmra.mxu0 %v318
  %v921 = vpop.f32.mrf.mxu0
  %v922 = vadd.f32 0.0, %v921
  %v923 = vpop.f32.mrf.mxu0
  %924 = vmatprep.mubr.f32.mxu0 0.0
  %925 = vmatmul.mubr.f32.gmra.mxu0 %v321
  %v926 = vpop.f32.mrf.mxu0
  %v927 = vadd.f32 0.0, %v926
  %v928 = vpop.f32.mrf.mxu0
  %929 = vmatprep.mubr.f32.mxu0 0.0
  %930 = vmatmul.mubr.f32.gmra.mxu0 %v324
  %v931 = vpop.f32.mrf.mxu0
  %v932 = vadd.f32 0.0, %v931
  %v933 = vpop.f32.mrf.mxu0
  %934 = vmatprep.mubr.f32.mxu0 0.0
  %935 = vmatmul.mubr.f32.gmra.mxu0 %v327
  %v936 = vpop.f32.mrf.mxu0
  %v937 = vadd.f32 0.0, %v936
  %v938 = vpop.f32.mrf.mxu0
  %939 = vmatprep.mubr.f32.mxu0 0.0
  %940 = vmatmul.mubr.f32.gmra.mxu0 %v330
  %v941 = vpop.f32.mrf.mxu0
  %v942 = vadd.f32 0.0, %v941
  %v943 = vpop.f32.mrf.mxu0
  %944 = vmatprep.mubr.f32.mxu0 0.0
  %945 = vmatmul.mubr.f32.gmra.mxu0 %v333
  %v946 = vpop.f32.mrf.mxu0
  %v947 = vadd.f32 0.0, %v946
  %v948 = vpop.f32.mrf.mxu0
  %949 = vmatprep.mubr.f32.mxu0 0.0
  %950 = vmatmul.mubr.f32.gmra.mxu0 %v336
  %v951 = vpop.f32.mrf.mxu0
  %v952 = vadd.f32 0.0, %v951
  %v953 = vpop.f32.mrf.mxu0
  %954 = vmatprep.mubr.f32.mxu0 0.0
  %955 = vmatmul.mubr.f32.gmra.mxu0 %v339
  %v956 = vpop.f32.mrf.mxu0
  %v957 = vadd.f32 0.0, %v956
  %v958 = vpop.f32.mrf.mxu0
  %959 = vmatprep.mubr.f32.mxu0 0.0
  %960 = vmatmul.mubr.f32.gmra.mxu0 %v342
  %v961 = vpop.f32.mrf.mxu0
  %v962 = vadd.f32 0.0, %v961
  %v963 = vpop.f32.mrf.mxu0
  %964 = vmatprep.mubr.f32.mxu0 0.0
  %965 = vmatmul.mubr.f32.gmra.mxu0 %v345
  %v966 = vpop.f32.mrf.mxu0
  %v967 = vadd.f32 0.0, %v966
  %v968 = vpop.f32.mrf.mxu0
  %969 = vmatprep.mubr.f32.mxu0 0.0
  %970 = vmatmul.mubr.f32.gmra.mxu0 %v348
  %v971 = vpop.f32.mrf.mxu0
  %v972 = vadd.f32 0.0, %v971
  %v973 = vpop.f32.mrf.mxu0
  %974 = vmatprep.mubr.f32.mxu0 0.0
  %975 = vmatmul.mubr.f32.gmra.mxu0 %v351
  %v976 = vpop.f32.mrf.mxu0
  %v977 = vadd.f32 0.0, %v976
  %v978 = vpop.f32.mrf.mxu0
  %979 = vmatprep.mubr.f32.mxu0 0.0
  %980 = vmatmul.mubr.f32.gmra.mxu0 %v354
  %v981 = vpop.f32.mrf.mxu0
  %v982 = vadd.f32 0.0, %v981
  %v983 = vpop.f32.mrf.mxu0
  %984 = vmatprep.mubr.f32.mxu0 0.0
  %985 = vmatmul.mubr.f32.gmra.mxu0 %v357
  %v986 = vpop.f32.mrf.mxu0
  %v987 = vadd.f32 0.0, %v986
  %v988 = vpop.f32.mrf.mxu0
  %989 = vmatprep.mubr.f32.mxu0 0.0
  %990 = vmatmul.mubr.f32.gmra.mxu0 %v360
  %v991 = vpop.f32.mrf.mxu0
  %v992 = vadd.f32 0.0, %v991
  %v993 = vpop.f32.mrf.mxu0
  %994 = vmatprep.mubr.f32.mxu0 0.0
  %995 = vmatmul.mubr.f32.gmra.mxu0 %v363
  %v996 = vpop.f32.mrf.mxu0
  %v997 = vadd.f32 0.0, %v996
  %v998 = vpop.f32.mrf.mxu0
  %999 = vmatprep.mubr.f32.mxu0 0.0
  %1000 = vmatmul.mubr.f32.gmra.mxu0 %v366
  %v1001 = vpop.f32.mrf.mxu0
  %v1002 = vadd.f32 0.0, %v1001
  %v1003 = vpop.f32.mrf.mxu0
  %1004 = vmatprep.mubr.f32.mxu0 0.0
  %1005 = vmatmul.mubr.f32.gmra.mxu0 %v369
  %v1006 = vpop.f32.mrf.mxu0
  %v1007 = vadd.f32 0.0, %v1006
  %v1008 = vpop.f32.mrf.mxu0
  %1009 = vmatprep.mubr.f32.mxu0 0.0
  %1010 = vmatmul.mubr.f32.gmra.mxu0 %v372
  %v1011 = vpop.f32.mrf.mxu0
  %v1012 = vadd.f32 0.0, %v1011
  %v1013 = vpop.f32.mrf.mxu0
  %1014 = vmatprep.mubr.f32.mxu0 0.0
  %1015 = vmatmul.mubr.f32.gmra.mxu0 %v375
  %v1016 = vpop.f32.mrf.mxu0
  %v1017 = vadd.f32 0.0, %v1016
  %v1018 = vpop.f32.mrf.mxu0
  %1019 = vmatprep.mubr.f32.mxu0 0.0
  %1020 = vmatmul.mubr.f32.gmra.mxu0 %v378
  %v1021 = vpop.f32.mrf.mxu0
  %v1022 = vadd.f32 0.0, %v1021
  %v1023 = vpop.f32.mrf.mxu0
  %1024 = vmatprep.mubr.f32.mxu0 0.0
  %1025 = vmatmul.mubr.f32.gmra.mxu0 %v381
  %v1026 = vpop.f32.mrf.mxu0
  %v1027 = vadd.f32 0.0, %v1026
  %v1028 = vpop.f32.mrf.mxu0
  %1029 = vmatprep.mubr.f32.mxu0 0.0
  %1030 = vmatmul.mubr.f32.gmra.mxu0 %v384
  %v1031 = vpop.f32.mrf.mxu0
  %v1032 = vadd.f32 0.0, %v1031
  %v1033 = vpop.f32.mrf.mxu0
  %1034 = vmatprep.mubr.f32.mxu0 0.0
  %1035 = vmatmul.mubr.f32.gmra.mxu0 %v387
  %v1036 = vpop.f32.mrf.mxu0
  %v1037 = vadd.f32 0.0, %v1036
  %v1038 = vpop.f32.mrf.mxu0
  %1039 = vmatprep.mubr.f32.mxu0 0.0
  %1040 = vmatmul.mubr.f32.gmra.mxu0 %v390
  %v1041 = vpop.f32.mrf.mxu0
  %v1042 = vadd.f32 0.0, %v1041
  %v1043 = vpop.f32.mrf.mxu0
  %1044 = vmatprep.mubr.f32.mxu0 0.0
  %1045 = vmatmul.mubr.f32.gmra.mxu0 %v393
  %v1046 = vpop.f32.mrf.mxu0
  %v1047 = vadd.f32 0.0, %v1046
  %v1048 = vpop.f32.mrf.mxu0
  %1049 = vmatprep.mubr.f32.mxu0 0.0
  %1050 = vmatmul.mubr.f32.gmra.mxu0 %v396
  %v1051 = vpop.f32.mrf.mxu0
  %v1052 = vadd.f32 0.0, %v1051
  %v1053 = vpop.f32.mrf.mxu0
  %1054 = vmatprep.mubr.f32.mxu0 0.0
  %1055 = vmatmul.mubr.f32.gmra.mxu0 %v399
  %v1056 = vpop.f32.mrf.mxu0
  %v1057 = vadd.f32 0.0, %v1056
  %v1058 = vpop.f32.mrf.mxu0
  %1059 = vmatprep.mubr.f32.mxu0 0.0
  %1060 = vmatmul.mubr.f32.gmra.mxu0 %v402
  %v1061 = vpop.f32.mrf.mxu0
  %v1062 = vadd.f32 0.0, %v1061
  %v1063 = vpop.f32.mrf.mxu0
  %1064 = vmatprep.mubr.f32.mxu0 0.0
  %1065 = vmatmul.mubr.f32.gmra.mxu0 %v405
  %v1066 = vpop.f32.mrf.mxu0
  %v1067 = vadd.f32 0.0, %v1066
  %v1068 = vpop.f32.mrf.mxu0
  %1069 = vmatprep.mubr.f32.mxu0 0.0
  %1070 = vmatmul.mubr.f32.gmra.mxu0 %v408
  %v1071 = vpop.f32.mrf.mxu0
  %v1072 = vadd.f32 0.0, %v1071
  %v1073 = vpop.f32.mrf.mxu0
  %1074 = vmatprep.mubr.f32.mxu0 0.0
  %1075 = vmatmul.mubr.f32.gmra.mxu0 %v411
  %v1076 = vpop.f32.mrf.mxu0
  %v1077 = vadd.f32 0.0, %v1076
  %v1078 = vpop.f32.mrf.mxu0
  %1079 = vmatprep.mubr.f32.mxu0 0.0
  %1080 = vmatmul.mubr.f32.gmra.mxu0 %v414
  %v1081 = vpop.f32.mrf.mxu0
  %v1082 = vadd.f32 0.0, %v1081
  %v1083 = vpop.f32.mrf.mxu0
  %1084 = vmatprep.mubr.f32.mxu0 0.0
  %1085 = vmatmul.mubr.f32.gmra.mxu0 %v417
  %v1086 = vpop.f32.mrf.mxu0
  %v1087 = vadd.f32 0.0, %v1086
  %v1088 = vpop.f32.mrf.mxu0
  %1089 = vmatprep.mubr.f32.mxu0 0.0
  %1090 = vmatmul.mubr.f32.gmra.mxu0 %v420
  %v1091 = vpop.f32.mrf.mxu0
  %v1092 = vadd.f32 0.0, %v1091
  %v1093 = vpop.f32.mrf.mxu0
  %1094 = vmatprep.mubr.f32.mxu0 0.0
  %1095 = vmatmul.mubr.f32.gmra.mxu0 %v423
  %v1096 = vpop.f32.mrf.mxu0
  %v1097 = vadd.f32 0.0, %v1096
  %v1098 = vpop.f32.mrf.mxu0
  %1099 = vmatprep.mubr.f32.mxu0 0.0
  %1100 = vmatmul.mubr.f32.gmra.mxu0 %v426
  %v1101 = vpop.f32.mrf.mxu0
  %v1102 = vadd.f32 0.0, %v1101
  %v1103 = vpop.f32.mrf.mxu0
  %1104 = vmatprep.mubr.f32.mxu0 0.0
  %1105 = vmatmul.mubr.f32.gmra.mxu0 %v429
  %v1106 = vpop.f32.mrf.mxu0
  %v1107 = vadd.f32 0.0, %v1106
  %v1108 = vpop.f32.mrf.mxu0
  %1109 = vmatprep.mubr.f32.mxu0 0.0
  %1110 = vmatmul.mubr.f32.gmra.mxu0 %v432
  %v1111 = vpop.f32.mrf.mxu0
  %v1112 = vadd.f32 0.0, %v1111
  %v1113 = vpop.f32.mrf.mxu0
  %1114 = vmatprep.mubr.f32.mxu0 0.0
  %1115 = vmatmul.mubr.f32.gmra.mxu0 %v435
  %v1116 = vpop.f32.mrf.mxu0
  %v1117 = vadd.f32 0.0, %v1116
  %v1118 = vpop.f32.mrf.mxu0
  %1119 = vmatprep.mubr.f32.mxu0 0.0
  %1120 = vmatmul.mubr.f32.gmra.mxu0 %v438
  %v1121 = vpop.f32.mrf.mxu0
  %v1122 = vadd.f32 0.0, %v1121
  %v1123 = vpop.f32.mrf.mxu0
  %1124 = vmatprep.mubr.f32.mxu0 0.0
  %1125 = vmatmul.mubr.f32.gmra.mxu0 %v441
  %v1126 = vpop.f32.mrf.mxu0
  %v1127 = vadd.f32 0.0, %v1126
  %v1128 = vpop.f32.mrf.mxu0
  %1129 = vmatprep.mubr.f32.mxu0 0.0
  %1130 = vmatmul.mubr.f32.gmra.mxu0 %v444
  %v1131 = vpop.f32.mrf.mxu0
  %v1132 = vadd.f32 0.0, %v1131
  %v1133 = vpop.f32.mrf.mxu0
  %1134 = vmatprep.mubr.f32.mxu0 0.0
  %1135 = vmatmul.mubr.f32.gmra.mxu0 %v447
  %v1136 = vpop.f32.mrf.mxu0
  %v1137 = vadd.f32 0.0, %v1136
  %v1138 = vpop.f32.mrf.mxu0
  %1139 = vmatprep.mubr.f32.mxu0 0.0
  %1140 = vmatmul.mubr.f32.gmra.mxu0 %v450
  %v1141 = vpop.f32.mrf.mxu0
  %v1142 = vadd.f32 0.0, %v1141
  %v1143 = vpop.f32.mrf.mxu0
  %1144 = vmatprep.mubr.f32.mxu0 0.0
  %1145 = vmatmul.mubr.f32.gmra.mxu0 %v453
  %v1146 = vpop.f32.mrf.mxu0
  %v1147 = vadd.f32 0.0, %v1146
  %v1148 = vpop.f32.mrf.mxu0
  %1149 = vmatprep.mubr.f32.mxu0 0.0
  %1150 = vmatmul.mubr.f32.gmra.mxu0 %v456
  %v1151 = vpop.f32.mrf.mxu0
  %v1152 = vadd.f32 0.0, %v1151
  %v1153 = vpop.f32.mrf.mxu0
  %1154 = vmatprep.mubr.f32.mxu0 0.0
  %1155 = vmatmul.mubr.f32.gmra.mxu0 %v459
  %v1156 = vpop.f32.mrf.mxu0
  %v1157 = vadd.f32 0.0, %v1156
  %v1158 = vpop.f32.mrf.mxu0
  %1159 = vmatprep.mubr.f32.mxu0 0.0
  %1160 = vmatmul.mubr.f32.gmra.mxu0 %v462
  %v1161 = vpop.f32.mrf.mxu0
  %v1162 = vadd.f32 0.0, %v1161
  %v1163 = vpop.f32.mrf.mxu0
  %1164 = vmatprep.mubr.f32.mxu0 0.0
  %1165 = vmatmul.mubr.f32.gmra.mxu0 %v465
  %v1166 = vpop.f32.mrf.mxu0
  %v1167 = vadd.f32 0.0, %v1166
  %v1168 = vpop.f32.mrf.mxu0
  %1169 = vmatprep.mubr.f32.mxu0 0.0
  %1170 = vmatmul.mubr.f32.gmra.mxu0 %v468
  %v1171 = vpop.f32.mrf.mxu0
  %v1172 = vadd.f32 0.0, %v1171
  %v1173 = vpop.f32.mrf.mxu0
  %1174 = vmatprep.mubr.f32.mxu0 0.0
  %1175 = vmatmul.mubr.f32.gmra.mxu0 %v471
  %v1176 = vpop.f32.mrf.mxu0
  %v1177 = vadd.f32 0.0, %v1176
  %v1178 = vpop.f32.mrf.mxu0
  %1179 = vmatprep.mubr.f32.mxu0 0.0
  %1180 = vmatmul.mubr.f32.gmra.mxu0 %v474
  %v1181 = vpop.f32.mrf.mxu0
  %v1182 = vadd.f32 0.0, %v1181
  %v1183 = vpop.f32.mrf.mxu0
  %1184 = vmatprep.mubr.f32.mxu0 0.0
  %1185 = vmatmul.mubr.f32.gmra.mxu0 %v477
  %v1186 = vpop.f32.mrf.mxu0
  %v1187 = vadd.f32 0.0, %v1186
  %v1188 = vpop.f32.mrf.mxu0
  %1189 = vmatprep.mubr.f32.mxu0 0.0
  %1190 = vmatmul.mubr.f32.gmra.mxu0 %v480
  %v1191 = vpop.f32.mrf.mxu0
  %v1192 = vadd.f32 0.0, %v1191
  %v1193 = vpop.f32.mrf.mxu0
  %1194 = vmatprep.mubr.f32.mxu0 0.0
  %1195 = vmatmul.mubr.f32.gmra.mxu0 %v483
  %v1196 = vpop.f32.mrf.mxu0
  %v1197 = vadd.f32 0.0, %v1196
  %v1198 = vpop.f32.mrf.mxu0
  %1199 = vmatprep.mubr.f32.mxu0 0.0
  %1200 = vmatmul.mubr.f32.gmra.mxu0 %v486
  %v1201 = vpop.f32.mrf.mxu0
  %v1202 = vadd.f32 0.0, %v1201
  %v1203 = vpop.f32.mrf.mxu0
  %1204 = vmatprep.mubr.f32.mxu0 0.0
  %1205 = vmatmul.mubr.f32.gmra.mxu0 %v489
  %v1206 = vpop.f32.mrf.mxu0
  %v1207 = vadd.f32 0.0, %v1206
  %v1208 = vpop.f32.mrf.mxu0
  %1209 = vmatprep.mubr.f32.mxu0 0.0
  %1210 = vmatmul.mubr.f32.gmra.mxu0 %v492
  %v1211 = vpop.f32.mrf.mxu0
  %v1212 = vadd.f32 0.0, %v1211
  %v1213 = vpop.f32.mrf.mxu0
  %1214 = vmatprep.mubr.f32.mxu0 0.0
  %1215 = vmatmul.mubr.f32.gmra.mxu0 %v495
  %v1216 = vpop.f32.mrf.mxu0
  %v1217 = vadd.f32 0.0, %v1216
  %v1218 = vpop.f32.mrf.mxu0
  %1219 = vmatprep.mubr.f32.mxu0 0.0
  %1220 = vmatmul.mubr.f32.gmra.mxu0 %v498
  %v1221 = vpop.f32.mrf.mxu0
  %v1222 = vadd.f32 0.0, %v1221
  %v1223 = vpop.f32.mrf.mxu0
  %1224 = vmatprep.mubr.f32.mxu0 0.0
  %1225 = vmatmul.mubr.f32.gmra.mxu0 %v501
  %v1226 = vpop.f32.mrf.mxu0
  %v1227 = vadd.f32 0.0, %v1226
  %v1228 = vpop.f32.mrf.mxu0
  %1229 = vmatprep.mubr.f32.mxu0 0.0
  %1230 = vmatmul.mubr.f32.gmra.mxu0 %v504
  %v1231 = vpop.f32.mrf.mxu0
  %v1232 = vadd.f32 0.0, %v1231
  %v1233 = vpop.f32.mrf.mxu0
  %1234 = vmatprep.mubr.f32.mxu0 0.0
  %1235 = vmatmul.mubr.f32.gmra.mxu0 %v507
  %v1236 = vpop.f32.mrf.mxu0
  %v1237 = vadd.f32 0.0, %v1236
  %v1238 = vpop.f32.mrf.mxu0
  %1239 = vmatprep.mubr.f32.mxu0 0.0
  %1240 = vmatmul.mubr.f32.gmra.mxu0 %v510
  %v1241 = vpop.f32.mrf.mxu0
  %v1242 = vadd.f32 0.0, %v1241
  %v1243 = vpop.f32.mrf.mxu0
  %1244 = vmatprep.mubr.f32.mxu0 0.0
  %1245 = vmatmul.mubr.f32.gmra.mxu0 %v513
  %v1246 = vpop.f32.mrf.mxu0
  %v1247 = vadd.f32 0.0, %v1246
  %v1248 = vpop.f32.mrf.mxu0
  %1249 = vmatprep.mubr.f32.mxu0 0.0
  %1250 = vmatmul.mubr.f32.gmra.mxu0 %v516
  %v1251 = vpop.f32.mrf.mxu0
  %v1252 = vadd.f32 0.0, %v1251
  %v1253 = vpop.f32.mrf.mxu0
  %1254 = vmatprep.mubr.f32.mxu0 0.0
  %1255 = vmatmul.mubr.f32.gmra.mxu0 %v519
  %v1256 = vpop.f32.mrf.mxu0
  %v1257 = vadd.f32 0.0, %v1256
  %v1258 = vpop.f32.mrf.mxu0
  %1259 = vmatprep.mubr.f32.mxu0 0.0
  %1260 = vmatmul.mubr.f32.gmra.mxu0 %v522
  %v1261 = vpop.f32.mrf.mxu0
  %v1262 = vadd.f32 0.0, %v1261
  %v1263 = vpop.f32.mrf.mxu0
  %1264 = vmatprep.mubr.f32.mxu0 0.0
  %1265 = vmatmul.mubr.f32.gmra.mxu0 %v525
  %v1266 = vpop.f32.mrf.mxu0
  %v1267 = vadd.f32 0.0, %v1266
  %v1268 = vpop.f32.mrf.mxu0
  %1269 = vmatprep.mubr.f32.mxu0 0.0
  %1270 = vmatmul.mubr.f32.gmra.mxu0 %v528
  %v1271 = vpop.f32.mrf.mxu0
  %v1272 = vadd.f32 0.0, %v1271
  %v1273 = vpop.f32.mrf.mxu0
  %1274 = vmatprep.mubr.f32.mxu0 0.0
  %1275 = vmatmul.mubr.f32.gmra.mxu0 %v531
  %v1276 = vpop.f32.mrf.mxu0
  %v1277 = vadd.f32 0.0, %v1276
  %v1278 = vpop.f32.mrf.mxu0
  %1279 = vmatprep.mubr.f32.mxu0 0.0
  %1280 = vmatmul.mubr.f32.gmra.mxu0 %v534
  %v1281 = vpop.f32.mrf.mxu0
  %v1282 = vadd.f32 0.0, %v1281
  %v1283 = vpop.f32.mrf.mxu0
  %1284 = vmatprep.mubr.f32.mxu0 0.0
  %1285 = vmatmul.mubr.f32.gmra.mxu0 %v537
  %v1286 = vpop.f32.mrf.mxu0
  %v1287 = vadd.f32 0.0, %v1286
  %v1288 = vpop.f32.mrf.mxu0
  %1289 = vmatprep.mubr.f32.mxu0 0.0
  %1290 = vmatmul.mubr.f32.gmra.mxu0 %v540
  %v1291 = vpop.f32.mrf.mxu0
  %v1292 = vadd.f32 0.0, %v1291
  %v1293 = vpop.f32.mrf.mxu0
  %1294 = vmatprep.mubr.f32.mxu0 0.0
  %1295 = vmatmul.mubr.f32.gmra.mxu0 %v543
  %v1296 = vpop.f32.mrf.mxu0
  %v1297 = vadd.f32 0.0, %v1296
  %v1298 = vpop.f32.mrf.mxu0
  %1299 = vmatprep.mubr.f32.mxu0 0.0
  %1300 = vmatmul.mubr.f32.gmra.mxu0 %v546
  %v1301 = vpop.f32.mrf.mxu0
  %v1302 = vadd.f32 0.0, %v1301
  %v1303 = vpop.f32.mrf.mxu0
  %1304 = vmatprep.mubr.f32.mxu0 0.0
  %1305 = vmatmul.mubr.f32.gmra.mxu0 %v549
  %v1306 = vpop.f32.mrf.mxu0
  %v1307 = vadd.f32 0.0, %v1306
  %v1308 = vpop.f32.mrf.mxu0
  %1309 = vmatprep.mubr.f32.mxu0 0.0
  %1310 = vmatmul.mubr.f32.gmra.mxu0 %v552
  %v1311 = vpop.f32.mrf.mxu0
  %v1312 = vadd.f32 0.0, %v1311
  %v1313 = vpop.f32.mrf.mxu0
  %1314 = vmatprep.mubr.f32.mxu0 0.0
  %1315 = vmatmul.mubr.f32.gmra.mxu0 %v555
  %v1316 = vpop.f32.mrf.mxu0
  %v1317 = vadd.f32 0.0, %v1316
  %v1318 = vpop.f32.mrf.mxu0
  %1319 = vmatprep.mubr.f32.mxu0 0.0
  %1320 = vmatmul.mubr.f32.gmra.mxu0 %v558
  %v1321 = vpop.f32.mrf.mxu0
  %v1322 = vadd.f32 0.0, %v1321
  %v1323 = vpop.f32.mrf.mxu0
  %1324 = vmatprep.mubr.f32.mxu0 0.0
  %1325 = vmatmul.mubr.f32.gmra.mxu0 %v561
  %v1326 = vpop.f32.mrf.mxu0
  %v1327 = vadd.f32 0.0, %v1326
  %v1328 = vpop.f32.mrf.mxu0
  %1329 = vmatprep.mubr.f32.mxu0 0.0
  %1330 = vmatmul.mubr.f32.gmra.mxu0 %v564
  %v1331 = vpop.f32.mrf.mxu0
  %v1332 = vadd.f32 0.0, %v1331
  %v1333 = vpop.f32.mrf.mxu0
  %1334 = vmatprep.mubr.f32.mxu0 0.0
  %1335 = vmatmul.mubr.f32.gmra.mxu0 %v567
  %v1336 = vpop.f32.mrf.mxu0
  %v1337 = vadd.f32 0.0, %v1336
  %v1338 = vpop.f32.mrf.mxu0
  %1339 = vmatprep.mubr.f32.mxu0 0.0
  %1340 = vmatmul.mubr.f32.gmra.mxu0 %v570
  %v1341 = vpop.f32.mrf.mxu0
  %v1342 = vadd.f32 0.0, %v1341
  %v1343 = vpop.f32.mrf.mxu0
  %1344 = vmatprep.mubr.f32.mxu0 0.0
  %1345 = vmatmul.mubr.f32.gmra.mxu0 %v573
  %v1346 = vpop.f32.mrf.mxu0
  %v1347 = vadd.f32 0.0, %v1346
  %v1348 = vpop.f32.mrf.mxu0
  %1349 = vmatprep.mubr.f32.mxu0 0.0
  %1350 = vmatmul.mubr.f32.gmra.mxu0 %v576
  %v1351 = vpop.f32.mrf.mxu0
  %v1352 = vadd.f32 0.0, %v1351
  %v1353 = vpop.f32.mrf.mxu0
  %1354 = vmatprep.mubr.f32.mxu0 0.0
  %1355 = vmatmul.mubr.f32.gmra.mxu0 %v579
  %v1356 = vpop.f32.mrf.mxu0
  %v1357 = vadd.f32 0.0, %v1356
  %v1358 = vpop.f32.mrf.mxu0
  %1359 = vmatprep.mubr.f32.mxu0 0.0
  %1360 = vmatmul.mubr.f32.gmra.mxu0 %v582
  %v1361 = vpop.f32.mrf.mxu0
  %v1362 = vadd.f32 0.0, %v1361
  %v1363 = vpop.f32.mrf.mxu0
  %1364 = vmatprep.mubr.f32.mxu0 0.0
  %1365 = vmatmul.mubr.f32.gmra.mxu0 %v585
  %v1366 = vpop.f32.mrf.mxu0
  %v1367 = vadd.f32 0.0, %v1366
  %v1368 = vpop.f32.mrf.mxu0
  %1369 = vmatprep.mubr.f32.mxu0 0.0
  %1370 = vmatmul.mubr.f32.gmra.mxu0 %v588
  %v1371 = vpop.f32.mrf.mxu0
  %v1372 = vadd.f32 0.0, %v1371
  %v1373 = vpop.f32.mrf.mxu0
  %1374 = vmatprep.mubr.f32.mxu0 0.0
  %1375 = vmatmul.mubr.f32.gmra.mxu0 %v591
  %v1376 = vpop.f32.mrf.mxu0
  %v1377 = vadd.f32 0.0, %v1376
  %v1378 = vpop.f32.mrf.mxu0
  %1379 = vmatprep.mubr.f32.mxu0 0.0
  %1380 = vmatmul.mubr.f32.gmra.mxu0 %v594
  %v1381 = vpop.f32.mrf.mxu0
  %v1382 = vadd.f32 0.0, %v1381
  %v1383 = vpop.f32.mrf.mxu0
  %1384 = vdwg.mxu0
  %v1385 = vmax.f32 %v667, %v847
  %v1386 = vmax.f32 %v672, %v852
  %v1387 = vmax.f32 %v677, %v857
  %v1388 = vmax.f32 %v682, %v862
  %v1389 = vmax.f32 %v687, %v867
  %v1390 = vmax.f32 %v692, %v872
  %v1391 = vmax.f32 %v697, %v877
  %v1392 = vmax.f32 %v702, %v882
  %v1393 = vmax.f32 %v707, %v887
  %v1394 = vmax.f32 %v712, %v892
  %v1395 = vmax.f32 %v717, %v897
  %v1396 = vmax.f32 %v722, %v902
  %v1397 = vmax.f32 %v727, %v907
  %v1398 = vmax.f32 %v732, %v912
  %v1399 = vmax.f32 %v737, %v917
  %v1400 = vmax.f32 %v742, %v922
  %v1401 = vmax.f32 %v747, %v927
  %v1402 = vmax.f32 %v752, %v932
  %v1403 = vmax.f32 %v757, %v937
  %v1404 = vmax.f32 %v762, %v942
  %v1405 = vmax.f32 %v767, %v947
  %v1406 = vmax.f32 %v772, %v952
  %v1407 = vmax.f32 %v777, %v957
  %v1408 = vmax.f32 %v782, %v962
  %v1409 = vmax.f32 %v787, %v967
  %v1410 = vmax.f32 %v792, %v972
  %v1411 = vmax.f32 %v797, %v977
  %v1412 = vmax.f32 %v802, %v982
  %v1413 = vmax.f32 %v807, %v987
  %v1414 = vmax.f32 %v812, %v992
  %v1415 = vmax.f32 %v817, %v997
  %v1416 = vmax.f32 %v822, %v1002
  %v1417 = vmax.f32 %v827, %v1007
  %v1418 = vmax.f32 %v832, %v1012
  %v1419 = vmax.f32 %v837, %v1017
  %v1420 = vmax.f32 %v842, %v1022
  %v1421 = vmax.f32 %v1027, %v1207
  %v1422 = vmax.f32 %v1032, %v1212
  %v1423 = vmax.f32 %v1037, %v1217
  %v1424 = vmax.f32 %v1042, %v1222
  %v1425 = vmax.f32 %v1047, %v1227
  %v1426 = vmax.f32 %v1052, %v1232
  %v1427 = vmax.f32 %v1057, %v1237
  %v1428 = vmax.f32 %v1062, %v1242
  %v1429 = vmax.f32 %v1067, %v1247
  %v1430 = vmax.f32 %v1072, %v1252
  %v1431 = vmax.f32 %v1077, %v1257
  %v1432 = vmax.f32 %v1082, %v1262
  %v1433 = vmax.f32 %v1087, %v1267
  %v1434 = vmax.f32 %v1092, %v1272
  %v1435 = vmax.f32 %v1097, %v1277
  %v1436 = vmax.f32 %v1102, %v1282
  %v1437 = vmax.f32 %v1107, %v1287
  %v1438 = vmax.f32 %v1112, %v1292
  %v1439 = vmax.f32 %v1117, %v1297
  %v1440 = vmax.f32 %v1122, %v1302
  %v1441 = vmax.f32 %v1127, %v1307
  %v1442 = vmax.f32 %v1132, %v1312
  %v1443 = vmax.f32 %v1137, %v1317
  %v1444 = vmax.f32 %v1142, %v1322
  %v1445 = vmax.f32 %v1147, %v1327
  %v1446 = vmax.f32 %v1152, %v1332
  %v1447 = vmax.f32 %v1157, %v1337
  %v1448 = vmax.f32 %v1162, %v1342
  %v1449 = vmax.f32 %v1167, %v1347
  %v1450 = vmax.f32 %v1172, %v1352
  %v1451 = vmax.f32 %v1177, %v1357
  %v1452 = vmax.f32 %v1182, %v1362
  %v1453 = vmax.f32 %v1187, %v1367
  %v1454 = vmax.f32 %v1192, %v1372
  %v1455 = vmax.f32 %v1197, %v1377
  %v1456 = vmax.f32 %v1202, %v1382
  %v1457 = vmax.f32 %v1385, %v1421
  %v1458 = vmax.f32 %v1386, %v1422
  %v1459 = vmax.f32 %v1387, %v1423
  %v1460 = vmax.f32 %v1388, %v1424
  %v1461 = vmax.f32 %v1389, %v1425
  %v1462 = vmax.f32 %v1390, %v1426
  %v1463 = vmax.f32 %v1391, %v1427
  %v1464 = vmax.f32 %v1392, %v1428
  %v1465 = vmax.f32 %v1393, %v1429
  %v1466 = vmax.f32 %v1394, %v1430
  %v1467 = vmax.f32 %v1395, %v1431
  %v1468 = vmax.f32 %v1396, %v1432
  %v1469 = vmax.f32 %v1397, %v1433
  %v1470 = vmax.f32 %v1398, %v1434
  %v1471 = vmax.f32 %v1399, %v1435
  %v1472 = vmax.f32 %v1400, %v1436
  %v1473 = vmax.f32 %v1401, %v1437
  %v1474 = vmax.f32 %v1402, %v1438
  %v1475 = vmax.f32 %v1403, %v1439
  %v1476 = vmax.f32 %v1404, %v1440
  %v1477 = vmax.f32 %v1405, %v1441
  %v1478 = vmax.f32 %v1406, %v1442
  %v1479 = vmax.f32 %v1407, %v1443
  %v1480 = vmax.f32 %v1408, %v1444
  %v1481 = vmax.f32 %v1409, %v1445
  %v1482 = vmax.f32 %v1410, %v1446
  %v1483 = vmax.f32 %v1411, %v1447
  %v1484 = vmax.f32 %v1412, %v1448
  %v1485 = vmax.f32 %v1413, %v1449
  %v1486 = vmax.f32 %v1414, %v1450
  %v1487 = vmax.f32 %v1415, %v1451
  %v1488 = vmax.f32 %v1416, %v1452
  %v1489 = vmax.f32 %v1417, %v1453
  %v1490 = vmax.f32 %v1418, %v1454
  %v1491 = vmax.f32 %v1419, %v1455
  %v1492 = vmax.f32 %v1420, %v1456
  %v1494 = vlaneseq
  %v1495 = vshrl.u32 %v1494, 7
  %v1496 = vsub.s32 0, %v1495
  %v1497 = vrot.slane %v162, %v1496
  %v1499 = vadd.f32 %v1457, %v1497
  %v1500 = vadd.f32 %v1458, %v1497
  %v1501 = vadd.f32 %v1459, %v1497
  %v1502 = vadd.f32 %v1460, %v1497
  %v1503 = vadd.f32 %v1461, %v1497
  %v1504 = vadd.f32 %v1462, %v1497
  %v1505 = vadd.f32 %v1463, %v1497
  %v1506 = vadd.f32 %v1464, %v1497
  %v1507 = vadd.f32 %v1465, %v1497
  %v1508 = vadd.f32 %v1466, %v1497
  %v1509 = vadd.f32 %v1467, %v1497
  %v1510 = vadd.f32 %v1468, %v1497
  %v1511 = vadd.f32 %v1469, %v1497
  %v1512 = vadd.f32 %v1470, %v1497
  %v1513 = vadd.f32 %v1471, %v1497
  %v1514 = vadd.f32 %v1472, %v1497
  %v1515 = vadd.f32 %v1473, %v1497
  %v1516 = vadd.f32 %v1474, %v1497
  %v1517 = vadd.f32 %v1475, %v1497
  %v1518 = vadd.f32 %v1476, %v1497
  %v1519 = vadd.f32 %v1477, %v1497
  %v1520 = vadd.f32 %v1478, %v1497
  %v1521 = vadd.f32 %v1479, %v1497
  %v1522 = vadd.f32 %v1480, %v1497
  %v1523 = vadd.f32 %v1481, %v1497
  %v1524 = vadd.f32 %v1482, %v1497
  %v1525 = vadd.f32 %v1483, %v1497
  %v1526 = vadd.f32 %v1484, %v1497
  %v1527 = vadd.f32 %v1485, %v1497
  %v1528 = vadd.f32 %v1486, %v1497
  %v1529 = vadd.f32 %v1487, %v1497
  %v1530 = vadd.f32 %v1488, %v1497
  %v1531 = vadd.f32 %v1489, %v1497
  %v1532 = vadd.f32 %v1490, %v1497
  %v1533 = vadd.f32 %v1491, %v1497
  %v1534 = vadd.f32 %v1492, %v1497
  %v1535 = vmax.f32 %v1499, 0.0
  %v1536 = vmax.f32 %v1500, 0.0
  %v1537 = vmax.f32 %v1501, 0.0
  %v1538 = vmax.f32 %v1502, 0.0
  %v1539 = vmax.f32 %v1503, 0.0
  %v1540 = vmax.f32 %v1504, 0.0
  %v1541 = vmax.f32 %v1505, 0.0
  %v1542 = vmax.f32 %v1506, 0.0
  %v1543 = vmax.f32 %v1507, 0.0
  %v1544 = vmax.f32 %v1508, 0.0
  %v1545 = vmax.f32 %v1509, 0.0
  %v1546 = vmax.f32 %v1510, 0.0
  %v1547 = vmax.f32 %v1511, 0.0
  %v1548 = vmax.f32 %v1512, 0.0
  %v1549 = vmax.f32 %v1513, 0.0
  %v1550 = vmax.f32 %v1514, 0.0
  %v1551 = vmax.f32 %v1515, 0.0
  %v1552 = vmax.f32 %v1516, 0.0
  %v1553 = vmax.f32 %v1517, 0.0
  %v1554 = vmax.f32 %v1518, 0.0
  %v1555 = vmax.f32 %v1519, 0.0
  %v1556 = vmax.f32 %v1520, 0.0
  %v1557 = vmax.f32 %v1521, 0.0
  %v1558 = vmax.f32 %v1522, 0.0
  %v1559 = vmax.f32 %v1523, 0.0
  %v1560 = vmax.f32 %v1524, 0.0
  %v1561 = vmax.f32 %v1525, 0.0
  %v1562 = vmax.f32 %v1526, 0.0
  %v1563 = vmax.f32 %v1527, 0.0
  %v1564 = vmax.f32 %v1528, 0.0
  %v1565 = vmax.f32 %v1529, 0.0
  %v1566 = vmax.f32 %v1530, 0.0
  %v1567 = vmax.f32 %v1531, 0.0
  %v1568 = vmax.f32 %v1532, 0.0
  %v1569 = vmax.f32 %v1533, 0.0
  %v1570 = vmax.f32 %v1534, 0.0
  %1571 = vst [vmem:[%s3] sm:$0xff] %v1535
  %1572 = vst [vmem:[%s3 + $0x8] sm:$0xff] %v1536
  %1573 = vst [vmem:[%s3 + $0x10] sm:$0xff] %v1537
  %1574 = vst [vmem:[%s3 + $0x18] sm:$0xff] %v1538
  %1575 = vst [vmem:[%s3 + $0x20] sm:$0xff] %v1539
  %1576 = vst [vmem:[%s3 + $0x28] sm:$0xff] %v1540
  %1577 = vst [vmem:[%s3 + $0x30] sm:$0xff] %v1541
  %1578 = vst [vmem:[%s3 + $0x38] sm:$0xff] %v1542
  %1579 = vst [vmem:[%s3 + $0x40] sm:$0xff] %v1543
  %1580 = vst [vmem:[%s3 + $0x48] sm:$0xff] %v1544
  %1581 = vst [vmem:[%s3 + $0x50] sm:$0xff] %v1545
  %1582 = vst [vmem:[%s3 + $0x58] sm:$0xff] %v1546
  %1583 = vst [vmem:[%s3 + $0x60] sm:$0xff] %v1547
  %1584 = vst [vmem:[%s3 + $0x68] sm:$0xff] %v1548
  %1585 = vst [vmem:[%s3 + $0x70] sm:$0xff] %v1549
  %1586 = vst [vmem:[%s3 + $0x78] sm:$0xff] %v1550
  %1587 = vst [vmem:[%s3 + $0x80] sm:$0xff] %v1551
  %1588 = vst [vmem:[%s3 + $0x88] sm:$0xff] %v1552
  %1589 = vst [vmem:[%s3 + $0x90] sm:$0xff] %v1553
  %1590 = vst [vmem:[%s3 + $0x98] sm:$0xff] %v1554
  %1591 = vst [vmem:[%s3 + $0xa0] sm:$0xff] %v1555
  %1592 = vst [vmem:[%s3 + $0xa8] sm:$0xff] %v1556
  %1593 = vst [vmem:[%s3 + $0xb0] sm:$0xff] %v1557
  %1594 = vst [vmem:[%s3 + $0xb8] sm:$0xff] %v1558
  %1595 = vst [vmem:[%s3 + $0xc0] sm:$0xff] %v1559
  %1596 = vst [vmem:[%s3 + $0xc8] sm:$0xff] %v1560
  %1597 = vst [vmem:[%s3 + $0xd0] sm:$0xff] %v1561
  %1598 = vst [vmem:[%s3 + $0xd8] sm:$0xff] %v1562
  %1599 = vst [vmem:[%s3 + $0xe0] sm:$0xff] %v1563
  %1600 = vst [vmem:[%s3 + $0xe8] sm:$0xff] %v1564
  %1601 = vst [vmem:[%s3 + $0xf0] sm:$0xff] %v1565
  %1602 = vst [vmem:[%s3 + $0xf8] sm:$0xff] %v1566
  %1603 = vst [vmem:[%s3 + $0x100] sm:$0xff] %v1567
  %1604 = vst [vmem:[%s3 + $0x108] sm:$0xff] %v1568
  %1605 = vst [vmem:[%s3 + $0x110] sm:$0xff] %v1569
  %1606 = vst [vmem:[%s3 + $0x118] sm:$0xff] %v1570
  // Predicated region
  $region14: #{lenet_forward.2} parent=0 // pred_check
    _
  $region15: #{lenet_forward.2} parent=0 // pred_check_branch
    %1608 = sbr.rel (0) target = $region17
  $region16: #{lenet_forward.2} parent=0 // pred_region
    _
  $region17: #{lenet_forward.2} parent=0 // pred_fallthru
    _
  // Predicated region
  $region18: #{lenet_forward.2} parent=0 // pred_check
    _
  $region19: #{lenet_forward.2} parent=0 // pred_check_branch
    %1610 = sbr.rel (0) target = $region21
  $region20: #{lenet_forward.2} parent=0 // pred_region
    _
  $region21: #{lenet_forward.2} parent=0 // pred_fallthru
    _

// kernel: lenet_forward.3
$region0: #{lenet_forward.3}
  #allocation0 [shape = 'u32[]', space=smem, size = 0x4, offset = 0x4, fixed_abs, tag = 'smem constant byte address 0x4 - core index']
  #allocation1 [shape = 'u32[144,128]{1,0:T(1,128)}', space=vmem, size = 0x12000, scoped, tag = 'internal scratch']
  %s0 = inlined_call_operand.vmem [shape: f32[512,500], index: 0, kind: input, shape index: {}]
  %s1 = inlined_call_operand.vmem [shape: f32[500,128], index: 1, kind: input, shape index: {}]
  %s2 = inlined_call_operand.vmem [shape: f32[1,128], index: 2, kind: input, shape index: {}]
  %s3 = inlined_call_operand.vmem [shape: f32[16,50,500], index: 3, kind: input, shape index: {}]
  %s4 = inlined_call_operand.vmem [shape: f32[1,500], index: 4, kind: input, shape index: {}]
  %s5 = inlined_call_operand.vmem [shape: f32[500,128], index: 5, kind: input, shape index: {}]
  %s6 = inlined_call_operand.vmem [shape: f32[1,128], index: 6, kind: input, shape index: {}]
  %s7 = inlined_call_operand.vmem [shape: f32[8,128], index: 7, kind: output, shape index: {}]
  %s8 = sld [smem:[#allocation0]]
  $region38: #{lenet_forward.3} parent=0
    _
  %s10 = ssub.s32 1, %s8
  %s11 = scalar_select 0, %s10, %s8
  // Predicated region
  $region2: #{lenet_forward.3} parent=0 // pred_check
    _
  $region3: #{lenet_forward.3} parent=0 // pred_check_branch
    %13 = sbr.rel (0) target = $region5
  $region4: #{lenet_forward.3} parent=0 // pred_region
    _
  $region5: #{lenet_forward.3} parent=0 // pred_fallthru
    _
  // Predicated region
  $region6: #{lenet_forward.3} parent=0 // pred_check
    _
  $region7: #{lenet_forward.3} parent=0 // pred_check_branch
    %15 = sbr.rel (0) target = $region9
  $region8: #{lenet_forward.3} parent=0 // pred_region
    _
  $region9: #{lenet_forward.3} parent=0 // pred_fallthru
    _
  // Predicated region
  $region10: #{lenet_forward.3} parent=0 // pred_check
    _
  $region11: #{lenet_forward.3} parent=0 // pred_check_branch
    %17 = sbr.rel (0) target = $region13
  $region12: #{lenet_forward.3} parent=0 // pred_region
    _
  $region13: #{lenet_forward.3} parent=0 // pred_fallthru
    _
  // Predicated region
  $region14: #{lenet_forward.3} parent=0 // pred_check
    _
  $region15: #{lenet_forward.3} parent=0 // pred_check_branch
    %19 = sbr.rel (0) target = $region17
  $region16: #{lenet_forward.3} parent=0 // pred_region
    _
  $region17: #{lenet_forward.3} parent=0 // pred_fallthru
    _
  // Predicated region
  $region18: #{lenet_forward.3} parent=0 // pred_check
    _
  $region19: #{lenet_forward.3} parent=0 // pred_check_branch
    %21 = sbr.rel (0) target = $region21
  $region20: #{lenet_forward.3} parent=0 // pred_region
    _
  $region21: #{lenet_forward.3} parent=0 // pred_fallthru
    _
  // Predicated region
  $region22: #{lenet_forward.3} parent=0 // pred_check
    _
  $region23: #{lenet_forward.3} parent=0 // pred_check_branch
    %23 = sbr.rel (0) target = $region25
  $region24: #{lenet_forward.3} parent=0 // pred_region
    _
  $region25: #{lenet_forward.3} parent=0 // pred_fallthru
    _
  // Predicated region
  $region26: #{lenet_forward.3} parent=0 // pred_check
    _
  $region27: #{lenet_forward.3} parent=0 // pred_check_branch
    %25 = sbr.rel (0) target = $region29
  $region28: #{lenet_forward.3} parent=0 // pred_region
    _
  $region29: #{lenet_forward.3} parent=0 // pred_fallthru
    _
  %v26 = vld [vmem:[%s0] sm:$0xff]
  %v27 = vld [vmem:[%s0 + $0x8] sm:$0xff]
  %v28 = vld [vmem:[%s0 + $0x10] sm:$0xff]
  %v29 = vld [vmem:[%s0 + $0x18] sm:$0xff]
  %v30 = vld [vmem:[%s0 + $0x20] sm:$0xff]
  %v31 = vld [vmem:[%s0 + $0x28] sm:$0xff]
  %v32 = vld [vmem:[%s0 + $0x30] sm:$0xff]
  %v33 = vld [vmem:[%s0 + $0x38] sm:$0xff]
  %v34 = vld [vmem:[%s0 + $0x40] sm:$0xff]
  %v35 = vld [vmem:[%s0 + $0x48] sm:$0xff]
  %v36 = vld [vmem:[%s0 + $0x50] sm:$0xff]
  %v37 = vld [vmem:[%s0 + $0x58] sm:$0xff]
  %v38 = vld [vmem:[%s0 + $0x60] sm:$0xff]
  %v39 = vld [vmem:[%s0 + $0x68] sm:$0xff]
  %v40 = vld [vmem:[%s0 + $0x70] sm:$0xff]
  %v41 = vld [vmem:[%s0 + $0x78] sm:$0xff]
  %v42 = vld [vmem:[%s0 + $0x80] sm:$0xff]
  %v43 = vld [vmem:[%s0 + $0x88] sm:$0xff]
  %v44 = vld [vmem:[%s0 + $0x90] sm:$0xff]
  %v45 = vld [vmem:[%s0 + $0x98] sm:$0xff]
  %v46 = vld [vmem:[%s0 + $0xa0] sm:$0xff]
  %v47 = vld [vmem:[%s0 + $0xa8] sm:$0xff]
  %v48 = vld [vmem:[%s0 + $0xb0] sm:$0xff]
  %v49 = vld [vmem:[%s0 + $0xb8] sm:$0xff]
  %v50 = vld [vmem:[%s0 + $0xc0] sm:$0xff]
  %v51 = vld [vmem:[%s0 + $0xc8] sm:$0xff]
  %v52 = vld [vmem:[%s0 + $0xd0] sm:$0xff]
  %v53 = vld [vmem:[%s0 + $0xd8] sm:$0xff]
  %v54 = vld [vmem:[%s0 + $0xe0] sm:$0xff]
  %v55 = vld [vmem:[%s0 + $0xe8] sm:$0xff]
  %v56 = vld [vmem:[%s0 + $0xf0] sm:$0xff]
  %v57 = vld [vmem:[%s0 + $0xf8] sm:$0xff]
  %v58 = vld [vmem:[%s0 + $0x100] sm:$0xff]
  %v59 = vld [vmem:[%s0 + $0x108] sm:$0xff]
  %v60 = vld [vmem:[%s0 + $0x110] sm:$0xff]
  %v61 = vld [vmem:[%s0 + $0x118] sm:$0xff]
  %v62 = vld [vmem:[%s0 + $0x120] sm:$0xff]
  %v63 = vld [vmem:[%s0 + $0x128] sm:$0xff]
  %v64 = vld [vmem:[%s0 + $0x130] sm:$0xff]
  %v65 = vld [vmem:[%s0 + $0x138] sm:$0xff]
  %v66 = vld [vmem:[%s0 + $0x140] sm:$0xff]
  %v67 = vld [vmem:[%s0 + $0x148] sm:$0xff]
  %v68 = vld [vmem:[%s0 + $0x150] sm:$0xff]
  %v69 = vld [vmem:[%s0 + $0x158] sm:$0xff]
  %v70 = vld [vmem:[%s0 + $0x160] sm:$0xff]
  %v71 = vld [vmem:[%s0 + $0x168] sm:$0xff]
  %v72 = vld [vmem:[%s0 + $0x170] sm:$0xff]
  %v73 = vld [vmem:[%s0 + $0x178] sm:$0xff]
  %v74 = vld [vmem:[%s0 + $0x180] sm:$0xff]
  %v75 = vld [vmem:[%s0 + $0x188] sm:$0xff]
  %v76 = vld [vmem:[%s0 + $0x190] sm:$0xff]
  %v77 = vld [vmem:[%s0 + $0x198] sm:$0xff]
  %v78 = vld [vmem:[%s0 + $0x1a0] sm:$0xff]
  %v79 = vld [vmem:[%s0 + $0x1a8] sm:$0xff]
  %v80 = vld [vmem:[%s0 + $0x1b0] sm:$0xff]
  %v81 = vld [vmem:[%s0 + $0x1b8] sm:$0xff]
  %v82 = vld [vmem:[%s0 + $0x1c0] sm:$0xff]
  %v83 = vld [vmem:[%s0 + $0x1c8] sm:$0xff]
  %v84 = vld [vmem:[%s0 + $0x1d0] sm:$0xff]
  %v85 = vld [vmem:[%s0 + $0x1d8] sm:$0xff]
  %v86 = vld [vmem:[%s0 + $0x1e0] sm:$0xff]
  %v87 = vld [vmem:[%s0 + $0x1e8] sm:$0xff]
  %v88 = vld [vmem:[%s0 + $0x1f0] sm:$0xff]
  %v89 = vld [vmem:[%s0 + $0x1f8] sm:$0xff]
  %v90 = vld [vmem:[%s0 + $0x200] sm:$0xff]
  %v91 = vld [vmem:[%s0 + $0x208] sm:$0xff]
  %v92 = vld [vmem:[%s0 + $0x210] sm:$0xff]
  %v93 = vld [vmem:[%s0 + $0x218] sm:$0xff]
  %v94 = vld [vmem:[%s0 + $0x220] sm:$0xff]
  %v95 = vld [vmem:[%s0 + $0x228] sm:$0xff]
  %v96 = vld [vmem:[%s0 + $0x230] sm:$0xff]
  %v97 = vld [vmem:[%s0 + $0x238] sm:$0xff]
  %v98 = vld [vmem:[%s0 + $0x240] sm:$0xff]
  %v99 = vld [vmem:[%s0 + $0x248] sm:$0xff]
  %v100 = vld [vmem:[%s0 + $0x250] sm:$0xff]
  %v101 = vld [vmem:[%s0 + $0x258] sm:$0xff]
  %v102 = vld [vmem:[%s0 + $0x260] sm:$0xff]
  %v103 = vld [vmem:[%s0 + $0x268] sm:$0xff]
  %v104 = vld [vmem:[%s0 + $0x270] sm:$0xff]
  %v105 = vld [vmem:[%s0 + $0x278] sm:$0xff]
  %v106 = vld [vmem:[%s0 + $0x280] sm:$0xff]
  %v107 = vld [vmem:[%s0 + $0x288] sm:$0xff]
  %v108 = vld [vmem:[%s0 + $0x290] sm:$0xff]
  %v109 = vld [vmem:[%s0 + $0x298] sm:$0xff]
  %v110 = vld [vmem:[%s0 + $0x2a0] sm:$0xff]
  %v111 = vld [vmem:[%s0 + $0x2a8] sm:$0xff]
  %v112 = vld [vmem:[%s0 + $0x2b0] sm:$0xff]
  %v113 = vld [vmem:[%s0 + $0x2b8] sm:$0xff]
  %v114 = vld [vmem:[%s0 + $0x2c0] sm:$0xff]
  %v115 = vld [vmem:[%s0 + $0x2c8] sm:$0xff]
  %v116 = vld [vmem:[%s0 + $0x2d0] sm:$0xff]
  %v117 = vld [vmem:[%s0 + $0x2d8] sm:$0xff]
  %v118 = vld [vmem:[%s0 + $0x2e0] sm:$0xff]
  %v119 = vld [vmem:[%s0 + $0x2e8] sm:$0xff]
  %v120 = vld [vmem:[%s0 + $0x2f0] sm:$0xff]
  %v121 = vld [vmem:[%s0 + $0x2f8] sm:$0xff]
  %v122 = vld [vmem:[%s0 + $0x300] sm:$0xff]
  %v123 = vld [vmem:[%s0 + $0x308] sm:$0xff]
  %v124 = vld [vmem:[%s0 + $0x310] sm:$0xff]
  %v125 = vld [vmem:[%s0 + $0x318] sm:$0xff]
  %v126 = vld [vmem:[%s0 + $0x320] sm:$0xff]
  %v127 = vld [vmem:[%s0 + $0x328] sm:$0xff]
  %v128 = vld [vmem:[%s0 + $0x330] sm:$0xff]
  %v129 = vld [vmem:[%s0 + $0x338] sm:$0xff]
  %v130 = vld [vmem:[%s0 + $0x340] sm:$0xff]
  %v131 = vld [vmem:[%s0 + $0x348] sm:$0xff]
  %v132 = vld [vmem:[%s0 + $0x350] sm:$0xff]
  %v133 = vld [vmem:[%s0 + $0x358] sm:$0xff]
  %v134 = vld [vmem:[%s0 + $0x360] sm:$0xff]
  %v135 = vld [vmem:[%s0 + $0x368] sm:$0xff]
  %v136 = vld [vmem:[%s0 + $0x370] sm:$0xff]
  %v137 = vld [vmem:[%s0 + $0x378] sm:$0xff]
  %v138 = vld [vmem:[%s0 + $0x380] sm:$0xff]
  %v139 = vld [vmem:[%s0 + $0x388] sm:$0xff]
  %v140 = vld [vmem:[%s0 + $0x390] sm:$0xff]
  %v141 = vld [vmem:[%s0 + $0x398] sm:$0xff]
  %v142 = vld [vmem:[%s0 + $0x3a0] sm:$0xff]
  %v143 = vld [vmem:[%s0 + $0x3a8] sm:$0xff]
  %v144 = vld [vmem:[%s0 + $0x3b0] sm:$0xff]
  %v145 = vld [vmem:[%s0 + $0x3b8] sm:$0xff]
  %v146 = vld [vmem:[%s0 + $0x3c0] sm:$0xff]
  %v147 = vld [vmem:[%s0 + $0x3c8] sm:$0xff]
  %v148 = vld [vmem:[%s0 + $0x3d0] sm:$0xff]
  %v149 = vld [vmem:[%s0 + $0x3d8] sm:$0xff]
  %v150 = vld [vmem:[%s0 + $0x3e0] sm:$0xff]
  %v151 = vld [vmem:[%s0 + $0x3e8] sm:$0xff]
  %v152 = vld [vmem:[%s0 + $0x3f0] sm:$0xff]
  %v153 = vld [vmem:[%s0 + $0x3f8] sm:$0xff]
  %v154 = vld [vmem:[%s0 + $0x400] sm:$0xff]
  %v155 = vld [vmem:[%s0 + $0x408] sm:$0xff]
  %v156 = vld [vmem:[%s0 + $0x410] sm:$0xff]
  %v157 = vld [vmem:[%s0 + $0x418] sm:$0xff]
  %v158 = vld [vmem:[%s0 + $0x420] sm:$0xff]
  %v159 = vld [vmem:[%s0 + $0x428] sm:$0xff]
  %v160 = vld [vmem:[%s0 + $0x430] sm:$0xff]
  %v161 = vld [vmem:[%s0 + $0x438] sm:$0xff]
  %v162 = vld [vmem:[%s0 + $0x440] sm:$0xff]
  %v163 = vld [vmem:[%s0 + $0x448] sm:$0xff]
  %v164 = vld [vmem:[%s0 + $0x450] sm:$0xff]
  %v165 = vld [vmem:[%s0 + $0x458] sm:$0xff]
  %v166 = vld [vmem:[%s0 + $0x460] sm:$0xff]
  %v167 = vld [vmem:[%s0 + $0x468] sm:$0xff]
  %v168 = vld [vmem:[%s0 + $0x470] sm:$0xff]
  %v169 = vld [vmem:[%s0 + $0x478] sm:$0xff]
  %v170 = vld [vmem:[%s0 + $0x480] sm:$0xff]
  %v171 = vld [vmem:[%s0 + $0x488] sm:$0xff]
  %v172 = vld [vmem:[%s0 + $0x490] sm:$0xff]
  %v173 = vld [vmem:[%s0 + $0x498] sm:$0xff]
  %v174 = vld [vmem:[%s0 + $0x4a0] sm:$0xff]
  %v175 = vld [vmem:[%s0 + $0x4a8] sm:$0xff]
  %v176 = vld [vmem:[%s0 + $0x4b0] sm:$0xff]
  %v177 = vld [vmem:[%s0 + $0x4b8] sm:$0xff]
  %v178 = vld [vmem:[%s0 + $0x4c0] sm:$0xff]
  %v179 = vld [vmem:[%s0 + $0x4c8] sm:$0xff]
  %v180 = vld [vmem:[%s0 + $0x4d0] sm:$0xff]
  %v181 = vld [vmem:[%s0 + $0x4d8] sm:$0xff]
  %v182 = vld [vmem:[%s0 + $0x4e0] sm:$0xff]
  %v183 = vld [vmem:[%s0 + $0x4e8] sm:$0xff]
  %v184 = vld [vmem:[%s0 + $0x4f0] sm:$0xff]
  %v185 = vld [vmem:[%s0 + $0x4f8] sm:$0xff]
  %v186 = vld [vmem:[%s0 + $0x500] sm:$0xff]
  %v187 = vld [vmem:[%s0 + $0x508] sm:$0xff]
  %v188 = vld [vmem:[%s0 + $0x510] sm:$0xff]
  %v189 = vld [vmem:[%s0 + $0x518] sm:$0xff]
  %v190 = vld [vmem:[%s0 + $0x520] sm:$0xff]
  %v191 = vld [vmem:[%s0 + $0x528] sm:$0xff]
  %v192 = vld [vmem:[%s0 + $0x530] sm:$0xff]
  %v193 = vld [vmem:[%s0 + $0x538] sm:$0xff]
  %v194 = vld [vmem:[%s0 + $0x540] sm:$0xff]
  %v195 = vld [vmem:[%s0 + $0x548] sm:$0xff]
  %v196 = vld [vmem:[%s0 + $0x550] sm:$0xff]
  %v197 = vld [vmem:[%s0 + $0x558] sm:$0xff]
  %v198 = vld [vmem:[%s0 + $0x560] sm:$0xff]
  %v199 = vld [vmem:[%s0 + $0x568] sm:$0xff]
  %v200 = vld [vmem:[%s0 + $0x570] sm:$0xff]
  %v201 = vld [vmem:[%s0 + $0x578] sm:$0xff]
  %v202 = vld [vmem:[%s0 + $0x580] sm:$0xff]
  %v203 = vld [vmem:[%s0 + $0x588] sm:$0xff]
  %v204 = vld [vmem:[%s0 + $0x590] sm:$0xff]
  %v205 = vld [vmem:[%s0 + $0x598] sm:$0xff]
  %v206 = vld [vmem:[%s0 + $0x5a0] sm:$0xff]
  %v207 = vld [vmem:[%s0 + $0x5a8] sm:$0xff]
  %v208 = vld [vmem:[%s0 + $0x5b0] sm:$0xff]
  %v209 = vld [vmem:[%s0 + $0x5b8] sm:$0xff]
  %v210 = vld [vmem:[%s0 + $0x5c0] sm:$0xff]
  %v211 = vld [vmem:[%s0 + $0x5c8] sm:$0xff]
  %v212 = vld [vmem:[%s0 + $0x5d0] sm:$0xff]
  %v213 = vld [vmem:[%s0 + $0x5d8] sm:$0xff]
  %v214 = vld [vmem:[%s0 + $0x5e0] sm:$0xff]
  %v215 = vld [vmem:[%s0 + $0x5e8] sm:$0xff]
  %v216 = vld [vmem:[%s0 + $0x5f0] sm:$0xff]
  %v217 = vld [vmem:[%s0 + $0x5f8] sm:$0xff]
  %v218 = vld [vmem:[%s0 + $0x600] sm:$0xff]
  %v219 = vld [vmem:[%s0 + $0x608] sm:$0xff]
  %v220 = vld [vmem:[%s0 + $0x610] sm:$0xff]
  %v221 = vld [vmem:[%s0 + $0x618] sm:$0xff]
  %v222 = vld [vmem:[%s0 + $0x620] sm:$0xff]
  %v223 = vld [vmem:[%s0 + $0x628] sm:$0xff]
  %v224 = vld [vmem:[%s0 + $0x630] sm:$0xff]
  %v225 = vld [vmem:[%s0 + $0x638] sm:$0xff]
  %v226 = vld [vmem:[%s0 + $0x640] sm:$0xff]
  %v227 = vld [vmem:[%s0 + $0x648] sm:$0xff]
  %v228 = vld [vmem:[%s0 + $0x650] sm:$0xff]
  %v229 = vld [vmem:[%s0 + $0x658] sm:$0xff]
  %v230 = vld [vmem:[%s0 + $0x660] sm:$0xff]
  %v231 = vld [vmem:[%s0 + $0x668] sm:$0xff]
  %v232 = vld [vmem:[%s0 + $0x670] sm:$0xff]
  %v233 = vld [vmem:[%s0 + $0x678] sm:$0xff]
  %v234 = vld [vmem:[%s0 + $0x680] sm:$0xff]
  %v235 = vld [vmem:[%s0 + $0x688] sm:$0xff]
  %v236 = vld [vmem:[%s0 + $0x690] sm:$0xff]
  %v237 = vld [vmem:[%s0 + $0x698] sm:$0xff]
  %v238 = vld [vmem:[%s0 + $0x6a0] sm:$0xff]
  %v239 = vld [vmem:[%s0 + $0x6a8] sm:$0xff]
  %v240 = vld [vmem:[%s0 + $0x6b0] sm:$0xff]
  %v241 = vld [vmem:[%s0 + $0x6b8] sm:$0xff]
  %v242 = vld [vmem:[%s0 + $0x6c0] sm:$0xff]
  %v243 = vld [vmem:[%s0 + $0x6c8] sm:$0xff]
  %v244 = vld [vmem:[%s0 + $0x6d0] sm:$0xff]
  %v245 = vld [vmem:[%s0 + $0x6d8] sm:$0xff]
  %v246 = vld [vmem:[%s0 + $0x6e0] sm:$0xff]
  %v247 = vld [vmem:[%s0 + $0x6e8] sm:$0xff]
  %v248 = vld [vmem:[%s0 + $0x6f0] sm:$0xff]
  %v249 = vld [vmem:[%s0 + $0x6f8] sm:$0xff]
  %v250 = vld [vmem:[%s0 + $0x700] sm:$0xff]
  %v251 = vld [vmem:[%s0 + $0x708] sm:$0xff]
  %v252 = vld [vmem:[%s0 + $0x710] sm:$0xff]
  %v253 = vld [vmem:[%s0 + $0x718] sm:$0xff]
  %v254 = vld [vmem:[%s0 + $0x720] sm:$0xff]
  %v255 = vld [vmem:[%s0 + $0x728] sm:$0xff]
  %v256 = vld [vmem:[%s0 + $0x730] sm:$0xff]
  %v257 = vld [vmem:[%s0 + $0x738] sm:$0xff]
  %v258 = vld [vmem:[%s0 + $0x740] sm:$0xff]
  %v259 = vld [vmem:[%s0 + $0x748] sm:$0xff]
  %v260 = vld [vmem:[%s0 + $0x750] sm:$0xff]
  %v261 = vld [vmem:[%s0 + $0x758] sm:$0xff]
  %v262 = vld [vmem:[%s0 + $0x760] sm:$0xff]
  %v263 = vld [vmem:[%s0 + $0x768] sm:$0xff]
  %v264 = vld [vmem:[%s0 + $0x770] sm:$0xff]
  %v265 = vld [vmem:[%s0 + $0x778] sm:$0xff]
  %v266 = vld [vmem:[%s0 + $0x780] sm:$0xff]
  %v267 = vld [vmem:[%s0 + $0x788] sm:$0xff]
  %v268 = vld [vmem:[%s0 + $0x790] sm:$0xff]
  %v269 = vld [vmem:[%s0 + $0x798] sm:$0xff]
  %v270 = vld [vmem:[%s0 + $0x7a0] sm:$0xff]
  %v271 = vld [vmem:[%s0 + $0x7a8] sm:$0xff]
  %v272 = vld [vmem:[%s0 + $0x7b0] sm:$0xff]
  %v273 = vld [vmem:[%s0 + $0x7b8] sm:$0xff]
  %v274 = vld [vmem:[%s0 + $0x7c0] sm:$0xff]
  %v275 = vld [vmem:[%s0 + $0x7c8] sm:$0xff]
  %v276 = vld [vmem:[%s0 + $0x7d0] sm:$0xff]
  %v277 = vld [vmem:[%s0 + $0x7d8] sm:$0xff]
  %v278 = vld [vmem:[%s0 + $0x7e0] sm:$0xff]
  %v279 = vld [vmem:[%s0 + $0x7e8] sm:$0xff]
  %v280 = vld [vmem:[%s0 + $0x7f0] sm:$0xff]
  %v281 = vld [vmem:[%s0 + $0x7f8] sm:$0xff]
  %v282 = vld [vmem:[%s1] sm:$0xff]
  %v283 = vld [vmem:[%s1 + $0x8] sm:$0xff]
  %v284 = vld [vmem:[%s1 + $0x10] sm:$0xff]
  %v285 = vld [vmem:[%s1 + $0x18] sm:$0xff]
  %v286 = vld [vmem:[%s1 + $0x20] sm:$0xff]
  %v287 = vld [vmem:[%s1 + $0x28] sm:$0xff]
  %v288 = vld [vmem:[%s1 + $0x30] sm:$0xff]
  %v289 = vld [vmem:[%s1 + $0x38] sm:$0xff]
  %v290 = vld [vmem:[%s1 + $0x40] sm:$0xff]
  %v291 = vld [vmem:[%s1 + $0x48] sm:$0xff]
  %v292 = vld [vmem:[%s1 + $0x50] sm:$0xff]
  %v293 = vld [vmem:[%s1 + $0x58] sm:$0xff]
  %v294 = vld [vmem:[%s1 + $0x60] sm:$0xff]
  %v295 = vld [vmem:[%s1 + $0x68] sm:$0xff]
  %v296 = vld [vmem:[%s1 + $0x70] sm:$0xff]
  %v297 = vld [vmem:[%s1 + $0x78] sm:$0xff]
  %v298 = vld [vmem:[%s1 + $0x80] sm:$0xff]
  %v299 = vld [vmem:[%s1 + $0x88] sm:$0xff]
  %v300 = vld [vmem:[%s1 + $0x90] sm:$0xff]
  %v301 = vld [vmem:[%s1 + $0x98] sm:$0xff]
  %v302 = vld [vmem:[%s1 + $0xa0] sm:$0xff]
  %v303 = vld [vmem:[%s1 + $0xa8] sm:$0xff]
  %v304 = vld [vmem:[%s1 + $0xb0] sm:$0xff]
  %v305 = vld [vmem:[%s1 + $0xb8] sm:$0xff]
  %v306 = vld [vmem:[%s1 + $0xc0] sm:$0xff]
  %v307 = vld [vmem:[%s1 + $0xc8] sm:$0xff]
  %v308 = vld [vmem:[%s1 + $0xd0] sm:$0xff]
  %v309 = vld [vmem:[%s1 + $0xd8] sm:$0xff]
  %v310 = vld [vmem:[%s1 + $0xe0] sm:$0xff]
  %v311 = vld [vmem:[%s1 + $0xe8] sm:$0xff]
  %v312 = vld [vmem:[%s1 + $0xf0] sm:$0xff]
  %v313 = vld [vmem:[%s1 + $0xf8] sm:$0xff]
  %v314 = vld [vmem:[%s1 + $0x100] sm:$0xff]
  %v315 = vld [vmem:[%s1 + $0x108] sm:$0xff]
  %v316 = vld [vmem:[%s1 + $0x110] sm:$0xff]
  %v317 = vld [vmem:[%s1 + $0x118] sm:$0xff]
  %v318 = vld [vmem:[%s1 + $0x120] sm:$0xff]
  %v319 = vld [vmem:[%s1 + $0x128] sm:$0xff]
  %v320 = vld [vmem:[%s1 + $0x130] sm:$0xff]
  %v321 = vld [vmem:[%s1 + $0x138] sm:$0xff]
  %v322 = vld [vmem:[%s1 + $0x140] sm:$0xff]
  %v323 = vld [vmem:[%s1 + $0x148] sm:$0xff]
  %v324 = vld [vmem:[%s1 + $0x150] sm:$0xff]
  %v325 = vld [vmem:[%s1 + $0x158] sm:$0xff]
  %v326 = vld [vmem:[%s1 + $0x160] sm:$0xff]
  %v327 = vld [vmem:[%s1 + $0x168] sm:$0xff]
  %v328 = vld [vmem:[%s1 + $0x170] sm:$0xff]
  %v329 = vld [vmem:[%s1 + $0x178] sm:$0xff]
  %v330 = vld [vmem:[%s1 + $0x180] sm:$0xff]
  %v331 = vld [vmem:[%s1 + $0x188] sm:$0xff]
  %v332 = vld [vmem:[%s1 + $0x190] sm:$0xff]
  %v333 = vld [vmem:[%s1 + $0x198] sm:$0xff]
  %v334 = vld [vmem:[%s1 + $0x1a0] sm:$0xff]
  %v335 = vld [vmem:[%s1 + $0x1a8] sm:$0xff]
  %v336 = vld [vmem:[%s1 + $0x1b0] sm:$0xff]
  %v337 = vld [vmem:[%s1 + $0x1b8] sm:$0xff]
  %v338 = vld [vmem:[%s1 + $0x1c0] sm:$0xff]
  %v339 = vld [vmem:[%s1 + $0x1c8] sm:$0xff]
  %v340 = vld [vmem:[%s1 + $0x1d0] sm:$0xff]
  %v341 = vld [vmem:[%s1 + $0x1d8] sm:$0xff]
  %v342 = vld [vmem:[%s1 + $0x1e0] sm:$0xff]
  %v343 = vld [vmem:[%s1 + $0x1e8] sm:$0xff]
  %v344 = vld [vmem:[%s1 + $0x1f0] sm:$0xf]
  %v345 = vld [vmem:[%s2] sm:$0x1]
  %vm346 = vcmask 949248
  %v348 = vsel %vm346, %v29, 0
  %v351 = vsel %vm346, %v33, 0
  %v354 = vsel %vm346, %v37, 0
  %v357 = vsel %vm346, %v41, 0
  %v360 = vsel %vm346, %v45, 0
  %v363 = vsel %vm346, %v49, 0
  %v366 = vsel %vm346, %v53, 0
  %v369 = vsel %vm346, %v57, 0
  %v372 = vsel %vm346, %v61, 0
  %v375 = vsel %vm346, %v65, 0
  %v378 = vsel %vm346, %v69, 0
  %v381 = vsel %vm346, %v73, 0
  %v384 = vsel %vm346, %v77, 0
  %v387 = vsel %vm346, %v81, 0
  %v390 = vsel %vm346, %v85, 0
  %v393 = vsel %vm346, %v89, 0
  %v396 = vsel %vm346, %v93, 0
  %v399 = vsel %vm346, %v97, 0
  %v402 = vsel %vm346, %v101, 0
  %v405 = vsel %vm346, %v105, 0
  %v408 = vsel %vm346, %v109, 0
  %v411 = vsel %vm346, %v113, 0
  %v414 = vsel %vm346, %v117, 0
  %v417 = vsel %vm346, %v121, 0
  %v420 = vsel %vm346, %v125, 0
  %v423 = vsel %vm346, %v129, 0
  %v426 = vsel %vm346, %v133, 0
  %v429 = vsel %vm346, %v137, 0
  %v432 = vsel %vm346, %v141, 0
  %v435 = vsel %vm346, %v145, 0
  %v438 = vsel %vm346, %v149, 0
  %v441 = vsel %vm346, %v153, 0
  %v444 = vsel %vm346, %v157, 0
  %v447 = vsel %vm346, %v161, 0
  %v450 = vsel %vm346, %v165, 0
  %v453 = vsel %vm346, %v169, 0
  %v456 = vsel %vm346, %v173, 0
  %v459 = vsel %vm346, %v177, 0
  %v462 = vsel %vm346, %v181, 0
  %v465 = vsel %vm346, %v185, 0
  %v468 = vsel %vm346, %v189, 0
  %v471 = vsel %vm346, %v193, 0
  %v474 = vsel %vm346, %v197, 0
  %v477 = vsel %vm346, %v201, 0
  %v480 = vsel %vm346, %v205, 0
  %v483 = vsel %vm346, %v209, 0
  %v486 = vsel %vm346, %v213, 0
  %v489 = vsel %vm346, %v217, 0
  %v492 = vsel %vm346, %v221, 0
  %v495 = vsel %vm346, %v225, 0
  %v498 = vsel %vm346, %v229, 0
  %v501 = vsel %vm346, %v233, 0
  %v504 = vsel %vm346, %v237, 0
  %v507 = vsel %vm346, %v241, 0
  %v510 = vsel %vm346, %v245, 0
  %v513 = vsel %vm346, %v249, 0
  %v516 = vsel %vm346, %v253, 0
  %v519 = vsel %vm346, %v257, 0
  %v522 = vsel %vm346, %v261, 0
  %v525 = vsel %vm346, %v265, 0
  %v528 = vsel %vm346, %v269, 0
  %v531 = vsel %vm346, %v273, 0
  %v534 = vsel %vm346, %v277, 0
  %v537 = vsel %vm346, %v281, 0
  %vm539 = vcmask 1043456
  %v541 = vsel %vm539, %v344, 0
  %543 = vmatprep.subr.mxu0 0.0
  %544 = vmatpush1.msra.mxu0 %v297
  %545 = vmatprep.subr.mxu0 0.0
  %546 = vmatpush1.msra.mxu0 %v296
  %547 = vmatprep.subr.mxu0 0.0
  %548 = vmatpush1.msra.mxu0 %v295
  %549 = vmatprep.subr.mxu0 0.0
  %550 = vmatpush1.msra.mxu0 %v294
  %551 = vmatprep.subr.mxu0 0.0
  %552 = vmatpush1.msra.mxu0 %v293
  %553 = vmatprep.subr.mxu0 0.0
  %554 = vmatpush1.msra.mxu0 %v292
  %555 = vmatprep.subr.mxu0 0.0
  %556 = vmatpush1.msra.mxu0 %v291
  %557 = vmatprep.subr.mxu0 0.0
  %558 = vmatpush1.msra.mxu0 %v290
  %559 = vmatprep.subr.mxu0 0.0
  %560 = vmatpush1.msra.mxu0 %v289
  %561 = vmatprep.subr.mxu0 0.0
  %562 = vmatpush1.msra.mxu0 %v288
  %563 = vmatprep.subr.mxu0 0.0
  %564 = vmatpush1.msra.mxu0 %v287
  %565 = vmatprep.subr.mxu0 0.0
  %566 = vmatpush1.msra.mxu0 %v286
  %567 = vmatprep.subr.mxu0 0.0
  %568 = vmatpush1.msra.mxu0 %v285
  %569 = vmatprep.subr.mxu0 0.0
  %570 = vmatpush1.msra.mxu0 %v284
  %571 = vmatprep.subr.mxu0 0.0
  %572 = vmatpush1.msra.mxu0 %v283
  %573 = vmatprep.subr.mxu0 0.0
  %574 = vmatpush1.msra.mxu0 %v282
  %575 = vmatprep.subr.mxu0 0.0
  %576 = vmatpush2.msra.mxu0 %v313
  %577 = vmatprep.subr.mxu0 0.0
  %578 = vmatpush2.msra.mxu0 %v312
  %579 = vmatprep.subr.mxu0 0.0
  %580 = vmatpush2.msra.mxu0 %v311
  %581 = vmatprep.subr.mxu0 0.0
  %582 = vmatpush2.msra.mxu0 %v310
  %583 = vmatprep.subr.mxu0 0.0
  %584 = vmatpush2.msra.mxu0 %v309
  %585 = vmatprep.subr.mxu0 0.0
  %586 = vmatpush2.msra.mxu0 %v308
  %587 = vmatprep.subr.mxu0 0.0
  %588 = vmatpush2.msra.mxu0 %v307
  %589 = vmatprep.subr.mxu0 0.0
  %590 = vmatpush2.msra.mxu0 %v306
  %591 = vmatprep.subr.mxu0 0.0
  %592 = vmatpush2.msra.mxu0 %v305
  %593 = vmatprep.subr.mxu0 0.0
  %594 = vmatpush2.msra.mxu0 %v304
  %595 = vmatprep.subr.mxu0 0.0
  %596 = vmatpush2.msra.mxu0 %v303
  %597 = vmatprep.subr.mxu0 0.0
  %598 = vmatpush2.msra.mxu0 %v302
  %599 = vmatprep.subr.mxu0 0.0
  %600 = vmatpush2.msra.mxu0 %v301
  %601 = vmatprep.subr.mxu0 0.0
  %602 = vmatpush2.msra.mxu0 %v300
  %603 = vmatprep.subr.mxu0 0.0
  %604 = vmatpush2.msra.mxu0 %v299
  %605 = vmatprep.subr.mxu0 0.0
  %606 = vmatpush2.msra.mxu0 %v298
  %607 = vmatprep.mubr.f32.mxu0 %v27
  %608 = vmatmul.mubr.f32.gmra.mxu0 %v26
  %v609 = vpop.f32.mrf.mxu0
  %v610 = vadd.f32 0.0, %v609
  %v611 = vpop.f32.mrf.mxu0
  %612 = vmatprep.mubr.f32.mxu0 %v31
  %613 = vmatmul.mubr.f32.gmra.mxu0 %v30
  %v614 = vpop.f32.mrf.mxu0
  %v615 = vadd.f32 0.0, %v614
  %v616 = vpop.f32.mrf.mxu0
  %617 = vmatprep.mubr.f32.mxu0 %v35
  %618 = vmatmul.mubr.f32.gmra.mxu0 %v34
  %v619 = vpop.f32.mrf.mxu0
  %v620 = vadd.f32 0.0, %v619
  %v621 = vpop.f32.mrf.mxu0
  %622 = vmatprep.mubr.f32.mxu0 %v39
  %623 = vmatmul.mubr.f32.gmra.mxu0 %v38
  %v624 = vpop.f32.mrf.mxu0
  %v625 = vadd.f32 0.0, %v624
  %v626 = vpop.f32.mrf.mxu0
  %627 = vmatprep.mubr.f32.mxu0 %v43
  %628 = vmatmul.mubr.f32.gmra.mxu0 %v42
  %v629 = vpop.f32.mrf.mxu0
  %v630 = vadd.f32 0.0, %v629
  %v631 = vpop.f32.mrf.mxu0
  %632 = vmatprep.mubr.f32.mxu0 %v47
  %633 = vmatmul.mubr.f32.gmra.mxu0 %v46
  %v634 = vpop.f32.mrf.mxu0
  %v635 = vadd.f32 0.0, %v634
  %v636 = vpop.f32.mrf.mxu0
  %637 = vmatprep.mubr.f32.mxu0 %v51
  %638 = vmatmul.mubr.f32.gmra.mxu0 %v50
  %v639 = vpop.f32.mrf.mxu0
  %v640 = vadd.f32 0.0, %v639
  %v641 = vpop.f32.mrf.mxu0
  %642 = vmatprep.mubr.f32.mxu0 %v55
  %643 = vmatmul.mubr.f32.gmra.mxu0 %v54
  %v644 = vpop.f32.mrf.mxu0
  %v645 = vadd.f32 0.0, %v644
  %v646 = vpop.f32.mrf.mxu0
  %647 = vmatprep.mubr.f32.mxu0 %v59
  %648 = vmatmul.mubr.f32.gmra.mxu0 %v58
  %v649 = vpop.f32.mrf.mxu0
  %v650 = vadd.f32 0.0, %v649
  %v651 = vpop.f32.mrf.mxu0
  %652 = vmatprep.mubr.f32.mxu0 %v63
  %653 = vmatmul.mubr.f32.gmra.mxu0 %v62
  %v654 = vpop.f32.mrf.mxu0
  %v655 = vadd.f32 0.0, %v654
  %v656 = vpop.f32.mrf.mxu0
  %657 = vmatprep.mubr.f32.mxu0 %v67
  %658 = vmatmul.mubr.f32.gmra.mxu0 %v66
  %v659 = vpop.f32.mrf.mxu0
  %v660 = vadd.f32 0.0, %v659
  %v661 = vpop.f32.mrf.mxu0
  %662 = vmatprep.mubr.f32.mxu0 %v71
  %663 = vmatmul.mubr.f32.gmra.mxu0 %v70
  %v664 = vpop.f32.mrf.mxu0
  %v665 = vadd.f32 0.0, %v664
  %v666 = vpop.f32.mrf.mxu0
  %667 = vmatprep.mubr.f32.mxu0 %v75
  %668 = vmatmul.mubr.f32.gmra.mxu0 %v74
  %v669 = vpop.f32.mrf.mxu0
  %v670 = vadd.f32 0.0, %v669
  %v671 = vpop.f32.mrf.mxu0
  %672 = vmatprep.mubr.f32.mxu0 %v79
  %673 = vmatmul.mubr.f32.gmra.mxu0 %v78
  %v674 = vpop.f32.mrf.mxu0
  %v675 = vadd.f32 0.0, %v674
  %v676 = vpop.f32.mrf.mxu0
  %677 = vmatprep.mubr.f32.mxu0 %v83
  %678 = vmatmul.mubr.f32.gmra.mxu0 %v82
  %v679 = vpop.f32.mrf.mxu0
  %v680 = vadd.f32 0.0, %v679
  %v681 = vpop.f32.mrf.mxu0
  %682 = vmatprep.mubr.f32.mxu0 %v87
  %683 = vmatmul.mubr.f32.gmra.mxu0 %v86
  %v684 = vpop.f32.mrf.mxu0
  %v685 = vadd.f32 0.0, %v684
  %v686 = vpop.f32.mrf.mxu0
  %687 = vmatprep.mubr.f32.mxu0 %v91
  %688 = vmatmul.mubr.f32.gmra.mxu0 %v90
  %v689 = vpop.f32.mrf.mxu0
  %v690 = vadd.f32 0.0, %v689
  %v691 = vpop.f32.mrf.mxu0
  %692 = vmatprep.mubr.f32.mxu0 %v95
  %693 = vmatmul.mubr.f32.gmra.mxu0 %v94
  %v694 = vpop.f32.mrf.mxu0
  %v695 = vadd.f32 0.0, %v694
  %v696 = vpop.f32.mrf.mxu0
  %697 = vmatprep.mubr.f32.mxu0 %v99
  %698 = vmatmul.mubr.f32.gmra.mxu0 %v98
  %v699 = vpop.f32.mrf.mxu0
  %v700 = vadd.f32 0.0, %v699
  %v701 = vpop.f32.mrf.mxu0
  %702 = vmatprep.mubr.f32.mxu0 %v103
  %703 = vmatmul.mubr.f32.gmra.mxu0 %v102
  %v704 = vpop.f32.mrf.mxu0
  %v705 = vadd.f32 0.0, %v704
  %v706 = vpop.f32.mrf.mxu0
  %707 = vmatprep.mubr.f32.mxu0 %v107
  %708 = vmatmul.mubr.f32.gmra.mxu0 %v106
  %v709 = vpop.f32.mrf.mxu0
  %v710 = vadd.f32 0.0, %v709
  %v711 = vpop.f32.mrf.mxu0
  %712 = vmatprep.mubr.f32.mxu0 %v111
  %713 = vmatmul.mubr.f32.gmra.mxu0 %v110
  %v714 = vpop.f32.mrf.mxu0
  %v715 = vadd.f32 0.0, %v714
  %v716 = vpop.f32.mrf.mxu0
  %717 = vmatprep.mubr.f32.mxu0 %v115
  %718 = vmatmul.mubr.f32.gmra.mxu0 %v114
  %v719 = vpop.f32.mrf.mxu0
  %v720 = vadd.f32 0.0, %v719
  %v721 = vpop.f32.mrf.mxu0
  %722 = vmatprep.mubr.f32.mxu0 %v119
  %723 = vmatmul.mubr.f32.gmra.mxu0 %v118
  %v724 = vpop.f32.mrf.mxu0
  %v725 = vadd.f32 0.0, %v724
  %v726 = vpop.f32.mrf.mxu0
  %727 = vmatprep.mubr.f32.mxu0 %v123
  %728 = vmatmul.mubr.f32.gmra.mxu0 %v122
  %v729 = vpop.f32.mrf.mxu0
  %v730 = vadd.f32 0.0, %v729
  %v731 = vpop.f32.mrf.mxu0
  %732 = vmatprep.mubr.f32.mxu0 %v127
  %733 = vmatmul.mubr.f32.gmra.mxu0 %v126
  %v734 = vpop.f32.mrf.mxu0
  %v735 = vadd.f32 0.0, %v734
  %v736 = vpop.f32.mrf.mxu0
  %737 = vmatprep.mubr.f32.mxu0 %v131
  %738 = vmatmul.mubr.f32.gmra.mxu0 %v130
  %v739 = vpop.f32.mrf.mxu0
  %v740 = vadd.f32 0.0, %v739
  %v741 = vpop.f32.mrf.mxu0
  %742 = vmatprep.mubr.f32.mxu0 %v135
  %743 = vmatmul.mubr.f32.gmra.mxu0 %v134
  %v744 = vpop.f32.mrf.mxu0
  %v745 = vadd.f32 0.0, %v744
  %v746 = vpop.f32.mrf.mxu0
  %747 = vmatprep.mubr.f32.mxu0 %v139
  %748 = vmatmul.mubr.f32.gmra.mxu0 %v138
  %v749 = vpop.f32.mrf.mxu0
  %v750 = vadd.f32 0.0, %v749
  %v751 = vpop.f32.mrf.mxu0
  %752 = vmatprep.mubr.f32.mxu0 %v143
  %753 = vmatmul.mubr.f32.gmra.mxu0 %v142
  %v754 = vpop.f32.mrf.mxu0
  %v755 = vadd.f32 0.0, %v754
  %v756 = vpop.f32.mrf.mxu0
  %757 = vmatprep.mubr.f32.mxu0 %v147
  %758 = vmatmul.mubr.f32.gmra.mxu0 %v146
  %v759 = vpop.f32.mrf.mxu0
  %v760 = vadd.f32 0.0, %v759
  %v761 = vpop.f32.mrf.mxu0
  %762 = vmatprep.mubr.f32.mxu0 %v151
  %763 = vmatmul.mubr.f32.gmra.mxu0 %v150
  %v764 = vpop.f32.mrf.mxu0
  %v765 = vadd.f32 0.0, %v764
  %v766 = vpop.f32.mrf.mxu0
  %767 = vmatprep.mubr.f32.mxu0 %v155
  %768 = vmatmul.mubr.f32.gmra.mxu0 %v154
  %v769 = vpop.f32.mrf.mxu0
  %v770 = vadd.f32 0.0, %v769
  %v771 = vpop.f32.mrf.mxu0
  %772 = vmatprep.mubr.f32.mxu0 %v159
  %773 = vmatmul.mubr.f32.gmra.mxu0 %v158
  %v774 = vpop.f32.mrf.mxu0
  %v775 = vadd.f32 0.0, %v774
  %v776 = vpop.f32.mrf.mxu0
  %777 = vmatprep.mubr.f32.mxu0 %v163
  %778 = vmatmul.mubr.f32.gmra.mxu0 %v162
  %v779 = vpop.f32.mrf.mxu0
  %v780 = vadd.f32 0.0, %v779
  %v781 = vpop.f32.mrf.mxu0
  %782 = vmatprep.mubr.f32.mxu0 %v167
  %783 = vmatmul.mubr.f32.gmra.mxu0 %v166
  %v784 = vpop.f32.mrf.mxu0
  %v785 = vadd.f32 0.0, %v784
  %v786 = vpop.f32.mrf.mxu0
  %787 = vmatprep.mubr.f32.mxu0 %v171
  %788 = vmatmul.mubr.f32.gmra.mxu0 %v170
  %v789 = vpop.f32.mrf.mxu0
  %v790 = vadd.f32 0.0, %v789
  %v791 = vpop.f32.mrf.mxu0
  %792 = vmatprep.mubr.f32.mxu0 %v175
  %793 = vmatmul.mubr.f32.gmra.mxu0 %v174
  %v794 = vpop.f32.mrf.mxu0
  %v795 = vadd.f32 0.0, %v794
  %v796 = vpop.f32.mrf.mxu0
  %797 = vmatprep.mubr.f32.mxu0 %v179
  %798 = vmatmul.mubr.f32.gmra.mxu0 %v178
  %v799 = vpop.f32.mrf.mxu0
  %v800 = vadd.f32 0.0, %v799
  %v801 = vpop.f32.mrf.mxu0
  %802 = vmatprep.mubr.f32.mxu0 %v183
  %803 = vmatmul.mubr.f32.gmra.mxu0 %v182
  %v804 = vpop.f32.mrf.mxu0
  %v805 = vadd.f32 0.0, %v804
  %v806 = vpop.f32.mrf.mxu0
  %807 = vmatprep.mubr.f32.mxu0 %v187
  %808 = vmatmul.mubr.f32.gmra.mxu0 %v186
  %v809 = vpop.f32.mrf.mxu0
  %v810 = vadd.f32 0.0, %v809
  %v811 = vpop.f32.mrf.mxu0
  %812 = vmatprep.mubr.f32.mxu0 %v191
  %813 = vmatmul.mubr.f32.gmra.mxu0 %v190
  %v814 = vpop.f32.mrf.mxu0
  %v815 = vadd.f32 0.0, %v814
  %v816 = vpop.f32.mrf.mxu0
  %817 = vmatprep.mubr.f32.mxu0 %v195
  %818 = vmatmul.mubr.f32.gmra.mxu0 %v194
  %v819 = vpop.f32.mrf.mxu0
  %v820 = vadd.f32 0.0, %v819
  %v821 = vpop.f32.mrf.mxu0
  %822 = vmatprep.mubr.f32.mxu0 %v199
  %823 = vmatmul.mubr.f32.gmra.mxu0 %v198
  %v824 = vpop.f32.mrf.mxu0
  %v825 = vadd.f32 0.0, %v824
  %v826 = vpop.f32.mrf.mxu0
  %827 = vmatprep.mubr.f32.mxu0 %v203
  %828 = vmatmul.mubr.f32.gmra.mxu0 %v202
  %v829 = vpop.f32.mrf.mxu0
  %v830 = vadd.f32 0.0, %v829
  %v831 = vpop.f32.mrf.mxu0
  %832 = vmatprep.mubr.f32.mxu0 %v207
  %833 = vmatmul.mubr.f32.gmra.mxu0 %v206
  %v834 = vpop.f32.mrf.mxu0
  %v835 = vadd.f32 0.0, %v834
  %v836 = vpop.f32.mrf.mxu0
  %837 = vmatprep.mubr.f32.mxu0 %v211
  %838 = vmatmul.mubr.f32.gmra.mxu0 %v210
  %v839 = vpop.f32.mrf.mxu0
  %v840 = vadd.f32 0.0, %v839
  %v841 = vpop.f32.mrf.mxu0
  %842 = vmatprep.mubr.f32.mxu0 %v215
  %843 = vmatmul.mubr.f32.gmra.mxu0 %v214
  %v844 = vpop.f32.mrf.mxu0
  %v845 = vadd.f32 0.0, %v844
  %v846 = vpop.f32.mrf.mxu0
  %847 = vmatprep.mubr.f32.mxu0 %v219
  %848 = vmatmul.mubr.f32.gmra.mxu0 %v218
  %v849 = vpop.f32.mrf.mxu0
  %v850 = vadd.f32 0.0, %v849
  %v851 = vpop.f32.mrf.mxu0
  %852 = vmatprep.mubr.f32.mxu0 %v223
  %853 = vmatmul.mubr.f32.gmra.mxu0 %v222
  %v854 = vpop.f32.mrf.mxu0
  %v855 = vadd.f32 0.0, %v854
  %v856 = vpop.f32.mrf.mxu0
  %857 = vmatprep.mubr.f32.mxu0 %v227
  %858 = vmatmul.mubr.f32.gmra.mxu0 %v226
  %v859 = vpop.f32.mrf.mxu0
  %v860 = vadd.f32 0.0, %v859
  %v861 = vpop.f32.mrf.mxu0
  %862 = vmatprep.mubr.f32.mxu0 %v231
  %863 = vmatmul.mubr.f32.gmra.mxu0 %v230
  %v864 = vpop.f32.mrf.mxu0
  %v865 = vadd.f32 0.0, %v864
  %v866 = vpop.f32.mrf.mxu0
  %867 = vmatprep.mubr.f32.mxu0 %v235
  %868 = vmatmul.mubr.f32.gmra.mxu0 %v234
  %v869 = vpop.f32.mrf.mxu0
  %v870 = vadd.f32 0.0, %v869
  %v871 = vpop.f32.mrf.mxu0
  %872 = vmatprep.mubr.f32.mxu0 %v239
  %873 = vmatmul.mubr.f32.gmra.mxu0 %v238
  %v874 = vpop.f32.mrf.mxu0
  %v875 = vadd.f32 0.0, %v874
  %v876 = vpop.f32.mrf.mxu0
  %877 = vmatprep.mubr.f32.mxu0 %v243
  %878 = vmatmul.mubr.f32.gmra.mxu0 %v242
  %v879 = vpop.f32.mrf.mxu0
  %v880 = vadd.f32 0.0, %v879
  %v881 = vpop.f32.mrf.mxu0
  %882 = vmatprep.mubr.f32.mxu0 %v247
  %883 = vmatmul.mubr.f32.gmra.mxu0 %v246
  %v884 = vpop.f32.mrf.mxu0
  %v885 = vadd.f32 0.0, %v884
  %v886 = vpop.f32.mrf.mxu0
  %887 = vmatprep.mubr.f32.mxu0 %v251
  %888 = vmatmul.mubr.f32.gmra.mxu0 %v250
  %v889 = vpop.f32.mrf.mxu0
  %v890 = vadd.f32 0.0, %v889
  %v891 = vpop.f32.mrf.mxu0
  %892 = vmatprep.mubr.f32.mxu0 %v255
  %893 = vmatmul.mubr.f32.gmra.mxu0 %v254
  %v894 = vpop.f32.mrf.mxu0
  %v895 = vadd.f32 0.0, %v894
  %v896 = vpop.f32.mrf.mxu0
  %897 = vmatprep.mubr.f32.mxu0 %v259
  %898 = vmatmul.mubr.f32.gmra.mxu0 %v258
  %v899 = vpop.f32.mrf.mxu0
  %v900 = vadd.f32 0.0, %v899
  %v901 = vpop.f32.mrf.mxu0
  %902 = vmatprep.mubr.f32.mxu0 %v263
  %903 = vmatmul.mubr.f32.gmra.mxu0 %v262
  %v904 = vpop.f32.mrf.mxu0
  %v905 = vadd.f32 0.0, %v904
  %v906 = vpop.f32.mrf.mxu0
  %907 = vmatprep.mubr.f32.mxu0 %v267
  %908 = vmatmul.mubr.f32.gmra.mxu0 %v266
  %v909 = vpop.f32.mrf.mxu0
  %v910 = vadd.f32 0.0, %v909
  %v911 = vpop.f32.mrf.mxu0
  %912 = vmatprep.mubr.f32.mxu0 %v271
  %913 = vmatmul.mubr.f32.gmra.mxu0 %v270
  %v914 = vpop.f32.mrf.mxu0
  %v915 = vadd.f32 0.0, %v914
  %v916 = vpop.f32.mrf.mxu0
  %917 = vmatprep.mubr.f32.mxu0 %v275
  %918 = vmatmul.mubr.f32.gmra.mxu0 %v274
  %v919 = vpop.f32.mrf.mxu0
  %v920 = vadd.f32 0.0, %v919
  %v921 = vpop.f32.mrf.mxu0
  %922 = vmatprep.mubr.f32.mxu0 %v279
  %923 = vmatmul.mubr.f32.gmra.mxu0 %v278
  %v924 = vpop.f32.mrf.mxu0
  %v925 = vadd.f32 0.0, %v924
  %v926 = vpop.f32.mrf.mxu0
  %927 = vdwg.mxu0
  %928 = vmatprep.subr.mxu0 0.0
  %929 = vmatpush1.msra.mxu0 %v329
  %930 = vmatprep.subr.mxu0 0.0
  %931 = vmatpush1.msra.mxu0 %v328
  %932 = vmatprep.subr.mxu0 0.0
  %933 = vmatpush1.msra.mxu0 %v327
  %934 = vmatprep.subr.mxu0 0.0
  %935 = vmatpush1.msra.mxu0 %v326
  %936 = vmatprep.subr.mxu0 0.0
  %937 = vmatpush1.msra.mxu0 %v325
  %938 = vmatprep.subr.mxu0 0.0
  %939 = vmatpush1.msra.mxu0 %v324
  %940 = vmatprep.subr.mxu0 0.0
  %941 = vmatpush1.msra.mxu0 %v323
  %942 = vmatprep.subr.mxu0 0.0
  %943 = vmatpush1.msra.mxu0 %v322
  %944 = vmatprep.subr.mxu0 0.0
  %945 = vmatpush1.msra.mxu0 %v321
  %946 = vmatprep.subr.mxu0 0.0
  %947 = vmatpush1.msra.mxu0 %v320
  %948 = vmatprep.subr.mxu0 0.0
  %949 = vmatpush1.msra.mxu0 %v319
  %950 = vmatprep.subr.mxu0 0.0
  %951 = vmatpush1.msra.mxu0 %v318
  %952 = vmatprep.subr.mxu0 0.0
  %953 = vmatpush1.msra.mxu0 %v317
  %954 = vmatprep.subr.mxu0 0.0
  %955 = vmatpush1.msra.mxu0 %v316
  %956 = vmatprep.subr.mxu0 0.0
  %957 = vmatpush1.msra.mxu0 %v315
  %958 = vmatprep.subr.mxu0 0.0
  %959 = vmatpush1.msra.mxu0 %v314
  %960 = vmatprep.subr.mxu0 0.0
  %961 = vmatpush2.msra.mxu0 0.0
  %962 = vmatprep.subr.mxu0 0.0
  %963 = vmatpush2.msra.mxu0 %v541
  %964 = vmatprep.subr.mxu0 0.0
  %965 = vmatpush2.msra.mxu0 %v343
  %966 = vmatprep.subr.mxu0 0.0
  %967 = vmatpush2.msra.mxu0 %v342
  %968 = vmatprep.subr.mxu0 0.0
  %969 = vmatpush2.msra.mxu0 %v341
  %970 = vmatprep.subr.mxu0 0.0
  %971 = vmatpush2.msra.mxu0 %v340
  %972 = vmatprep.subr.mxu0 0.0
  %973 = vmatpush2.msra.mxu0 %v339
  %974 = vmatprep.subr.mxu0 0.0
  %975 = vmatpush2.msra.mxu0 %v338
  %976 = vmatprep.subr.mxu0 0.0
  %977 = vmatpush2.msra.mxu0 %v337
  %978 = vmatprep.subr.mxu0 0.0
  %979 = vmatpush2.msra.mxu0 %v336
  %980 = vmatprep.subr.mxu0 0.0
  %981 = vmatpush2.msra.mxu0 %v335
  %982 = vmatprep.subr.mxu0 0.0
  %983 = vmatpush2.msra.mxu0 %v334
  %984 = vmatprep.subr.mxu0 0.0
  %985 = vmatpush2.msra.mxu0 %v333
  %986 = vmatprep.subr.mxu0 0.0
  %987 = vmatpush2.msra.mxu0 %v332
  %988 = vmatprep.subr.mxu0 0.0
  %989 = vmatpush2.msra.mxu0 %v331
  %990 = vmatprep.subr.mxu0 0.0
  %991 = vmatpush2.msra.mxu0 %v330
  %992 = vmatprep.mubr.f32.mxu0 %v348
  %993 = vmatmul.mubr.f32.gmra.mxu0 %v28
  %v994 = vpop.f32.mrf.mxu0
  %v995 = vadd.f32 %v610, %v994
  %v996 = vpop.f32.mrf.mxu0
  %997 = vmatprep.mubr.f32.mxu0 %v351
  %998 = vmatmul.mubr.f32.gmra.mxu0 %v32
  %v999 = vpop.f32.mrf.mxu0
  %v1000 = vadd.f32 %v615, %v999
  %v1001 = vpop.f32.mrf.mxu0
  %1002 = vmatprep.mubr.f32.mxu0 %v354
  %1003 = vmatmul.mubr.f32.gmra.mxu0 %v36
  %v1004 = vpop.f32.mrf.mxu0
  %v1005 = vadd.f32 %v620, %v1004
  %v1006 = vpop.f32.mrf.mxu0
  %1007 = vmatprep.mubr.f32.mxu0 %v357
  %1008 = vmatmul.mubr.f32.gmra.mxu0 %v40
  %v1009 = vpop.f32.mrf.mxu0
  %v1010 = vadd.f32 %v625, %v1009
  %v1011 = vpop.f32.mrf.mxu0
  %1012 = vmatprep.mubr.f32.mxu0 %v360
  %1013 = vmatmul.mubr.f32.gmra.mxu0 %v44
  %v1014 = vpop.f32.mrf.mxu0
  %v1015 = vadd.f32 %v630, %v1014
  %v1016 = vpop.f32.mrf.mxu0
  %1017 = vmatprep.mubr.f32.mxu0 %v363
  %1018 = vmatmul.mubr.f32.gmra.mxu0 %v48
  %v1019 = vpop.f32.mrf.mxu0
  %v1020 = vadd.f32 %v635, %v1019
  %v1021 = vpop.f32.mrf.mxu0
  %1022 = vmatprep.mubr.f32.mxu0 %v366
  %1023 = vmatmul.mubr.f32.gmra.mxu0 %v52
  %v1024 = vpop.f32.mrf.mxu0
  %v1025 = vadd.f32 %v640, %v1024
  %v1026 = vpop.f32.mrf.mxu0
  %1027 = vmatprep.mubr.f32.mxu0 %v369
  %1028 = vmatmul.mubr.f32.gmra.mxu0 %v56
  %v1029 = vpop.f32.mrf.mxu0
  %v1030 = vadd.f32 %v645, %v1029
  %v1031 = vpop.f32.mrf.mxu0
  %1032 = vmatprep.mubr.f32.mxu0 %v372
  %1033 = vmatmul.mubr.f32.gmra.mxu0 %v60
  %v1034 = vpop.f32.mrf.mxu0
  %v1035 = vadd.f32 %v650, %v1034
  %v1036 = vpop.f32.mrf.mxu0
  %1037 = vmatprep.mubr.f32.mxu0 %v375
  %1038 = vmatmul.mubr.f32.gmra.mxu0 %v64
  %v1039 = vpop.f32.mrf.mxu0
  %v1040 = vadd.f32 %v655, %v1039
  %v1041 = vpop.f32.mrf.mxu0
  %1042 = vmatprep.mubr.f32.mxu0 %v378
  %1043 = vmatmul.mubr.f32.gmra.mxu0 %v68
  %v1044 = vpop.f32.mrf.mxu0
  %v1045 = vadd.f32 %v660, %v1044
  %v1046 = vpop.f32.mrf.mxu0
  %1047 = vmatprep.mubr.f32.mxu0 %v381
  %1048 = vmatmul.mubr.f32.gmra.mxu0 %v72
  %v1049 = vpop.f32.mrf.mxu0
  %v1050 = vadd.f32 %v665, %v1049
  %v1051 = vpop.f32.mrf.mxu0
  %1052 = vmatprep.mubr.f32.mxu0 %v384
  %1053 = vmatmul.mubr.f32.gmra.mxu0 %v76
  %v1054 = vpop.f32.mrf.mxu0
  %v1055 = vadd.f32 %v670, %v1054
  %v1056 = vpop.f32.mrf.mxu0
  %1057 = vmatprep.mubr.f32.mxu0 %v387
  %1058 = vmatmul.mubr.f32.gmra.mxu0 %v80
  %v1059 = vpop.f32.mrf.mxu0
  %v1060 = vadd.f32 %v675, %v1059
  %v1061 = vpop.f32.mrf.mxu0
  %1062 = vmatprep.mubr.f32.mxu0 %v390
  %1063 = vmatmul.mubr.f32.gmra.mxu0 %v84
  %v1064 = vpop.f32.mrf.mxu0
  %v1065 = vadd.f32 %v680, %v1064
  %v1066 = vpop.f32.mrf.mxu0
  %1067 = vmatprep.mubr.f32.mxu0 %v393
  %1068 = vmatmul.mubr.f32.gmra.mxu0 %v88
  %v1069 = vpop.f32.mrf.mxu0
  %v1070 = vadd.f32 %v685, %v1069
  %v1071 = vpop.f32.mrf.mxu0
  %1072 = vmatprep.mubr.f32.mxu0 %v396
  %1073 = vmatmul.mubr.f32.gmra.mxu0 %v92
  %v1074 = vpop.f32.mrf.mxu0
  %v1075 = vadd.f32 %v690, %v1074
  %v1076 = vpop.f32.mrf.mxu0
  %1077 = vmatprep.mubr.f32.mxu0 %v399
  %1078 = vmatmul.mubr.f32.gmra.mxu0 %v96
  %v1079 = vpop.f32.mrf.mxu0
  %v1080 = vadd.f32 %v695, %v1079
  %v1081 = vpop.f32.mrf.mxu0
  %1082 = vmatprep.mubr.f32.mxu0 %v402
  %1083 = vmatmul.mubr.f32.gmra.mxu0 %v100
  %v1084 = vpop.f32.mrf.mxu0
  %v1085 = vadd.f32 %v700, %v1084
  %v1086 = vpop.f32.mrf.mxu0
  %1087 = vmatprep.mubr.f32.mxu0 %v405
  %1088 = vmatmul.mubr.f32.gmra.mxu0 %v104
  %v1089 = vpop.f32.mrf.mxu0
  %v1090 = vadd.f32 %v705, %v1089
  %v1091 = vpop.f32.mrf.mxu0
  %1092 = vmatprep.mubr.f32.mxu0 %v408
  %1093 = vmatmul.mubr.f32.gmra.mxu0 %v108
  %v1094 = vpop.f32.mrf.mxu0
  %v1095 = vadd.f32 %v710, %v1094
  %v1096 = vpop.f32.mrf.mxu0
  %1097 = vmatprep.mubr.f32.mxu0 %v411
  %1098 = vmatmul.mubr.f32.gmra.mxu0 %v112
  %v1099 = vpop.f32.mrf.mxu0
  %v1100 = vadd.f32 %v715, %v1099
  %v1101 = vpop.f32.mrf.mxu0
  %1102 = vmatprep.mubr.f32.mxu0 %v414
  %1103 = vmatmul.mubr.f32.gmra.mxu0 %v116
  %v1104 = vpop.f32.mrf.mxu0
  %v1105 = vadd.f32 %v720, %v1104
  %v1106 = vpop.f32.mrf.mxu0
  %1107 = vmatprep.mubr.f32.mxu0 %v417
  %1108 = vmatmul.mubr.f32.gmra.mxu0 %v120
  %v1109 = vpop.f32.mrf.mxu0
  %v1110 = vadd.f32 %v725, %v1109
  %v1111 = vpop.f32.mrf.mxu0
  %1112 = vmatprep.mubr.f32.mxu0 %v420
  %1113 = vmatmul.mubr.f32.gmra.mxu0 %v124
  %v1114 = vpop.f32.mrf.mxu0
  %v1115 = vadd.f32 %v730, %v1114
  %v1116 = vpop.f32.mrf.mxu0
  %1117 = vmatprep.mubr.f32.mxu0 %v423
  %1118 = vmatmul.mubr.f32.gmra.mxu0 %v128
  %v1119 = vpop.f32.mrf.mxu0
  %v1120 = vadd.f32 %v735, %v1119
  %v1121 = vpop.f32.mrf.mxu0
  %1122 = vmatprep.mubr.f32.mxu0 %v426
  %1123 = vmatmul.mubr.f32.gmra.mxu0 %v132
  %v1124 = vpop.f32.mrf.mxu0
  %v1125 = vadd.f32 %v740, %v1124
  %v1126 = vpop.f32.mrf.mxu0
  %1127 = vmatprep.mubr.f32.mxu0 %v429
  %1128 = vmatmul.mubr.f32.gmra.mxu0 %v136
  %v1129 = vpop.f32.mrf.mxu0
  %v1130 = vadd.f32 %v745, %v1129
  %v1131 = vpop.f32.mrf.mxu0
  %1132 = vmatprep.mubr.f32.mxu0 %v432
  %1133 = vmatmul.mubr.f32.gmra.mxu0 %v140
  %v1134 = vpop.f32.mrf.mxu0
  %v1135 = vadd.f32 %v750, %v1134
  %v1136 = vpop.f32.mrf.mxu0
  %1137 = vmatprep.mubr.f32.mxu0 %v435
  %1138 = vmatmul.mubr.f32.gmra.mxu0 %v144
  %v1139 = vpop.f32.mrf.mxu0
  %v1140 = vadd.f32 %v755, %v1139
  %v1141 = vpop.f32.mrf.mxu0
  %1142 = vmatprep.mubr.f32.mxu0 %v438
  %1143 = vmatmul.mubr.f32.gmra.mxu0 %v148
  %v1144 = vpop.f32.mrf.mxu0
  %v1145 = vadd.f32 %v760, %v1144
  %v1146 = vpop.f32.mrf.mxu0
  %1147 = vmatprep.mubr.f32.mxu0 %v441
  %1148 = vmatmul.mubr.f32.gmra.mxu0 %v152
  %v1149 = vpop.f32.mrf.mxu0
  %v1150 = vadd.f32 %v765, %v1149
  %v1151 = vpop.f32.mrf.mxu0
  %1152 = vmatprep.mubr.f32.mxu0 %v444
  %1153 = vmatmul.mubr.f32.gmra.mxu0 %v156
  %v1154 = vpop.f32.mrf.mxu0
  %v1155 = vadd.f32 %v770, %v1154
  %v1156 = vpop.f32.mrf.mxu0
  %1157 = vmatprep.mubr.f32.mxu0 %v447
  %1158 = vmatmul.mubr.f32.gmra.mxu0 %v160
  %v1159 = vpop.f32.mrf.mxu0
  %v1160 = vadd.f32 %v775, %v1159
  %v1161 = vpop.f32.mrf.mxu0
  %1162 = vmatprep.mubr.f32.mxu0 %v450
  %1163 = vmatmul.mubr.f32.gmra.mxu0 %v164
  %v1164 = vpop.f32.mrf.mxu0
  %v1165 = vadd.f32 %v780, %v1164
  %v1166 = vpop.f32.mrf.mxu0
  %1167 = vmatprep.mubr.f32.mxu0 %v453
  %1168 = vmatmul.mubr.f32.gmra.mxu0 %v168
  %v1169 = vpop.f32.mrf.mxu0
  %v1170 = vadd.f32 %v785, %v1169
  %v1171 = vpop.f32.mrf.mxu0
  %1172 = vmatprep.mubr.f32.mxu0 %v456
  %1173 = vmatmul.mubr.f32.gmra.mxu0 %v172
  %v1174 = vpop.f32.mrf.mxu0
  %v1175 = vadd.f32 %v790, %v1174
  %v1176 = vpop.f32.mrf.mxu0
  %1177 = vmatprep.mubr.f32.mxu0 %v459
  %1178 = vmatmul.mubr.f32.gmra.mxu0 %v176
  %v1179 = vpop.f32.mrf.mxu0
  %v1180 = vadd.f32 %v795, %v1179
  %v1181 = vpop.f32.mrf.mxu0
  %1182 = vmatprep.mubr.f32.mxu0 %v462
  %1183 = vmatmul.mubr.f32.gmra.mxu0 %v180
  %v1184 = vpop.f32.mrf.mxu0
  %v1185 = vadd.f32 %v800, %v1184
  %v1186 = vpop.f32.mrf.mxu0
  %1187 = vmatprep.mubr.f32.mxu0 %v465
  %1188 = vmatmul.mubr.f32.gmra.mxu0 %v184
  %v1189 = vpop.f32.mrf.mxu0
  %v1190 = vadd.f32 %v805, %v1189
  %v1191 = vpop.f32.mrf.mxu0
  %1192 = vmatprep.mubr.f32.mxu0 %v468
  %1193 = vmatmul.mubr.f32.gmra.mxu0 %v188
  %v1194 = vpop.f32.mrf.mxu0
  %v1195 = vadd.f32 %v810, %v1194
  %v1196 = vpop.f32.mrf.mxu0
  %1197 = vmatprep.mubr.f32.mxu0 %v471
  %1198 = vmatmul.mubr.f32.gmra.mxu0 %v192
  %v1199 = vpop.f32.mrf.mxu0
  %v1200 = vadd.f32 %v815, %v1199
  %v1201 = vpop.f32.mrf.mxu0
  %1202 = vmatprep.mubr.f32.mxu0 %v474
  %1203 = vmatmul.mubr.f32.gmra.mxu0 %v196
  %v1204 = vpop.f32.mrf.mxu0
  %v1205 = vadd.f32 %v820, %v1204
  %v1206 = vpop.f32.mrf.mxu0
  %1207 = vmatprep.mubr.f32.mxu0 %v477
  %1208 = vmatmul.mubr.f32.gmra.mxu0 %v200
  %v1209 = vpop.f32.mrf.mxu0
  %v1210 = vadd.f32 %v825, %v1209
  %v1211 = vpop.f32.mrf.mxu0
  %1212 = vmatprep.mubr.f32.mxu0 %v480
  %1213 = vmatmul.mubr.f32.gmra.mxu0 %v204
  %v1214 = vpop.f32.mrf.mxu0
  %v1215 = vadd.f32 %v830, %v1214
  %v1216 = vpop.f32.mrf.mxu0
  %1217 = vmatprep.mubr.f32.mxu0 %v483
  %1218 = vmatmul.mubr.f32.gmra.mxu0 %v208
  %v1219 = vpop.f32.mrf.mxu0
  %v1220 = vadd.f32 %v835, %v1219
  %v1221 = vpop.f32.mrf.mxu0
  %1222 = vmatprep.mubr.f32.mxu0 %v486
  %1223 = vmatmul.mubr.f32.gmra.mxu0 %v212
  %v1224 = vpop.f32.mrf.mxu0
  %v1225 = vadd.f32 %v840, %v1224
  %v1226 = vpop.f32.mrf.mxu0
  %1227 = vmatprep.mubr.f32.mxu0 %v489
  %1228 = vmatmul.mubr.f32.gmra.mxu0 %v216
  %v1229 = vpop.f32.mrf.mxu0
  %v1230 = vadd.f32 %v845, %v1229
  %v1231 = vpop.f32.mrf.mxu0
  %1232 = vmatprep.mubr.f32.mxu0 %v492
  %1233 = vmatmul.mubr.f32.gmra.mxu0 %v220
  %v1234 = vpop.f32.mrf.mxu0
  %v1235 = vadd.f32 %v850, %v1234
  %v1236 = vpop.f32.mrf.mxu0
  %1237 = vmatprep.mubr.f32.mxu0 %v495
  %1238 = vmatmul.mubr.f32.gmra.mxu0 %v224
  %v1239 = vpop.f32.mrf.mxu0
  %v1240 = vadd.f32 %v855, %v1239
  %v1241 = vpop.f32.mrf.mxu0
  %1242 = vmatprep.mubr.f32.mxu0 %v498
  %1243 = vmatmul.mubr.f32.gmra.mxu0 %v228
  %v1244 = vpop.f32.mrf.mxu0
  %v1245 = vadd.f32 %v860, %v1244
  %v1246 = vpop.f32.mrf.mxu0
  %1247 = vmatprep.mubr.f32.mxu0 %v501
  %1248 = vmatmul.mubr.f32.gmra.mxu0 %v232
  %v1249 = vpop.f32.mrf.mxu0
  %v1250 = vadd.f32 %v865, %v1249
  %v1251 = vpop.f32.mrf.mxu0
  %1252 = vmatprep.mubr.f32.mxu0 %v504
  %1253 = vmatmul.mubr.f32.gmra.mxu0 %v236
  %v1254 = vpop.f32.mrf.mxu0
  %v1255 = vadd.f32 %v870, %v1254
  %v1256 = vpop.f32.mrf.mxu0
  %1257 = vmatprep.mubr.f32.mxu0 %v507
  %1258 = vmatmul.mubr.f32.gmra.mxu0 %v240
  %v1259 = vpop.f32.mrf.mxu0
  %v1260 = vadd.f32 %v875, %v1259
  %v1261 = vpop.f32.mrf.mxu0
  %1262 = vmatprep.mubr.f32.mxu0 %v510
  %1263 = vmatmul.mubr.f32.gmra.mxu0 %v244
  %v1264 = vpop.f32.mrf.mxu0
  %v1265 = vadd.f32 %v880, %v1264
  %v1266 = vpop.f32.mrf.mxu0
  %1267 = vmatprep.mubr.f32.mxu0 %v513
  %1268 = vmatmul.mubr.f32.gmra.mxu0 %v248
  %v1269 = vpop.f32.mrf.mxu0
  %v1270 = vadd.f32 %v885, %v1269
  %v1271 = vpop.f32.mrf.mxu0
  %1272 = vmatprep.mubr.f32.mxu0 %v516
  %1273 = vmatmul.mubr.f32.gmra.mxu0 %v252
  %v1274 = vpop.f32.mrf.mxu0
  %v1275 = vadd.f32 %v890, %v1274
  %v1276 = vpop.f32.mrf.mxu0
  %1277 = vmatprep.mubr.f32.mxu0 %v519
  %1278 = vmatmul.mubr.f32.gmra.mxu0 %v256
  %v1279 = vpop.f32.mrf.mxu0
  %v1280 = vadd.f32 %v895, %v1279
  %v1281 = vpop.f32.mrf.mxu0
  %1282 = vmatprep.mubr.f32.mxu0 %v522
  %1283 = vmatmul.mubr.f32.gmra.mxu0 %v260
  %v1284 = vpop.f32.mrf.mxu0
  %v1285 = vadd.f32 %v900, %v1284
  %v1286 = vpop.f32.mrf.mxu0
  %1287 = vmatprep.mubr.f32.mxu0 %v525
  %1288 = vmatmul.mubr.f32.gmra.mxu0 %v264
  %v1289 = vpop.f32.mrf.mxu0
  %v1290 = vadd.f32 %v905, %v1289
  %v1291 = vpop.f32.mrf.mxu0
  %1292 = vmatprep.mubr.f32.mxu0 %v528
  %1293 = vmatmul.mubr.f32.gmra.mxu0 %v268
  %v1294 = vpop.f32.mrf.mxu0
  %v1295 = vadd.f32 %v910, %v1294
  %v1296 = vpop.f32.mrf.mxu0
  %1297 = vmatprep.mubr.f32.mxu0 %v531
  %1298 = vmatmul.mubr.f32.gmra.mxu0 %v272
  %v1299 = vpop.f32.mrf.mxu0
  %v1300 = vadd.f32 %v915, %v1299
  %v1301 = vpop.f32.mrf.mxu0
  %1302 = vmatprep.mubr.f32.mxu0 %v534
  %1303 = vmatmul.mubr.f32.gmra.mxu0 %v276
  %v1304 = vpop.f32.mrf.mxu0
  %v1305 = vadd.f32 %v920, %v1304
  %v1306 = vpop.f32.mrf.mxu0
  %1307 = vmatprep.mubr.f32.mxu0 %v537
  %1308 = vmatmul.mubr.f32.gmra.mxu0 %v280
  %v1309 = vpop.f32.mrf.mxu0
  %v1310 = vadd.f32 %v925, %v1309
  %v1311 = vpop.f32.mrf.mxu0
  %1312 = vdwg.mxu0
  %v1313 = vmax.f32 %v995, %v1075
  %v1314 = vmax.f32 %v1000, %v1080
  %v1315 = vmax.f32 %v1005, %v1085
  %v1316 = vmax.f32 %v1010, %v1090
  %v1317 = vmax.f32 %v1015, %v1095
  %v1318 = vmax.f32 %v1020, %v1100
  %v1319 = vmax.f32 %v1025, %v1105
  %v1320 = vmax.f32 %v1030, %v1110
  %v1321 = vmax.f32 %v1035, %v1115
  %v1322 = vmax.f32 %v1040, %v1120
  %v1323 = vmax.f32 %v1045, %v1125
  %v1324 = vmax.f32 %v1050, %v1130
  %v1325 = vmax.f32 %v1055, %v1135
  %v1326 = vmax.f32 %v1060, %v1140
  %v1327 = vmax.f32 %v1065, %v1145
  %v1328 = vmax.f32 %v1070, %v1150
  %v1329 = vmax.f32 %v1155, %v1235
  %v1330 = vmax.f32 %v1160, %v1240
  %v1331 = vmax.f32 %v1165, %v1245
  %v1332 = vmax.f32 %v1170, %v1250
  %v1333 = vmax.f32 %v1175, %v1255
  %v1334 = vmax.f32 %v1180, %v1260
  %v1335 = vmax.f32 %v1185, %v1265
  %v1336 = vmax.f32 %v1190, %v1270
  %v1337 = vmax.f32 %v1195, %v1275
  %v1338 = vmax.f32 %v1200, %v1280
  %v1339 = vmax.f32 %v1205, %v1285
  %v1340 = vmax.f32 %v1210, %v1290
  %v1341 = vmax.f32 %v1215, %v1295
  %v1342 = vmax.f32 %v1220, %v1300
  %v1343 = vmax.f32 %v1225, %v1305
  %v1344 = vmax.f32 %v1230, %v1310
  %v1345 = vmax.f32 %v1313, %v1329
  %v1346 = vmax.f32 %v1314, %v1330
  %v1347 = vmax.f32 %v1315, %v1331
  %v1348 = vmax.f32 %v1316, %v1332
  %v1349 = vmax.f32 %v1317, %v1333
  %v1350 = vmax.f32 %v1318, %v1334
  %v1351 = vmax.f32 %v1319, %v1335
  %v1352 = vmax.f32 %v1320, %v1336
  %v1353 = vmax.f32 %v1321, %v1337
  %v1354 = vmax.f32 %v1322, %v1338
  %v1355 = vmax.f32 %v1323, %v1339
  %v1356 = vmax.f32 %v1324, %v1340
  %v1357 = vmax.f32 %v1325, %v1341
  %v1358 = vmax.f32 %v1326, %v1342
  %v1359 = vmax.f32 %v1327, %v1343
  %v1360 = vmax.f32 %v1328, %v1344
  %v1362 = vlaneseq
  %v1363 = vshrl.u32 %v1362, 7
  %v1364 = vsub.s32 0, %v1363
  %v1365 = vrot.slane %v345, %v1364
  %v1367 = vadd.f32 %v1345, %v1365
  %v1368 = vadd.f32 %v1346, %v1365
  %v1369 = vadd.f32 %v1347, %v1365
  %v1370 = vadd.f32 %v1348, %v1365
  %v1371 = vadd.f32 %v1349, %v1365
  %v1372 = vadd.f32 %v1350, %v1365
  %v1373 = vadd.f32 %v1351, %v1365
  %v1374 = vadd.f32 %v1352, %v1365
  %v1375 = vadd.f32 %v1353, %v1365
  %v1376 = vadd.f32 %v1354, %v1365
  %v1377 = vadd.f32 %v1355, %v1365
  %v1378 = vadd.f32 %v1356, %v1365
  %v1379 = vadd.f32 %v1357, %v1365
  %v1380 = vadd.f32 %v1358, %v1365
  %v1381 = vadd.f32 %v1359, %v1365
  %v1382 = vadd.f32 %v1360, %v1365
  %v1383 = vmax.f32 %v1367, 0.0
  %v1384 = vmax.f32 %v1368, 0.0
  %v1385 = vmax.f32 %v1369, 0.0
  %v1386 = vmax.f32 %v1370, 0.0
  %v1387 = vmax.f32 %v1371, 0.0
  %v1388 = vmax.f32 %v1372, 0.0
  %v1389 = vmax.f32 %v1373, 0.0
  %v1390 = vmax.f32 %v1374, 0.0
  %v1391 = vmax.f32 %v1375, 0.0
  %v1392 = vmax.f32 %v1376, 0.0
  %v1393 = vmax.f32 %v1377, 0.0
  %v1394 = vmax.f32 %v1378, 0.0
  %v1395 = vmax.f32 %v1379, 0.0
  %v1396 = vmax.f32 %v1380, 0.0
  %v1397 = vmax.f32 %v1381, 0.0
  %v1398 = vmax.f32 %v1382, 0.0
  %v1399 = vld [vmem:[%s3] sm:$0xff]
  %v1400 = vld [vmem:[%s3 + $0x8] sm:$0xff]
  %v1401 = vld [vmem:[%s3 + $0x10] sm:$0xff]
  %v1402 = vld [vmem:[%s3 + $0x18] sm:$0xff]
  %v1403 = vld [vmem:[%s3 + $0x20] sm:$0xff]
  %v1404 = vld [vmem:[%s3 + $0x28] sm:$0xff]
  %v1405 = vld [vmem:[%s3 + $0x30] sm:$0xff]
  %v1406 = vld [vmem:[%s3 + $0x38] sm:$0xff]
  %v1407 = vld [vmem:[%s3 + $0x40] sm:$0xff]
  %v1408 = vld [vmem:[%s3 + $0x48] sm:$0xff]
  %v1409 = vld [vmem:[%s3 + $0x50] sm:$0xff]
  %v1410 = vld [vmem:[%s3 + $0x58] sm:$0xff]
  %v1411 = vld [vmem:[%s3 + $0x60] sm:$0xff]
  %v1412 = vld [vmem:[%s3 + $0x68] sm:$0xff]
  %v1413 = vld [vmem:[%s3 + $0x70] sm:$0xff]
  %v1414 = vld [vmem:[%s3 + $0x78] sm:$0xff]
  %v1415 = vld [vmem:[%s3 + $0x80] sm:$0xff]
  %v1416 = vld [vmem:[%s3 + $0x88] sm:$0xff]
  %v1417 = vld [vmem:[%s3 + $0x90] sm:$0xff]
  %v1418 = vld [vmem:[%s3 + $0x98] sm:$0xff]
  %v1419 = vld [vmem:[%s3 + $0xa0] sm:$0xff]
  %v1420 = vld [vmem:[%s3 + $0xa8] sm:$0xff]
  %v1421 = vld [vmem:[%s3 + $0xb0] sm:$0xff]
  %v1422 = vld [vmem:[%s3 + $0xb8] sm:$0xff]
  %v1423 = vld [vmem:[%s3 + $0xc0] sm:$0x3]
  %v1424 = vld [vmem:[%s3 + $0xc8] sm:$0x3]
  %v1425 = vld [vmem:[%s3 + $0xd0] sm:$0x3]
  %v1426 = vld [vmem:[%s3 + $0xd8] sm:$0x3]
  %s1427 = scalar_lea.vmem %s3, 224
  %v1428 = vld [vmem:[%s1427] sm:$0xff]
  %v1429 = vld [vmem:[%s1427 + $0x8] sm:$0xff]
  %v1430 = vld [vmem:[%s1427 + $0x10] sm:$0xff]
  %v1431 = vld [vmem:[%s1427 + $0x18] sm:$0xff]
  %v1432 = vld [vmem:[%s1427 + $0x20] sm:$0xff]
  %v1433 = vld [vmem:[%s1427 + $0x28] sm:$0xff]
  %v1434 = vld [vmem:[%s1427 + $0x30] sm:$0xff]
  %v1435 = vld [vmem:[%s1427 + $0x38] sm:$0xff]
  %v1436 = vld [vmem:[%s1427 + $0x40] sm:$0xff]
  %v1437 = vld [vmem:[%s1427 + $0x48] sm:$0xff]
  %v1438 = vld [vmem:[%s1427 + $0x50] sm:$0xff]
  %v1439 = vld [vmem:[%s1427 + $0x58] sm:$0xff]
  %v1440 = vld [vmem:[%s1427 + $0x60] sm:$0xff]
  %v1441 = vld [vmem:[%s1427 + $0x68] sm:$0xff]
  %v1442 = vld [vmem:[%s1427 + $0x70] sm:$0xff]
  %v1443 = vld [vmem:[%s1427 + $0x78] sm:$0xff]
  %v1444 = vld [vmem:[%s1427 + $0x80] sm:$0xff]
  %v1445 = vld [vmem:[%s1427 + $0x88] sm:$0xff]
  %v1446 = vld [vmem:[%s1427 + $0x90] sm:$0xff]
  %v1447 = vld [vmem:[%s1427 + $0x98] sm:$0xff]
  %v1448 = vld [vmem:[%s1427 + $0xa0] sm:$0xff]
  %v1449 = vld [vmem:[%s1427 + $0xa8] sm:$0xff]
  %v1450 = vld [vmem:[%s1427 + $0xb0] sm:$0xff]
  %v1451 = vld [vmem:[%s1427 + $0xb8] sm:$0xff]
  %v1452 = vld [vmem:[%s1427 + $0xc0] sm:$0x3]
  %v1453 = vld [vmem:[%s1427 + $0xc8] sm:$0x3]
  %v1454 = vld [vmem:[%s1427 + $0xd0] sm:$0x3]
  %v1455 = vld [vmem:[%s1427 + $0xd8] sm:$0x3]
  %vm1456 = vcmask 408576
  %v1458 = vsel %vm1456, %v1384, 0
  %vm1460 = vcmask 1041408
  %v1462 = vsel %vm1460, %v1452, 0
  %v1465 = vsel %vm1460, %v1453, 0
  %v1468 = vsel %vm1460, %v1454, 0
  %v1471 = vsel %vm1460, %v1455, 0
  %1473 = vmatprep.subr.mxu0 0.0
  %1474 = vmatpush1.msra.mxu0 0.0
  %1475 = vmatprep.subr.mxu0 0.0
  %1476 = vmatpush1.msra.mxu0 0.0
  %1477 = vmatprep.subr.mxu0 0.0
  %1478 = vmatpush1.msra.mxu0 0.0
  %1479 = vmatprep.subr.mxu0 0.0
  %1480 = vmatpush1.msra.mxu0 0.0
  %1481 = vmatprep.subr.mxu0 0.0
  %1482 = vmatpush1.msra.mxu0 0.0
  %1483 = vmatprep.subr.mxu0 0.0
  %1484 = vmatpush1.msra.mxu0 0.0
  %1485 = vmatprep.subr.mxu0 0.0
  %1486 = vmatpush1.msra.mxu0 0.0
  %1487 = vmatprep.subr.mxu0 0.0
  %1488 = vmatpush1.msra.mxu0 0.0
  %1489 = vmatprep.subr.mxu0 0.0
  %1490 = vmatpush1.msra.mxu0 0.0
  %1491 = vmatprep.subr.mxu0 %v1465
  %1492 = vmatpush1.msra.mxu0 %v1462
  %1493 = vmatprep.subr.mxu0 %v1449
  %1494 = vmatpush1.msra.mxu0 %v1448
  %1495 = vmatprep.subr.mxu0 %v1445
  %1496 = vmatpush1.msra.mxu0 %v1444
  %1497 = vmatprep.subr.mxu0 %v1441
  %1498 = vmatpush1.msra.mxu0 %v1440
  %1499 = vmatprep.subr.mxu0 %v1437
  %1500 = vmatpush1.msra.mxu0 %v1436
  %1501 = vmatprep.subr.mxu0 %v1433
  %1502 = vmatpush1.msra.mxu0 %v1432
  %1503 = vmatprep.subr.mxu0 %v1429
  %1504 = vmatpush1.msra.mxu0 %v1428
  %1505 = vmatprep.subr.mxu0 0.0
  %1506 = vmatpush2.msra.mxu0 0.0
  %1507 = vmatprep.subr.mxu0 0.0
  %1508 = vmatpush2.msra.mxu0 0.0
  %1509 = vmatprep.subr.mxu0 0.0
  %1510 = vmatpush2.msra.mxu0 0.0
  %1511 = vmatprep.subr.mxu0 0.0
  %1512 = vmatpush2.msra.mxu0 0.0
  %1513 = vmatprep.subr.mxu0 0.0
  %1514 = vmatpush2.msra.mxu0 0.0
  %1515 = vmatprep.subr.mxu0 0.0
  %1516 = vmatpush2.msra.mxu0 0.0
  %1517 = vmatprep.subr.mxu0 0.0
  %1518 = vmatpush2.msra.mxu0 0.0
  %1519 = vmatprep.subr.mxu0 0.0
  %1520 = vmatpush2.msra.mxu0 0.0
  %1521 = vmatprep.subr.mxu0 0.0
  %1522 = vmatpush2.msra.mxu0 0.0
  %1523 = vmatprep.subr.mxu0 0.0
  %1524 = vmatpush2.msra.mxu0 0.0
  %1525 = vmatprep.subr.mxu0 0.0
  %1526 = vmatpush2.msra.mxu0 0.0
  %1527 = vmatprep.subr.mxu0 0.0
  %1528 = vmatpush2.msra.mxu0 0.0
  %1529 = vmatprep.subr.mxu0 0.0
  %1530 = vmatpush2.msra.mxu0 0.0
  %1531 = vmatprep.subr.mxu0 0.0
  %1532 = vmatpush2.msra.mxu0 0.0
  %1533 = vmatprep.subr.mxu0 0.0
  %1534 = vmatpush2.msra.mxu0 0.0
  %1535 = vmatprep.subr.mxu0 0.0
  %1536 = vmatpush2.msra.mxu0 0.0
  %1537 = vmatprep.mubr.f32.mxu0 0.0
  %1538 = vmatmul.mubr.f32.gmra.mxu0 %v1458
  %v1539 = vpop.f32.mrf.mxu0
  %v1540 = vadd.f32 0.0, %v1539
  %v1541 = vpop.f32.mrf.mxu0
  %v1542 = vadd.f32 0.0, %v1541
  %1543 = vdwg.mxu0
  %1544 = vmatprep.subr.mxu0 0.0
  %1545 = vmatpush1.msra.mxu0 0.0
  %1546 = vmatprep.subr.mxu0 0.0
  %1547 = vmatpush1.msra.mxu0 0.0
  %1548 = vmatprep.subr.mxu0 0.0
  %1549 = vmatpush1.msra.mxu0 0.0
  %1550 = vmatprep.subr.mxu0 0.0
  %1551 = vmatpush1.msra.mxu0 0.0
  %1552 = vmatprep.subr.mxu0 0.0
  %1553 = vmatpush1.msra.mxu0 0.0
  %1554 = vmatprep.subr.mxu0 0.0
  %1555 = vmatpush1.msra.mxu0 0.0
  %1556 = vmatprep.subr.mxu0 0.0
  %1557 = vmatpush1.msra.mxu0 0.0
  %1558 = vmatprep.subr.mxu0 0.0
  %1559 = vmatpush1.msra.mxu0 0.0
  %1560 = vmatprep.subr.mxu0 0.0
  %1561 = vmatpush1.msra.mxu0 0.0
  %1562 = vmatprep.subr.mxu0 %v1471
  %1563 = vmatpush1.msra.mxu0 %v1468
  %1564 = vmatprep.subr.mxu0 %v1451
  %1565 = vmatpush1.msra.mxu0 %v1450
  %1566 = vmatprep.subr.mxu0 %v1447
  %1567 = vmatpush1.msra.mxu0 %v1446
  %1568 = vmatprep.subr.mxu0 %v1443
  %1569 = vmatpush1.msra.mxu0 %v1442
  %1570 = vmatprep.subr.mxu0 %v1439
  %1571 = vmatpush1.msra.mxu0 %v1438
  %1572 = vmatprep.subr.mxu0 %v1435
  %1573 = vmatpush1.msra.mxu0 %v1434
  %1574 = vmatprep.subr.mxu0 %v1431
  %1575 = vmatpush1.msra.mxu0 %v1430
  %1576 = vmatprep.subr.mxu0 0.0
  %1577 = vmatpush2.msra.mxu0 0.0
  %1578 = vmatprep.subr.mxu0 0.0
  %1579 = vmatpush2.msra.mxu0 0.0
  %1580 = vmatprep.subr.mxu0 0.0
  %1581 = vmatpush2.msra.mxu0 0.0
  %1582 = vmatprep.subr.mxu0 0.0
  %1583 = vmatpush2.msra.mxu0 0.0
  %1584 = vmatprep.subr.mxu0 0.0
  %1585 = vmatpush2.msra.mxu0 0.0
  %1586 = vmatprep.subr.mxu0 0.0
  %1587 = vmatpush2.msra.mxu0 0.0
  %1588 = vmatprep.subr.mxu0 0.0
  %1589 = vmatpush2.msra.mxu0 0.0
  %1590 = vmatprep.subr.mxu0 0.0
  %1591 = vmatpush2.msra.mxu0 0.0
  %1592 = vmatprep.subr.mxu0 0.0
  %1593 = vmatpush2.msra.mxu0 0.0
  %1594 = vmatprep.subr.mxu0 0.0
  %1595 = vmatpush2.msra.mxu0 0.0
  %1596 = vmatprep.subr.mxu0 0.0
  %1597 = vmatpush2.msra.mxu0 0.0
  %1598 = vmatprep.subr.mxu0 0.0
  %1599 = vmatpush2.msra.mxu0 0.0
  %1600 = vmatprep.subr.mxu0 0.0
  %1601 = vmatpush2.msra.mxu0 0.0
  %1602 = vmatprep.subr.mxu0 0.0
  %1603 = vmatpush2.msra.mxu0 0.0
  %1604 = vmatprep.subr.mxu0 0.0
  %1605 = vmatpush2.msra.mxu0 0.0
  %1606 = vmatprep.subr.mxu0 0.0
  %1607 = vmatpush2.msra.mxu0 0.0
  %1608 = vmatprep.mubr.f32.mxu0 0.0
  %1609 = vmatmul.mubr.f32.gmra.mxu0 %v1458
  %v1610 = vpop.f32.mrf.mxu0
  %v1611 = vadd.f32 0.0, %v1610
  %v1612 = vpop.f32.mrf.mxu0
  %v1613 = vadd.f32 0.0, %v1612
  %1614 = vdwg.mxu0
  %v1616 = vsel %vm1456, %v1383, 0
  %v1619 = vsel %vm1460, %v1423, 0
  %v1622 = vsel %vm1460, %v1424, 0
  %v1625 = vsel %vm1460, %v1425, 0
  %v1628 = vsel %vm1460, %v1426, 0
  %1630 = vmatprep.subr.mxu0 0.0
  %1631 = vmatpush1.msra.mxu0 0.0
  %1632 = vmatprep.subr.mxu0 0.0
  %1633 = vmatpush1.msra.mxu0 0.0
  %1634 = vmatprep.subr.mxu0 0.0
  %1635 = vmatpush1.msra.mxu0 0.0
  %1636 = vmatprep.subr.mxu0 0.0
  %1637 = vmatpush1.msra.mxu0 0.0
  %1638 = vmatprep.subr.mxu0 0.0
  %1639 = vmatpush1.msra.mxu0 0.0
  %1640 = vmatprep.subr.mxu0 0.0
  %1641 = vmatpush1.msra.mxu0 0.0
  %1642 = vmatprep.subr.mxu0 0.0
  %1643 = vmatpush1.msra.mxu0 0.0
  %1644 = vmatprep.subr.mxu0 0.0
  %1645 = vmatpush1.msra.mxu0 0.0
  %1646 = vmatprep.subr.mxu0 0.0
  %1647 = vmatpush1.msra.mxu0 0.0
  %1648 = vmatprep.subr.mxu0 %v1622
  %1649 = vmatpush1.msra.mxu0 %v1619
  %1650 = vmatprep.subr.mxu0 %v1420
  %1651 = vmatpush1.msra.mxu0 %v1419
  %1652 = vmatprep.subr.mxu0 %v1416
  %1653 = vmatpush1.msra.mxu0 %v1415
  %1654 = vmatprep.subr.mxu0 %v1412
  %1655 = vmatpush1.msra.mxu0 %v1411
  %1656 = vmatprep.subr.mxu0 %v1408
  %1657 = vmatpush1.msra.mxu0 %v1407
  %1658 = vmatprep.subr.mxu0 %v1404
  %1659 = vmatpush1.msra.mxu0 %v1403
  %1660 = vmatprep.subr.mxu0 %v1400
  %1661 = vmatpush1.msra.mxu0 %v1399
  %1662 = vmatprep.subr.mxu0 0.0
  %1663 = vmatpush2.msra.mxu0 0.0
  %1664 = vmatprep.subr.mxu0 0.0
  %1665 = vmatpush2.msra.mxu0 0.0
  %1666 = vmatprep.subr.mxu0 0.0
  %1667 = vmatpush2.msra.mxu0 0.0
  %1668 = vmatprep.subr.mxu0 0.0
  %1669 = vmatpush2.msra.mxu0 0.0
  %1670 = vmatprep.subr.mxu0 0.0
  %1671 = vmatpush2.msra.mxu0 0.0
  %1672 = vmatprep.subr.mxu0 0.0
  %1673 = vmatpush2.msra.mxu0 0.0
  %1674 = vmatprep.subr.mxu0 0.0
  %1675 = vmatpush2.msra.mxu0 0.0
  %1676 = vmatprep.subr.mxu0 0.0
  %1677 = vmatpush2.msra.mxu0 0.0
  %1678 = vmatprep.subr.mxu0 0.0
  %1679 = vmatpush2.msra.mxu0 0.0
  %1680 = vmatprep.subr.mxu0 0.0
  %1681 = vmatpush2.msra.mxu0 0.0
  %1682 = vmatprep.subr.mxu0 0.0
  %1683 = vmatpush2.msra.mxu0 0.0
  %1684 = vmatprep.subr.mxu0 0.0
  %1685 = vmatpush2.msra.mxu0 0.0
  %1686 = vmatprep.subr.mxu0 0.0
  %1687 = vmatpush2.msra.mxu0 0.0
  %1688 = vmatprep.subr.mxu0 0.0
  %1689 = vmatpush2.msra.mxu0 0.0
  %1690 = vmatprep.subr.mxu0 0.0
  %1691 = vmatpush2.msra.mxu0 0.0
  %1692 = vmatprep.subr.mxu0 0.0
  %1693 = vmatpush2.msra.mxu0 0.0
  %1694 = vmatprep.mubr.f32.mxu0 0.0
  %1695 = vmatmul.mubr.f32.gmra.mxu0 %v1616
  %v1696 = vpop.f32.mrf.mxu0
  %v1697 = vadd.f32 %v1540, %v1696
  %v1698 = vpop.f32.mrf.mxu0
  %v1699 = vadd.f32 %v1542, %v1698
  %1700 = vdwg.mxu0
  %1701 = vmatprep.subr.mxu0 0.0
  %1702 = vmatpush1.msra.mxu0 0.0
  %1703 = vmatprep.subr.mxu0 0.0
  %1704 = vmatpush1.msra.mxu0 0.0
  %1705 = vmatprep.subr.mxu0 0.0
  %1706 = vmatpush1.msra.mxu0 0.0
  %1707 = vmatprep.subr.mxu0 0.0
  %1708 = vmatpush1.msra.mxu0 0.0
  %1709 = vmatprep.subr.mxu0 0.0
  %1710 = vmatpush1.msra.mxu0 0.0
  %1711 = vmatprep.subr.mxu0 0.0
  %1712 = vmatpush1.msra.mxu0 0.0
  %1713 = vmatprep.subr.mxu0 0.0
  %1714 = vmatpush1.msra.mxu0 0.0
  %1715 = vmatprep.subr.mxu0 0.0
  %1716 = vmatpush1.msra.mxu0 0.0
  %1717 = vmatprep.subr.mxu0 0.0
  %1718 = vmatpush1.msra.mxu0 0.0
  %1719 = vmatprep.subr.mxu0 %v1628
  %1720 = vmatpush1.msra.mxu0 %v1625
  %1721 = vmatprep.subr.mxu0 %v1422
  %1722 = vmatpush1.msra.mxu0 %v1421
  %1723 = vmatprep.subr.mxu0 %v1418
  %1724 = vmatpush1.msra.mxu0 %v1417
  %1725 = vmatprep.subr.mxu0 %v1414
  %1726 = vmatpush1.msra.mxu0 %v1413
  %1727 = vmatprep.subr.mxu0 %v1410
  %1728 = vmatpush1.msra.mxu0 %v1409
  %1729 = vmatprep.subr.mxu0 %v1406
  %1730 = vmatpush1.msra.mxu0 %v1405
  %1731 = vmatprep.subr.mxu0 %v1402
  %1732 = vmatpush1.msra.mxu0 %v1401
  %1733 = vmatprep.subr.mxu0 0.0
  %1734 = vmatpush2.msra.mxu0 0.0
  %1735 = vmatprep.subr.mxu0 0.0
  %1736 = vmatpush2.msra.mxu0 0.0
  %1737 = vmatprep.subr.mxu0 0.0
  %1738 = vmatpush2.msra.mxu0 0.0
  %1739 = vmatprep.subr.mxu0 0.0
  %1740 = vmatpush2.msra.mxu0 0.0
  %1741 = vmatprep.subr.mxu0 0.0
  %1742 = vmatpush2.msra.mxu0 0.0
  %1743 = vmatprep.subr.mxu0 0.0
  %1744 = vmatpush2.msra.mxu0 0.0
  %1745 = vmatprep.subr.mxu0 0.0
  %1746 = vmatpush2.msra.mxu0 0.0
  %1747 = vmatprep.subr.mxu0 0.0
  %1748 = vmatpush2.msra.mxu0 0.0
  %1749 = vmatprep.subr.mxu0 0.0
  %1750 = vmatpush2.msra.mxu0 0.0
  %1751 = vmatprep.subr.mxu0 0.0
  %1752 = vmatpush2.msra.mxu0 0.0
  %1753 = vmatprep.subr.mxu0 0.0
  %1754 = vmatpush2.msra.mxu0 0.0
  %1755 = vmatprep.subr.mxu0 0.0
  %1756 = vmatpush2.msra.mxu0 0.0
  %1757 = vmatprep.subr.mxu0 0.0
  %1758 = vmatpush2.msra.mxu0 0.0
  %1759 = vmatprep.subr.mxu0 0.0
  %1760 = vmatpush2.msra.mxu0 0.0
  %1761 = vmatprep.subr.mxu0 0.0
  %1762 = vmatpush2.msra.mxu0 0.0
  %1763 = vmatprep.subr.mxu0 0.0
  %1764 = vmatpush2.msra.mxu0 0.0
  %1765 = vmatprep.mubr.f32.mxu0 0.0
  %1766 = vmatmul.mubr.f32.gmra.mxu0 %v1616
  %v1767 = vpop.f32.mrf.mxu0
  %v1768 = vadd.f32 %v1611, %v1767
  %v1769 = vpop.f32.mrf.mxu0
  %v1770 = vadd.f32 %v1613, %v1769
  %1771 = vdwg.mxu0
  %s1772 = scalar_lea.vmem %s3, 448
  %v1773 = vld [vmem:[%s1772] sm:$0xff]
  %v1774 = vld [vmem:[%s1772 + $0x8] sm:$0xff]
  %v1775 = vld [vmem:[%s1772 + $0x10] sm:$0xff]
  %v1776 = vld [vmem:[%s1772 + $0x18] sm:$0xff]
  %v1777 = vld [vmem:[%s1772 + $0x20] sm:$0xff]
  %v1778 = vld [vmem:[%s1772 + $0x28] sm:$0xff]
  %v1779 = vld [vmem:[%s1772 + $0x30] sm:$0xff]
  %v1780 = vld [vmem:[%s1772 + $0x38] sm:$0xff]
  %v1781 = vld [vmem:[%s1772 + $0x40] sm:$0xff]
  %v1782 = vld [vmem:[%s1772 + $0x48] sm:$0xff]
  %v1783 = vld [vmem:[%s1772 + $0x50] sm:$0xff]
  %v1784 = vld [vmem:[%s1772 + $0x58] sm:$0xff]
  %v1785 = vld [vmem:[%s1772 + $0x60] sm:$0xff]
  %v1786 = vld [vmem:[%s1772 + $0x68] sm:$0xff]
  %v1787 = vld [vmem:[%s1772 + $0x70] sm:$0xff]
  %v1788 = vld [vmem:[%s1772 + $0x78] sm:$0xff]
  %v1789 = vld [vmem:[%s1772 + $0x80] sm:$0xff]
  %v1790 = vld [vmem:[%s1772 + $0x88] sm:$0xff]
  %v1791 = vld [vmem:[%s1772 + $0x90] sm:$0xff]
  %v1792 = vld [vmem:[%s1772 + $0x98] sm:$0xff]
  %v1793 = vld [vmem:[%s1772 + $0xa0] sm:$0xff]
  %v1794 = vld [vmem:[%s1772 + $0xa8] sm:$0xff]
  %v1795 = vld [vmem:[%s1772 + $0xb0] sm:$0xff]
  %v1796 = vld [vmem:[%s1772 + $0xb8] sm:$0xff]
  %v1797 = vld [vmem:[%s1772 + $0xc0] sm:$0x3]
  %v1798 = vld [vmem:[%s1772 + $0xc8] sm:$0x3]
  %v1799 = vld [vmem:[%s1772 + $0xd0] sm:$0x3]
  %v1800 = vld [vmem:[%s1772 + $0xd8] sm:$0x3]
  %v1802 = vsel %vm1456, %v1385, 0
  %v1805 = vsel %vm1460, %v1797, 0
  %v1808 = vsel %vm1460, %v1798, 0
  %v1811 = vsel %vm1460, %v1799, 0
  %v1814 = vsel %vm1460, %v1800, 0
  %1816 = vmatprep.subr.mxu0 0.0
  %1817 = vmatpush1.msra.mxu0 0.0
  %1818 = vmatprep.subr.mxu0 0.0
  %1819 = vmatpush1.msra.mxu0 0.0
  %1820 = vmatprep.subr.mxu0 0.0
  %1821 = vmatpush1.msra.mxu0 0.0
  %1822 = vmatprep.subr.mxu0 0.0
  %1823 = vmatpush1.msra.mxu0 0.0
  %1824 = vmatprep.subr.mxu0 0.0
  %1825 = vmatpush1.msra.mxu0 0.0
  %1826 = vmatprep.subr.mxu0 0.0
  %1827 = vmatpush1.msra.mxu0 0.0
  %1828 = vmatprep.subr.mxu0 0.0
  %1829 = vmatpush1.msra.mxu0 0.0
  %1830 = vmatprep.subr.mxu0 0.0
  %1831 = vmatpush1.msra.mxu0 0.0
  %1832 = vmatprep.subr.mxu0 0.0
  %1833 = vmatpush1.msra.mxu0 0.0
  %1834 = vmatprep.subr.mxu0 %v1808
  %1835 = vmatpush1.msra.mxu0 %v1805
  %1836 = vmatprep.subr.mxu0 %v1794
  %1837 = vmatpush1.msra.mxu0 %v1793
  %1838 = vmatprep.subr.mxu0 %v1790
  %1839 = vmatpush1.msra.mxu0 %v1789
  %1840 = vmatprep.subr.mxu0 %v1786
  %1841 = vmatpush1.msra.mxu0 %v1785
  %1842 = vmatprep.subr.mxu0 %v1782
  %1843 = vmatpush1.msra.mxu0 %v1781
  %1844 = vmatprep.subr.mxu0 %v1778
  %1845 = vmatpush1.msra.mxu0 %v1777
  %1846 = vmatprep.subr.mxu0 %v1774
  %1847 = vmatpush1.msra.mxu0 %v1773
  %1848 = vmatprep.subr.mxu0 0.0
  %1849 = vmatpush2.msra.mxu0 0.0
  %1850 = vmatprep.subr.mxu0 0.0
  %1851 = vmatpush2.msra.mxu0 0.0
  %1852 = vmatprep.subr.mxu0 0.0
  %1853 = vmatpush2.msra.mxu0 0.0
  %1854 = vmatprep.subr.mxu0 0.0
  %1855 = vmatpush2.msra.mxu0 0.0
  %1856 = vmatprep.subr.mxu0 0.0
  %1857 = vmatpush2.msra.mxu0 0.0
  %1858 = vmatprep.subr.mxu0 0.0
  %1859 = vmatpush2.msra.mxu0 0.0
  %1860 = vmatprep.subr.mxu0 0.0
  %1861 = vmatpush2.msra.mxu0 0.0
  %1862 = vmatprep.subr.mxu0 0.0
  %1863 = vmatpush2.msra.mxu0 0.0
  %1864 = vmatprep.subr.mxu0 0.0
  %1865 = vmatpush2.msra.mxu0 0.0
  %1866 = vmatprep.subr.mxu0 0.0
  %1867 = vmatpush2.msra.mxu0 0.0
  %1868 = vmatprep.subr.mxu0 0.0
  %1869 = vmatpush2.msra.mxu0 0.0
  %1870 = vmatprep.subr.mxu0 0.0
  %1871 = vmatpush2.msra.mxu0 0.0
  %1872 = vmatprep.subr.mxu0 0.0
  %1873 = vmatpush2.msra.mxu0 0.0
  %1874 = vmatprep.subr.mxu0 0.0
  %1875 = vmatpush2.msra.mxu0 0.0
  %1876 = vmatprep.subr.mxu0 0.0
  %1877 = vmatpush2.msra.mxu0 0.0
  %1878 = vmatprep.subr.mxu0 0.0
  %1879 = vmatpush2.msra.mxu0 0.0
  %1880 = vmatprep.mubr.f32.mxu0 0.0
  %1881 = vmatmul.mubr.f32.gmra.mxu0 %v1802
  %v1882 = vpop.f32.mrf.mxu0
  %v1883 = vadd.f32 0.0, %v1882
  %v1884 = vpop.f32.mrf.mxu0
  %v1885 = vadd.f32 0.0, %v1884
  %1886 = vdwg.mxu0
  %1887 = vmatprep.subr.mxu0 0.0
  %1888 = vmatpush1.msra.mxu0 0.0
  %1889 = vmatprep.subr.mxu0 0.0
  %1890 = vmatpush1.msra.mxu0 0.0
  %1891 = vmatprep.subr.mxu0 0.0
  %1892 = vmatpush1.msra.mxu0 0.0
  %1893 = vmatprep.subr.mxu0 0.0
  %1894 = vmatpush1.msra.mxu0 0.0
  %1895 = vmatprep.subr.mxu0 0.0
  %1896 = vmatpush1.msra.mxu0 0.0
  %1897 = vmatprep.subr.mxu0 0.0
  %1898 = vmatpush1.msra.mxu0 0.0
  %1899 = vmatprep.subr.mxu0 0.0
  %1900 = vmatpush1.msra.mxu0 0.0
  %1901 = vmatprep.subr.mxu0 0.0
  %1902 = vmatpush1.msra.mxu0 0.0
  %1903 = vmatprep.subr.mxu0 0.0
  %1904 = vmatpush1.msra.mxu0 0.0
  %1905 = vmatprep.subr.mxu0 %v1814
  %1906 = vmatpush1.msra.mxu0 %v1811
  %1907 = vmatprep.subr.mxu0 %v1796
  %1908 = vmatpush1.msra.mxu0 %v1795
  %1909 = vmatprep.subr.mxu0 %v1792
  %1910 = vmatpush1.msra.mxu0 %v1791
  %1911 = vmatprep.subr.mxu0 %v1788
  %1912 = vmatpush1.msra.mxu0 %v1787
  %1913 = vmatprep.subr.mxu0 %v1784
  %1914 = vmatpush1.msra.mxu0 %v1783
  %1915 = vmatprep.subr.mxu0 %v1780
  %1916 = vmatpush1.msra.mxu0 %v1779
  %1917 = vmatprep.subr.mxu0 %v1776
  %1918 = vmatpush1.msra.mxu0 %v1775
  %1919 = vmatprep.subr.mxu0 0.0
  %1920 = vmatpush2.msra.mxu0 0.0
  %1921 = vmatprep.subr.mxu0 0.0
  %1922 = vmatpush2.msra.mxu0 0.0
  %1923 = vmatprep.subr.mxu0 0.0
  %1924 = vmatpush2.msra.mxu0 0.0
  %1925 = vmatprep.subr.mxu0 0.0
  %1926 = vmatpush2.msra.mxu0 0.0
  %1927 = vmatprep.subr.mxu0 0.0
  %1928 = vmatpush2.msra.mxu0 0.0
  %1929 = vmatprep.subr.mxu0 0.0
  %1930 = vmatpush2.msra.mxu0 0.0
  %1931 = vmatprep.subr.mxu0 0.0
  %1932 = vmatpush2.msra.mxu0 0.0
  %1933 = vmatprep.subr.mxu0 0.0
  %1934 = vmatpush2.msra.mxu0 0.0
  %1935 = vmatprep.subr.mxu0 0.0
  %1936 = vmatpush2.msra.mxu0 0.0
  %1937 = vmatprep.subr.mxu0 0.0
  %1938 = vmatpush2.msra.mxu0 0.0
  %1939 = vmatprep.subr.mxu0 0.0
  %1940 = vmatpush2.msra.mxu0 0.0
  %1941 = vmatprep.subr.mxu0 0.0
  %1942 = vmatpush2.msra.mxu0 0.0
  %1943 = vmatprep.subr.mxu0 0.0
  %1944 = vmatpush2.msra.mxu0 0.0
  %1945 = vmatprep.subr.mxu0 0.0
  %1946 = vmatpush2.msra.mxu0 0.0
  %1947 = vmatprep.subr.mxu0 0.0
  %1948 = vmatpush2.msra.mxu0 0.0
  %1949 = vmatprep.subr.mxu0 0.0
  %1950 = vmatpush2.msra.mxu0 0.0
  %1951 = vmatprep.mubr.f32.mxu0 0.0
  %1952 = vmatmul.mubr.f32.gmra.mxu0 %v1802
  %v1953 = vpop.f32.mrf.mxu0
  %v1954 = vadd.f32 0.0, %v1953
  %v1955 = vpop.f32.mrf.mxu0
  %v1956 = vadd.f32 0.0, %v1955
  %1957 = vdwg.mxu0
  %v1958 = vadd.f32 %v1697, %v1883
  %v1959 = vadd.f32 %v1699, %v1885
  %v1960 = vadd.f32 %v1768, %v1954
  %v1961 = vadd.f32 %v1770, %v1956
  %s1962 = scalar_lea.vmem %s3, 672
  %v1963 = vld [vmem:[%s1962] sm:$0xff]
  %v1964 = vld [vmem:[%s1962 + $0x8] sm:$0xff]
  %v1965 = vld [vmem:[%s1962 + $0x10] sm:$0xff]
  %v1966 = vld [vmem:[%s1962 + $0x18] sm:$0xff]
  %v1967 = vld [vmem:[%s1962 + $0x20] sm:$0xff]
  %v1968 = vld [vmem:[%s1962 + $0x28] sm:$0xff]
  %v1969 = vld [vmem:[%s1962 + $0x30] sm:$0xff]
  %v1970 = vld [vmem:[%s1962 + $0x38] sm:$0xff]
  %v1971 = vld [vmem:[%s1962 + $0x40] sm:$0xff]
  %v1972 = vld [vmem:[%s1962 + $0x48] sm:$0xff]
  %v1973 = vld [vmem:[%s1962 + $0x50] sm:$0xff]
  %v1974 = vld [vmem:[%s1962 + $0x58] sm:$0xff]
  %v1975 = vld [vmem:[%s1962 + $0x60] sm:$0xff]
  %v1976 = vld [vmem:[%s1962 + $0x68] sm:$0xff]
  %v1977 = vld [vmem:[%s1962 + $0x70] sm:$0xff]
  %v1978 = vld [vmem:[%s1962 + $0x78] sm:$0xff]
  %v1979 = vld [vmem:[%s1962 + $0x80] sm:$0xff]
  %v1980 = vld [vmem:[%s1962 + $0x88] sm:$0xff]
  %v1981 = vld [vmem:[%s1962 + $0x90] sm:$0xff]
  %v1982 = vld [vmem:[%s1962 + $0x98] sm:$0xff]
  %v1983 = vld [vmem:[%s1962 + $0xa0] sm:$0xff]
  %v1984 = vld [vmem:[%s1962 + $0xa8] sm:$0xff]
  %v1985 = vld [vmem:[%s1962 + $0xb0] sm:$0xff]
  %v1986 = vld [vmem:[%s1962 + $0xb8] sm:$0xff]
  %v1987 = vld [vmem:[%s1962 + $0xc0] sm:$0x3]
  %v1988 = vld [vmem:[%s1962 + $0xc8] sm:$0x3]
  %v1989 = vld [vmem:[%s1962 + $0xd0] sm:$0x3]
  %v1990 = vld [vmem:[%s1962 + $0xd8] sm:$0x3]
  %v1992 = vsel %vm1456, %v1386, 0
  %v1995 = vsel %vm1460, %v1987, 0
  %v1998 = vsel %vm1460, %v1988, 0
  %v2001 = vsel %vm1460, %v1989, 0
  %v2004 = vsel %vm1460, %v1990, 0
  %2006 = vmatprep.subr.mxu0 0.0
  %2007 = vmatpush1.msra.mxu0 0.0
  %2008 = vmatprep.subr.mxu0 0.0
  %2009 = vmatpush1.msra.mxu0 0.0
  %2010 = vmatprep.subr.mxu0 0.0
  %2011 = vmatpush1.msra.mxu0 0.0
  %2012 = vmatprep.subr.mxu0 0.0
  %2013 = vmatpush1.msra.mxu0 0.0
  %2014 = vmatprep.subr.mxu0 0.0
  %2015 = vmatpush1.msra.mxu0 0.0
  %2016 = vmatprep.subr.mxu0 0.0
  %2017 = vmatpush1.msra.mxu0 0.0
  %2018 = vmatprep.subr.mxu0 0.0
  %2019 = vmatpush1.msra.mxu0 0.0
  %2020 = vmatprep.subr.mxu0 0.0
  %2021 = vmatpush1.msra.mxu0 0.0
  %2022 = vmatprep.subr.mxu0 0.0
  %2023 = vmatpush1.msra.mxu0 0.0
  %2024 = vmatprep.subr.mxu0 %v1998
  %2025 = vmatpush1.msra.mxu0 %v1995
  %2026 = vmatprep.subr.mxu0 %v1984
  %2027 = vmatpush1.msra.mxu0 %v1983
  %2028 = vmatprep.subr.mxu0 %v1980
  %2029 = vmatpush1.msra.mxu0 %v1979
  %2030 = vmatprep.subr.mxu0 %v1976
  %2031 = vmatpush1.msra.mxu0 %v1975
  %2032 = vmatprep.subr.mxu0 %v1972
  %2033 = vmatpush1.msra.mxu0 %v1971
  %2034 = vmatprep.subr.mxu0 %v1968
  %2035 = vmatpush1.msra.mxu0 %v1967
  %2036 = vmatprep.subr.mxu0 %v1964
  %2037 = vmatpush1.msra.mxu0 %v1963
  %2038 = vmatprep.subr.mxu0 0.0
  %2039 = vmatpush2.msra.mxu0 0.0
  %2040 = vmatprep.subr.mxu0 0.0
  %2041 = vmatpush2.msra.mxu0 0.0
  %2042 = vmatprep.subr.mxu0 0.0
  %2043 = vmatpush2.msra.mxu0 0.0
  %2044 = vmatprep.subr.mxu0 0.0
  %2045 = vmatpush2.msra.mxu0 0.0
  %2046 = vmatprep.subr.mxu0 0.0
  %2047 = vmatpush2.msra.mxu0 0.0
  %2048 = vmatprep.subr.mxu0 0.0
  %2049 = vmatpush2.msra.mxu0 0.0
  %2050 = vmatprep.subr.mxu0 0.0
  %2051 = vmatpush2.msra.mxu0 0.0
  %2052 = vmatprep.subr.mxu0 0.0
  %2053 = vmatpush2.msra.mxu0 0.0
  %2054 = vmatprep.subr.mxu0 0.0
  %2055 = vmatpush2.msra.mxu0 0.0
  %2056 = vmatprep.subr.mxu0 0.0
  %2057 = vmatpush2.msra.mxu0 0.0
  %2058 = vmatprep.subr.mxu0 0.0
  %2059 = vmatpush2.msra.mxu0 0.0
  %2060 = vmatprep.subr.mxu0 0.0
  %2061 = vmatpush2.msra.mxu0 0.0
  %2062 = vmatprep.subr.mxu0 0.0
  %2063 = vmatpush2.msra.mxu0 0.0
  %2064 = vmatprep.subr.mxu0 0.0
  %2065 = vmatpush2.msra.mxu0 0.0
  %2066 = vmatprep.subr.mxu0 0.0
  %2067 = vmatpush2.msra.mxu0 0.0
  %2068 = vmatprep.subr.mxu0 0.0
  %2069 = vmatpush2.msra.mxu0 0.0
  %2070 = vmatprep.mubr.f32.mxu0 0.0
  %2071 = vmatmul.mubr.f32.gmra.mxu0 %v1992
  %v2072 = vpop.f32.mrf.mxu0
  %v2073 = vadd.f32 0.0, %v2072
  %v2074 = vpop.f32.mrf.mxu0
  %v2075 = vadd.f32 0.0, %v2074
  %2076 = vdwg.mxu0
  %2077 = vmatprep.subr.mxu0 0.0
  %2078 = vmatpush1.msra.mxu0 0.0
  %2079 = vmatprep.subr.mxu0 0.0
  %2080 = vmatpush1.msra.mxu0 0.0
  %2081 = vmatprep.subr.mxu0 0.0
  %2082 = vmatpush1.msra.mxu0 0.0
  %2083 = vmatprep.subr.mxu0 0.0
  %2084 = vmatpush1.msra.mxu0 0.0
  %2085 = vmatprep.subr.mxu0 0.0
  %2086 = vmatpush1.msra.mxu0 0.0
  %2087 = vmatprep.subr.mxu0 0.0
  %2088 = vmatpush1.msra.mxu0 0.0
  %2089 = vmatprep.subr.mxu0 0.0
  %2090 = vmatpush1.msra.mxu0 0.0
  %2091 = vmatprep.subr.mxu0 0.0
  %2092 = vmatpush1.msra.mxu0 0.0
  %2093 = vmatprep.subr.mxu0 0.0
  %2094 = vmatpush1.msra.mxu0 0.0
  %2095 = vmatprep.subr.mxu0 %v2004
  %2096 = vmatpush1.msra.mxu0 %v2001
  %2097 = vmatprep.subr.mxu0 %v1986
  %2098 = vmatpush1.msra.mxu0 %v1985
  %2099 = vmatprep.subr.mxu0 %v1982
  %2100 = vmatpush1.msra.mxu0 %v1981
  %2101 = vmatprep.subr.mxu0 %v1978
  %2102 = vmatpush1.msra.mxu0 %v1977
  %2103 = vmatprep.subr.mxu0 %v1974
  %2104 = vmatpush1.msra.mxu0 %v1973
  %2105 = vmatprep.subr.mxu0 %v1970
  %2106 = vmatpush1.msra.mxu0 %v1969
  %2107 = vmatprep.subr.mxu0 %v1966
  %2108 = vmatpush1.msra.mxu0 %v1965
  %2109 = vmatprep.subr.mxu0 0.0
  %2110 = vmatpush2.msra.mxu0 0.0
  %2111 = vmatprep.subr.mxu0 0.0
  %2112 = vmatpush2.msra.mxu0 0.0
  %2113 = vmatprep.subr.mxu0 0.0
  %2114 = vmatpush2.msra.mxu0 0.0
  %2115 = vmatprep.subr.mxu0 0.0
  %2116 = vmatpush2.msra.mxu0 0.0
  %2117 = vmatprep.subr.mxu0 0.0
  %2118 = vmatpush2.msra.mxu0 0.0
  %2119 = vmatprep.subr.mxu0 0.0
  %2120 = vmatpush2.msra.mxu0 0.0
  %2121 = vmatprep.subr.mxu0 0.0
  %2122 = vmatpush2.msra.mxu0 0.0
  %2123 = vmatprep.subr.mxu0 0.0
  %2124 = vmatpush2.msra.mxu0 0.0
  %2125 = vmatprep.subr.mxu0 0.0
  %2126 = vmatpush2.msra.mxu0 0.0
  %2127 = vmatprep.subr.mxu0 0.0
  %2128 = vmatpush2.msra.mxu0 0.0
  %2129 = vmatprep.subr.mxu0 0.0
  %2130 = vmatpush2.msra.mxu0 0.0
  %2131 = vmatprep.subr.mxu0 0.0
  %2132 = vmatpush2.msra.mxu0 0.0
  %2133 = vmatprep.subr.mxu0 0.0
  %2134 = vmatpush2.msra.mxu0 0.0
  %2135 = vmatprep.subr.mxu0 0.0
  %2136 = vmatpush2.msra.mxu0 0.0
  %2137 = vmatprep.subr.mxu0 0.0
  %2138 = vmatpush2.msra.mxu0 0.0
  %2139 = vmatprep.subr.mxu0 0.0
  %2140 = vmatpush2.msra.mxu0 0.0
  %2141 = vmatprep.mubr.f32.mxu0 0.0
  %2142 = vmatmul.mubr.f32.gmra.mxu0 %v1992
  %v2143 = vpop.f32.mrf.mxu0
  %v2144 = vadd.f32 0.0, %v2143
  %v2145 = vpop.f32.mrf.mxu0
  %v2146 = vadd.f32 0.0, %v2145
  %2147 = vdwg.mxu0
  %v2148 = vadd.f32 %v1958, %v2073
  %v2149 = vadd.f32 %v1959, %v2075
  %v2150 = vadd.f32 %v1960, %v2144
  %v2151 = vadd.f32 %v1961, %v2146
  %s2152 = scalar_lea.vmem %s3, 896
  %v2153 = vld [vmem:[%s2152] sm:$0xff]
  %v2154 = vld [vmem:[%s2152 + $0x8] sm:$0xff]
  %v2155 = vld [vmem:[%s2152 + $0x10] sm:$0xff]
  %v2156 = vld [vmem:[%s2152 + $0x18] sm:$0xff]
  %v2157 = vld [vmem:[%s2152 + $0x20] sm:$0xff]
  %v2158 = vld [vmem:[%s2152 + $0x28] sm:$0xff]
  %v2159 = vld [vmem:[%s2152 + $0x30] sm:$0xff]
  %v2160 = vld [vmem:[%s2152 + $0x38] sm:$0xff]
  %v2161 = vld [vmem:[%s2152 + $0x40] sm:$0xff]
  %v2162 = vld [vmem:[%s2152 + $0x48] sm:$0xff]
  %v2163 = vld [vmem:[%s2152 + $0x50] sm:$0xff]
  %v2164 = vld [vmem:[%s2152 + $0x58] sm:$0xff]
  %v2165 = vld [vmem:[%s2152 + $0x60] sm:$0xff]
  %v2166 = vld [vmem:[%s2152 + $0x68] sm:$0xff]
  %v2167 = vld [vmem:[%s2152 + $0x70] sm:$0xff]
  %v2168 = vld [vmem:[%s2152 + $0x78] sm:$0xff]
  %v2169 = vld [vmem:[%s2152 + $0x80] sm:$0xff]
  %v2170 = vld [vmem:[%s2152 + $0x88] sm:$0xff]
  %v2171 = vld [vmem:[%s2152 + $0x90] sm:$0xff]
  %v2172 = vld [vmem:[%s2152 + $0x98] sm:$0xff]
  %v2173 = vld [vmem:[%s2152 + $0xa0] sm:$0xff]
  %v2174 = vld [vmem:[%s2152 + $0xa8] sm:$0xff]
  %v2175 = vld [vmem:[%s2152 + $0xb0] sm:$0xff]
  %v2176 = vld [vmem:[%s2152 + $0xb8] sm:$0xff]
  %v2177 = vld [vmem:[%s2152 + $0xc0] sm:$0x3]
  %v2178 = vld [vmem:[%s2152 + $0xc8] sm:$0x3]
  %v2179 = vld [vmem:[%s2152 + $0xd0] sm:$0x3]
  %v2180 = vld [vmem:[%s2152 + $0xd8] sm:$0x3]
  %v2182 = vsel %vm1456, %v1387, 0
  %v2185 = vsel %vm1460, %v2177, 0
  %v2188 = vsel %vm1460, %v2178, 0
  %v2191 = vsel %vm1460, %v2179, 0
  %v2194 = vsel %vm1460, %v2180, 0
  %2196 = vmatprep.subr.mxu0 0.0
  %2197 = vmatpush1.msra.mxu0 0.0
  %2198 = vmatprep.subr.mxu0 0.0
  %2199 = vmatpush1.msra.mxu0 0.0
  %2200 = vmatprep.subr.mxu0 0.0
  %2201 = vmatpush1.msra.mxu0 0.0
  %2202 = vmatprep.subr.mxu0 0.0
  %2203 = vmatpush1.msra.mxu0 0.0
  %2204 = vmatprep.subr.mxu0 0.0
  %2205 = vmatpush1.msra.mxu0 0.0
  %2206 = vmatprep.subr.mxu0 0.0
  %2207 = vmatpush1.msra.mxu0 0.0
  %2208 = vmatprep.subr.mxu0 0.0
  %2209 = vmatpush1.msra.mxu0 0.0
  %2210 = vmatprep.subr.mxu0 0.0
  %2211 = vmatpush1.msra.mxu0 0.0
  %2212 = vmatprep.subr.mxu0 0.0
  %2213 = vmatpush1.msra.mxu0 0.0
  %2214 = vmatprep.subr.mxu0 %v2188
  %2215 = vmatpush1.msra.mxu0 %v2185
  %2216 = vmatprep.subr.mxu0 %v2174
  %2217 = vmatpush1.msra.mxu0 %v2173
  %2218 = vmatprep.subr.mxu0 %v2170
  %2219 = vmatpush1.msra.mxu0 %v2169
  %2220 = vmatprep.subr.mxu0 %v2166
  %2221 = vmatpush1.msra.mxu0 %v2165
  %2222 = vmatprep.subr.mxu0 %v2162
  %2223 = vmatpush1.msra.mxu0 %v2161
  %2224 = vmatprep.subr.mxu0 %v2158
  %2225 = vmatpush1.msra.mxu0 %v2157
  %2226 = vmatprep.subr.mxu0 %v2154
  %2227 = vmatpush1.msra.mxu0 %v2153
  %2228 = vmatprep.subr.mxu0 0.0
  %2229 = vmatpush2.msra.mxu0 0.0
  %2230 = vmatprep.subr.mxu0 0.0
  %2231 = vmatpush2.msra.mxu0 0.0
  %2232 = vmatprep.subr.mxu0 0.0
  %2233 = vmatpush2.msra.mxu0 0.0
  %2234 = vmatprep.subr.mxu0 0.0
  %2235 = vmatpush2.msra.mxu0 0.0
  %2236 = vmatprep.subr.mxu0 0.0
  %2237 = vmatpush2.msra.mxu0 0.0
  %2238 = vmatprep.subr.mxu0 0.0
  %2239 = vmatpush2.msra.mxu0 0.0
  %2240 = vmatprep.subr.mxu0 0.0
  %2241 = vmatpush2.msra.mxu0 0.0
  %2242 = vmatprep.subr.mxu0 0.0
  %2243 = vmatpush2.msra.mxu0 0.0
  %2244 = vmatprep.subr.mxu0 0.0
  %2245 = vmatpush2.msra.mxu0 0.0
  %2246 = vmatprep.subr.mxu0 0.0
  %2247 = vmatpush2.msra.mxu0 0.0
  %2248 = vmatprep.subr.mxu0 0.0
  %2249 = vmatpush2.msra.mxu0 0.0
  %2250 = vmatprep.subr.mxu0 0.0
  %2251 = vmatpush2.msra.mxu0 0.0
  %2252 = vmatprep.subr.mxu0 0.0
  %2253 = vmatpush2.msra.mxu0 0.0
  %2254 = vmatprep.subr.mxu0 0.0
  %2255 = vmatpush2.msra.mxu0 0.0
  %2256 = vmatprep.subr.mxu0 0.0
  %2257 = vmatpush2.msra.mxu0 0.0
  %2258 = vmatprep.subr.mxu0 0.0
  %2259 = vmatpush2.msra.mxu0 0.0
  %2260 = vmatprep.mubr.f32.mxu0 0.0
  %2261 = vmatmul.mubr.f32.gmra.mxu0 %v2182
  %v2262 = vpop.f32.mrf.mxu0
  %v2263 = vadd.f32 0.0, %v2262
  %v2264 = vpop.f32.mrf.mxu0
  %v2265 = vadd.f32 0.0, %v2264
  %2266 = vdwg.mxu0
  %2267 = vmatprep.subr.mxu0 0.0
  %2268 = vmatpush1.msra.mxu0 0.0
  %2269 = vmatprep.subr.mxu0 0.0
  %2270 = vmatpush1.msra.mxu0 0.0
  %2271 = vmatprep.subr.mxu0 0.0
  %2272 = vmatpush1.msra.mxu0 0.0
  %2273 = vmatprep.subr.mxu0 0.0
  %2274 = vmatpush1.msra.mxu0 0.0
  %2275 = vmatprep.subr.mxu0 0.0
  %2276 = vmatpush1.msra.mxu0 0.0
  %2277 = vmatprep.subr.mxu0 0.0
  %2278 = vmatpush1.msra.mxu0 0.0
  %2279 = vmatprep.subr.mxu0 0.0
  %2280 = vmatpush1.msra.mxu0 0.0
  %2281 = vmatprep.subr.mxu0 0.0
  %2282 = vmatpush1.msra.mxu0 0.0
  %2283 = vmatprep.subr.mxu0 0.0
  %2284 = vmatpush1.msra.mxu0 0.0
  %2285 = vmatprep.subr.mxu0 %v2194
  %2286 = vmatpush1.msra.mxu0 %v2191
  %2287 = vmatprep.subr.mxu0 %v2176
  %2288 = vmatpush1.msra.mxu0 %v2175
  %2289 = vmatprep.subr.mxu0 %v2172
  %2290 = vmatpush1.msra.mxu0 %v2171
  %2291 = vmatprep.subr.mxu0 %v2168
  %2292 = vmatpush1.msra.mxu0 %v2167
  %2293 = vmatprep.subr.mxu0 %v2164
  %2294 = vmatpush1.msra.mxu0 %v2163
  %2295 = vmatprep.subr.mxu0 %v2160
  %2296 = vmatpush1.msra.mxu0 %v2159
  %2297 = vmatprep.subr.mxu0 %v2156
  %2298 = vmatpush1.msra.mxu0 %v2155
  %2299 = vmatprep.subr.mxu0 0.0
  %2300 = vmatpush2.msra.mxu0 0.0
  %2301 = vmatprep.subr.mxu0 0.0
  %2302 = vmatpush2.msra.mxu0 0.0
  %2303 = vmatprep.subr.mxu0 0.0
  %2304 = vmatpush2.msra.mxu0 0.0
  %2305 = vmatprep.subr.mxu0 0.0
  %2306 = vmatpush2.msra.mxu0 0.0
  %2307 = vmatprep.subr.mxu0 0.0
  %2308 = vmatpush2.msra.mxu0 0.0
  %2309 = vmatprep.subr.mxu0 0.0
  %2310 = vmatpush2.msra.mxu0 0.0
  %2311 = vmatprep.subr.mxu0 0.0
  %2312 = vmatpush2.msra.mxu0 0.0
  %2313 = vmatprep.subr.mxu0 0.0
  %2314 = vmatpush2.msra.mxu0 0.0
  %2315 = vmatprep.subr.mxu0 0.0
  %2316 = vmatpush2.msra.mxu0 0.0
  %2317 = vmatprep.subr.mxu0 0.0
  %2318 = vmatpush2.msra.mxu0 0.0
  %2319 = vmatprep.subr.mxu0 0.0
  %2320 = vmatpush2.msra.mxu0 0.0
  %2321 = vmatprep.subr.mxu0 0.0
  %2322 = vmatpush2.msra.mxu0 0.0
  %2323 = vmatprep.subr.mxu0 0.0
  %2324 = vmatpush2.msra.mxu0 0.0
  %2325 = vmatprep.subr.mxu0 0.0
  %2326 = vmatpush2.msra.mxu0 0.0
  %2327 = vmatprep.subr.mxu0 0.0
  %2328 = vmatpush2.msra.mxu0 0.0
  %2329 = vmatprep.subr.mxu0 0.0
  %2330 = vmatpush2.msra.mxu0 0.0
  %2331 = vmatprep.mubr.f32.mxu0 0.0
  %2332 = vmatmul.mubr.f32.gmra.mxu0 %v2182
  %v2333 = vpop.f32.mrf.mxu0
  %v2334 = vadd.f32 0.0, %v2333
  %v2335 = vpop.f32.mrf.mxu0
  %v2336 = vadd.f32 0.0, %v2335
  %2337 = vdwg.mxu0
  %v2338 = vadd.f32 %v2148, %v2263
  %v2339 = vadd.f32 %v2149, %v2265
  %v2340 = vadd.f32 %v2150, %v2334
  %v2341 = vadd.f32 %v2151, %v2336
  %s2342 = scalar_lea.vmem %s3, 1120
  %v2343 = vld [vmem:[%s2342] sm:$0xff]
  %v2344 = vld [vmem:[%s2342 + $0x8] sm:$0xff]
  %v2345 = vld [vmem:[%s2342 + $0x10] sm:$0xff]
  %v2346 = vld [vmem:[%s2342 + $0x18] sm:$0xff]
  %v2347 = vld [vmem:[%s2342 + $0x20] sm:$0xff]
  %v2348 = vld [vmem:[%s2342 + $0x28] sm:$0xff]
  %v2349 = vld [vmem:[%s2342 + $0x30] sm:$0xff]
  %v2350 = vld [vmem:[%s2342 + $0x38] sm:$0xff]
  %v2351 = vld [vmem:[%s2342 + $0x40] sm:$0xff]
  %v2352 = vld [vmem:[%s2342 + $0x48] sm:$0xff]
  %v2353 = vld [vmem:[%s2342 + $0x50] sm:$0xff]
  %v2354 = vld [vmem:[%s2342 + $0x58] sm:$0xff]
  %v2355 = vld [vmem:[%s2342 + $0x60] sm:$0xff]
  %v2356 = vld [vmem:[%s2342 + $0x68] sm:$0xff]
  %v2357 = vld [vmem:[%s2342 + $0x70] sm:$0xff]
  %v2358 = vld [vmem:[%s2342 + $0x78] sm:$0xff]
  %v2359 = vld [vmem:[%s2342 + $0x80] sm:$0xff]
  %v2360 = vld [vmem:[%s2342 + $0x88] sm:$0xff]
  %v2361 = vld [vmem:[%s2342 + $0x90] sm:$0xff]
  %v2362 = vld [vmem:[%s2342 + $0x98] sm:$0xff]
  %v2363 = vld [vmem:[%s2342 + $0xa0] sm:$0xff]
  %v2364 = vld [vmem:[%s2342 + $0xa8] sm:$0xff]
  %v2365 = vld [vmem:[%s2342 + $0xb0] sm:$0xff]
  %v2366 = vld [vmem:[%s2342 + $0xb8] sm:$0xff]
  %v2367 = vld [vmem:[%s2342 + $0xc0] sm:$0x3]
  %v2368 = vld [vmem:[%s2342 + $0xc8] sm:$0x3]
  %v2369 = vld [vmem:[%s2342 + $0xd0] sm:$0x3]
  %v2370 = vld [vmem:[%s2342 + $0xd8] sm:$0x3]
  %v2372 = vsel %vm1456, %v1388, 0
  %v2375 = vsel %vm1460, %v2367, 0
  %v2378 = vsel %vm1460, %v2368, 0
  %v2381 = vsel %vm1460, %v2369, 0
  %v2384 = vsel %vm1460, %v2370, 0
  %2386 = vmatprep.subr.mxu0 0.0
  %2387 = vmatpush1.msra.mxu0 0.0
  %2388 = vmatprep.subr.mxu0 0.0
  %2389 = vmatpush1.msra.mxu0 0.0
  %2390 = vmatprep.subr.mxu0 0.0
  %2391 = vmatpush1.msra.mxu0 0.0
  %2392 = vmatprep.subr.mxu0 0.0
  %2393 = vmatpush1.msra.mxu0 0.0
  %2394 = vmatprep.subr.mxu0 0.0
  %2395 = vmatpush1.msra.mxu0 0.0
  %2396 = vmatprep.subr.mxu0 0.0
  %2397 = vmatpush1.msra.mxu0 0.0
  %2398 = vmatprep.subr.mxu0 0.0
  %2399 = vmatpush1.msra.mxu0 0.0
  %2400 = vmatprep.subr.mxu0 0.0
  %2401 = vmatpush1.msra.mxu0 0.0
  %2402 = vmatprep.subr.mxu0 0.0
  %2403 = vmatpush1.msra.mxu0 0.0
  %2404 = vmatprep.subr.mxu0 %v2378
  %2405 = vmatpush1.msra.mxu0 %v2375
  %2406 = vmatprep.subr.mxu0 %v2364
  %2407 = vmatpush1.msra.mxu0 %v2363
  %2408 = vmatprep.subr.mxu0 %v2360
  %2409 = vmatpush1.msra.mxu0 %v2359
  %2410 = vmatprep.subr.mxu0 %v2356
  %2411 = vmatpush1.msra.mxu0 %v2355
  %2412 = vmatprep.subr.mxu0 %v2352
  %2413 = vmatpush1.msra.mxu0 %v2351
  %2414 = vmatprep.subr.mxu0 %v2348
  %2415 = vmatpush1.msra.mxu0 %v2347
  %2416 = vmatprep.subr.mxu0 %v2344
  %2417 = vmatpush1.msra.mxu0 %v2343
  %2418 = vmatprep.subr.mxu0 0.0
  %2419 = vmatpush2.msra.mxu0 0.0
  %2420 = vmatprep.subr.mxu0 0.0
  %2421 = vmatpush2.msra.mxu0 0.0
  %2422 = vmatprep.subr.mxu0 0.0
  %2423 = vmatpush2.msra.mxu0 0.0
  %2424 = vmatprep.subr.mxu0 0.0
  %2425 = vmatpush2.msra.mxu0 0.0
  %2426 = vmatprep.subr.mxu0 0.0
  %2427 = vmatpush2.msra.mxu0 0.0
  %2428 = vmatprep.subr.mxu0 0.0
  %2429 = vmatpush2.msra.mxu0 0.0
  %2430 = vmatprep.subr.mxu0 0.0
  %2431 = vmatpush2.msra.mxu0 0.0
  %2432 = vmatprep.subr.mxu0 0.0
  %2433 = vmatpush2.msra.mxu0 0.0
  %2434 = vmatprep.subr.mxu0 0.0
  %2435 = vmatpush2.msra.mxu0 0.0
  %2436 = vmatprep.subr.mxu0 0.0
  %2437 = vmatpush2.msra.mxu0 0.0
  %2438 = vmatprep.subr.mxu0 0.0
  %2439 = vmatpush2.msra.mxu0 0.0
  %2440 = vmatprep.subr.mxu0 0.0
  %2441 = vmatpush2.msra.mxu0 0.0
  %2442 = vmatprep.subr.mxu0 0.0
  %2443 = vmatpush2.msra.mxu0 0.0
  %2444 = vmatprep.subr.mxu0 0.0
  %2445 = vmatpush2.msra.mxu0 0.0
  %2446 = vmatprep.subr.mxu0 0.0
  %2447 = vmatpush2.msra.mxu0 0.0
  %2448 = vmatprep.subr.mxu0 0.0
  %2449 = vmatpush2.msra.mxu0 0.0
  %2450 = vmatprep.mubr.f32.mxu0 0.0
  %2451 = vmatmul.mubr.f32.gmra.mxu0 %v2372
  %v2452 = vpop.f32.mrf.mxu0
  %v2453 = vadd.f32 0.0, %v2452
  %v2454 = vpop.f32.mrf.mxu0
  %v2455 = vadd.f32 0.0, %v2454
  %2456 = vdwg.mxu0
  %2457 = vmatprep.subr.mxu0 0.0
  %2458 = vmatpush1.msra.mxu0 0.0
  %2459 = vmatprep.subr.mxu0 0.0
  %2460 = vmatpush1.msra.mxu0 0.0
  %2461 = vmatprep.subr.mxu0 0.0
  %2462 = vmatpush1.msra.mxu0 0.0
  %2463 = vmatprep.subr.mxu0 0.0
  %2464 = vmatpush1.msra.mxu0 0.0
  %2465 = vmatprep.subr.mxu0 0.0
  %2466 = vmatpush1.msra.mxu0 0.0
  %2467 = vmatprep.subr.mxu0 0.0
  %2468 = vmatpush1.msra.mxu0 0.0
  %2469 = vmatprep.subr.mxu0 0.0
  %2470 = vmatpush1.msra.mxu0 0.0
  %2471 = vmatprep.subr.mxu0 0.0
  %2472 = vmatpush1.msra.mxu0 0.0
  %2473 = vmatprep.subr.mxu0 0.0
  %2474 = vmatpush1.msra.mxu0 0.0
  %2475 = vmatprep.subr.mxu0 %v2384
  %2476 = vmatpush1.msra.mxu0 %v2381
  %2477 = vmatprep.subr.mxu0 %v2366
  %2478 = vmatpush1.msra.mxu0 %v2365
  %2479 = vmatprep.subr.mxu0 %v2362
  %2480 = vmatpush1.msra.mxu0 %v2361
  %2481 = vmatprep.subr.mxu0 %v2358
  %2482 = vmatpush1.msra.mxu0 %v2357
  %2483 = vmatprep.subr.mxu0 %v2354
  %2484 = vmatpush1.msra.mxu0 %v2353
  %2485 = vmatprep.subr.mxu0 %v2350
  %2486 = vmatpush1.msra.mxu0 %v2349
  %2487 = vmatprep.subr.mxu0 %v2346
  %2488 = vmatpush1.msra.mxu0 %v2345
  %2489 = vmatprep.subr.mxu0 0.0
  %2490 = vmatpush2.msra.mxu0 0.0
  %2491 = vmatprep.subr.mxu0 0.0
  %2492 = vmatpush2.msra.mxu0 0.0
  %2493 = vmatprep.subr.mxu0 0.0
  %2494 = vmatpush2.msra.mxu0 0.0
  %2495 = vmatprep.subr.mxu0 0.0
  %2496 = vmatpush2.msra.mxu0 0.0
  %2497 = vmatprep.subr.mxu0 0.0
  %2498 = vmatpush2.msra.mxu0 0.0
  %2499 = vmatprep.subr.mxu0 0.0
  %2500 = vmatpush2.msra.mxu0 0.0
  %2501 = vmatprep.subr.mxu0 0.0
  %2502 = vmatpush2.msra.mxu0 0.0
  %2503 = vmatprep.subr.mxu0 0.0
  %2504 = vmatpush2.msra.mxu0 0.0
  %2505 = vmatprep.subr.mxu0 0.0
  %2506 = vmatpush2.msra.mxu0 0.0
  %2507 = vmatprep.subr.mxu0 0.0
  %2508 = vmatpush2.msra.mxu0 0.0
  %2509 = vmatprep.subr.mxu0 0.0
  %2510 = vmatpush2.msra.mxu0 0.0
  %2511 = vmatprep.subr.mxu0 0.0
  %2512 = vmatpush2.msra.mxu0 0.0
  %2513 = vmatprep.subr.mxu0 0.0
  %2514 = vmatpush2.msra.mxu0 0.0
  %2515 = vmatprep.subr.mxu0 0.0
  %2516 = vmatpush2.msra.mxu0 0.0
  %2517 = vmatprep.subr.mxu0 0.0
  %2518 = vmatpush2.msra.mxu0 0.0
  %2519 = vmatprep.subr.mxu0 0.0
  %2520 = vmatpush2.msra.mxu0 0.0
  %2521 = vmatprep.mubr.f32.mxu0 0.0
  %2522 = vmatmul.mubr.f32.gmra.mxu0 %v2372
  %v2523 = vpop.f32.mrf.mxu0
  %v2524 = vadd.f32 0.0, %v2523
  %v2525 = vpop.f32.mrf.mxu0
  %v2526 = vadd.f32 0.0, %v2525
  %2527 = vdwg.mxu0
  %v2528 = vadd.f32 %v2338, %v2453
  %v2529 = vadd.f32 %v2339, %v2455
  %v2530 = vadd.f32 %v2340, %v2524
  %v2531 = vadd.f32 %v2341, %v2526
  %s2532 = scalar_lea.vmem %s3, 1344
  %v2533 = vld [vmem:[%s2532] sm:$0xff]
  %v2534 = vld [vmem:[%s2532 + $0x8] sm:$0xff]
  %v2535 = vld [vmem:[%s2532 + $0x10] sm:$0xff]
  %v2536 = vld [vmem:[%s2532 + $0x18] sm:$0xff]
  %v2537 = vld [vmem:[%s2532 + $0x20] sm:$0xff]
  %v2538 = vld [vmem:[%s2532 + $0x28] sm:$0xff]
  %v2539 = vld [vmem:[%s2532 + $0x30] sm:$0xff]
  %v2540 = vld [vmem:[%s2532 + $0x38] sm:$0xff]
  %v2541 = vld [vmem:[%s2532 + $0x40] sm:$0xff]
  %v2542 = vld [vmem:[%s2532 + $0x48] sm:$0xff]
  %v2543 = vld [vmem:[%s2532 + $0x50] sm:$0xff]
  %v2544 = vld [vmem:[%s2532 + $0x58] sm:$0xff]
  %v2545 = vld [vmem:[%s2532 + $0x60] sm:$0xff]
  %v2546 = vld [vmem:[%s2532 + $0x68] sm:$0xff]
  %v2547 = vld [vmem:[%s2532 + $0x70] sm:$0xff]
  %v2548 = vld [vmem:[%s2532 + $0x78] sm:$0xff]
  %v2549 = vld [vmem:[%s2532 + $0x80] sm:$0xff]
  %v2550 = vld [vmem:[%s2532 + $0x88] sm:$0xff]
  %v2551 = vld [vmem:[%s2532 + $0x90] sm:$0xff]
  %v2552 = vld [vmem:[%s2532 + $0x98] sm:$0xff]
  %v2553 = vld [vmem:[%s2532 + $0xa0] sm:$0xff]
  %v2554 = vld [vmem:[%s2532 + $0xa8] sm:$0xff]
  %v2555 = vld [vmem:[%s2532 + $0xb0] sm:$0xff]
  %v2556 = vld [vmem:[%s2532 + $0xb8] sm:$0xff]
  %v2557 = vld [vmem:[%s2532 + $0xc0] sm:$0x3]
  %v2558 = vld [vmem:[%s2532 + $0xc8] sm:$0x3]
  %v2559 = vld [vmem:[%s2532 + $0xd0] sm:$0x3]
  %v2560 = vld [vmem:[%s2532 + $0xd8] sm:$0x3]
  %v2562 = vsel %vm1456, %v1389, 0
  %v2565 = vsel %vm1460, %v2557, 0
  %v2568 = vsel %vm1460, %v2558, 0
  %v2571 = vsel %vm1460, %v2559, 0
  %v2574 = vsel %vm1460, %v2560, 0
  %2576 = vmatprep.subr.mxu0 0.0
  %2577 = vmatpush1.msra.mxu0 0.0
  %2578 = vmatprep.subr.mxu0 0.0
  %2579 = vmatpush1.msra.mxu0 0.0
  %2580 = vmatprep.subr.mxu0 0.0
  %2581 = vmatpush1.msra.mxu0 0.0
  %2582 = vmatprep.subr.mxu0 0.0
  %2583 = vmatpush1.msra.mxu0 0.0
  %2584 = vmatprep.subr.mxu0 0.0
  %2585 = vmatpush1.msra.mxu0 0.0
  %2586 = vmatprep.subr.mxu0 0.0
  %2587 = vmatpush1.msra.mxu0 0.0
  %2588 = vmatprep.subr.mxu0 0.0
  %2589 = vmatpush1.msra.mxu0 0.0
  %2590 = vmatprep.subr.mxu0 0.0
  %2591 = vmatpush1.msra.mxu0 0.0
  %2592 = vmatprep.subr.mxu0 0.0
  %2593 = vmatpush1.msra.mxu0 0.0
  %2594 = vmatprep.subr.mxu0 %v2568
  %2595 = vmatpush1.msra.mxu0 %v2565
  %2596 = vmatprep.subr.mxu0 %v2554
  %2597 = vmatpush1.msra.mxu0 %v2553
  %2598 = vmatprep.subr.mxu0 %v2550
  %2599 = vmatpush1.msra.mxu0 %v2549
  %2600 = vmatprep.subr.mxu0 %v2546
  %2601 = vmatpush1.msra.mxu0 %v2545
  %2602 = vmatprep.subr.mxu0 %v2542
  %2603 = vmatpush1.msra.mxu0 %v2541
  %2604 = vmatprep.subr.mxu0 %v2538
  %2605 = vmatpush1.msra.mxu0 %v2537
  %2606 = vmatprep.subr.mxu0 %v2534
  %2607 = vmatpush1.msra.mxu0 %v2533
  %2608 = vmatprep.subr.mxu0 0.0
  %2609 = vmatpush2.msra.mxu0 0.0
  %2610 = vmatprep.subr.mxu0 0.0
  %2611 = vmatpush2.msra.mxu0 0.0
  %2612 = vmatprep.subr.mxu0 0.0
  %2613 = vmatpush2.msra.mxu0 0.0
  %2614 = vmatprep.subr.mxu0 0.0
  %2615 = vmatpush2.msra.mxu0 0.0
  %2616 = vmatprep.subr.mxu0 0.0
  %2617 = vmatpush2.msra.mxu0 0.0
  %2618 = vmatprep.subr.mxu0 0.0
  %2619 = vmatpush2.msra.mxu0 0.0
  %2620 = vmatprep.subr.mxu0 0.0
  %2621 = vmatpush2.msra.mxu0 0.0
  %2622 = vmatprep.subr.mxu0 0.0
  %2623 = vmatpush2.msra.mxu0 0.0
  %2624 = vmatprep.subr.mxu0 0.0
  %2625 = vmatpush2.msra.mxu0 0.0
  %2626 = vmatprep.subr.mxu0 0.0
  %2627 = vmatpush2.msra.mxu0 0.0
  %2628 = vmatprep.subr.mxu0 0.0
  %2629 = vmatpush2.msra.mxu0 0.0
  %2630 = vmatprep.subr.mxu0 0.0
  %2631 = vmatpush2.msra.mxu0 0.0
  %2632 = vmatprep.subr.mxu0 0.0
  %2633 = vmatpush2.msra.mxu0 0.0
  %2634 = vmatprep.subr.mxu0 0.0
  %2635 = vmatpush2.msra.mxu0 0.0
  %2636 = vmatprep.subr.mxu0 0.0
  %2637 = vmatpush2.msra.mxu0 0.0
  %2638 = vmatprep.subr.mxu0 0.0
  %2639 = vmatpush2.msra.mxu0 0.0
  %2640 = vmatprep.mubr.f32.mxu0 0.0
  %2641 = vmatmul.mubr.f32.gmra.mxu0 %v2562
  %v2642 = vpop.f32.mrf.mxu0
  %v2643 = vadd.f32 0.0, %v2642
  %v2644 = vpop.f32.mrf.mxu0
  %v2645 = vadd.f32 0.0, %v2644
  %2646 = vdwg.mxu0
  %2647 = vmatprep.subr.mxu0 0.0
  %2648 = vmatpush1.msra.mxu0 0.0
  %2649 = vmatprep.subr.mxu0 0.0
  %2650 = vmatpush1.msra.mxu0 0.0
  %2651 = vmatprep.subr.mxu0 0.0
  %2652 = vmatpush1.msra.mxu0 0.0
  %2653 = vmatprep.subr.mxu0 0.0
  %2654 = vmatpush1.msra.mxu0 0.0
  %2655 = vmatprep.subr.mxu0 0.0
  %2656 = vmatpush1.msra.mxu0 0.0
  %2657 = vmatprep.subr.mxu0 0.0
  %2658 = vmatpush1.msra.mxu0 0.0
  %2659 = vmatprep.subr.mxu0 0.0
  %2660 = vmatpush1.msra.mxu0 0.0
  %2661 = vmatprep.subr.mxu0 0.0
  %2662 = vmatpush1.msra.mxu0 0.0
  %2663 = vmatprep.subr.mxu0 0.0
  %2664 = vmatpush1.msra.mxu0 0.0
  %2665 = vmatprep.subr.mxu0 %v2574
  %2666 = vmatpush1.msra.mxu0 %v2571
  %2667 = vmatprep.subr.mxu0 %v2556
  %2668 = vmatpush1.msra.mxu0 %v2555
  %2669 = vmatprep.subr.mxu0 %v2552
  %2670 = vmatpush1.msra.mxu0 %v2551
  %2671 = vmatprep.subr.mxu0 %v2548
  %2672 = vmatpush1.msra.mxu0 %v2547
  %2673 = vmatprep.subr.mxu0 %v2544
  %2674 = vmatpush1.msra.mxu0 %v2543
  %2675 = vmatprep.subr.mxu0 %v2540
  %2676 = vmatpush1.msra.mxu0 %v2539
  %2677 = vmatprep.subr.mxu0 %v2536
  %2678 = vmatpush1.msra.mxu0 %v2535
  %2679 = vmatprep.subr.mxu0 0.0
  %2680 = vmatpush2.msra.mxu0 0.0
  %2681 = vmatprep.subr.mxu0 0.0
  %2682 = vmatpush2.msra.mxu0 0.0
  %2683 = vmatprep.subr.mxu0 0.0
  %2684 = vmatpush2.msra.mxu0 0.0
  %2685 = vmatprep.subr.mxu0 0.0
  %2686 = vmatpush2.msra.mxu0 0.0
  %2687 = vmatprep.subr.mxu0 0.0
  %2688 = vmatpush2.msra.mxu0 0.0
  %2689 = vmatprep.subr.mxu0 0.0
  %2690 = vmatpush2.msra.mxu0 0.0
  %2691 = vmatprep.subr.mxu0 0.0
  %2692 = vmatpush2.msra.mxu0 0.0
  %2693 = vmatprep.subr.mxu0 0.0
  %2694 = vmatpush2.msra.mxu0 0.0
  %2695 = vmatprep.subr.mxu0 0.0
  %2696 = vmatpush2.msra.mxu0 0.0
  %2697 = vmatprep.subr.mxu0 0.0
  %2698 = vmatpush2.msra.mxu0 0.0
  %2699 = vmatprep.subr.mxu0 0.0
  %2700 = vmatpush2.msra.mxu0 0.0
  %2701 = vmatprep.subr.mxu0 0.0
  %2702 = vmatpush2.msra.mxu0 0.0
  %2703 = vmatprep.subr.mxu0 0.0
  %2704 = vmatpush2.msra.mxu0 0.0
  %2705 = vmatprep.subr.mxu0 0.0
  %2706 = vmatpush2.msra.mxu0 0.0
  %2707 = vmatprep.subr.mxu0 0.0
  %2708 = vmatpush2.msra.mxu0 0.0
  %2709 = vmatprep.subr.mxu0 0.0
  %2710 = vmatpush2.msra.mxu0 0.0
  %2711 = vmatprep.mubr.f32.mxu0 0.0
  %2712 = vmatmul.mubr.f32.gmra.mxu0 %v2562
  %v2713 = vpop.f32.mrf.mxu0
  %v2714 = vadd.f32 0.0, %v2713
  %v2715 = vpop.f32.mrf.mxu0
  %v2716 = vadd.f32 0.0, %v2715
  %2717 = vdwg.mxu0
  %v2718 = vadd.f32 %v2528, %v2643
  %v2719 = vadd.f32 %v2529, %v2645
  %v2720 = vadd.f32 %v2530, %v2714
  %v2721 = vadd.f32 %v2531, %v2716
  %s2722 = scalar_lea.vmem %s3, 1568
  %v2723 = vld [vmem:[%s2722] sm:$0xff]
  %v2724 = vld [vmem:[%s2722 + $0x8] sm:$0xff]
  %v2725 = vld [vmem:[%s2722 + $0x10] sm:$0xff]
  %v2726 = vld [vmem:[%s2722 + $0x18] sm:$0xff]
  %v2727 = vld [vmem:[%s2722 + $0x20] sm:$0xff]
  %v2728 = vld [vmem:[%s2722 + $0x28] sm:$0xff]
  %v2729 = vld [vmem:[%s2722 + $0x30] sm:$0xff]
  %v2730 = vld [vmem:[%s2722 + $0x38] sm:$0xff]
  %v2731 = vld [vmem:[%s2722 + $0x40] sm:$0xff]
  %v2732 = vld [vmem:[%s2722 + $0x48] sm:$0xff]
  %v2733 = vld [vmem:[%s2722 + $0x50] sm:$0xff]
  %v2734 = vld [vmem:[%s2722 + $0x58] sm:$0xff]
  %v2735 = vld [vmem:[%s2722 + $0x60] sm:$0xff]
  %v2736 = vld [vmem:[%s2722 + $0x68] sm:$0xff]
  %v2737 = vld [vmem:[%s2722 + $0x70] sm:$0xff]
  %v2738 = vld [vmem:[%s2722 + $0x78] sm:$0xff]
  %v2739 = vld [vmem:[%s2722 + $0x80] sm:$0xff]
  %v2740 = vld [vmem:[%s2722 + $0x88] sm:$0xff]
  %v2741 = vld [vmem:[%s2722 + $0x90] sm:$0xff]
  %v2742 = vld [vmem:[%s2722 + $0x98] sm:$0xff]
  %v2743 = vld [vmem:[%s2722 + $0xa0] sm:$0xff]
  %v2744 = vld [vmem:[%s2722 + $0xa8] sm:$0xff]
  %v2745 = vld [vmem:[%s2722 + $0xb0] sm:$0xff]
  %v2746 = vld [vmem:[%s2722 + $0xb8] sm:$0xff]
  %v2747 = vld [vmem:[%s2722 + $0xc0] sm:$0x3]
  %v2748 = vld [vmem:[%s2722 + $0xc8] sm:$0x3]
  %v2749 = vld [vmem:[%s2722 + $0xd0] sm:$0x3]
  %v2750 = vld [vmem:[%s2722 + $0xd8] sm:$0x3]
  %v2752 = vsel %vm1456, %v1390, 0
  %v2755 = vsel %vm1460, %v2747, 0
  %v2758 = vsel %vm1460, %v2748, 0
  %v2761 = vsel %vm1460, %v2749, 0
  %v2764 = vsel %vm1460, %v2750, 0
  %2766 = vmatprep.subr.mxu0 0.0
  %2767 = vmatpush1.msra.mxu0 0.0
  %2768 = vmatprep.subr.mxu0 0.0
  %2769 = vmatpush1.msra.mxu0 0.0
  %2770 = vmatprep.subr.mxu0 0.0
  %2771 = vmatpush1.msra.mxu0 0.0
  %2772 = vmatprep.subr.mxu0 0.0
  %2773 = vmatpush1.msra.mxu0 0.0
  %2774 = vmatprep.subr.mxu0 0.0
  %2775 = vmatpush1.msra.mxu0 0.0
  %2776 = vmatprep.subr.mxu0 0.0
  %2777 = vmatpush1.msra.mxu0 0.0
  %2778 = vmatprep.subr.mxu0 0.0
  %2779 = vmatpush1.msra.mxu0 0.0
  %2780 = vmatprep.subr.mxu0 0.0
  %2781 = vmatpush1.msra.mxu0 0.0
  %2782 = vmatprep.subr.mxu0 0.0
  %2783 = vmatpush1.msra.mxu0 0.0
  %2784 = vmatprep.subr.mxu0 %v2758
  %2785 = vmatpush1.msra.mxu0 %v2755
  %2786 = vmatprep.subr.mxu0 %v2744
  %2787 = vmatpush1.msra.mxu0 %v2743
  %2788 = vmatprep.subr.mxu0 %v2740
  %2789 = vmatpush1.msra.mxu0 %v2739
  %2790 = vmatprep.subr.mxu0 %v2736
  %2791 = vmatpush1.msra.mxu0 %v2735
  %2792 = vmatprep.subr.mxu0 %v2732
  %2793 = vmatpush1.msra.mxu0 %v2731
  %2794 = vmatprep.subr.mxu0 %v2728
  %2795 = vmatpush1.msra.mxu0 %v2727
  %2796 = vmatprep.subr.mxu0 %v2724
  %2797 = vmatpush1.msra.mxu0 %v2723
  %2798 = vmatprep.subr.mxu0 0.0
  %2799 = vmatpush2.msra.mxu0 0.0
  %2800 = vmatprep.subr.mxu0 0.0
  %2801 = vmatpush2.msra.mxu0 0.0
  %2802 = vmatprep.subr.mxu0 0.0
  %2803 = vmatpush2.msra.mxu0 0.0
  %2804 = vmatprep.subr.mxu0 0.0
  %2805 = vmatpush2.msra.mxu0 0.0
  %2806 = vmatprep.subr.mxu0 0.0
  %2807 = vmatpush2.msra.mxu0 0.0
  %2808 = vmatprep.subr.mxu0 0.0
  %2809 = vmatpush2.msra.mxu0 0.0
  %2810 = vmatprep.subr.mxu0 0.0
  %2811 = vmatpush2.msra.mxu0 0.0
  %2812 = vmatprep.subr.mxu0 0.0
  %2813 = vmatpush2.msra.mxu0 0.0
  %2814 = vmatprep.subr.mxu0 0.0
  %2815 = vmatpush2.msra.mxu0 0.0
  %2816 = vmatprep.subr.mxu0 0.0
  %2817 = vmatpush2.msra.mxu0 0.0
  %2818 = vmatprep.subr.mxu0 0.0
  %2819 = vmatpush2.msra.mxu0 0.0
  %2820 = vmatprep.subr.mxu0 0.0
  %2821 = vmatpush2.msra.mxu0 0.0
  %2822 = vmatprep.subr.mxu0 0.0
  %2823 = vmatpush2.msra.mxu0 0.0
  %2824 = vmatprep.subr.mxu0 0.0
  %2825 = vmatpush2.msra.mxu0 0.0
  %2826 = vmatprep.subr.mxu0 0.0
  %2827 = vmatpush2.msra.mxu0 0.0
  %2828 = vmatprep.subr.mxu0 0.0
  %2829 = vmatpush2.msra.mxu0 0.0
  %2830 = vmatprep.mubr.f32.mxu0 0.0
  %2831 = vmatmul.mubr.f32.gmra.mxu0 %v2752
  %v2832 = vpop.f32.mrf.mxu0
  %v2833 = vadd.f32 0.0, %v2832
  %v2834 = vpop.f32.mrf.mxu0
  %v2835 = vadd.f32 0.0, %v2834
  %2836 = vdwg.mxu0
  %2837 = vmatprep.subr.mxu0 0.0
  %2838 = vmatpush1.msra.mxu0 0.0
  %2839 = vmatprep.subr.mxu0 0.0
  %2840 = vmatpush1.msra.mxu0 0.0
  %2841 = vmatprep.subr.mxu0 0.0
  %2842 = vmatpush1.msra.mxu0 0.0
  %2843 = vmatprep.subr.mxu0 0.0
  %2844 = vmatpush1.msra.mxu0 0.0
  %2845 = vmatprep.subr.mxu0 0.0
  %2846 = vmatpush1.msra.mxu0 0.0
  %2847 = vmatprep.subr.mxu0 0.0
  %2848 = vmatpush1.msra.mxu0 0.0
  %2849 = vmatprep.subr.mxu0 0.0
  %2850 = vmatpush1.msra.mxu0 0.0
  %2851 = vmatprep.subr.mxu0 0.0
  %2852 = vmatpush1.msra.mxu0 0.0
  %2853 = vmatprep.subr.mxu0 0.0
  %2854 = vmatpush1.msra.mxu0 0.0
  %2855 = vmatprep.subr.mxu0 %v2764
  %2856 = vmatpush1.msra.mxu0 %v2761
  %2857 = vmatprep.subr.mxu0 %v2746
  %2858 = vmatpush1.msra.mxu0 %v2745
  %2859 = vmatprep.subr.mxu0 %v2742
  %2860 = vmatpush1.msra.mxu0 %v2741
  %2861 = vmatprep.subr.mxu0 %v2738
  %2862 = vmatpush1.msra.mxu0 %v2737
  %2863 = vmatprep.subr.mxu0 %v2734
  %2864 = vmatpush1.msra.mxu0 %v2733
  %2865 = vmatprep.subr.mxu0 %v2730
  %2866 = vmatpush1.msra.mxu0 %v2729
  %2867 = vmatprep.subr.mxu0 %v2726
  %2868 = vmatpush1.msra.mxu0 %v2725
  %2869 = vmatprep.subr.mxu0 0.0
  %2870 = vmatpush2.msra.mxu0 0.0
  %2871 = vmatprep.subr.mxu0 0.0
  %2872 = vmatpush2.msra.mxu0 0.0
  %2873 = vmatprep.subr.mxu0 0.0
  %2874 = vmatpush2.msra.mxu0 0.0
  %2875 = vmatprep.subr.mxu0 0.0
  %2876 = vmatpush2.msra.mxu0 0.0
  %2877 = vmatprep.subr.mxu0 0.0
  %2878 = vmatpush2.msra.mxu0 0.0
  %2879 = vmatprep.subr.mxu0 0.0
  %2880 = vmatpush2.msra.mxu0 0.0
  %2881 = vmatprep.subr.mxu0 0.0
  %2882 = vmatpush2.msra.mxu0 0.0
  %2883 = vmatprep.subr.mxu0 0.0
  %2884 = vmatpush2.msra.mxu0 0.0
  %2885 = vmatprep.subr.mxu0 0.0
  %2886 = vmatpush2.msra.mxu0 0.0
  %2887 = vmatprep.subr.mxu0 0.0
  %2888 = vmatpush2.msra.mxu0 0.0
  %2889 = vmatprep.subr.mxu0 0.0
  %2890 = vmatpush2.msra.mxu0 0.0
  %2891 = vmatprep.subr.mxu0 0.0
  %2892 = vmatpush2.msra.mxu0 0.0
  %2893 = vmatprep.subr.mxu0 0.0
  %2894 = vmatpush2.msra.mxu0 0.0
  %2895 = vmatprep.subr.mxu0 0.0
  %2896 = vmatpush2.msra.mxu0 0.0
  %2897 = vmatprep.subr.mxu0 0.0
  %2898 = vmatpush2.msra.mxu0 0.0
  %2899 = vmatprep.subr.mxu0 0.0
  %2900 = vmatpush2.msra.mxu0 0.0
  %2901 = vmatprep.mubr.f32.mxu0 0.0
  %2902 = vmatmul.mubr.f32.gmra.mxu0 %v2752
  %v2903 = vpop.f32.mrf.mxu0
  %v2904 = vadd.f32 0.0, %v2903
  %v2905 = vpop.f32.mrf.mxu0
  %v2906 = vadd.f32 0.0, %v2905
  %2907 = vdwg.mxu0
  %v2908 = vadd.f32 %v2718, %v2833
  %v2909 = vadd.f32 %v2719, %v2835
  %v2910 = vadd.f32 %v2720, %v2904
  %v2911 = vadd.f32 %v2721, %v2906
  %s2912 = scalar_lea.vmem %s3, 1792
  %v2913 = vld [vmem:[%s2912] sm:$0xff]
  %v2914 = vld [vmem:[%s2912 + $0x8] sm:$0xff]
  %v2915 = vld [vmem:[%s2912 + $0x10] sm:$0xff]
  %v2916 = vld [vmem:[%s2912 + $0x18] sm:$0xff]
  %v2917 = vld [vmem:[%s2912 + $0x20] sm:$0xff]
  %v2918 = vld [vmem:[%s2912 + $0x28] sm:$0xff]
  %v2919 = vld [vmem:[%s2912 + $0x30] sm:$0xff]
  %v2920 = vld [vmem:[%s2912 + $0x38] sm:$0xff]
  %v2921 = vld [vmem:[%s2912 + $0x40] sm:$0xff]
  %v2922 = vld [vmem:[%s2912 + $0x48] sm:$0xff]
  %v2923 = vld [vmem:[%s2912 + $0x50] sm:$0xff]
  %v2924 = vld [vmem:[%s2912 + $0x58] sm:$0xff]
  %v2925 = vld [vmem:[%s2912 + $0x60] sm:$0xff]
  %v2926 = vld [vmem:[%s2912 + $0x68] sm:$0xff]
  %v2927 = vld [vmem:[%s2912 + $0x70] sm:$0xff]
  %v2928 = vld [vmem:[%s2912 + $0x78] sm:$0xff]
  %v2929 = vld [vmem:[%s2912 + $0x80] sm:$0xff]
  %v2930 = vld [vmem:[%s2912 + $0x88] sm:$0xff]
  %v2931 = vld [vmem:[%s2912 + $0x90] sm:$0xff]
  %v2932 = vld [vmem:[%s2912 + $0x98] sm:$0xff]
  %v2933 = vld [vmem:[%s2912 + $0xa0] sm:$0xff]
  %v2934 = vld [vmem:[%s2912 + $0xa8] sm:$0xff]
  %v2935 = vld [vmem:[%s2912 + $0xb0] sm:$0xff]
  %v2936 = vld [vmem:[%s2912 + $0xb8] sm:$0xff]
  %v2937 = vld [vmem:[%s2912 + $0xc0] sm:$0x3]
  %v2938 = vld [vmem:[%s2912 + $0xc8] sm:$0x3]
  %v2939 = vld [vmem:[%s2912 + $0xd0] sm:$0x3]
  %v2940 = vld [vmem:[%s2912 + $0xd8] sm:$0x3]
  %v2942 = vsel %vm1456, %v1391, 0
  %v2945 = vsel %vm1460, %v2937, 0
  %v2948 = vsel %vm1460, %v2938, 0
  %v2951 = vsel %vm1460, %v2939, 0
  %v2954 = vsel %vm1460, %v2940, 0
  %2956 = vmatprep.subr.mxu0 0.0
  %2957 = vmatpush1.msra.mxu0 0.0
  %2958 = vmatprep.subr.mxu0 0.0
  %2959 = vmatpush1.msra.mxu0 0.0
  %2960 = vmatprep.subr.mxu0 0.0
  %2961 = vmatpush1.msra.mxu0 0.0
  %2962 = vmatprep.subr.mxu0 0.0
  %2963 = vmatpush1.msra.mxu0 0.0
  %2964 = vmatprep.subr.mxu0 0.0
  %2965 = vmatpush1.msra.mxu0 0.0
  %2966 = vmatprep.subr.mxu0 0.0
  %2967 = vmatpush1.msra.mxu0 0.0
  %2968 = vmatprep.subr.mxu0 0.0
  %2969 = vmatpush1.msra.mxu0 0.0
  %2970 = vmatprep.subr.mxu0 0.0
  %2971 = vmatpush1.msra.mxu0 0.0
  %2972 = vmatprep.subr.mxu0 0.0
  %2973 = vmatpush1.msra.mxu0 0.0
  %2974 = vmatprep.subr.mxu0 %v2948
  %2975 = vmatpush1.msra.mxu0 %v2945
  %2976 = vmatprep.subr.mxu0 %v2934
  %2977 = vmatpush1.msra.mxu0 %v2933
  %2978 = vmatprep.subr.mxu0 %v2930
  %2979 = vmatpush1.msra.mxu0 %v2929
  %2980 = vmatprep.subr.mxu0 %v2926
  %2981 = vmatpush1.msra.mxu0 %v2925
  %2982 = vmatprep.subr.mxu0 %v2922
  %2983 = vmatpush1.msra.mxu0 %v2921
  %2984 = vmatprep.subr.mxu0 %v2918
  %2985 = vmatpush1.msra.mxu0 %v2917
  %2986 = vmatprep.subr.mxu0 %v2914
  %2987 = vmatpush1.msra.mxu0 %v2913
  %2988 = vmatprep.subr.mxu0 0.0
  %2989 = vmatpush2.msra.mxu0 0.0
  %2990 = vmatprep.subr.mxu0 0.0
  %2991 = vmatpush2.msra.mxu0 0.0
  %2992 = vmatprep.subr.mxu0 0.0
  %2993 = vmatpush2.msra.mxu0 0.0
  %2994 = vmatprep.subr.mxu0 0.0
  %2995 = vmatpush2.msra.mxu0 0.0
  %2996 = vmatprep.subr.mxu0 0.0
  %2997 = vmatpush2.msra.mxu0 0.0
  %2998 = vmatprep.subr.mxu0 0.0
  %2999 = vmatpush2.msra.mxu0 0.0
  %3000 = vmatprep.subr.mxu0 0.0
  %3001 = vmatpush2.msra.mxu0 0.0
  %3002 = vmatprep.subr.mxu0 0.0
  %3003 = vmatpush2.msra.mxu0 0.0
  %3004 = vmatprep.subr.mxu0 0.0
  %3005 = vmatpush2.msra.mxu0 0.0
  %3006 = vmatprep.subr.mxu0 0.0
  %3007 = vmatpush2.msra.mxu0 0.0
  %3008 = vmatprep.subr.mxu0 0.0
  %3009 = vmatpush2.msra.mxu0 0.0
  %3010 = vmatprep.subr.mxu0 0.0
  %3011 = vmatpush2.msra.mxu0 0.0
  %3012 = vmatprep.subr.mxu0 0.0
  %3013 = vmatpush2.msra.mxu0 0.0
  %3014 = vmatprep.subr.mxu0 0.0
  %3015 = vmatpush2.msra.mxu0 0.0
  %3016 = vmatprep.subr.mxu0 0.0
  %3017 = vmatpush2.msra.mxu0 0.0
  %3018 = vmatprep.subr.mxu0 0.0
  %3019 = vmatpush2.msra.mxu0 0.0
  %3020 = vmatprep.mubr.f32.mxu0 0.0
  %3021 = vmatmul.mubr.f32.gmra.mxu0 %v2942
  %v3022 = vpop.f32.mrf.mxu0
  %v3023 = vadd.f32 0.0, %v3022
  %v3024 = vpop.f32.mrf.mxu0
  %v3025 = vadd.f32 0.0, %v3024
  %3026 = vdwg.mxu0
  %3027 = vmatprep.subr.mxu0 0.0
  %3028 = vmatpush1.msra.mxu0 0.0
  %3029 = vmatprep.subr.mxu0 0.0
  %3030 = vmatpush1.msra.mxu0 0.0
  %3031 = vmatprep.subr.mxu0 0.0
  %3032 = vmatpush1.msra.mxu0 0.0
  %3033 = vmatprep.subr.mxu0 0.0
  %3034 = vmatpush1.msra.mxu0 0.0
  %3035 = vmatprep.subr.mxu0 0.0
  %3036 = vmatpush1.msra.mxu0 0.0
  %3037 = vmatprep.subr.mxu0 0.0
  %3038 = vmatpush1.msra.mxu0 0.0
  %3039 = vmatprep.subr.mxu0 0.0
  %3040 = vmatpush1.msra.mxu0 0.0
  %3041 = vmatprep.subr.mxu0 0.0
  %3042 = vmatpush1.msra.mxu0 0.0
  %3043 = vmatprep.subr.mxu0 0.0
  %3044 = vmatpush1.msra.mxu0 0.0
  %3045 = vmatprep.subr.mxu0 %v2954
  %3046 = vmatpush1.msra.mxu0 %v2951
  %3047 = vmatprep.subr.mxu0 %v2936
  %3048 = vmatpush1.msra.mxu0 %v2935
  %3049 = vmatprep.subr.mxu0 %v2932
  %3050 = vmatpush1.msra.mxu0 %v2931
  %3051 = vmatprep.subr.mxu0 %v2928
  %3052 = vmatpush1.msra.mxu0 %v2927
  %3053 = vmatprep.subr.mxu0 %v2924
  %3054 = vmatpush1.msra.mxu0 %v2923
  %3055 = vmatprep.subr.mxu0 %v2920
  %3056 = vmatpush1.msra.mxu0 %v2919
  %3057 = vmatprep.subr.mxu0 %v2916
  %3058 = vmatpush1.msra.mxu0 %v2915
  %3059 = vmatprep.subr.mxu0 0.0
  %3060 = vmatpush2.msra.mxu0 0.0
  %3061 = vmatprep.subr.mxu0 0.0
  %3062 = vmatpush2.msra.mxu0 0.0
  %3063 = vmatprep.subr.mxu0 0.0
  %3064 = vmatpush2.msra.mxu0 0.0
  %3065 = vmatprep.subr.mxu0 0.0
  %3066 = vmatpush2.msra.mxu0 0.0
  %3067 = vmatprep.subr.mxu0 0.0
  %3068 = vmatpush2.msra.mxu0 0.0
  %3069 = vmatprep.subr.mxu0 0.0
  %3070 = vmatpush2.msra.mxu0 0.0
  %3071 = vmatprep.subr.mxu0 0.0
  %3072 = vmatpush2.msra.mxu0 0.0
  %3073 = vmatprep.subr.mxu0 0.0
  %3074 = vmatpush2.msra.mxu0 0.0
  %3075 = vmatprep.subr.mxu0 0.0
  %3076 = vmatpush2.msra.mxu0 0.0
  %3077 = vmatprep.subr.mxu0 0.0
  %3078 = vmatpush2.msra.mxu0 0.0
  %3079 = vmatprep.subr.mxu0 0.0
  %3080 = vmatpush2.msra.mxu0 0.0
  %3081 = vmatprep.subr.mxu0 0.0
  %3082 = vmatpush2.msra.mxu0 0.0
  %3083 = vmatprep.subr.mxu0 0.0
  %3084 = vmatpush2.msra.mxu0 0.0
  %3085 = vmatprep.subr.mxu0 0.0
  %3086 = vmatpush2.msra.mxu0 0.0
  %3087 = vmatprep.subr.mxu0 0.0
  %3088 = vmatpush2.msra.mxu0 0.0
  %3089 = vmatprep.subr.mxu0 0.0
  %3090 = vmatpush2.msra.mxu0 0.0
  %3091 = vmatprep.mubr.f32.mxu0 0.0
  %3092 = vmatmul.mubr.f32.gmra.mxu0 %v2942
  %v3093 = vpop.f32.mrf.mxu0
  %v3094 = vadd.f32 0.0, %v3093
  %v3095 = vpop.f32.mrf.mxu0
  %v3096 = vadd.f32 0.0, %v3095
  %3097 = vdwg.mxu0
  %v3098 = vadd.f32 %v2908, %v3023
  %v3099 = vadd.f32 %v2909, %v3025
  %v3100 = vadd.f32 %v2910, %v3094
  %v3101 = vadd.f32 %v2911, %v3096
  %s3102 = scalar_lea.vmem %s3, 2016
  %v3103 = vld [vmem:[%s3102] sm:$0xff]
  %v3104 = vld [vmem:[%s3102 + $0x8] sm:$0xff]
  %v3105 = vld [vmem:[%s3102 + $0x10] sm:$0xff]
  %v3106 = vld [vmem:[%s3102 + $0x18] sm:$0xff]
  %v3107 = vld [vmem:[%s3102 + $0x20] sm:$0xff]
  %v3108 = vld [vmem:[%s3102 + $0x28] sm:$0xff]
  %v3109 = vld [vmem:[%s3102 + $0x30] sm:$0xff]
  %v3110 = vld [vmem:[%s3102 + $0x38] sm:$0xff]
  %v3111 = vld [vmem:[%s3102 + $0x40] sm:$0xff]
  %v3112 = vld [vmem:[%s3102 + $0x48] sm:$0xff]
  %v3113 = vld [vmem:[%s3102 + $0x50] sm:$0xff]
  %v3114 = vld [vmem:[%s3102 + $0x58] sm:$0xff]
  %v3115 = vld [vmem:[%s3102 + $0x60] sm:$0xff]
  %v3116 = vld [vmem:[%s3102 + $0x68] sm:$0xff]
  %v3117 = vld [vmem:[%s3102 + $0x70] sm:$0xff]
  %v3118 = vld [vmem:[%s3102 + $0x78] sm:$0xff]
  %v3119 = vld [vmem:[%s3102 + $0x80] sm:$0xff]
  %v3120 = vld [vmem:[%s3102 + $0x88] sm:$0xff]
  %v3121 = vld [vmem:[%s3102 + $0x90] sm:$0xff]
  %v3122 = vld [vmem:[%s3102 + $0x98] sm:$0xff]
  %v3123 = vld [vmem:[%s3102 + $0xa0] sm:$0xff]
  %v3124 = vld [vmem:[%s3102 + $0xa8] sm:$0xff]
  %v3125 = vld [vmem:[%s3102 + $0xb0] sm:$0xff]
  %v3126 = vld [vmem:[%s3102 + $0xb8] sm:$0xff]
  %v3127 = vld [vmem:[%s3102 + $0xc0] sm:$0x3]
  %v3128 = vld [vmem:[%s3102 + $0xc8] sm:$0x3]
  %v3129 = vld [vmem:[%s3102 + $0xd0] sm:$0x3]
  %v3130 = vld [vmem:[%s3102 + $0xd8] sm:$0x3]
  %v3132 = vsel %vm1456, %v1392, 0
  %v3135 = vsel %vm1460, %v3127, 0
  %v3138 = vsel %vm1460, %v3128, 0
  %v3141 = vsel %vm1460, %v3129, 0
  %v3144 = vsel %vm1460, %v3130, 0
  %3146 = vmatprep.subr.mxu0 0.0
  %3147 = vmatpush1.msra.mxu0 0.0
  %3148 = vmatprep.subr.mxu0 0.0
  %3149 = vmatpush1.msra.mxu0 0.0
  %3150 = vmatprep.subr.mxu0 0.0
  %3151 = vmatpush1.msra.mxu0 0.0
  %3152 = vmatprep.subr.mxu0 0.0
  %3153 = vmatpush1.msra.mxu0 0.0
  %3154 = vmatprep.subr.mxu0 0.0
  %3155 = vmatpush1.msra.mxu0 0.0
  %3156 = vmatprep.subr.mxu0 0.0
  %3157 = vmatpush1.msra.mxu0 0.0
  %3158 = vmatprep.subr.mxu0 0.0
  %3159 = vmatpush1.msra.mxu0 0.0
  %3160 = vmatprep.subr.mxu0 0.0
  %3161 = vmatpush1.msra.mxu0 0.0
  %3162 = vmatprep.subr.mxu0 0.0
  %3163 = vmatpush1.msra.mxu0 0.0
  %3164 = vmatprep.subr.mxu0 %v3138
  %3165 = vmatpush1.msra.mxu0 %v3135
  %3166 = vmatprep.subr.mxu0 %v3124
  %3167 = vmatpush1.msra.mxu0 %v3123
  %3168 = vmatprep.subr.mxu0 %v3120
  %3169 = vmatpush1.msra.mxu0 %v3119
  %3170 = vmatprep.subr.mxu0 %v3116
  %3171 = vmatpush1.msra.mxu0 %v3115
  %3172 = vmatprep.subr.mxu0 %v3112
  %3173 = vmatpush1.msra.mxu0 %v3111
  %3174 = vmatprep.subr.mxu0 %v3108
  %3175 = vmatpush1.msra.mxu0 %v3107
  %3176 = vmatprep.subr.mxu0 %v3104
  %3177 = vmatpush1.msra.mxu0 %v3103
  %3178 = vmatprep.subr.mxu0 0.0
  %3179 = vmatpush2.msra.mxu0 0.0
  %3180 = vmatprep.subr.mxu0 0.0
  %3181 = vmatpush2.msra.mxu0 0.0
  %3182 = vmatprep.subr.mxu0 0.0
  %3183 = vmatpush2.msra.mxu0 0.0
  %3184 = vmatprep.subr.mxu0 0.0
  %3185 = vmatpush2.msra.mxu0 0.0
  %3186 = vmatprep.subr.mxu0 0.0
  %3187 = vmatpush2.msra.mxu0 0.0
  %3188 = vmatprep.subr.mxu0 0.0
  %3189 = vmatpush2.msra.mxu0 0.0
  %3190 = vmatprep.subr.mxu0 0.0
  %3191 = vmatpush2.msra.mxu0 0.0
  %3192 = vmatprep.subr.mxu0 0.0
  %3193 = vmatpush2.msra.mxu0 0.0
  %3194 = vmatprep.subr.mxu0 0.0
  %3195 = vmatpush2.msra.mxu0 0.0
  %3196 = vmatprep.subr.mxu0 0.0
  %3197 = vmatpush2.msra.mxu0 0.0
  %3198 = vmatprep.subr.mxu0 0.0
  %3199 = vmatpush2.msra.mxu0 0.0
  %3200 = vmatprep.subr.mxu0 0.0
  %3201 = vmatpush2.msra.mxu0 0.0
  %3202 = vmatprep.subr.mxu0 0.0
  %3203 = vmatpush2.msra.mxu0 0.0
  %3204 = vmatprep.subr.mxu0 0.0
  %3205 = vmatpush2.msra.mxu0 0.0
  %3206 = vmatprep.subr.mxu0 0.0
  %3207 = vmatpush2.msra.mxu0 0.0
  %3208 = vmatprep.subr.mxu0 0.0
  %3209 = vmatpush2.msra.mxu0 0.0
  %3210 = vmatprep.mubr.f32.mxu0 0.0
  %3211 = vmatmul.mubr.f32.gmra.mxu0 %v3132
  %v3212 = vpop.f32.mrf.mxu0
  %v3213 = vadd.f32 0.0, %v3212
  %v3214 = vpop.f32.mrf.mxu0
  %v3215 = vadd.f32 0.0, %v3214
  %3216 = vdwg.mxu0
  %3217 = vmatprep.subr.mxu0 0.0
  %3218 = vmatpush1.msra.mxu0 0.0
  %3219 = vmatprep.subr.mxu0 0.0
  %3220 = vmatpush1.msra.mxu0 0.0
  %3221 = vmatprep.subr.mxu0 0.0
  %3222 = vmatpush1.msra.mxu0 0.0
  %3223 = vmatprep.subr.mxu0 0.0
  %3224 = vmatpush1.msra.mxu0 0.0
  %3225 = vmatprep.subr.mxu0 0.0
  %3226 = vmatpush1.msra.mxu0 0.0
  %3227 = vmatprep.subr.mxu0 0.0
  %3228 = vmatpush1.msra.mxu0 0.0
  %3229 = vmatprep.subr.mxu0 0.0
  %3230 = vmatpush1.msra.mxu0 0.0
  %3231 = vmatprep.subr.mxu0 0.0
  %3232 = vmatpush1.msra.mxu0 0.0
  %3233 = vmatprep.subr.mxu0 0.0
  %3234 = vmatpush1.msra.mxu0 0.0
  %3235 = vmatprep.subr.mxu0 %v3144
  %3236 = vmatpush1.msra.mxu0 %v3141
  %3237 = vmatprep.subr.mxu0 %v3126
  %3238 = vmatpush1.msra.mxu0 %v3125
  %3239 = vmatprep.subr.mxu0 %v3122
  %3240 = vmatpush1.msra.mxu0 %v3121
  %3241 = vmatprep.subr.mxu0 %v3118
  %3242 = vmatpush1.msra.mxu0 %v3117
  %3243 = vmatprep.subr.mxu0 %v3114
  %3244 = vmatpush1.msra.mxu0 %v3113
  %3245 = vmatprep.subr.mxu0 %v3110
  %3246 = vmatpush1.msra.mxu0 %v3109
  %3247 = vmatprep.subr.mxu0 %v3106
  %3248 = vmatpush1.msra.mxu0 %v3105
  %3249 = vmatprep.subr.mxu0 0.0
  %3250 = vmatpush2.msra.mxu0 0.0
  %3251 = vmatprep.subr.mxu0 0.0
  %3252 = vmatpush2.msra.mxu0 0.0
  %3253 = vmatprep.subr.mxu0 0.0
  %3254 = vmatpush2.msra.mxu0 0.0
  %3255 = vmatprep.subr.mxu0 0.0
  %3256 = vmatpush2.msra.mxu0 0.0
  %3257 = vmatprep.subr.mxu0 0.0
  %3258 = vmatpush2.msra.mxu0 0.0
  %3259 = vmatprep.subr.mxu0 0.0
  %3260 = vmatpush2.msra.mxu0 0.0
  %3261 = vmatprep.subr.mxu0 0.0
  %3262 = vmatpush2.msra.mxu0 0.0
  %3263 = vmatprep.subr.mxu0 0.0
  %3264 = vmatpush2.msra.mxu0 0.0
  %3265 = vmatprep.subr.mxu0 0.0
  %3266 = vmatpush2.msra.mxu0 0.0
  %3267 = vmatprep.subr.mxu0 0.0
  %3268 = vmatpush2.msra.mxu0 0.0
  %3269 = vmatprep.subr.mxu0 0.0
  %3270 = vmatpush2.msra.mxu0 0.0
  %3271 = vmatprep.subr.mxu0 0.0
  %3272 = vmatpush2.msra.mxu0 0.0
  %3273 = vmatprep.subr.mxu0 0.0
  %3274 = vmatpush2.msra.mxu0 0.0
  %3275 = vmatprep.subr.mxu0 0.0
  %3276 = vmatpush2.msra.mxu0 0.0
  %3277 = vmatprep.subr.mxu0 0.0
  %3278 = vmatpush2.msra.mxu0 0.0
  %3279 = vmatprep.subr.mxu0 0.0
  %3280 = vmatpush2.msra.mxu0 0.0
  %3281 = vmatprep.mubr.f32.mxu0 0.0
  %3282 = vmatmul.mubr.f32.gmra.mxu0 %v3132
  %v3283 = vpop.f32.mrf.mxu0
  %v3284 = vadd.f32 0.0, %v3283
  %v3285 = vpop.f32.mrf.mxu0
  %v3286 = vadd.f32 0.0, %v3285
  %3287 = vdwg.mxu0
  %v3288 = vadd.f32 %v3098, %v3213
  %v3289 = vadd.f32 %v3099, %v3215
  %v3290 = vadd.f32 %v3100, %v3284
  %v3291 = vadd.f32 %v3101, %v3286
  %s3292 = scalar_lea.vmem %s3, 2240
  %v3293 = vld [vmem:[%s3292] sm:$0xff]
  %v3294 = vld [vmem:[%s3292 + $0x8] sm:$0xff]
  %v3295 = vld [vmem:[%s3292 + $0x10] sm:$0xff]
  %v3296 = vld [vmem:[%s3292 + $0x18] sm:$0xff]
  %v3297 = vld [vmem:[%s3292 + $0x20] sm:$0xff]
  %v3298 = vld [vmem:[%s3292 + $0x28] sm:$0xff]
  %v3299 = vld [vmem:[%s3292 + $0x30] sm:$0xff]
  %v3300 = vld [vmem:[%s3292 + $0x38] sm:$0xff]
  %v3301 = vld [vmem:[%s3292 + $0x40] sm:$0xff]
  %v3302 = vld [vmem:[%s3292 + $0x48] sm:$0xff]
  %v3303 = vld [vmem:[%s3292 + $0x50] sm:$0xff]
  %v3304 = vld [vmem:[%s3292 + $0x58] sm:$0xff]
  %v3305 = vld [vmem:[%s3292 + $0x60] sm:$0xff]
  %v3306 = vld [vmem:[%s3292 + $0x68] sm:$0xff]
  %v3307 = vld [vmem:[%s3292 + $0x70] sm:$0xff]
  %v3308 = vld [vmem:[%s3292 + $0x78] sm:$0xff]
  %v3309 = vld [vmem:[%s3292 + $0x80] sm:$0xff]
  %v3310 = vld [vmem:[%s3292 + $0x88] sm:$0xff]
  %v3311 = vld [vmem:[%s3292 + $0x90] sm:$0xff]
  %v3312 = vld [vmem:[%s3292 + $0x98] sm:$0xff]
  %v3313 = vld [vmem:[%s3292 + $0xa0] sm:$0xff]
  %v3314 = vld [vmem:[%s3292 + $0xa8] sm:$0xff]
  %v3315 = vld [vmem:[%s3292 + $0xb0] sm:$0xff]
  %v3316 = vld [vmem:[%s3292 + $0xb8] sm:$0xff]
  %v3317 = vld [vmem:[%s3292 + $0xc0] sm:$0x3]
  %v3318 = vld [vmem:[%s3292 + $0xc8] sm:$0x3]
  %v3319 = vld [vmem:[%s3292 + $0xd0] sm:$0x3]
  %v3320 = vld [vmem:[%s3292 + $0xd8] sm:$0x3]
  %v3322 = vsel %vm1456, %v1393, 0
  %v3325 = vsel %vm1460, %v3317, 0
  %v3328 = vsel %vm1460, %v3318, 0
  %v3331 = vsel %vm1460, %v3319, 0
  %v3334 = vsel %vm1460, %v3320, 0
  %3336 = vmatprep.subr.mxu0 0.0
  %3337 = vmatpush1.msra.mxu0 0.0
  %3338 = vmatprep.subr.mxu0 0.0
  %3339 = vmatpush1.msra.mxu0 0.0
  %3340 = vmatprep.subr.mxu0 0.0
  %3341 = vmatpush1.msra.mxu0 0.0
  %3342 = vmatprep.subr.mxu0 0.0
  %3343 = vmatpush1.msra.mxu0 0.0
  %3344 = vmatprep.subr.mxu0 0.0
  %3345 = vmatpush1.msra.mxu0 0.0
  %3346 = vmatprep.subr.mxu0 0.0
  %3347 = vmatpush1.msra.mxu0 0.0
  %3348 = vmatprep.subr.mxu0 0.0
  %3349 = vmatpush1.msra.mxu0 0.0
  %3350 = vmatprep.subr.mxu0 0.0
  %3351 = vmatpush1.msra.mxu0 0.0
  %3352 = vmatprep.subr.mxu0 0.0
  %3353 = vmatpush1.msra.mxu0 0.0
  %3354 = vmatprep.subr.mxu0 %v3328
  %3355 = vmatpush1.msra.mxu0 %v3325
  %3356 = vmatprep.subr.mxu0 %v3314
  %3357 = vmatpush1.msra.mxu0 %v3313
  %3358 = vmatprep.subr.mxu0 %v3310
  %3359 = vmatpush1.msra.mxu0 %v3309
  %3360 = vmatprep.subr.mxu0 %v3306
  %3361 = vmatpush1.msra.mxu0 %v3305
  %3362 = vmatprep.subr.mxu0 %v3302
  %3363 = vmatpush1.msra.mxu0 %v3301
  %3364 = vmatprep.subr.mxu0 %v3298
  %3365 = vmatpush1.msra.mxu0 %v3297
  %3366 = vmatprep.subr.mxu0 %v3294
  %3367 = vmatpush1.msra.mxu0 %v3293
  %3368 = vmatprep.subr.mxu0 0.0
  %3369 = vmatpush2.msra.mxu0 0.0
  %3370 = vmatprep.subr.mxu0 0.0
  %3371 = vmatpush2.msra.mxu0 0.0
  %3372 = vmatprep.subr.mxu0 0.0
  %3373 = vmatpush2.msra.mxu0 0.0
  %3374 = vmatprep.subr.mxu0 0.0
  %3375 = vmatpush2.msra.mxu0 0.0
  %3376 = vmatprep.subr.mxu0 0.0
  %3377 = vmatpush2.msra.mxu0 0.0
  %3378 = vmatprep.subr.mxu0 0.0
  %3379 = vmatpush2.msra.mxu0 0.0
  %3380 = vmatprep.subr.mxu0 0.0
  %3381 = vmatpush2.msra.mxu0 0.0
  %3382 = vmatprep.subr.mxu0 0.0
  %3383 = vmatpush2.msra.mxu0 0.0
  %3384 = vmatprep.subr.mxu0 0.0
  %3385 = vmatpush2.msra.mxu0 0.0
  %3386 = vmatprep.subr.mxu0 0.0
  %3387 = vmatpush2.msra.mxu0 0.0
  %3388 = vmatprep.subr.mxu0 0.0
  %3389 = vmatpush2.msra.mxu0 0.0
  %3390 = vmatprep.subr.mxu0 0.0
  %3391 = vmatpush2.msra.mxu0 0.0
  %3392 = vmatprep.subr.mxu0 0.0
  %3393 = vmatpush2.msra.mxu0 0.0
  %3394 = vmatprep.subr.mxu0 0.0
  %3395 = vmatpush2.msra.mxu0 0.0
  %3396 = vmatprep.subr.mxu0 0.0
  %3397 = vmatpush2.msra.mxu0 0.0
  %3398 = vmatprep.subr.mxu0 0.0
  %3399 = vmatpush2.msra.mxu0 0.0
  %3400 = vmatprep.mubr.f32.mxu0 0.0
  %3401 = vmatmul.mubr.f32.gmra.mxu0 %v3322
  %v3402 = vpop.f32.mrf.mxu0
  %v3403 = vadd.f32 0.0, %v3402
  %v3404 = vpop.f32.mrf.mxu0
  %v3405 = vadd.f32 0.0, %v3404
  %3406 = vdwg.mxu0
  %3407 = vmatprep.subr.mxu0 0.0
  %3408 = vmatpush1.msra.mxu0 0.0
  %3409 = vmatprep.subr.mxu0 0.0
  %3410 = vmatpush1.msra.mxu0 0.0
  %3411 = vmatprep.subr.mxu0 0.0
  %3412 = vmatpush1.msra.mxu0 0.0
  %3413 = vmatprep.subr.mxu0 0.0
  %3414 = vmatpush1.msra.mxu0 0.0
  %3415 = vmatprep.subr.mxu0 0.0
  %3416 = vmatpush1.msra.mxu0 0.0
  %3417 = vmatprep.subr.mxu0 0.0
  %3418 = vmatpush1.msra.mxu0 0.0
  %3419 = vmatprep.subr.mxu0 0.0
  %3420 = vmatpush1.msra.mxu0 0.0
  %3421 = vmatprep.subr.mxu0 0.0
  %3422 = vmatpush1.msra.mxu0 0.0
  %3423 = vmatprep.subr.mxu0 0.0
  %3424 = vmatpush1.msra.mxu0 0.0
  %3425 = vmatprep.subr.mxu0 %v3334
  %3426 = vmatpush1.msra.mxu0 %v3331
  %3427 = vmatprep.subr.mxu0 %v3316
  %3428 = vmatpush1.msra.mxu0 %v3315
  %3429 = vmatprep.subr.mxu0 %v3312
  %3430 = vmatpush1.msra.mxu0 %v3311
  %3431 = vmatprep.subr.mxu0 %v3308
  %3432 = vmatpush1.msra.mxu0 %v3307
  %3433 = vmatprep.subr.mxu0 %v3304
  %3434 = vmatpush1.msra.mxu0 %v3303
  %3435 = vmatprep.subr.mxu0 %v3300
  %3436 = vmatpush1.msra.mxu0 %v3299
  %3437 = vmatprep.subr.mxu0 %v3296
  %3438 = vmatpush1.msra.mxu0 %v3295
  %3439 = vmatprep.subr.mxu0 0.0
  %3440 = vmatpush2.msra.mxu0 0.0
  %3441 = vmatprep.subr.mxu0 0.0
  %3442 = vmatpush2.msra.mxu0 0.0
  %3443 = vmatprep.subr.mxu0 0.0
  %3444 = vmatpush2.msra.mxu0 0.0
  %3445 = vmatprep.subr.mxu0 0.0
  %3446 = vmatpush2.msra.mxu0 0.0
  %3447 = vmatprep.subr.mxu0 0.0
  %3448 = vmatpush2.msra.mxu0 0.0
  %3449 = vmatprep.subr.mxu0 0.0
  %3450 = vmatpush2.msra.mxu0 0.0
  %3451 = vmatprep.subr.mxu0 0.0
  %3452 = vmatpush2.msra.mxu0 0.0
  %3453 = vmatprep.subr.mxu0 0.0
  %3454 = vmatpush2.msra.mxu0 0.0
  %3455 = vmatprep.subr.mxu0 0.0
  %3456 = vmatpush2.msra.mxu0 0.0
  %3457 = vmatprep.subr.mxu0 0.0
  %3458 = vmatpush2.msra.mxu0 0.0
  %3459 = vmatprep.subr.mxu0 0.0
  %3460 = vmatpush2.msra.mxu0 0.0
  %3461 = vmatprep.subr.mxu0 0.0
  %3462 = vmatpush2.msra.mxu0 0.0
  %3463 = vmatprep.subr.mxu0 0.0
  %3464 = vmatpush2.msra.mxu0 0.0
  %3465 = vmatprep.subr.mxu0 0.0
  %3466 = vmatpush2.msra.mxu0 0.0
  %3467 = vmatprep.subr.mxu0 0.0
  %3468 = vmatpush2.msra.mxu0 0.0
  %3469 = vmatprep.subr.mxu0 0.0
  %3470 = vmatpush2.msra.mxu0 0.0
  %3471 = vmatprep.mubr.f32.mxu0 0.0
  %3472 = vmatmul.mubr.f32.gmra.mxu0 %v3322
  %v3473 = vpop.f32.mrf.mxu0
  %v3474 = vadd.f32 0.0, %v3473
  %v3475 = vpop.f32.mrf.mxu0
  %v3476 = vadd.f32 0.0, %v3475
  %3477 = vdwg.mxu0
  %v3478 = vadd.f32 %v3288, %v3403
  %v3479 = vadd.f32 %v3289, %v3405
  %v3480 = vadd.f32 %v3290, %v3474
  %v3481 = vadd.f32 %v3291, %v3476
  %s3482 = scalar_lea.vmem %s3, 2464
  %v3483 = vld [vmem:[%s3482] sm:$0xff]
  %v3484 = vld [vmem:[%s3482 + $0x8] sm:$0xff]
  %v3485 = vld [vmem:[%s3482 + $0x10] sm:$0xff]
  %v3486 = vld [vmem:[%s3482 + $0x18] sm:$0xff]
  %v3487 = vld [vmem:[%s3482 + $0x20] sm:$0xff]
  %v3488 = vld [vmem:[%s3482 + $0x28] sm:$0xff]
  %v3489 = vld [vmem:[%s3482 + $0x30] sm:$0xff]
  %v3490 = vld [vmem:[%s3482 + $0x38] sm:$0xff]
  %v3491 = vld [vmem:[%s3482 + $0x40] sm:$0xff]
  %v3492 = vld [vmem:[%s3482 + $0x48] sm:$0xff]
  %v3493 = vld [vmem:[%s3482 + $0x50] sm:$0xff]
  %v3494 = vld [vmem:[%s3482 + $0x58] sm:$0xff]
  %v3495 = vld [vmem:[%s3482 + $0x60] sm:$0xff]
  %v3496 = vld [vmem:[%s3482 + $0x68] sm:$0xff]
  %v3497 = vld [vmem:[%s3482 + $0x70] sm:$0xff]
  %v3498 = vld [vmem:[%s3482 + $0x78] sm:$0xff]
  %v3499 = vld [vmem:[%s3482 + $0x80] sm:$0xff]
  %v3500 = vld [vmem:[%s3482 + $0x88] sm:$0xff]
  %v3501 = vld [vmem:[%s3482 + $0x90] sm:$0xff]
  %v3502 = vld [vmem:[%s3482 + $0x98] sm:$0xff]
  %v3503 = vld [vmem:[%s3482 + $0xa0] sm:$0xff]
  %v3504 = vld [vmem:[%s3482 + $0xa8] sm:$0xff]
  %v3505 = vld [vmem:[%s3482 + $0xb0] sm:$0xff]
  %v3506 = vld [vmem:[%s3482 + $0xb8] sm:$0xff]
  %v3507 = vld [vmem:[%s3482 + $0xc0] sm:$0x3]
  %v3508 = vld [vmem:[%s3482 + $0xc8] sm:$0x3]
  %v3509 = vld [vmem:[%s3482 + $0xd0] sm:$0x3]
  %v3510 = vld [vmem:[%s3482 + $0xd8] sm:$0x3]
  %v3512 = vsel %vm1456, %v1394, 0
  %v3515 = vsel %vm1460, %v3507, 0
  %v3518 = vsel %vm1460, %v3508, 0
  %v3521 = vsel %vm1460, %v3509, 0
  %v3524 = vsel %vm1460, %v3510, 0
  %3526 = vmatprep.subr.mxu0 0.0
  %3527 = vmatpush1.msra.mxu0 0.0
  %3528 = vmatprep.subr.mxu0 0.0
  %3529 = vmatpush1.msra.mxu0 0.0
  %3530 = vmatprep.subr.mxu0 0.0
  %3531 = vmatpush1.msra.mxu0 0.0
  %3532 = vmatprep.subr.mxu0 0.0
  %3533 = vmatpush1.msra.mxu0 0.0
  %3534 = vmatprep.subr.mxu0 0.0
  %3535 = vmatpush1.msra.mxu0 0.0
  %3536 = vmatprep.subr.mxu0 0.0
  %3537 = vmatpush1.msra.mxu0 0.0
  %3538 = vmatprep.subr.mxu0 0.0
  %3539 = vmatpush1.msra.mxu0 0.0
  %3540 = vmatprep.subr.mxu0 0.0
  %3541 = vmatpush1.msra.mxu0 0.0
  %3542 = vmatprep.subr.mxu0 0.0
  %3543 = vmatpush1.msra.mxu0 0.0
  %3544 = vmatprep.subr.mxu0 %v3518
  %3545 = vmatpush1.msra.mxu0 %v3515
  %3546 = vmatprep.subr.mxu0 %v3504
  %3547 = vmatpush1.msra.mxu0 %v3503
  %3548 = vmatprep.subr.mxu0 %v3500
  %3549 = vmatpush1.msra.mxu0 %v3499
  %3550 = vmatprep.subr.mxu0 %v3496
  %3551 = vmatpush1.msra.mxu0 %v3495
  %3552 = vmatprep.subr.mxu0 %v3492
  %3553 = vmatpush1.msra.mxu0 %v3491
  %3554 = vmatprep.subr.mxu0 %v3488
  %3555 = vmatpush1.msra.mxu0 %v3487
  %3556 = vmatprep.subr.mxu0 %v3484
  %3557 = vmatpush1.msra.mxu0 %v3483
  %3558 = vmatprep.subr.mxu0 0.0
  %3559 = vmatpush2.msra.mxu0 0.0
  %3560 = vmatprep.subr.mxu0 0.0
  %3561 = vmatpush2.msra.mxu0 0.0
  %3562 = vmatprep.subr.mxu0 0.0
  %3563 = vmatpush2.msra.mxu0 0.0
  %3564 = vmatprep.subr.mxu0 0.0
  %3565 = vmatpush2.msra.mxu0 0.0
  %3566 = vmatprep.subr.mxu0 0.0
  %3567 = vmatpush2.msra.mxu0 0.0
  %3568 = vmatprep.subr.mxu0 0.0
  %3569 = vmatpush2.msra.mxu0 0.0
  %3570 = vmatprep.subr.mxu0 0.0
  %3571 = vmatpush2.msra.mxu0 0.0
  %3572 = vmatprep.subr.mxu0 0.0
  %3573 = vmatpush2.msra.mxu0 0.0
  %3574 = vmatprep.subr.mxu0 0.0
  %3575 = vmatpush2.msra.mxu0 0.0
  %3576 = vmatprep.subr.mxu0 0.0
  %3577 = vmatpush2.msra.mxu0 0.0
  %3578 = vmatprep.subr.mxu0 0.0
  %3579 = vmatpush2.msra.mxu0 0.0
  %3580 = vmatprep.subr.mxu0 0.0
  %3581 = vmatpush2.msra.mxu0 0.0
  %3582 = vmatprep.subr.mxu0 0.0
  %3583 = vmatpush2.msra.mxu0 0.0
  %3584 = vmatprep.subr.mxu0 0.0
  %3585 = vmatpush2.msra.mxu0 0.0
  %3586 = vmatprep.subr.mxu0 0.0
  %3587 = vmatpush2.msra.mxu0 0.0
  %3588 = vmatprep.subr.mxu0 0.0
  %3589 = vmatpush2.msra.mxu0 0.0
  %3590 = vmatprep.mubr.f32.mxu0 0.0
  %3591 = vmatmul.mubr.f32.gmra.mxu0 %v3512
  %v3592 = vpop.f32.mrf.mxu0
  %v3593 = vadd.f32 0.0, %v3592
  %v3594 = vpop.f32.mrf.mxu0
  %v3595 = vadd.f32 0.0, %v3594
  %3596 = vdwg.mxu0
  %3597 = vmatprep.subr.mxu0 0.0
  %3598 = vmatpush1.msra.mxu0 0.0
  %3599 = vmatprep.subr.mxu0 0.0
  %3600 = vmatpush1.msra.mxu0 0.0
  %3601 = vmatprep.subr.mxu0 0.0
  %3602 = vmatpush1.msra.mxu0 0.0
  %3603 = vmatprep.subr.mxu0 0.0
  %3604 = vmatpush1.msra.mxu0 0.0
  %3605 = vmatprep.subr.mxu0 0.0
  %3606 = vmatpush1.msra.mxu0 0.0
  %3607 = vmatprep.subr.mxu0 0.0
  %3608 = vmatpush1.msra.mxu0 0.0
  %3609 = vmatprep.subr.mxu0 0.0
  %3610 = vmatpush1.msra.mxu0 0.0
  %3611 = vmatprep.subr.mxu0 0.0
  %3612 = vmatpush1.msra.mxu0 0.0
  %3613 = vmatprep.subr.mxu0 0.0
  %3614 = vmatpush1.msra.mxu0 0.0
  %3615 = vmatprep.subr.mxu0 %v3524
  %3616 = vmatpush1.msra.mxu0 %v3521
  %3617 = vmatprep.subr.mxu0 %v3506
  %3618 = vmatpush1.msra.mxu0 %v3505
  %3619 = vmatprep.subr.mxu0 %v3502
  %3620 = vmatpush1.msra.mxu0 %v3501
  %3621 = vmatprep.subr.mxu0 %v3498
  %3622 = vmatpush1.msra.mxu0 %v3497
  %3623 = vmatprep.subr.mxu0 %v3494
  %3624 = vmatpush1.msra.mxu0 %v3493
  %3625 = vmatprep.subr.mxu0 %v3490
  %3626 = vmatpush1.msra.mxu0 %v3489
  %3627 = vmatprep.subr.mxu0 %v3486
  %3628 = vmatpush1.msra.mxu0 %v3485
  %3629 = vmatprep.subr.mxu0 0.0
  %3630 = vmatpush2.msra.mxu0 0.0
  %3631 = vmatprep.subr.mxu0 0.0
  %3632 = vmatpush2.msra.mxu0 0.0
  %3633 = vmatprep.subr.mxu0 0.0
  %3634 = vmatpush2.msra.mxu0 0.0
  %3635 = vmatprep.subr.mxu0 0.0
  %3636 = vmatpush2.msra.mxu0 0.0
  %3637 = vmatprep.subr.mxu0 0.0
  %3638 = vmatpush2.msra.mxu0 0.0
  %3639 = vmatprep.subr.mxu0 0.0
  %3640 = vmatpush2.msra.mxu0 0.0
  %3641 = vmatprep.subr.mxu0 0.0
  %3642 = vmatpush2.msra.mxu0 0.0
  %3643 = vmatprep.subr.mxu0 0.0
  %3644 = vmatpush2.msra.mxu0 0.0
  %3645 = vmatprep.subr.mxu0 0.0
  %3646 = vmatpush2.msra.mxu0 0.0
  %3647 = vmatprep.subr.mxu0 0.0
  %3648 = vmatpush2.msra.mxu0 0.0
  %3649 = vmatprep.subr.mxu0 0.0
  %3650 = vmatpush2.msra.mxu0 0.0
  %3651 = vmatprep.subr.mxu0 0.0
  %3652 = vmatpush2.msra.mxu0 0.0
  %3653 = vmatprep.subr.mxu0 0.0
  %3654 = vmatpush2.msra.mxu0 0.0
  %3655 = vmatprep.subr.mxu0 0.0
  %3656 = vmatpush2.msra.mxu0 0.0
  %3657 = vmatprep.subr.mxu0 0.0
  %3658 = vmatpush2.msra.mxu0 0.0
  %3659 = vmatprep.subr.mxu0 0.0
  %3660 = vmatpush2.msra.mxu0 0.0
  %3661 = vmatprep.mubr.f32.mxu0 0.0
  %3662 = vmatmul.mubr.f32.gmra.mxu0 %v3512
  %v3663 = vpop.f32.mrf.mxu0
  %v3664 = vadd.f32 0.0, %v3663
  %v3665 = vpop.f32.mrf.mxu0
  %v3666 = vadd.f32 0.0, %v3665
  %3667 = vdwg.mxu0
  %v3668 = vadd.f32 %v3478, %v3593
  %v3669 = vadd.f32 %v3479, %v3595
  %v3670 = vadd.f32 %v3480, %v3664
  %v3671 = vadd.f32 %v3481, %v3666
  %s3672 = scalar_lea.vmem %s3, 2688
  %v3673 = vld [vmem:[%s3672] sm:$0xff]
  %v3674 = vld [vmem:[%s3672 + $0x8] sm:$0xff]
  %v3675 = vld [vmem:[%s3672 + $0x10] sm:$0xff]
  %v3676 = vld [vmem:[%s3672 + $0x18] sm:$0xff]
  %v3677 = vld [vmem:[%s3672 + $0x20] sm:$0xff]
  %v3678 = vld [vmem:[%s3672 + $0x28] sm:$0xff]
  %v3679 = vld [vmem:[%s3672 + $0x30] sm:$0xff]
  %v3680 = vld [vmem:[%s3672 + $0x38] sm:$0xff]
  %v3681 = vld [vmem:[%s3672 + $0x40] sm:$0xff]
  %v3682 = vld [vmem:[%s3672 + $0x48] sm:$0xff]
  %v3683 = vld [vmem:[%s3672 + $0x50] sm:$0xff]
  %v3684 = vld [vmem:[%s3672 + $0x58] sm:$0xff]
  %v3685 = vld [vmem:[%s3672 + $0x60] sm:$0xff]
  %v3686 = vld [vmem:[%s3672 + $0x68] sm:$0xff]
  %v3687 = vld [vmem:[%s3672 + $0x70] sm:$0xff]
  %v3688 = vld [vmem:[%s3672 + $0x78] sm:$0xff]
  %v3689 = vld [vmem:[%s3672 + $0x80] sm:$0xff]
  %v3690 = vld [vmem:[%s3672 + $0x88] sm:$0xff]
  %v3691 = vld [vmem:[%s3672 + $0x90] sm:$0xff]
  %v3692 = vld [vmem:[%s3672 + $0x98] sm:$0xff]
  %v3693 = vld [vmem:[%s3672 + $0xa0] sm:$0xff]
  %v3694 = vld [vmem:[%s3672 + $0xa8] sm:$0xff]
  %v3695 = vld [vmem:[%s3672 + $0xb0] sm:$0xff]
  %v3696 = vld [vmem:[%s3672 + $0xb8] sm:$0xff]
  %v3697 = vld [vmem:[%s3672 + $0xc0] sm:$0x3]
  %v3698 = vld [vmem:[%s3672 + $0xc8] sm:$0x3]
  %v3699 = vld [vmem:[%s3672 + $0xd0] sm:$0x3]
  %v3700 = vld [vmem:[%s3672 + $0xd8] sm:$0x3]
  %v3702 = vsel %vm1456, %v1395, 0
  %v3705 = vsel %vm1460, %v3697, 0
  %v3708 = vsel %vm1460, %v3698, 0
  %v3711 = vsel %vm1460, %v3699, 0
  %v3714 = vsel %vm1460, %v3700, 0
  %3716 = vmatprep.subr.mxu0 0.0
  %3717 = vmatpush1.msra.mxu0 0.0
  %3718 = vmatprep.subr.mxu0 0.0
  %3719 = vmatpush1.msra.mxu0 0.0
  %3720 = vmatprep.subr.mxu0 0.0
  %3721 = vmatpush1.msra.mxu0 0.0
  %3722 = vmatprep.subr.mxu0 0.0
  %3723 = vmatpush1.msra.mxu0 0.0
  %3724 = vmatprep.subr.mxu0 0.0
  %3725 = vmatpush1.msra.mxu0 0.0
  %3726 = vmatprep.subr.mxu0 0.0
  %3727 = vmatpush1.msra.mxu0 0.0
  %3728 = vmatprep.subr.mxu0 0.0
  %3729 = vmatpush1.msra.mxu0 0.0
  %3730 = vmatprep.subr.mxu0 0.0
  %3731 = vmatpush1.msra.mxu0 0.0
  %3732 = vmatprep.subr.mxu0 0.0
  %3733 = vmatpush1.msra.mxu0 0.0
  %3734 = vmatprep.subr.mxu0 %v3708
  %3735 = vmatpush1.msra.mxu0 %v3705
  %3736 = vmatprep.subr.mxu0 %v3694
  %3737 = vmatpush1.msra.mxu0 %v3693
  %3738 = vmatprep.subr.mxu0 %v3690
  %3739 = vmatpush1.msra.mxu0 %v3689
  %3740 = vmatprep.subr.mxu0 %v3686
  %3741 = vmatpush1.msra.mxu0 %v3685
  %3742 = vmatprep.subr.mxu0 %v3682
  %3743 = vmatpush1.msra.mxu0 %v3681
  %3744 = vmatprep.subr.mxu0 %v3678
  %3745 = vmatpush1.msra.mxu0 %v3677
  %3746 = vmatprep.subr.mxu0 %v3674
  %3747 = vmatpush1.msra.mxu0 %v3673
  %3748 = vmatprep.subr.mxu0 0.0
  %3749 = vmatpush2.msra.mxu0 0.0
  %3750 = vmatprep.subr.mxu0 0.0
  %3751 = vmatpush2.msra.mxu0 0.0
  %3752 = vmatprep.subr.mxu0 0.0
  %3753 = vmatpush2.msra.mxu0 0.0
  %3754 = vmatprep.subr.mxu0 0.0
  %3755 = vmatpush2.msra.mxu0 0.0
  %3756 = vmatprep.subr.mxu0 0.0
  %3757 = vmatpush2.msra.mxu0 0.0
  %3758 = vmatprep.subr.mxu0 0.0
  %3759 = vmatpush2.msra.mxu0 0.0
  %3760 = vmatprep.subr.mxu0 0.0
  %3761 = vmatpush2.msra.mxu0 0.0
  %3762 = vmatprep.subr.mxu0 0.0
  %3763 = vmatpush2.msra.mxu0 0.0
  %3764 = vmatprep.subr.mxu0 0.0
  %3765 = vmatpush2.msra.mxu0 0.0
  %3766 = vmatprep.subr.mxu0 0.0
  %3767 = vmatpush2.msra.mxu0 0.0
  %3768 = vmatprep.subr.mxu0 0.0
  %3769 = vmatpush2.msra.mxu0 0.0
  %3770 = vmatprep.subr.mxu0 0.0
  %3771 = vmatpush2.msra.mxu0 0.0
  %3772 = vmatprep.subr.mxu0 0.0
  %3773 = vmatpush2.msra.mxu0 0.0
  %3774 = vmatprep.subr.mxu0 0.0
  %3775 = vmatpush2.msra.mxu0 0.0
  %3776 = vmatprep.subr.mxu0 0.0
  %3777 = vmatpush2.msra.mxu0 0.0
  %3778 = vmatprep.subr.mxu0 0.0
  %3779 = vmatpush2.msra.mxu0 0.0
  %3780 = vmatprep.mubr.f32.mxu0 0.0
  %3781 = vmatmul.mubr.f32.gmra.mxu0 %v3702
  %v3782 = vpop.f32.mrf.mxu0
  %v3783 = vadd.f32 0.0, %v3782
  %v3784 = vpop.f32.mrf.mxu0
  %v3785 = vadd.f32 0.0, %v3784
  %3786 = vdwg.mxu0
  %3787 = vmatprep.subr.mxu0 0.0
  %3788 = vmatpush1.msra.mxu0 0.0
  %3789 = vmatprep.subr.mxu0 0.0
  %3790 = vmatpush1.msra.mxu0 0.0
  %3791 = vmatprep.subr.mxu0 0.0
  %3792 = vmatpush1.msra.mxu0 0.0
  %3793 = vmatprep.subr.mxu0 0.0
  %3794 = vmatpush1.msra.mxu0 0.0
  %3795 = vmatprep.subr.mxu0 0.0
  %3796 = vmatpush1.msra.mxu0 0.0
  %3797 = vmatprep.subr.mxu0 0.0
  %3798 = vmatpush1.msra.mxu0 0.0
  %3799 = vmatprep.subr.mxu0 0.0
  %3800 = vmatpush1.msra.mxu0 0.0
  %3801 = vmatprep.subr.mxu0 0.0
  %3802 = vmatpush1.msra.mxu0 0.0
  %3803 = vmatprep.subr.mxu0 0.0
  %3804 = vmatpush1.msra.mxu0 0.0
  %3805 = vmatprep.subr.mxu0 %v3714
  %3806 = vmatpush1.msra.mxu0 %v3711
  %3807 = vmatprep.subr.mxu0 %v3696
  %3808 = vmatpush1.msra.mxu0 %v3695
  %3809 = vmatprep.subr.mxu0 %v3692
  %3810 = vmatpush1.msra.mxu0 %v3691
  %3811 = vmatprep.subr.mxu0 %v3688
  %3812 = vmatpush1.msra.mxu0 %v3687
  %3813 = vmatprep.subr.mxu0 %v3684
  %3814 = vmatpush1.msra.mxu0 %v3683
  %3815 = vmatprep.subr.mxu0 %v3680
  %3816 = vmatpush1.msra.mxu0 %v3679
  %3817 = vmatprep.subr.mxu0 %v3676
  %3818 = vmatpush1.msra.mxu0 %v3675
  %3819 = vmatprep.subr.mxu0 0.0
  %3820 = vmatpush2.msra.mxu0 0.0
  %3821 = vmatprep.subr.mxu0 0.0
  %3822 = vmatpush2.msra.mxu0 0.0
  %3823 = vmatprep.subr.mxu0 0.0
  %3824 = vmatpush2.msra.mxu0 0.0
  %3825 = vmatprep.subr.mxu0 0.0
  %3826 = vmatpush2.msra.mxu0 0.0
  %3827 = vmatprep.subr.mxu0 0.0
  %3828 = vmatpush2.msra.mxu0 0.0
  %3829 = vmatprep.subr.mxu0 0.0
  %3830 = vmatpush2.msra.mxu0 0.0
  %3831 = vmatprep.subr.mxu0 0.0
  %3832 = vmatpush2.msra.mxu0 0.0
  %3833 = vmatprep.subr.mxu0 0.0
  %3834 = vmatpush2.msra.mxu0 0.0
  %3835 = vmatprep.subr.mxu0 0.0
  %3836 = vmatpush2.msra.mxu0 0.0
  %3837 = vmatprep.subr.mxu0 0.0
  %3838 = vmatpush2.msra.mxu0 0.0
  %3839 = vmatprep.subr.mxu0 0.0
  %3840 = vmatpush2.msra.mxu0 0.0
  %3841 = vmatprep.subr.mxu0 0.0
  %3842 = vmatpush2.msra.mxu0 0.0
  %3843 = vmatprep.subr.mxu0 0.0
  %3844 = vmatpush2.msra.mxu0 0.0
  %3845 = vmatprep.subr.mxu0 0.0
  %3846 = vmatpush2.msra.mxu0 0.0
  %3847 = vmatprep.subr.mxu0 0.0
  %3848 = vmatpush2.msra.mxu0 0.0
  %3849 = vmatprep.subr.mxu0 0.0
  %3850 = vmatpush2.msra.mxu0 0.0
  %3851 = vmatprep.mubr.f32.mxu0 0.0
  %3852 = vmatmul.mubr.f32.gmra.mxu0 %v3702
  %v3853 = vpop.f32.mrf.mxu0
  %v3854 = vadd.f32 0.0, %v3853
  %v3855 = vpop.f32.mrf.mxu0
  %v3856 = vadd.f32 0.0, %v3855
  %3857 = vdwg.mxu0
  %v3858 = vadd.f32 %v3668, %v3783
  %v3859 = vadd.f32 %v3669, %v3785
  %v3860 = vadd.f32 %v3670, %v3854
  %v3861 = vadd.f32 %v3671, %v3856
  %s3862 = scalar_lea.vmem %s3, 2912
  %v3863 = vld [vmem:[%s3862] sm:$0xff]
  %v3864 = vld [vmem:[%s3862 + $0x8] sm:$0xff]
  %v3865 = vld [vmem:[%s3862 + $0x10] sm:$0xff]
  %v3866 = vld [vmem:[%s3862 + $0x18] sm:$0xff]
  %v3867 = vld [vmem:[%s3862 + $0x20] sm:$0xff]
  %v3868 = vld [vmem:[%s3862 + $0x28] sm:$0xff]
  %v3869 = vld [vmem:[%s3862 + $0x30] sm:$0xff]
  %v3870 = vld [vmem:[%s3862 + $0x38] sm:$0xff]
  %v3871 = vld [vmem:[%s3862 + $0x40] sm:$0xff]
  %v3872 = vld [vmem:[%s3862 + $0x48] sm:$0xff]
  %v3873 = vld [vmem:[%s3862 + $0x50] sm:$0xff]
  %v3874 = vld [vmem:[%s3862 + $0x58] sm:$0xff]
  %v3875 = vld [vmem:[%s3862 + $0x60] sm:$0xff]
  %v3876 = vld [vmem:[%s3862 + $0x68] sm:$0xff]
  %v3877 = vld [vmem:[%s3862 + $0x70] sm:$0xff]
  %v3878 = vld [vmem:[%s3862 + $0x78] sm:$0xff]
  %v3879 = vld [vmem:[%s3862 + $0x80] sm:$0xff]
  %v3880 = vld [vmem:[%s3862 + $0x88] sm:$0xff]
  %v3881 = vld [vmem:[%s3862 + $0x90] sm:$0xff]
  %v3882 = vld [vmem:[%s3862 + $0x98] sm:$0xff]
  %v3883 = vld [vmem:[%s3862 + $0xa0] sm:$0xff]
  %v3884 = vld [vmem:[%s3862 + $0xa8] sm:$0xff]
  %v3885 = vld [vmem:[%s3862 + $0xb0] sm:$0xff]
  %v3886 = vld [vmem:[%s3862 + $0xb8] sm:$0xff]
  %v3887 = vld [vmem:[%s3862 + $0xc0] sm:$0x3]
  %v3888 = vld [vmem:[%s3862 + $0xc8] sm:$0x3]
  %v3889 = vld [vmem:[%s3862 + $0xd0] sm:$0x3]
  %v3890 = vld [vmem:[%s3862 + $0xd8] sm:$0x3]
  %v3892 = vsel %vm1456, %v1396, 0
  %v3895 = vsel %vm1460, %v3887, 0
  %v3898 = vsel %vm1460, %v3888, 0
  %v3901 = vsel %vm1460, %v3889, 0
  %v3904 = vsel %vm1460, %v3890, 0
  %3906 = vmatprep.subr.mxu0 0.0
  %3907 = vmatpush1.msra.mxu0 0.0
  %3908 = vmatprep.subr.mxu0 0.0
  %3909 = vmatpush1.msra.mxu0 0.0
  %3910 = vmatprep.subr.mxu0 0.0
  %3911 = vmatpush1.msra.mxu0 0.0
  %3912 = vmatprep.subr.mxu0 0.0
  %3913 = vmatpush1.msra.mxu0 0.0
  %3914 = vmatprep.subr.mxu0 0.0
  %3915 = vmatpush1.msra.mxu0 0.0
  %3916 = vmatprep.subr.mxu0 0.0
  %3917 = vmatpush1.msra.mxu0 0.0
  %3918 = vmatprep.subr.mxu0 0.0
  %3919 = vmatpush1.msra.mxu0 0.0
  %3920 = vmatprep.subr.mxu0 0.0
  %3921 = vmatpush1.msra.mxu0 0.0
  %3922 = vmatprep.subr.mxu0 0.0
  %3923 = vmatpush1.msra.mxu0 0.0
  %3924 = vmatprep.subr.mxu0 %v3898
  %3925 = vmatpush1.msra.mxu0 %v3895
  %3926 = vmatprep.subr.mxu0 %v3884
  %3927 = vmatpush1.msra.mxu0 %v3883
  %3928 = vmatprep.subr.mxu0 %v3880
  %3929 = vmatpush1.msra.mxu0 %v3879
  %3930 = vmatprep.subr.mxu0 %v3876
  %3931 = vmatpush1.msra.mxu0 %v3875
  %3932 = vmatprep.subr.mxu0 %v3872
  %3933 = vmatpush1.msra.mxu0 %v3871
  %3934 = vmatprep.subr.mxu0 %v3868
  %3935 = vmatpush1.msra.mxu0 %v3867
  %3936 = vmatprep.subr.mxu0 %v3864
  %3937 = vmatpush1.msra.mxu0 %v3863
  %3938 = vmatprep.subr.mxu0 0.0
  %3939 = vmatpush2.msra.mxu0 0.0
  %3940 = vmatprep.subr.mxu0 0.0
  %3941 = vmatpush2.msra.mxu0 0.0
  %3942 = vmatprep.subr.mxu0 0.0
  %3943 = vmatpush2.msra.mxu0 0.0
  %3944 = vmatprep.subr.mxu0 0.0
  %3945 = vmatpush2.msra.mxu0 0.0
  %3946 = vmatprep.subr.mxu0 0.0
  %3947 = vmatpush2.msra.mxu0 0.0
  %3948 = vmatprep.subr.mxu0 0.0
  %3949 = vmatpush2.msra.mxu0 0.0
  %3950 = vmatprep.subr.mxu0 0.0
  %3951 = vmatpush2.msra.mxu0 0.0
  %3952 = vmatprep.subr.mxu0 0.0
  %3953 = vmatpush2.msra.mxu0 0.0
  %3954 = vmatprep.subr.mxu0 0.0
  %3955 = vmatpush2.msra.mxu0 0.0
  %3956 = vmatprep.subr.mxu0 0.0
  %3957 = vmatpush2.msra.mxu0 0.0
  %3958 = vmatprep.subr.mxu0 0.0
  %3959 = vmatpush2.msra.mxu0 0.0
  %3960 = vmatprep.subr.mxu0 0.0
  %3961 = vmatpush2.msra.mxu0 0.0
  %3962 = vmatprep.subr.mxu0 0.0
  %3963 = vmatpush2.msra.mxu0 0.0
  %3964 = vmatprep.subr.mxu0 0.0
  %3965 = vmatpush2.msra.mxu0 0.0
  %3966 = vmatprep.subr.mxu0 0.0
  %3967 = vmatpush2.msra.mxu0 0.0
  %3968 = vmatprep.subr.mxu0 0.0
  %3969 = vmatpush2.msra.mxu0 0.0
  %3970 = vmatprep.mubr.f32.mxu0 0.0
  %3971 = vmatmul.mubr.f32.gmra.mxu0 %v3892
  %v3972 = vpop.f32.mrf.mxu0
  %v3973 = vadd.f32 0.0, %v3972
  %v3974 = vpop.f32.mrf.mxu0
  %v3975 = vadd.f32 0.0, %v3974
  %3976 = vdwg.mxu0
  %3977 = vmatprep.subr.mxu0 0.0
  %3978 = vmatpush1.msra.mxu0 0.0
  %3979 = vmatprep.subr.mxu0 0.0
  %3980 = vmatpush1.msra.mxu0 0.0
  %3981 = vmatprep.subr.mxu0 0.0
  %3982 = vmatpush1.msra.mxu0 0.0
  %3983 = vmatprep.subr.mxu0 0.0
  %3984 = vmatpush1.msra.mxu0 0.0
  %3985 = vmatprep.subr.mxu0 0.0
  %3986 = vmatpush1.msra.mxu0 0.0
  %3987 = vmatprep.subr.mxu0 0.0
  %3988 = vmatpush1.msra.mxu0 0.0
  %3989 = vmatprep.subr.mxu0 0.0
  %3990 = vmatpush1.msra.mxu0 0.0
  %3991 = vmatprep.subr.mxu0 0.0
  %3992 = vmatpush1.msra.mxu0 0.0
  %3993 = vmatprep.subr.mxu0 0.0
  %3994 = vmatpush1.msra.mxu0 0.0
  %3995 = vmatprep.subr.mxu0 %v3904
  %3996 = vmatpush1.msra.mxu0 %v3901
  %3997 = vmatprep.subr.mxu0 %v3886
  %3998 = vmatpush1.msra.mxu0 %v3885
  %3999 = vmatprep.subr.mxu0 %v3882
  %4000 = vmatpush1.msra.mxu0 %v3881
  %4001 = vmatprep.subr.mxu0 %v3878
  %4002 = vmatpush1.msra.mxu0 %v3877
  %4003 = vmatprep.subr.mxu0 %v3874
  %4004 = vmatpush1.msra.mxu0 %v3873
  %4005 = vmatprep.subr.mxu0 %v3870
  %4006 = vmatpush1.msra.mxu0 %v3869
  %4007 = vmatprep.subr.mxu0 %v3866
  %4008 = vmatpush1.msra.mxu0 %v3865
  %4009 = vmatprep.subr.mxu0 0.0
  %4010 = vmatpush2.msra.mxu0 0.0
  %4011 = vmatprep.subr.mxu0 0.0
  %4012 = vmatpush2.msra.mxu0 0.0
  %4013 = vmatprep.subr.mxu0 0.0
  %4014 = vmatpush2.msra.mxu0 0.0
  %4015 = vmatprep.subr.mxu0 0.0
  %4016 = vmatpush2.msra.mxu0 0.0
  %4017 = vmatprep.subr.mxu0 0.0
  %4018 = vmatpush2.msra.mxu0 0.0
  %4019 = vmatprep.subr.mxu0 0.0
  %4020 = vmatpush2.msra.mxu0 0.0
  %4021 = vmatprep.subr.mxu0 0.0
  %4022 = vmatpush2.msra.mxu0 0.0
  %4023 = vmatprep.subr.mxu0 0.0
  %4024 = vmatpush2.msra.mxu0 0.0
  %4025 = vmatprep.subr.mxu0 0.0
  %4026 = vmatpush2.msra.mxu0 0.0
  %4027 = vmatprep.subr.mxu0 0.0
  %4028 = vmatpush2.msra.mxu0 0.0
  %4029 = vmatprep.subr.mxu0 0.0
  %4030 = vmatpush2.msra.mxu0 0.0
  %4031 = vmatprep.subr.mxu0 0.0
  %4032 = vmatpush2.msra.mxu0 0.0
  %4033 = vmatprep.subr.mxu0 0.0
  %4034 = vmatpush2.msra.mxu0 0.0
  %4035 = vmatprep.subr.mxu0 0.0
  %4036 = vmatpush2.msra.mxu0 0.0
  %4037 = vmatprep.subr.mxu0 0.0
  %4038 = vmatpush2.msra.mxu0 0.0
  %4039 = vmatprep.subr.mxu0 0.0
  %4040 = vmatpush2.msra.mxu0 0.0
  %4041 = vmatprep.mubr.f32.mxu0 0.0
  %4042 = vmatmul.mubr.f32.gmra.mxu0 %v3892
  %v4043 = vpop.f32.mrf.mxu0
  %v4044 = vadd.f32 0.0, %v4043
  %v4045 = vpop.f32.mrf.mxu0
  %v4046 = vadd.f32 0.0, %v4045
  %4047 = vdwg.mxu0
  %v4048 = vadd.f32 %v3858, %v3973
  %v4049 = vadd.f32 %v3859, %v3975
  %v4050 = vadd.f32 %v3860, %v4044
  %v4051 = vadd.f32 %v3861, %v4046
  %s4052 = scalar_lea.vmem %s3, 3136
  %v4053 = vld [vmem:[%s4052] sm:$0xff]
  %v4054 = vld [vmem:[%s4052 + $0x8] sm:$0xff]
  %v4055 = vld [vmem:[%s4052 + $0x10] sm:$0xff]
  %v4056 = vld [vmem:[%s4052 + $0x18] sm:$0xff]
  %v4057 = vld [vmem:[%s4052 + $0x20] sm:$0xff]
  %v4058 = vld [vmem:[%s4052 + $0x28] sm:$0xff]
  %v4059 = vld [vmem:[%s4052 + $0x30] sm:$0xff]
  %v4060 = vld [vmem:[%s4052 + $0x38] sm:$0xff]
  %v4061 = vld [vmem:[%s4052 + $0x40] sm:$0xff]
  %v4062 = vld [vmem:[%s4052 + $0x48] sm:$0xff]
  %v4063 = vld [vmem:[%s4052 + $0x50] sm:$0xff]
  %v4064 = vld [vmem:[%s4052 + $0x58] sm:$0xff]
  %v4065 = vld [vmem:[%s4052 + $0x60] sm:$0xff]
  %v4066 = vld [vmem:[%s4052 + $0x68] sm:$0xff]
  %v4067 = vld [vmem:[%s4052 + $0x70] sm:$0xff]
  %v4068 = vld [vmem:[%s4052 + $0x78] sm:$0xff]
  %v4069 = vld [vmem:[%s4052 + $0x80] sm:$0xff]
  %v4070 = vld [vmem:[%s4052 + $0x88] sm:$0xff]
  %v4071 = vld [vmem:[%s4052 + $0x90] sm:$0xff]
  %v4072 = vld [vmem:[%s4052 + $0x98] sm:$0xff]
  %v4073 = vld [vmem:[%s4052 + $0xa0] sm:$0xff]
  %v4074 = vld [vmem:[%s4052 + $0xa8] sm:$0xff]
  %v4075 = vld [vmem:[%s4052 + $0xb0] sm:$0xff]
  %v4076 = vld [vmem:[%s4052 + $0xb8] sm:$0xff]
  %v4077 = vld [vmem:[%s4052 + $0xc0] sm:$0x3]
  %v4078 = vld [vmem:[%s4052 + $0xc8] sm:$0x3]
  %v4079 = vld [vmem:[%s4052 + $0xd0] sm:$0x3]
  %v4080 = vld [vmem:[%s4052 + $0xd8] sm:$0x3]
  %v4082 = vsel %vm1456, %v1397, 0
  %v4085 = vsel %vm1460, %v4077, 0
  %v4088 = vsel %vm1460, %v4078, 0
  %v4091 = vsel %vm1460, %v4079, 0
  %v4094 = vsel %vm1460, %v4080, 0
  %4096 = vmatprep.subr.mxu0 0.0
  %4097 = vmatpush1.msra.mxu0 0.0
  %4098 = vmatprep.subr.mxu0 0.0
  %4099 = vmatpush1.msra.mxu0 0.0
  %4100 = vmatprep.subr.mxu0 0.0
  %4101 = vmatpush1.msra.mxu0 0.0
  %4102 = vmatprep.subr.mxu0 0.0
  %4103 = vmatpush1.msra.mxu0 0.0
  %4104 = vmatprep.subr.mxu0 0.0
  %4105 = vmatpush1.msra.mxu0 0.0
  %4106 = vmatprep.subr.mxu0 0.0
  %4107 = vmatpush1.msra.mxu0 0.0
  %4108 = vmatprep.subr.mxu0 0.0
  %4109 = vmatpush1.msra.mxu0 0.0
  %4110 = vmatprep.subr.mxu0 0.0
  %4111 = vmatpush1.msra.mxu0 0.0
  %4112 = vmatprep.subr.mxu0 0.0
  %4113 = vmatpush1.msra.mxu0 0.0
  %4114 = vmatprep.subr.mxu0 %v4088
  %4115 = vmatpush1.msra.mxu0 %v4085
  %4116 = vmatprep.subr.mxu0 %v4074
  %4117 = vmatpush1.msra.mxu0 %v4073
  %4118 = vmatprep.subr.mxu0 %v4070
  %4119 = vmatpush1.msra.mxu0 %v4069
  %4120 = vmatprep.subr.mxu0 %v4066
  %4121 = vmatpush1.msra.mxu0 %v4065
  %4122 = vmatprep.subr.mxu0 %v4062
  %4123 = vmatpush1.msra.mxu0 %v4061
  %4124 = vmatprep.subr.mxu0 %v4058
  %4125 = vmatpush1.msra.mxu0 %v4057
  %4126 = vmatprep.subr.mxu0 %v4054
  %4127 = vmatpush1.msra.mxu0 %v4053
  %4128 = vmatprep.subr.mxu0 0.0
  %4129 = vmatpush2.msra.mxu0 0.0
  %4130 = vmatprep.subr.mxu0 0.0
  %4131 = vmatpush2.msra.mxu0 0.0
  %4132 = vmatprep.subr.mxu0 0.0
  %4133 = vmatpush2.msra.mxu0 0.0
  %4134 = vmatprep.subr.mxu0 0.0
  %4135 = vmatpush2.msra.mxu0 0.0
  %4136 = vmatprep.subr.mxu0 0.0
  %4137 = vmatpush2.msra.mxu0 0.0
  %4138 = vmatprep.subr.mxu0 0.0
  %4139 = vmatpush2.msra.mxu0 0.0
  %4140 = vmatprep.subr.mxu0 0.0
  %4141 = vmatpush2.msra.mxu0 0.0
  %4142 = vmatprep.subr.mxu0 0.0
  %4143 = vmatpush2.msra.mxu0 0.0
  %4144 = vmatprep.subr.mxu0 0.0
  %4145 = vmatpush2.msra.mxu0 0.0
  %4146 = vmatprep.subr.mxu0 0.0
  %4147 = vmatpush2.msra.mxu0 0.0
  %4148 = vmatprep.subr.mxu0 0.0
  %4149 = vmatpush2.msra.mxu0 0.0
  %4150 = vmatprep.subr.mxu0 0.0
  %4151 = vmatpush2.msra.mxu0 0.0
  %4152 = vmatprep.subr.mxu0 0.0
  %4153 = vmatpush2.msra.mxu0 0.0
  %4154 = vmatprep.subr.mxu0 0.0
  %4155 = vmatpush2.msra.mxu0 0.0
  %4156 = vmatprep.subr.mxu0 0.0
  %4157 = vmatpush2.msra.mxu0 0.0
  %4158 = vmatprep.subr.mxu0 0.0
  %4159 = vmatpush2.msra.mxu0 0.0
  %4160 = vmatprep.mubr.f32.mxu0 0.0
  %4161 = vmatmul.mubr.f32.gmra.mxu0 %v4082
  %v4162 = vpop.f32.mrf.mxu0
  %v4163 = vadd.f32 0.0, %v4162
  %v4164 = vpop.f32.mrf.mxu0
  %v4165 = vadd.f32 0.0, %v4164
  %4166 = vdwg.mxu0
  %4167 = vmatprep.subr.mxu0 0.0
  %4168 = vmatpush1.msra.mxu0 0.0
  %4169 = vmatprep.subr.mxu0 0.0
  %4170 = vmatpush1.msra.mxu0 0.0
  %4171 = vmatprep.subr.mxu0 0.0
  %4172 = vmatpush1.msra.mxu0 0.0
  %4173 = vmatprep.subr.mxu0 0.0
  %4174 = vmatpush1.msra.mxu0 0.0
  %4175 = vmatprep.subr.mxu0 0.0
  %4176 = vmatpush1.msra.mxu0 0.0
  %4177 = vmatprep.subr.mxu0 0.0
  %4178 = vmatpush1.msra.mxu0 0.0
  %4179 = vmatprep.subr.mxu0 0.0
  %4180 = vmatpush1.msra.mxu0 0.0
  %4181 = vmatprep.subr.mxu0 0.0
  %4182 = vmatpush1.msra.mxu0 0.0
  %4183 = vmatprep.subr.mxu0 0.0
  %4184 = vmatpush1.msra.mxu0 0.0
  %4185 = vmatprep.subr.mxu0 %v4094
  %4186 = vmatpush1.msra.mxu0 %v4091
  %4187 = vmatprep.subr.mxu0 %v4076
  %4188 = vmatpush1.msra.mxu0 %v4075
  %4189 = vmatprep.subr.mxu0 %v4072
  %4190 = vmatpush1.msra.mxu0 %v4071
  %4191 = vmatprep.subr.mxu0 %v4068
  %4192 = vmatpush1.msra.mxu0 %v4067
  %4193 = vmatprep.subr.mxu0 %v4064
  %4194 = vmatpush1.msra.mxu0 %v4063
  %4195 = vmatprep.subr.mxu0 %v4060
  %4196 = vmatpush1.msra.mxu0 %v4059
  %4197 = vmatprep.subr.mxu0 %v4056
  %4198 = vmatpush1.msra.mxu0 %v4055
  %4199 = vmatprep.subr.mxu0 0.0
  %4200 = vmatpush2.msra.mxu0 0.0
  %4201 = vmatprep.subr.mxu0 0.0
  %4202 = vmatpush2.msra.mxu0 0.0
  %4203 = vmatprep.subr.mxu0 0.0
  %4204 = vmatpush2.msra.mxu0 0.0
  %4205 = vmatprep.subr.mxu0 0.0
  %4206 = vmatpush2.msra.mxu0 0.0
  %4207 = vmatprep.subr.mxu0 0.0
  %4208 = vmatpush2.msra.mxu0 0.0
  %4209 = vmatprep.subr.mxu0 0.0
  %4210 = vmatpush2.msra.mxu0 0.0
  %4211 = vmatprep.subr.mxu0 0.0
  %4212 = vmatpush2.msra.mxu0 0.0
  %4213 = vmatprep.subr.mxu0 0.0
  %4214 = vmatpush2.msra.mxu0 0.0
  %4215 = vmatprep.subr.mxu0 0.0
  %4216 = vmatpush2.msra.mxu0 0.0
  %4217 = vmatprep.subr.mxu0 0.0
  %4218 = vmatpush2.msra.mxu0 0.0
  %4219 = vmatprep.subr.mxu0 0.0
  %4220 = vmatpush2.msra.mxu0 0.0
  %4221 = vmatprep.subr.mxu0 0.0
  %4222 = vmatpush2.msra.mxu0 0.0
  %4223 = vmatprep.subr.mxu0 0.0
  %4224 = vmatpush2.msra.mxu0 0.0
  %4225 = vmatprep.subr.mxu0 0.0
  %4226 = vmatpush2.msra.mxu0 0.0
  %4227 = vmatprep.subr.mxu0 0.0
  %4228 = vmatpush2.msra.mxu0 0.0
  %4229 = vmatprep.subr.mxu0 0.0
  %4230 = vmatpush2.msra.mxu0 0.0
  %4231 = vmatprep.mubr.f32.mxu0 0.0
  %4232 = vmatmul.mubr.f32.gmra.mxu0 %v4082
  %v4233 = vpop.f32.mrf.mxu0
  %v4234 = vadd.f32 0.0, %v4233
  %v4235 = vpop.f32.mrf.mxu0
  %v4236 = vadd.f32 0.0, %v4235
  %4237 = vdwg.mxu0
  %v4238 = vadd.f32 %v4048, %v4163
  %v4239 = vadd.f32 %v4049, %v4165
  %v4240 = vadd.f32 %v4050, %v4234
  %v4241 = vadd.f32 %v4051, %v4236
  %s4242 = scalar_lea.vmem %s3, 3360
  %v4243 = vld [vmem:[%s4242] sm:$0xff]
  %v4244 = vld [vmem:[%s4242 + $0x8] sm:$0xff]
  %v4245 = vld [vmem:[%s4242 + $0x10] sm:$0xff]
  %v4246 = vld [vmem:[%s4242 + $0x18] sm:$0xff]
  %v4247 = vld [vmem:[%s4242 + $0x20] sm:$0xff]
  %v4248 = vld [vmem:[%s4242 + $0x28] sm:$0xff]
  %v4249 = vld [vmem:[%s4242 + $0x30] sm:$0xff]
  %v4250 = vld [vmem:[%s4242 + $0x38] sm:$0xff]
  %v4251 = vld [vmem:[%s4242 + $0x40] sm:$0xff]
  %v4252 = vld [vmem:[%s4242 + $0x48] sm:$0xff]
  %v4253 = vld [vmem:[%s4242 + $0x50] sm:$0xff]
  %v4254 = vld [vmem:[%s4242 + $0x58] sm:$0xff]
  %v4255 = vld [vmem:[%s4242 + $0x60] sm:$0xff]
  %v4256 = vld [vmem:[%s4242 + $0x68] sm:$0xff]
  %v4257 = vld [vmem:[%s4242 + $0x70] sm:$0xff]
  %v4258 = vld [vmem:[%s4242 + $0x78] sm:$0xff]
  %v4259 = vld [vmem:[%s4242 + $0x80] sm:$0xff]
  %v4260 = vld [vmem:[%s4242 + $0x88] sm:$0xff]
  %v4261 = vld [vmem:[%s4242 + $0x90] sm:$0xff]
  %v4262 = vld [vmem:[%s4242 + $0x98] sm:$0xff]
  %v4263 = vld [vmem:[%s4242 + $0xa0] sm:$0xff]
  %v4264 = vld [vmem:[%s4242 + $0xa8] sm:$0xff]
  %v4265 = vld [vmem:[%s4242 + $0xb0] sm:$0xff]
  %v4266 = vld [vmem:[%s4242 + $0xb8] sm:$0xff]
  %v4267 = vld [vmem:[%s4242 + $0xc0] sm:$0x3]
  %v4268 = vld [vmem:[%s4242 + $0xc8] sm:$0x3]
  %v4269 = vld [vmem:[%s4242 + $0xd0] sm:$0x3]
  %v4270 = vld [vmem:[%s4242 + $0xd8] sm:$0x3]
  %v4272 = vsel %vm1456, %v1398, 0
  %v4275 = vsel %vm1460, %v4267, 0
  %v4278 = vsel %vm1460, %v4268, 0
  %v4281 = vsel %vm1460, %v4269, 0
  %v4284 = vsel %vm1460, %v4270, 0
  %4286 = vmatprep.subr.mxu0 0.0
  %4287 = vmatpush1.msra.mxu0 0.0
  %4288 = vmatprep.subr.mxu0 0.0
  %4289 = vmatpush1.msra.mxu0 0.0
  %4290 = vmatprep.subr.mxu0 0.0
  %4291 = vmatpush1.msra.mxu0 0.0
  %4292 = vmatprep.subr.mxu0 0.0
  %4293 = vmatpush1.msra.mxu0 0.0
  %4294 = vmatprep.subr.mxu0 0.0
  %4295 = vmatpush1.msra.mxu0 0.0
  %4296 = vmatprep.subr.mxu0 0.0
  %4297 = vmatpush1.msra.mxu0 0.0
  %4298 = vmatprep.subr.mxu0 0.0
  %4299 = vmatpush1.msra.mxu0 0.0
  %4300 = vmatprep.subr.mxu0 0.0
  %4301 = vmatpush1.msra.mxu0 0.0
  %4302 = vmatprep.subr.mxu0 0.0
  %4303 = vmatpush1.msra.mxu0 0.0
  %4304 = vmatprep.subr.mxu0 %v4278
  %4305 = vmatpush1.msra.mxu0 %v4275
  %4306 = vmatprep.subr.mxu0 %v4264
  %4307 = vmatpush1.msra.mxu0 %v4263
  %4308 = vmatprep.subr.mxu0 %v4260
  %4309 = vmatpush1.msra.mxu0 %v4259
  %4310 = vmatprep.subr.mxu0 %v4256
  %4311 = vmatpush1.msra.mxu0 %v4255
  %4312 = vmatprep.subr.mxu0 %v4252
  %4313 = vmatpush1.msra.mxu0 %v4251
  %4314 = vmatprep.subr.mxu0 %v4248
  %4315 = vmatpush1.msra.mxu0 %v4247
  %4316 = vmatprep.subr.mxu0 %v4244
  %4317 = vmatpush1.msra.mxu0 %v4243
  %4318 = vmatprep.subr.mxu0 0.0
  %4319 = vmatpush2.msra.mxu0 0.0
  %4320 = vmatprep.subr.mxu0 0.0
  %4321 = vmatpush2.msra.mxu0 0.0
  %4322 = vmatprep.subr.mxu0 0.0
  %4323 = vmatpush2.msra.mxu0 0.0
  %4324 = vmatprep.subr.mxu0 0.0
  %4325 = vmatpush2.msra.mxu0 0.0
  %4326 = vmatprep.subr.mxu0 0.0
  %4327 = vmatpush2.msra.mxu0 0.0
  %4328 = vmatprep.subr.mxu0 0.0
  %4329 = vmatpush2.msra.mxu0 0.0
  %4330 = vmatprep.subr.mxu0 0.0
  %4331 = vmatpush2.msra.mxu0 0.0
  %4332 = vmatprep.subr.mxu0 0.0
  %4333 = vmatpush2.msra.mxu0 0.0
  %4334 = vmatprep.subr.mxu0 0.0
  %4335 = vmatpush2.msra.mxu0 0.0
  %4336 = vmatprep.subr.mxu0 0.0
  %4337 = vmatpush2.msra.mxu0 0.0
  %4338 = vmatprep.subr.mxu0 0.0
  %4339 = vmatpush2.msra.mxu0 0.0
  %4340 = vmatprep.subr.mxu0 0.0
  %4341 = vmatpush2.msra.mxu0 0.0
  %4342 = vmatprep.subr.mxu0 0.0
  %4343 = vmatpush2.msra.mxu0 0.0
  %4344 = vmatprep.subr.mxu0 0.0
  %4345 = vmatpush2.msra.mxu0 0.0
  %4346 = vmatprep.subr.mxu0 0.0
  %4347 = vmatpush2.msra.mxu0 0.0
  %4348 = vmatprep.subr.mxu0 0.0
  %4349 = vmatpush2.msra.mxu0 0.0
  %4350 = vmatprep.mubr.f32.mxu0 0.0
  %4351 = vmatmul.mubr.f32.gmra.mxu0 %v4272
  %v4352 = vpop.f32.mrf.mxu0
  %v4353 = vadd.f32 0.0, %v4352
  %v4354 = vpop.f32.mrf.mxu0
  %v4355 = vadd.f32 0.0, %v4354
  %4356 = vdwg.mxu0
  %4357 = vmatprep.subr.mxu0 0.0
  %4358 = vmatpush1.msra.mxu0 0.0
  %4359 = vmatprep.subr.mxu0 0.0
  %4360 = vmatpush1.msra.mxu0 0.0
  %4361 = vmatprep.subr.mxu0 0.0
  %4362 = vmatpush1.msra.mxu0 0.0
  %4363 = vmatprep.subr.mxu0 0.0
  %4364 = vmatpush1.msra.mxu0 0.0
  %4365 = vmatprep.subr.mxu0 0.0
  %4366 = vmatpush1.msra.mxu0 0.0
  %4367 = vmatprep.subr.mxu0 0.0
  %4368 = vmatpush1.msra.mxu0 0.0
  %4369 = vmatprep.subr.mxu0 0.0
  %4370 = vmatpush1.msra.mxu0 0.0
  %4371 = vmatprep.subr.mxu0 0.0
  %4372 = vmatpush1.msra.mxu0 0.0
  %4373 = vmatprep.subr.mxu0 0.0
  %4374 = vmatpush1.msra.mxu0 0.0
  %4375 = vmatprep.subr.mxu0 %v4284
  %4376 = vmatpush1.msra.mxu0 %v4281
  %4377 = vmatprep.subr.mxu0 %v4266
  %4378 = vmatpush1.msra.mxu0 %v4265
  %4379 = vmatprep.subr.mxu0 %v4262
  %4380 = vmatpush1.msra.mxu0 %v4261
  %4381 = vmatprep.subr.mxu0 %v4258
  %4382 = vmatpush1.msra.mxu0 %v4257
  %4383 = vmatprep.subr.mxu0 %v4254
  %4384 = vmatpush1.msra.mxu0 %v4253
  %4385 = vmatprep.subr.mxu0 %v4250
  %4386 = vmatpush1.msra.mxu0 %v4249
  %4387 = vmatprep.subr.mxu0 %v4246
  %4388 = vmatpush1.msra.mxu0 %v4245
  %4389 = vmatprep.subr.mxu0 0.0
  %4390 = vmatpush2.msra.mxu0 0.0
  %4391 = vmatprep.subr.mxu0 0.0
  %4392 = vmatpush2.msra.mxu0 0.0
  %4393 = vmatprep.subr.mxu0 0.0
  %4394 = vmatpush2.msra.mxu0 0.0
  %4395 = vmatprep.subr.mxu0 0.0
  %4396 = vmatpush2.msra.mxu0 0.0
  %4397 = vmatprep.subr.mxu0 0.0
  %4398 = vmatpush2.msra.mxu0 0.0
  %4399 = vmatprep.subr.mxu0 0.0
  %4400 = vmatpush2.msra.mxu0 0.0
  %4401 = vmatprep.subr.mxu0 0.0
  %4402 = vmatpush2.msra.mxu0 0.0
  %4403 = vmatprep.subr.mxu0 0.0
  %4404 = vmatpush2.msra.mxu0 0.0
  %4405 = vmatprep.subr.mxu0 0.0
  %4406 = vmatpush2.msra.mxu0 0.0
  %4407 = vmatprep.subr.mxu0 0.0
  %4408 = vmatpush2.msra.mxu0 0.0
  %4409 = vmatprep.subr.mxu0 0.0
  %4410 = vmatpush2.msra.mxu0 0.0
  %4411 = vmatprep.subr.mxu0 0.0
  %4412 = vmatpush2.msra.mxu0 0.0
  %4413 = vmatprep.subr.mxu0 0.0
  %4414 = vmatpush2.msra.mxu0 0.0
  %4415 = vmatprep.subr.mxu0 0.0
  %4416 = vmatpush2.msra.mxu0 0.0
  %4417 = vmatprep.subr.mxu0 0.0
  %4418 = vmatpush2.msra.mxu0 0.0
  %4419 = vmatprep.subr.mxu0 0.0
  %4420 = vmatpush2.msra.mxu0 0.0
  %4421 = vmatprep.mubr.f32.mxu0 0.0
  %4422 = vmatmul.mubr.f32.gmra.mxu0 %v4272
  %v4423 = vpop.f32.mrf.mxu0
  %v4424 = vadd.f32 0.0, %v4423
  %v4425 = vpop.f32.mrf.mxu0
  %v4426 = vadd.f32 0.0, %v4425
  %4427 = vdwg.mxu0
  %v4428 = vadd.f32 %v4238, %v4353
  %v4429 = vadd.f32 %v4239, %v4355
  %v4430 = vadd.f32 %v4240, %v4424
  %v4431 = vadd.f32 %v4241, %v4426
  %v4432 = vld [vmem:[%s4] sm:$0xf]
  %v4434 = vlaneseq
  %v4435 = vshrl.u32 %v4434, 7
  %v4436 = vsub.s32 0, %v4435
  %v4437 = vrot.slane %v4432, %v4436
  %v4438 = vlaneseq
  %v4439 = vshrl.u32 %v4438, 7
  %v4440 = vsub.s32 1, %v4439
  %v4441 = vrot.slane %v4432, %v4440
  %v4442 = vlaneseq
  %v4443 = vshrl.u32 %v4442, 7
  %v4444 = vsub.s32 2, %v4443
  %v4445 = vrot.slane %v4432, %v4444
  %v4446 = vlaneseq
  %v4447 = vshrl.u32 %v4446, 7
  %v4448 = vsub.s32 3, %v4447
  %v4449 = vrot.slane %v4432, %v4448
  %v4454 = vadd.f32 %v4428, %v4437
  %v4455 = vadd.f32 %v4429, %v4441
  %v4456 = vadd.f32 %v4430, %v4445
  %v4457 = vadd.f32 %v4431, %v4449
  %v4458 = vmax.f32 %v4454, 0.0
  %v4459 = vmax.f32 %v4455, 0.0
  %v4460 = vmax.f32 %v4456, 0.0
  %v4461 = vmax.f32 %v4457, 0.0
  %v4462 = vld [vmem:[%s5] sm:$0xff]
  %v4463 = vld [vmem:[%s5 + $0x8] sm:$0xff]
  %v4464 = vld [vmem:[%s5 + $0x10] sm:$0xff]
  %v4465 = vld [vmem:[%s5 + $0x18] sm:$0xff]
  %v4466 = vld [vmem:[%s5 + $0x20] sm:$0xff]
  %v4467 = vld [vmem:[%s5 + $0x28] sm:$0xff]
  %v4468 = vld [vmem:[%s5 + $0x30] sm:$0xff]
  %v4469 = vld [vmem:[%s5 + $0x38] sm:$0xff]
  %v4470 = vld [vmem:[%s5 + $0x40] sm:$0xff]
  %v4471 = vld [vmem:[%s5 + $0x48] sm:$0xff]
  %v4472 = vld [vmem:[%s5 + $0x50] sm:$0xff]
  %v4473 = vld [vmem:[%s5 + $0x58] sm:$0xff]
  %v4474 = vld [vmem:[%s5 + $0x60] sm:$0xff]
  %v4475 = vld [vmem:[%s5 + $0x68] sm:$0xff]
  %v4476 = vld [vmem:[%s5 + $0x70] sm:$0xff]
  %v4477 = vld [vmem:[%s5 + $0x78] sm:$0xff]
  %v4478 = vld [vmem:[%s5 + $0x80] sm:$0xff]
  %v4479 = vld [vmem:[%s5 + $0x88] sm:$0xff]
  %v4480 = vld [vmem:[%s5 + $0x90] sm:$0xff]
  %v4481 = vld [vmem:[%s5 + $0x98] sm:$0xff]
  %v4482 = vld [vmem:[%s5 + $0xa0] sm:$0xff]
  %v4483 = vld [vmem:[%s5 + $0xa8] sm:$0xff]
  %v4484 = vld [vmem:[%s5 + $0xb0] sm:$0xff]
  %v4485 = vld [vmem:[%s5 + $0xb8] sm:$0xff]
  %v4486 = vld [vmem:[%s5 + $0xc0] sm:$0xff]
  %v4487 = vld [vmem:[%s5 + $0xc8] sm:$0xff]
  %v4488 = vld [vmem:[%s5 + $0xd0] sm:$0xff]
  %v4489 = vld [vmem:[%s5 + $0xd8] sm:$0xff]
  %v4490 = vld [vmem:[%s5 + $0xe0] sm:$0xff]
  %v4491 = vld [vmem:[%s5 + $0xe8] sm:$0xff]
  %v4492 = vld [vmem:[%s5 + $0xf0] sm:$0xff]
  %v4493 = vld [vmem:[%s5 + $0xf8] sm:$0xff]
  %v4494 = vld [vmem:[%s5 + $0x100] sm:$0xff]
  %v4495 = vld [vmem:[%s5 + $0x108] sm:$0xff]
  %v4496 = vld [vmem:[%s5 + $0x110] sm:$0xff]
  %v4497 = vld [vmem:[%s5 + $0x118] sm:$0xff]
  %v4498 = vld [vmem:[%s5 + $0x120] sm:$0xff]
  %v4499 = vld [vmem:[%s5 + $0x128] sm:$0xff]
  %v4500 = vld [vmem:[%s5 + $0x130] sm:$0xff]
  %v4501 = vld [vmem:[%s5 + $0x138] sm:$0xff]
  %v4502 = vld [vmem:[%s5 + $0x140] sm:$0xff]
  %v4503 = vld [vmem:[%s5 + $0x148] sm:$0xff]
  %v4504 = vld [vmem:[%s5 + $0x150] sm:$0xff]
  %v4505 = vld [vmem:[%s5 + $0x158] sm:$0xff]
  %v4506 = vld [vmem:[%s5 + $0x160] sm:$0xff]
  %v4507 = vld [vmem:[%s5 + $0x168] sm:$0xff]
  %v4508 = vld [vmem:[%s5 + $0x170] sm:$0xff]
  %v4509 = vld [vmem:[%s5 + $0x178] sm:$0xff]
  %v4510 = vld [vmem:[%s5 + $0x180] sm:$0xff]
  %v4511 = vld [vmem:[%s5 + $0x188] sm:$0xff]
  %v4512 = vld [vmem:[%s5 + $0x190] sm:$0xff]
  %v4513 = vld [vmem:[%s5 + $0x198] sm:$0xff]
  %v4514 = vld [vmem:[%s5 + $0x1a0] sm:$0xff]
  %v4515 = vld [vmem:[%s5 + $0x1a8] sm:$0xff]
  %v4516 = vld [vmem:[%s5 + $0x1b0] sm:$0xff]
  %v4517 = vld [vmem:[%s5 + $0x1b8] sm:$0xff]
  %v4518 = vld [vmem:[%s5 + $0x1c0] sm:$0xff]
  %v4519 = vld [vmem:[%s5 + $0x1c8] sm:$0xff]
  %v4520 = vld [vmem:[%s5 + $0x1d0] sm:$0xff]
  %v4521 = vld [vmem:[%s5 + $0x1d8] sm:$0xff]
  %v4522 = vld [vmem:[%s5 + $0x1e0] sm:$0xff]
  %v4523 = vld [vmem:[%s5 + $0x1e8] sm:$0xff]
  %v4524 = vld [vmem:[%s5 + $0x1f0] sm:$0xf]
  %v4525 = vld [vmem:[%s6] sm:$0x1]
  %v4527 = vlaneseq
  %v4528 = vshrl.u32 %v4527, 7
  %v4529 = vsub.s32 0, %v4528
  %v4530 = vrot.slane %v4525, %v4529
  %v4533 = vsel %vm346, %v4461, 0
  %v4536 = vsel %vm539, %v4524, 0
  %4538 = vmatprep.subr.mxu0 0.0
  %4539 = vmatpush1.msra.mxu0 %v4477
  %4540 = vmatprep.subr.mxu0 0.0
  %4541 = vmatpush1.msra.mxu0 %v4476
  %4542 = vmatprep.subr.mxu0 0.0
  %4543 = vmatpush1.msra.mxu0 %v4475
  %4544 = vmatprep.subr.mxu0 0.0
  %4545 = vmatpush1.msra.mxu0 %v4474
  %4546 = vmatprep.subr.mxu0 0.0
  %4547 = vmatpush1.msra.mxu0 %v4473
  %4548 = vmatprep.subr.mxu0 0.0
  %4549 = vmatpush1.msra.mxu0 %v4472
  %4550 = vmatprep.subr.mxu0 0.0
  %4551 = vmatpush1.msra.mxu0 %v4471
  %4552 = vmatprep.subr.mxu0 0.0
  %4553 = vmatpush1.msra.mxu0 %v4470
  %4554 = vmatprep.subr.mxu0 0.0
  %4555 = vmatpush1.msra.mxu0 %v4469
  %4556 = vmatprep.subr.mxu0 0.0
  %4557 = vmatpush1.msra.mxu0 %v4468
  %4558 = vmatprep.subr.mxu0 0.0
  %4559 = vmatpush1.msra.mxu0 %v4467
  %4560 = vmatprep.subr.mxu0 0.0
  %4561 = vmatpush1.msra.mxu0 %v4466
  %4562 = vmatprep.subr.mxu0 0.0
  %4563 = vmatpush1.msra.mxu0 %v4465
  %4564 = vmatprep.subr.mxu0 0.0
  %4565 = vmatpush1.msra.mxu0 %v4464
  %4566 = vmatprep.subr.mxu0 0.0
  %4567 = vmatpush1.msra.mxu0 %v4463
  %4568 = vmatprep.subr.mxu0 0.0
  %4569 = vmatpush1.msra.mxu0 %v4462
  %4570 = vmatprep.subr.mxu0 0.0
  %4571 = vmatpush2.msra.mxu0 %v4493
  %4572 = vmatprep.subr.mxu0 0.0
  %4573 = vmatpush2.msra.mxu0 %v4492
  %4574 = vmatprep.subr.mxu0 0.0
  %4575 = vmatpush2.msra.mxu0 %v4491
  %4576 = vmatprep.subr.mxu0 0.0
  %4577 = vmatpush2.msra.mxu0 %v4490
  %4578 = vmatprep.subr.mxu0 0.0
  %4579 = vmatpush2.msra.mxu0 %v4489
  %4580 = vmatprep.subr.mxu0 0.0
  %4581 = vmatpush2.msra.mxu0 %v4488
  %4582 = vmatprep.subr.mxu0 0.0
  %4583 = vmatpush2.msra.mxu0 %v4487
  %4584 = vmatprep.subr.mxu0 0.0
  %4585 = vmatpush2.msra.mxu0 %v4486
  %4586 = vmatprep.subr.mxu0 0.0
  %4587 = vmatpush2.msra.mxu0 %v4485
  %4588 = vmatprep.subr.mxu0 0.0
  %4589 = vmatpush2.msra.mxu0 %v4484
  %4590 = vmatprep.subr.mxu0 0.0
  %4591 = vmatpush2.msra.mxu0 %v4483
  %4592 = vmatprep.subr.mxu0 0.0
  %4593 = vmatpush2.msra.mxu0 %v4482
  %4594 = vmatprep.subr.mxu0 0.0
  %4595 = vmatpush2.msra.mxu0 %v4481
  %4596 = vmatprep.subr.mxu0 0.0
  %4597 = vmatpush2.msra.mxu0 %v4480
  %4598 = vmatprep.subr.mxu0 0.0
  %4599 = vmatpush2.msra.mxu0 %v4479
  %4600 = vmatprep.subr.mxu0 0.0
  %4601 = vmatpush2.msra.mxu0 %v4478
  %4602 = vmatprep.mubr.f32.mxu0 %v4459
  %4603 = vmatmul.mubr.f32.gmra.mxu0 %v4458
  %v4604 = vpop.f32.mrf.mxu0
  %v4605 = vadd.f32 %v4530, %v4604
  %v4606 = vpop.f32.mrf.mxu0
  %4607 = vdwg.mxu0
  %4608 = vmatprep.subr.mxu0 0.0
  %4609 = vmatpush1.msra.mxu0 %v4509
  %4610 = vmatprep.subr.mxu0 0.0
  %4611 = vmatpush1.msra.mxu0 %v4508
  %4612 = vmatprep.subr.mxu0 0.0
  %4613 = vmatpush1.msra.mxu0 %v4507
  %4614 = vmatprep.subr.mxu0 0.0
  %4615 = vmatpush1.msra.mxu0 %v4506
  %4616 = vmatprep.subr.mxu0 0.0
  %4617 = vmatpush1.msra.mxu0 %v4505
  %4618 = vmatprep.subr.mxu0 0.0
  %4619 = vmatpush1.msra.mxu0 %v4504
  %4620 = vmatprep.subr.mxu0 0.0
  %4621 = vmatpush1.msra.mxu0 %v4503
  %4622 = vmatprep.subr.mxu0 0.0
  %4623 = vmatpush1.msra.mxu0 %v4502
  %4624 = vmatprep.subr.mxu0 0.0
  %4625 = vmatpush1.msra.mxu0 %v4501
  %4626 = vmatprep.subr.mxu0 0.0
  %4627 = vmatpush1.msra.mxu0 %v4500
  %4628 = vmatprep.subr.mxu0 0.0
  %4629 = vmatpush1.msra.mxu0 %v4499
  %4630 = vmatprep.subr.mxu0 0.0
  %4631 = vmatpush1.msra.mxu0 %v4498
  %4632 = vmatprep.subr.mxu0 0.0
  %4633 = vmatpush1.msra.mxu0 %v4497
  %4634 = vmatprep.subr.mxu0 0.0
  %4635 = vmatpush1.msra.mxu0 %v4496
  %4636 = vmatprep.subr.mxu0 0.0
  %4637 = vmatpush1.msra.mxu0 %v4495
  %4638 = vmatprep.subr.mxu0 0.0
  %4639 = vmatpush1.msra.mxu0 %v4494
  %4640 = vmatprep.subr.mxu0 0.0
  %4641 = vmatpush2.msra.mxu0 0.0
  %4642 = vmatprep.subr.mxu0 0.0
  %4643 = vmatpush2.msra.mxu0 %v4536
  %4644 = vmatprep.subr.mxu0 0.0
  %4645 = vmatpush2.msra.mxu0 %v4523
  %4646 = vmatprep.subr.mxu0 0.0
  %4647 = vmatpush2.msra.mxu0 %v4522
  %4648 = vmatprep.subr.mxu0 0.0
  %4649 = vmatpush2.msra.mxu0 %v4521
  %4650 = vmatprep.subr.mxu0 0.0
  %4651 = vmatpush2.msra.mxu0 %v4520
  %4652 = vmatprep.subr.mxu0 0.0
  %4653 = vmatpush2.msra.mxu0 %v4519
  %4654 = vmatprep.subr.mxu0 0.0
  %4655 = vmatpush2.msra.mxu0 %v4518
  %4656 = vmatprep.subr.mxu0 0.0
  %4657 = vmatpush2.msra.mxu0 %v4517
  %4658 = vmatprep.subr.mxu0 0.0
  %4659 = vmatpush2.msra.mxu0 %v4516
  %4660 = vmatprep.subr.mxu0 0.0
  %4661 = vmatpush2.msra.mxu0 %v4515
  %4662 = vmatprep.subr.mxu0 0.0
  %4663 = vmatpush2.msra.mxu0 %v4514
  %4664 = vmatprep.subr.mxu0 0.0
  %4665 = vmatpush2.msra.mxu0 %v4513
  %4666 = vmatprep.subr.mxu0 0.0
  %4667 = vmatpush2.msra.mxu0 %v4512
  %4668 = vmatprep.subr.mxu0 0.0
  %4669 = vmatpush2.msra.mxu0 %v4511
  %4670 = vmatprep.subr.mxu0 0.0
  %4671 = vmatpush2.msra.mxu0 %v4510
  %4672 = vmatprep.mubr.f32.mxu0 %v4533
  %4673 = vmatmul.mubr.f32.gmra.mxu0 %v4460
  %v4674 = vpop.f32.mrf.mxu0
  %v4675 = vadd.f32 %v4605, %v4674
  %v4676 = vpop.f32.mrf.mxu0
  %4677 = vdwg.mxu0
  %4678 = vmax.xlane.f32.xlu0 %v4675
  %v4679 = vpop.xlane.xlu0 %4678
  %v4680 = vsub.f32 %v4675, %v4679
  %v4681 = vmul.f32 %v4680, 1.442695
  %v4682 = vpow.pop %v4681
  %4683 = vadd.xlane.f32.xlu0 %v4682
  %v4684 = vpop.xlane.xlu0 %4683
  %v4685 = vlog2.pop %v4684
  %v4686 = vmul.f32 %v4685, 0.6931472
  %v4687 = vsub.f32 %v4680, %v4686
  %4688 = vst [vmem:[%s7] sm:$0xff] %v4687
  // Predicated region
  $region30: #{lenet_forward.3} parent=0 // pred_check
    _
  $region31: #{lenet_forward.3} parent=0 // pred_check_branch
    %4690 = sbr.rel (0) target = $region33
  $region32: #{lenet_forward.3} parent=0 // pred_region
    _
  $region33: #{lenet_forward.3} parent=0 // pred_fallthru
    _
  // Predicated region
  $region34: #{lenet_forward.3} parent=0 // pred_check
    _
  $region35: #{lenet_forward.3} parent=0 // pred_check_branch
    %4692 = sbr.rel (0) target = $region37
  $region36: #{lenet_forward.3} parent=0 // pred_region
    _
  $region37: #{lenet_forward.3} parent=0 // pred_fallthru
    _

</llo_original>
